<compile_context>
chip_gen: v6e
topology: v6e:2x2x1
jax: 0.10.0
libtpu: 0.0.40
codegen_flags: <defaults>
</compile_context>

<pallas_src>
import jax
import jax.numpy as jnp
from jax.experimental import pallas as pl
from jax.experimental.pallas import tpu as pltpu

BN_EPS = 1e-5


def _round_up(x, m):
    return ((x + m - 1) // m) * m


def _block_kernel(x_ref, w1_ref, w2_ref, g1_ref, b1_ref, g2_ref, b2_ref,
                  out_ref, xpad1_ref, lhs1_ref, xpad2_ref, lhs2_ref):
    """Fused (conv3x3 -> BN(batch stats) -> ReLU) x 2, fully VMEM-resident.

    x_ref   : (N, H, W, Cin)        bf16 NHWC input
    w1_ref  : (9*Cin,  Cpad)        bf16 stacked conv1 weights (taps along K)
    w2_ref  : (9*Cout, Cpad)        bf16 stacked conv2 weights
    g*/b*   : (1, 1, 1, Cpad)       f32 BN gamma/beta (zero-padded past Cout)
    out_ref : (N, H, W, Cpad)       f32 lane-dense output (Cpad % 128 == 0)
    xpad*_ref, lhs*_ref             f32 VMEM scratch (padded input / im2col)
    """
    N, H, W, Cin = x_ref.shape
    Cout = xpad2_ref.shape[-1]
    inv_n = 1.0 / float(N * H * W)

    # ----------------- stage 1: conv1 -> bn1 -> relu -----------------
    # Zero-pad the input inside the kernel (no jnp.pad HBM pass in the wrapper).
    xpad1_ref[...] = jnp.zeros_like(xpad1_ref)
    xpad1_ref[:, 1:H + 1, 1:W + 1, :] = x_ref[...].astype(jnp.float32)

    # im2col: stack the 9 taps along the contraction axis -> ONE MXU matmul.
    for kh in range(3):
        for kw in range(3):
            t = kh * 3 + kw
            lhs1_ref[:, :, :, t * Cin:(t + 1) * Cin] = \
                xpad1_ref[:, kh:kh + H, kw:kw + W, :]

    acc1 = jax.lax.dot_general(
        lhs1_ref[...].astype(jnp.bfloat16), w1_ref[...],
        dimension_numbers=(((3,), (0,)), ((), ())),
        preferred_element_type=jnp.float32)                # (N, H, W, Cpad) f32

    # One-pass BN stats; fold gamma into scale and beta into shift.
    s1 = jnp.sum(acc1, axis=(0, 1, 2), keepdims=True)
    q1 = jnp.sum(acc1 * acc1, axis=(0, 1, 2), keepdims=True)
    mean1 = s1 * inv_n
    var1 = q1 * inv_n - mean1 * mean1
    scale1 = g1_ref[...] * jax.lax.rsqrt(var1 + BN_EPS)
    shift1 = b1_ref[...] - mean1 * scale1
    y1 = jnp.maximum(acc1 * scale1 + shift1, 0.0)          # (N, H, W, Cpad) f32

    # ----------------- stage 2: conv2 -> bn2 -> relu -----------------
    # The intermediate never leaves VMEM; only its real Cout channels feed conv2.
    xpad2_ref[...] = jnp.zeros_like(xpad2_ref)
    xpad2_ref[:, 1:H + 1, 1:W + 1, :] = y1[:, :, :, :Cout]

    for kh in range(3):
        for kw in range(3):
            t = kh * 3 + kw
            lhs2_ref[:, :, :, t * Cout:(t + 1) * Cout] = \
                xpad2_ref[:, kh:kh + H, kw:kw + W, :]

    acc2 = jax.lax.dot_general(
        lhs2_ref[...].astype(jnp.bfloat16), w2_ref[...],
        dimension_numbers=(((3,), (0,)), ((), ())),
        preferred_element_type=jnp.float32)                # (N, H, W, Cpad) f32

    s2 = jnp.sum(acc2, axis=(0, 1, 2), keepdims=True)
    q2 = jnp.sum(acc2 * acc2, axis=(0, 1, 2), keepdims=True)
    mean2 = s2 * inv_n
    var2 = q2 * inv_n - mean2 * mean2
    scale2 = g2_ref[...] * jax.lax.rsqrt(var2 + BN_EPS)
    shift2 = b2_ref[...] - mean2 * scale2

    # Lane-dense (Cpad is a multiple of 128) unmasked store of the final result.
    out_ref[...] = jnp.maximum(acc2 * scale2 + shift2, 0.0)


def _stack_weight(w_hwio, cpad):
    """(3,3,Ci,Co) HWIO -> (9*Ci, cpad) bf16, taps stacked along K, Co zero-padded."""
    kh, kw, ci, co = w_hwio.shape
    w = w_hwio.astype(jnp.float32).reshape(kh * kw * ci, co)
    w = jnp.pad(w, ((0, 0), (0, cpad - co)))
    return w.astype(jnp.bfloat16)


def _pad_vec(v, cpad):
    """(C,) -> (1,1,1,cpad) f32, zero-padded (padded channels end up exactly 0)."""
    c = v.shape[0]
    return jnp.pad(v.astype(jnp.float32), (0, cpad - c)).reshape(1, 1, 1, cpad)


def _vmem_working_set_bytes(N, H, W, Cin, Cout, cpad):
    f32, bf16 = 4, 2
    io = (N * H * W * Cin * bf16
          + 9 * Cin * cpad * bf16 + 9 * Cout * cpad * bf16
          + 4 * cpad * f32
          + N * H * W * cpad * f32)
    scratch = f32 * (N * (H + 2) * (W + 2) * Cin + N * H * W * 9 * Cin
                     + N * (H + 2) * (W + 2) * Cout + N * H * W * 9 * Cout)
    return io + scratch


def block_forward(x_nchw, params):
    """Pallas equivalent of Block.forward. Input/output are NCHW like PyTorch."""
    N, Cin, H, W = x_nchw.shape
    Cout = params["w1"].shape[-1]
    cpad = _round_up(Cout, 128)          # lane-dense output block (128-lane axis)

    # Conservative single-call budget (leaves headroom vs v7x's 64 MiB VMEM).
    if _vmem_working_set_bytes(N, H, W, Cin, Cout, cpad) > 24 * 1024 * 1024:
        # TODO(synk): implement the gridded two-phase-BN tiling described at the
        # top of the file for working sets that do not fit in VMEM.
        raise NotImplementedError("Block working set exceeds single-call VMEM budget")

    # Layout glue kept in XLA: NCHW -> NHWC once at entry, bf16 feed halves HBM
    # traffic into the kernel.
    x = jnp.transpose(x_nchw, (0, 2, 3, 1)).astype(jnp.bfloat16)

    w1 = _stack_weight(params["w1"], cpad)     # (9*Cin,  cpad) bf16
    w2 = _stack_weight(params["w2"], cpad)     # (9*Cout, cpad) bf16
    g1 = _pad_vec(params["g1"], cpad)
    b1 = _pad_vec(params["b1"], cpad)
    g2 = _pad_vec(params["g2"], cpad)
    b2 = _pad_vec(params["b2"], cpad)

    out_padded = pl.pallas_call(
        _block_kernel,
        out_shape=jax.ShapeDtypeStruct((N, H, W, cpad), jnp.float32),
        in_specs=[pl.BlockSpec(memory_space=pltpu.MemorySpace.VMEM)] * 7,
        out_specs=pl.BlockSpec(memory_space=pltpu.MemorySpace.VMEM),
        scratch_shapes=[
            pltpu.VMEM((N, H + 2, W + 2, Cin), jnp.float32),    # padded input
            pltpu.VMEM((N, H, W, 9 * Cin), jnp.float32),        # im2col LHS, stage 1
            pltpu.VMEM((N, H + 2, W + 2, Cout), jnp.float32),   # padded intermediate
            pltpu.VMEM((N, H, W, 9 * Cout), jnp.float32),       # im2col LHS, stage 2
        ],
        compiler_params=pltpu.CompilerParams(
            vmem_limit_bytes=32 * 1024 * 1024),
    )(x, w1, w2, g1, b1, g2, b2)

    # Strip channel padding and return NCHW; XLA fuses slice + transpose.
    return jnp.transpose(out_padded[..., :Cout], (0, 3, 1, 2))


# --------------------- plain-JAX references for correctness ---------------------
def _ref_conv_bn_relu(x_nhwc, w_hwio, gamma, beta, quantize):
    def q(a):
        a = a.astype(jnp.float32)
        return a.astype(jnp.bfloat16).astype(jnp.float32) if quantize else a
    y = jax.lax.conv_general_dilated(
        q(x_nhwc), q(w_hwio), window_strides=(1, 1), padding=((1, 1), (1, 1)),
        dimension_numbers=("NHWC", "HWIO", "NHWC"),
        precision=jax.lax.Precision.HIGHEST)
    mean = jnp.mean(y, axis=(0, 1, 2), keepdims=True)
    var = jnp.mean((y - mean) ** 2, axis=(0, 1, 2), keepdims=True)
    y = (y - mean) * jax.lax.rsqrt(var + BN_EPS)
    y = y * gamma.reshape(1, 1, 1, -1) + beta.reshape(1, 1, 1, -1)
    return jnp.maximum(y, 0.0)


def _ref_block(x_nchw, params, quantize):
    x = jnp.transpose(x_nchw, (0, 2, 3, 1))
    y = _ref_conv_bn_relu(x, params["w1"], params["g1"], params["b1"], quantize)
    y = _ref_conv_bn_relu(y, params["w2"], params["g2"], params["b2"], quantize)
    return jnp.transpose(y, (0, 3, 1, 2))


if __name__ == "__main__":
    # Small shapes consistent with the module: batch=2, in_channels=4,
    # out_channels=8, spatial 16x16.
    N, Cin, Cout, H, W = 2, 4, 8, 16, 16

    key = jax.random.PRNGKey(0)
    k_x, k_w1, k_w2, k_g1, k_b1, k_g2, k_b2 = jax.random.split(key, 7)

    x = jax.random.normal(k_x, (N, Cin, H, W), dtype=jnp.float32)   # NCHW like PyTorch

    params = {
        # conv weights stored HWIO (== PyTorch (Cout,Cin,3,3) transposed (2,3,1,0))
        "w1": jax.random.normal(k_w1, (3, 3, Cin, Cout), dtype=jnp.float32) * 0.1,
        "w2": jax.random.normal(k_w2, (3, 3, Cout, Cout), dtype=jnp.float32) * 0.1,
        # nn.BatchNorm2d default init is gamma=1, beta=0; nontrivial values here
        # exercise the affine path deterministically.
        "g1": 1.0 + 0.1 * jax.random.normal(k_g1, (Cout,), dtype=jnp.float32),
        "b1": 0.1 * jax.random.normal(k_b1, (Cout,), dtype=jnp.float32),
        "g2": 1.0 + 0.1 * jax.random.normal(k_g2, (Cout,), dtype=jnp.float32),
        "b2": 0.1 * jax.random.normal(k_b2, (Cout,), dtype=jnp.float32),
    }

    out = jax.block_until_ready(block_forward(x, params))
    # Reference with the same bf16 MXU-operand quantization (f32 accumulation):
    ref_q = jax.block_until_ready(_ref_block(x, params, True))
    # Pure-f32 PyTorch-semantics reference (loose check: bf16 operand rounding only):
    ref_f = jax.block_until_ready(_ref_block(x, params, False))

    assert out.shape == (N, Cout, H, W), out.shape
    assert jnp.allclose(out, ref_q, atol=5e-3, rtol=5e-3), \
        float(jnp.max(jnp.abs(out - ref_q)))
    assert jnp.allclose(out, ref_f, atol=1.5e-1, rtol=1e-1), \
        float(jnp.max(jnp.abs(out - ref_f)))

    print("KERNEL_OK")
</pallas_src>

<mosaic_0001>
module attributes {stable_mosaic.version = 11 : i64} {
  func.func @_block_kernel(%arg0: memref<2x16x16x4xbf16, #tpu.memory_space<vmem>>, %arg1: memref<36x128xbf16, #tpu.memory_space<vmem>>, %arg2: memref<72x128xbf16, #tpu.memory_space<vmem>>, %arg3: memref<1x1x1x128xf32, #tpu.memory_space<vmem>>, %arg4: memref<1x1x1x128xf32, #tpu.memory_space<vmem>>, %arg5: memref<1x1x1x128xf32, #tpu.memory_space<vmem>>, %arg6: memref<1x1x1x128xf32, #tpu.memory_space<vmem>>, %arg7: memref<2x16x16x128xf32, #tpu.memory_space<vmem>>, %arg8: memref<2x18x18x4xf32, #tpu.memory_space<vmem>>, %arg9: memref<2x16x16x36xf32, #tpu.memory_space<vmem>>, %arg10: memref<2x18x18x8xf32, #tpu.memory_space<vmem>>, %arg11: memref<2x16x16x72xf32, #tpu.memory_space<vmem>>) attributes {dimension_semantics = [], scalar_prefetch = 0 : i64, scratch_operands = 4 : i64, tpu.core_type = #tpu.core_type<tc>} {
    %cst = arith.constant 0.000000e+00 : f32
    %0 = vector.broadcast %cst : f32 to vector<2x18x18x4xf32>
    %c0 = arith.constant 0 : index
    %c0_0 = arith.constant 0 : index
    %c0_1 = arith.constant 0 : index
    %c0_2 = arith.constant 0 : index
    %1 = vector.load %arg8[%c0, %c0_0, %c0_1, %c0_2] : memref<2x18x18x4xf32, #tpu.memory_space<vmem>>, vector<2x18x18x4xf32>
    tpu.vector_store %arg8[%c0, %c0_0, %c0_1, %c0_2], %0 {strides = array<i32>} : memref<2x18x18x4xf32, #tpu.memory_space<vmem>>, vector<2x18x18x4xf32>,
    %c0_3 = arith.constant 0 : index
    %c0_4 = arith.constant 0 : index
    %c0_5 = arith.constant 0 : index
    %c0_6 = arith.constant 0 : index
    %2 = vector.load %arg0[%c0_3, %c0_4, %c0_5, %c0_6] : memref<2x16x16x4xbf16, #tpu.memory_space<vmem>>, vector<2x16x16x4xbf16>
    %3 = arith.extf %2 : vector<2x16x16x4xbf16> to vector<2x16x16x4xf32>
    %c0_7 = arith.constant 0 : index
    %c1 = arith.constant 1 : index
    %c1_8 = arith.constant 1 : index
    %c0_9 = arith.constant 0 : index
    %4 = vector.load %arg8[%c0_7, %c1, %c1_8, %c0_9] : memref<2x18x18x4xf32, #tpu.memory_space<vmem>>, vector<2x16x16x4xf32>
    tpu.vector_store %arg8[%c0_7, %c1, %c1_8, %c0_9], %3 {strides = array<i32>} : memref<2x18x18x4xf32, #tpu.memory_space<vmem>>, vector<2x16x16x4xf32>,
    %c0_10 = arith.constant 0 : index
    %c0_11 = arith.constant 0 : index
    %c0_12 = arith.constant 0 : index
    %c0_13 = arith.constant 0 : index
    %5 = vector.load %arg8[%c0_10, %c0_11, %c0_12, %c0_13] : memref<2x18x18x4xf32, #tpu.memory_space<vmem>>, vector<2x16x16x4xf32>
    %c0_14 = arith.constant 0 : index
    %c0_15 = arith.constant 0 : index
    %c0_16 = arith.constant 0 : index
    %c0_17 = arith.constant 0 : index
    %6 = vector.load %arg9[%c0_14, %c0_15, %c0_16, %c0_17] : memref<2x16x16x36xf32, #tpu.memory_space<vmem>>, vector<2x16x16x4xf32>
    tpu.vector_store %arg9[%c0_14, %c0_15, %c0_16, %c0_17], %5 {strides = array<i32>} : memref<2x16x16x36xf32, #tpu.memory_space<vmem>>, vector<2x16x16x4xf32>,
    %c0_18 = arith.constant 0 : index
    %c0_19 = arith.constant 0 : index
    %c1_20 = arith.constant 1 : index
    %c0_21 = arith.constant 0 : index
    %7 = vector.load %arg8[%c0_18, %c0_19, %c1_20, %c0_21] : memref<2x18x18x4xf32, #tpu.memory_space<vmem>>, vector<2x16x16x4xf32>
    %c0_22 = arith.constant 0 : index
    %c0_23 = arith.constant 0 : index
    %c0_24 = arith.constant 0 : index
    %c4 = arith.constant 4 : index
    %8 = vector.load %arg9[%c0_22, %c0_23, %c0_24, %c4] : memref<2x16x16x36xf32, #tpu.memory_space<vmem>>, vector<2x16x16x4xf32>
    tpu.vector_store %arg9[%c0_22, %c0_23, %c0_24, %c4], %7 {strides = array<i32>} : memref<2x16x16x36xf32, #tpu.memory_space<vmem>>, vector<2x16x16x4xf32>,
    %c0_25 = arith.constant 0 : index
    %c0_26 = arith.constant 0 : index
    %c2 = arith.constant 2 : index
    %c0_27 = arith.constant 0 : index
    %9 = vector.load %arg8[%c0_25, %c0_26, %c2, %c0_27] : memref<2x18x18x4xf32, #tpu.memory_space<vmem>>, vector<2x16x16x4xf32>
    %c0_28 = arith.constant 0 : index
    %c0_29 = arith.constant 0 : index
    %c0_30 = arith.constant 0 : index
    %c8 = arith.constant 8 : index
    %10 = vector.load %arg9[%c0_28, %c0_29, %c0_30, %c8] : memref<2x16x16x36xf32, #tpu.memory_space<vmem>>, vector<2x16x16x4xf32>
    tpu.vector_store %arg9[%c0_28, %c0_29, %c0_30, %c8], %9 {strides = array<i32>} : memref<2x16x16x36xf32, #tpu.memory_space<vmem>>, vector<2x16x16x4xf32>,
    %c0_31 = arith.constant 0 : index
    %c1_32 = arith.constant 1 : index
    %c0_33 = arith.constant 0 : index
    %c0_34 = arith.constant 0 : index
    %11 = vector.load %arg8[%c0_31, %c1_32, %c0_33, %c0_34] : memref<2x18x18x4xf32, #tpu.memory_space<vmem>>, vector<2x16x16x4xf32>
    %c0_35 = arith.constant 0 : index
    %c0_36 = arith.constant 0 : index
    %c0_37 = arith.constant 0 : index
    %c12 = arith.constant 12 : index
    %12 = vector.load %arg9[%c0_35, %c0_36, %c0_37, %c12] : memref<2x16x16x36xf32, #tpu.memory_space<vmem>>, vector<2x16x16x4xf32>
    tpu.vector_store %arg9[%c0_35, %c0_36, %c0_37, %c12], %11 {strides = array<i32>} : memref<2x16x16x36xf32, #tpu.memory_space<vmem>>, vector<2x16x16x4xf32>,
    %c0_38 = arith.constant 0 : index
    %c1_39 = arith.constant 1 : index
    %c1_40 = arith.constant 1 : index
    %c0_41 = arith.constant 0 : index
    %13 = vector.load %arg8[%c0_38, %c1_39, %c1_40, %c0_41] : memref<2x18x18x4xf32, #tpu.memory_space<vmem>>, vector<2x16x16x4xf32>
    %c0_42 = arith.constant 0 : index
    %c0_43 = arith.constant 0 : index
    %c0_44 = arith.constant 0 : index
    %c16 = arith.constant 16 : index
    %14 = vector.load %arg9[%c0_42, %c0_43, %c0_44, %c16] : memref<2x16x16x36xf32, #tpu.memory_space<vmem>>, vector<2x16x16x4xf32>
    tpu.vector_store %arg9[%c0_42, %c0_43, %c0_44, %c16], %13 {strides = array<i32>} : memref<2x16x16x36xf32, #tpu.memory_space<vmem>>, vector<2x16x16x4xf32>,
    %c0_45 = arith.constant 0 : index
    %c1_46 = arith.constant 1 : index
    %c2_47 = arith.constant 2 : index
    %c0_48 = arith.constant 0 : index
    %15 = vector.load %arg8[%c0_45, %c1_46, %c2_47, %c0_48] : memref<2x18x18x4xf32, #tpu.memory_space<vmem>>, vector<2x16x16x4xf32>
    %c0_49 = arith.constant 0 : index
    %c0_50 = arith.constant 0 : index
    %c0_51 = arith.constant 0 : index
    %c20 = arith.constant 20 : index
    %16 = vector.load %arg9[%c0_49, %c0_50, %c0_51, %c20] : memref<2x16x16x36xf32, #tpu.memory_space<vmem>>, vector<2x16x16x4xf32>
    tpu.vector_store %arg9[%c0_49, %c0_50, %c0_51, %c20], %15 {strides = array<i32>} : memref<2x16x16x36xf32, #tpu.memory_space<vmem>>, vector<2x16x16x4xf32>,
    %c0_52 = arith.constant 0 : index
    %c2_53 = arith.constant 2 : index
    %c0_54 = arith.constant 0 : index
    %c0_55 = arith.constant 0 : index
    %17 = vector.load %arg8[%c0_52, %c2_53, %c0_54, %c0_55] : memref<2x18x18x4xf32, #tpu.memory_space<vmem>>, vector<2x16x16x4xf32>
    %c0_56 = arith.constant 0 : index
    %c0_57 = arith.constant 0 : index
    %c0_58 = arith.constant 0 : index
    %c24 = arith.constant 24 : index
    %18 = vector.load %arg9[%c0_56, %c0_57, %c0_58, %c24] : memref<2x16x16x36xf32, #tpu.memory_space<vmem>>, vector<2x16x16x4xf32>
    tpu.vector_store %arg9[%c0_56, %c0_57, %c0_58, %c24], %17 {strides = array<i32>} : memref<2x16x16x36xf32, #tpu.memory_space<vmem>>, vector<2x16x16x4xf32>,
    %c0_59 = arith.constant 0 : index
    %c2_60 = arith.constant 2 : index
    %c1_61 = arith.constant 1 : index
    %c0_62 = arith.constant 0 : index
    %19 = vector.load %arg8[%c0_59, %c2_60, %c1_61, %c0_62] : memref<2x18x18x4xf32, #tpu.memory_space<vmem>>, vector<2x16x16x4xf32>
    %c0_63 = arith.constant 0 : index
    %c0_64 = arith.constant 0 : index
    %c0_65 = arith.constant 0 : index
    %c28 = arith.constant 28 : index
    %20 = vector.load %arg9[%c0_63, %c0_64, %c0_65, %c28] : memref<2x16x16x36xf32, #tpu.memory_space<vmem>>, vector<2x16x16x4xf32>
    tpu.vector_store %arg9[%c0_63, %c0_64, %c0_65, %c28], %19 {strides = array<i32>} : memref<2x16x16x36xf32, #tpu.memory_space<vmem>>, vector<2x16x16x4xf32>,
    %c0_66 = arith.constant 0 : index
    %c2_67 = arith.constant 2 : index
    %c2_68 = arith.constant 2 : index
    %c0_69 = arith.constant 0 : index
    %21 = vector.load %arg8[%c0_66, %c2_67, %c2_68, %c0_69] : memref<2x18x18x4xf32, #tpu.memory_space<vmem>>, vector<2x16x16x4xf32>
    %c0_70 = arith.constant 0 : index
    %c0_71 = arith.constant 0 : index
    %c0_72 = arith.constant 0 : index
    %c32 = arith.constant 32 : index
    %22 = vector.load %arg9[%c0_70, %c0_71, %c0_72, %c32] : memref<2x16x16x36xf32, #tpu.memory_space<vmem>>, vector<2x16x16x4xf32>
    tpu.vector_store %arg9[%c0_70, %c0_71, %c0_72, %c32], %21 {strides = array<i32>} : memref<2x16x16x36xf32, #tpu.memory_space<vmem>>, vector<2x16x16x4xf32>,
    %c0_73 = arith.constant 0 : index
    %c0_74 = arith.constant 0 : index
    %c0_75 = arith.constant 0 : index
    %c0_76 = arith.constant 0 : index
    %23 = vector.load %arg9[%c0_73, %c0_74, %c0_75, %c0_76] : memref<2x16x16x36xf32, #tpu.memory_space<vmem>>, vector<2x16x16x36xf32>
    %24 = arith.truncf %23 : vector<2x16x16x36xf32> to vector<2x16x16x36xbf16>
    %c0_77 = arith.constant 0 : index
    %c0_78 = arith.constant 0 : index
    %25 = vector.load %arg1[%c0_77, %c0_78] : memref<36x128xbf16, #tpu.memory_space<vmem>>, vector<36x128xbf16>
    %cst_79 = arith.constant dense<0.000000e+00> : vector<2x16x16x128xf32>
    %26 = tpu.matmul %24, %25, %cst_79 {dimension_numbers = #tpu.dot_dimension_numbers<[3], [0], [0, 1, 2], [1], [0, 0, 0, 1, 0, 2, 1, 1], [], []>} : vector<2x16x16x36xbf16>, vector<36x128xbf16>, vector<2x16x16x128xf32> -> vector<2x16x16x128xf32>
    %cst_80 = arith.constant dense<0.000000e+00> : vector<128xf32>
    %27 = vector.multi_reduction <add>, %26, %cst_80 [0, 1, 2] : vector<2x16x16x128xf32> to vector<128xf32>
    %28 = vector.shape_cast %27 : vector<128xf32> to vector<1x1x1x128xf32>
    %29 = arith.mulf %26, %26 : vector<2x16x16x128xf32>
    %cst_81 = arith.constant dense<0.000000e+00> : vector<128xf32>
    %30 = vector.multi_reduction <add>, %29, %cst_81 [0, 1, 2] : vector<2x16x16x128xf32> to vector<128xf32>
    %31 = vector.shape_cast %30 : vector<128xf32> to vector<1x1x1x128xf32>
    %cst_82 = arith.constant 0.001953125 : f32
    %32 = vector.broadcast %cst_82 : f32 to vector<1x1x1x128xf32>
    %33 = arith.mulf %28, %32 : vector<1x1x1x128xf32>
    %cst_83 = arith.constant 0.001953125 : f32
    %34 = vector.broadcast %cst_83 : f32 to vector<1x1x1x128xf32>
    %35 = arith.mulf %31, %34 : vector<1x1x1x128xf32>
    %36 = arith.mulf %33, %33 : vector<1x1x1x128xf32>
    %37 = arith.subf %35, %36 : vector<1x1x1x128xf32>
    %c0_84 = arith.constant 0 : index
    %c0_85 = arith.constant 0 : index
    %c0_86 = arith.constant 0 : index
    %c0_87 = arith.constant 0 : index
    %38 = vector.load %arg3[%c0_84, %c0_85, %c0_86, %c0_87] : memref<1x1x1x128xf32, #tpu.memory_space<vmem>>, vector<1x1x1x128xf32>
    %cst_88 = arith.constant 9.99999974E-6 : f32
    %39 = vector.broadcast %cst_88 : f32 to vector<1x1x1x128xf32>
    %40 = arith.addf %37, %39 : vector<1x1x1x128xf32>
    %41 = math.rsqrt %40 : vector<1x1x1x128xf32>
    %42 = arith.mulf %38, %41 : vector<1x1x1x128xf32>
    %c0_89 = arith.constant 0 : index
    %c0_90 = arith.constant 0 : index
    %c0_91 = arith.constant 0 : index
    %c0_92 = arith.constant 0 : index
    %43 = vector.load %arg4[%c0_89, %c0_90, %c0_91, %c0_92] : memref<1x1x1x128xf32, #tpu.memory_space<vmem>>, vector<1x1x1x128xf32>
    %44 = arith.mulf %33, %42 : vector<1x1x1x128xf32>
    %45 = arith.subf %43, %44 : vector<1x1x1x128xf32>
    %46 = vector.broadcast %42 : vector<1x1x1x128xf32> to vector<2x16x16x128xf32>
    %47 = arith.mulf %26, %46 : vector<2x16x16x128xf32>
    %48 = vector.broadcast %45 : vector<1x1x1x128xf32> to vector<2x16x16x128xf32>
    %49 = arith.addf %47, %48 : vector<2x16x16x128xf32>
    %cst_93 = arith.constant 0.000000e+00 : f32
    %50 = vector.broadcast %cst_93 : f32 to vector<2x16x16x128xf32>
    %51 = arith.maximumf %49, %50 : vector<2x16x16x128xf32>
    %cst_94 = arith.constant 0.000000e+00 : f32
    %52 = vector.broadcast %cst_94 : f32 to vector<2x18x18x8xf32>
    %c0_95 = arith.constant 0 : index
    %c0_96 = arith.constant 0 : index
    %c0_97 = arith.constant 0 : index
    %c0_98 = arith.constant 0 : index
    %53 = vector.load %arg10[%c0_95, %c0_96, %c0_97, %c0_98] : memref<2x18x18x8xf32, #tpu.memory_space<vmem>>, vector<2x18x18x8xf32>
    tpu.vector_store %arg10[%c0_95, %c0_96, %c0_97, %c0_98], %52 {strides = array<i32>} : memref<2x18x18x8xf32, #tpu.memory_space<vmem>>, vector<2x18x18x8xf32>,
    %54 = vector.extract_strided_slice %51 {offsets = [0, 0, 0, 0], sizes = [2, 16, 16, 8], strides = [1, 1, 1, 1]} : vector<2x16x16x128xf32> to vector<2x16x16x8xf32>
    %c0_99 = arith.constant 0 : index
    %c1_100 = arith.constant 1 : index
    %c1_101 = arith.constant 1 : index
    %c0_102 = arith.constant 0 : index
    %55 = vector.load %arg10[%c0_99, %c1_100, %c1_101, %c0_102] : memref<2x18x18x8xf32, #tpu.memory_space<vmem>>, vector<2x16x16x8xf32>
    tpu.vector_store %arg10[%c0_99, %c1_100, %c1_101, %c0_102], %54 {strides = array<i32>} : memref<2x18x18x8xf32, #tpu.memory_space<vmem>>, vector<2x16x16x8xf32>,
    %c0_103 = arith.constant 0 : index
    %c0_104 = arith.constant 0 : index
    %c0_105 = arith.constant 0 : index
    %c0_106 = arith.constant 0 : index
    %56 = vector.load %arg10[%c0_103, %c0_104, %c0_105, %c0_106] : memref<2x18x18x8xf32, #tpu.memory_space<vmem>>, vector<2x16x16x8xf32>
    %c0_107 = arith.constant 0 : index
    %c0_108 = arith.constant 0 : index
    %c0_109 = arith.constant 0 : index
    %c0_110 = arith.constant 0 : index
    %57 = vector.load %arg11[%c0_107, %c0_108, %c0_109, %c0_110] : memref<2x16x16x72xf32, #tpu.memory_space<vmem>>, vector<2x16x16x8xf32>
    tpu.vector_store %arg11[%c0_107, %c0_108, %c0_109, %c0_110], %56 {strides = array<i32>} : memref<2x16x16x72xf32, #tpu.memory_space<vmem>>, vector<2x16x16x8xf32>,
    %c0_111 = arith.constant 0 : index
    %c0_112 = arith.constant 0 : index
    %c1_113 = arith.constant 1 : index
    %c0_114 = arith.constant 0 : index
    %58 = vector.load %arg10[%c0_111, %c0_112, %c1_113, %c0_114] : memref<2x18x18x8xf32, #tpu.memory_space<vmem>>, vector<2x16x16x8xf32>
    %c0_115 = arith.constant 0 : index
    %c0_116 = arith.constant 0 : index
    %c0_117 = arith.constant 0 : index
    %c8_118 = arith.constant 8 : index
    %59 = vector.load %arg11[%c0_115, %c0_116, %c0_117, %c8_118] : memref<2x16x16x72xf32, #tpu.memory_space<vmem>>, vector<2x16x16x8xf32>
    tpu.vector_store %arg11[%c0_115, %c0_116, %c0_117, %c8_118], %58 {strides = array<i32>} : memref<2x16x16x72xf32, #tpu.memory_space<vmem>>, vector<2x16x16x8xf32>,
    %c0_119 = arith.constant 0 : index
    %c0_120 = arith.constant 0 : index
    %c2_121 = arith.constant 2 : index
    %c0_122 = arith.constant 0 : index
    %60 = vector.load %arg10[%c0_119, %c0_120, %c2_121, %c0_122] : memref<2x18x18x8xf32, #tpu.memory_space<vmem>>, vector<2x16x16x8xf32>
    %c0_123 = arith.constant 0 : index
    %c0_124 = arith.constant 0 : index
    %c0_125 = arith.constant 0 : index
    %c16_126 = arith.constant 16 : index
    %61 = vector.load %arg11[%c0_123, %c0_124, %c0_125, %c16_126] : memref<2x16x16x72xf32, #tpu.memory_space<vmem>>, vector<2x16x16x8xf32>
    tpu.vector_store %arg11[%c0_123, %c0_124, %c0_125, %c16_126], %60 {strides = array<i32>} : memref<2x16x16x72xf32, #tpu.memory_space<vmem>>, vector<2x16x16x8xf32>,
    %c0_127 = arith.constant 0 : index
    %c1_128 = arith.constant 1 : index
    %c0_129 = arith.constant 0 : index
    %c0_130 = arith.constant 0 : index
    %62 = vector.load %arg10[%c0_127, %c1_128, %c0_129, %c0_130] : memref<2x18x18x8xf32, #tpu.memory_space<vmem>>, vector<2x16x16x8xf32>
    %c0_131 = arith.constant 0 : index
    %c0_132 = arith.constant 0 : index
    %c0_133 = arith.constant 0 : index
    %c24_134 = arith.constant 24 : index
    %63 = vector.load %arg11[%c0_131, %c0_132, %c0_133, %c24_134] : memref<2x16x16x72xf32, #tpu.memory_space<vmem>>, vector<2x16x16x8xf32>
    tpu.vector_store %arg11[%c0_131, %c0_132, %c0_133, %c24_134], %62 {strides = array<i32>} : memref<2x16x16x72xf32, #tpu.memory_space<vmem>>, vector<2x16x16x8xf32>,
    %c0_135 = arith.constant 0 : index
    %c1_136 = arith.constant 1 : index
    %c1_137 = arith.constant 1 : index
    %c0_138 = arith.constant 0 : index
    %64 = vector.load %arg10[%c0_135, %c1_136, %c1_137, %c0_138] : memref<2x18x18x8xf32, #tpu.memory_space<vmem>>, vector<2x16x16x8xf32>
    %c0_139 = arith.constant 0 : index
    %c0_140 = arith.constant 0 : index
    %c0_141 = arith.constant 0 : index
    %c32_142 = arith.constant 32 : index
    %65 = vector.load %arg11[%c0_139, %c0_140, %c0_141, %c32_142] : memref<2x16x16x72xf32, #tpu.memory_space<vmem>>, vector<2x16x16x8xf32>
    tpu.vector_store %arg11[%c0_139, %c0_140, %c0_141, %c32_142], %64 {strides = array<i32>} : memref<2x16x16x72xf32, #tpu.memory_space<vmem>>, vector<2x16x16x8xf32>,
    %c0_143 = arith.constant 0 : index
    %c1_144 = arith.constant 1 : index
    %c2_145 = arith.constant 2 : index
    %c0_146 = arith.constant 0 : index
    %66 = vector.load %arg10[%c0_143, %c1_144, %c2_145, %c0_146] : memref<2x18x18x8xf32, #tpu.memory_space<vmem>>, vector<2x16x16x8xf32>
    %c0_147 = arith.constant 0 : index
    %c0_148 = arith.constant 0 : index
    %c0_149 = arith.constant 0 : index
    %c40 = arith.constant 40 : index
    %67 = vector.load %arg11[%c0_147, %c0_148, %c0_149, %c40] : memref<2x16x16x72xf32, #tpu.memory_space<vmem>>, vector<2x16x16x8xf32>
    tpu.vector_store %arg11[%c0_147, %c0_148, %c0_149, %c40], %66 {strides = array<i32>} : memref<2x16x16x72xf32, #tpu.memory_space<vmem>>, vector<2x16x16x8xf32>,
    %c0_150 = arith.constant 0 : index
    %c2_151 = arith.constant 2 : index
    %c0_152 = arith.constant 0 : index
    %c0_153 = arith.constant 0 : index
    %68 = vector.load %arg10[%c0_150, %c2_151, %c0_152, %c0_153] : memref<2x18x18x8xf32, #tpu.memory_space<vmem>>, vector<2x16x16x8xf32>
    %c0_154 = arith.constant 0 : index
    %c0_155 = arith.constant 0 : index
    %c0_156 = arith.constant 0 : index
    %c48 = arith.constant 48 : index
    %69 = vector.load %arg11[%c0_154, %c0_155, %c0_156, %c48] : memref<2x16x16x72xf32, #tpu.memory_space<vmem>>, vector<2x16x16x8xf32>
    tpu.vector_store %arg11[%c0_154, %c0_155, %c0_156, %c48], %68 {strides = array<i32>} : memref<2x16x16x72xf32, #tpu.memory_space<vmem>>, vector<2x16x16x8xf32>,
    %c0_157 = arith.constant 0 : index
    %c2_158 = arith.constant 2 : index
    %c1_159 = arith.constant 1 : index
    %c0_160 = arith.constant 0 : index
    %70 = vector.load %arg10[%c0_157, %c2_158, %c1_159, %c0_160] : memref<2x18x18x8xf32, #tpu.memory_space<vmem>>, vector<2x16x16x8xf32>
    %c0_161 = arith.constant 0 : index
    %c0_162 = arith.constant 0 : index
    %c0_163 = arith.constant 0 : index
    %c56 = arith.constant 56 : index
    %71 = vector.load %arg11[%c0_161, %c0_162, %c0_163, %c56] : memref<2x16x16x72xf32, #tpu.memory_space<vmem>>, vector<2x16x16x8xf32>
    tpu.vector_store %arg11[%c0_161, %c0_162, %c0_163, %c56], %70 {strides = array<i32>} : memref<2x16x16x72xf32, #tpu.memory_space<vmem>>, vector<2x16x16x8xf32>,
    %c0_164 = arith.constant 0 : index
    %c2_165 = arith.constant 2 : index
    %c2_166 = arith.constant 2 : index
    %c0_167 = arith.constant 0 : index
    %72 = vector.load %arg10[%c0_164, %c2_165, %c2_166, %c0_167] : memref<2x18x18x8xf32, #tpu.memory_space<vmem>>, vector<2x16x16x8xf32>
    %c0_168 = arith.constant 0 : index
    %c0_169 = arith.constant 0 : index
    %c0_170 = arith.constant 0 : index
    %c64 = arith.constant 64 : index
    %73 = vector.load %arg11[%c0_168, %c0_169, %c0_170, %c64] : memref<2x16x16x72xf32, #tpu.memory_space<vmem>>, vector<2x16x16x8xf32>
    tpu.vector_store %arg11[%c0_168, %c0_169, %c0_170, %c64], %72 {strides = array<i32>} : memref<2x16x16x72xf32, #tpu.memory_space<vmem>>, vector<2x16x16x8xf32>,
    %c0_171 = arith.constant 0 : index
    %c0_172 = arith.constant 0 : index
    %c0_173 = arith.constant 0 : index
    %c0_174 = arith.constant 0 : index
    %74 = vector.load %arg11[%c0_171, %c0_172, %c0_173, %c0_174] : memref<2x16x16x72xf32, #tpu.memory_space<vmem>>, vector<2x16x16x72xf32>
    %75 = arith.truncf %74 : vector<2x16x16x72xf32> to vector<2x16x16x72xbf16>
    %c0_175 = arith.constant 0 : index
    %c0_176 = arith.constant 0 : index
    %76 = vector.load %arg2[%c0_175, %c0_176] : memref<72x128xbf16, #tpu.memory_space<vmem>>, vector<72x128xbf16>
    %cst_177 = arith.constant dense<0.000000e+00> : vector<2x16x16x128xf32>
    %77 = tpu.matmul %75, %76, %cst_177 {dimension_numbers = #tpu.dot_dimension_numbers<[3], [0], [0, 1, 2], [1], [0, 0, 0, 1, 0, 2, 1, 1], [], []>} : vector<2x16x16x72xbf16>, vector<72x128xbf16>, vector<2x16x16x128xf32> -> vector<2x16x16x128xf32>
    %cst_178 = arith.constant dense<0.000000e+00> : vector<128xf32>
    %78 = vector.multi_reduction <add>, %77, %cst_178 [0, 1, 2] : vector<2x16x16x128xf32> to vector<128xf32>
    %79 = vector.shape_cast %78 : vector<128xf32> to vector<1x1x1x128xf32>
    %80 = arith.mulf %77, %77 : vector<2x16x16x128xf32>
    %cst_179 = arith.constant dense<0.000000e+00> : vector<128xf32>
    %81 = vector.multi_reduction <add>, %80, %cst_179 [0, 1, 2] : vector<2x16x16x128xf32> to vector<128xf32>
    %82 = vector.shape_cast %81 : vector<128xf32> to vector<1x1x1x128xf32>
    %cst_180 = arith.constant 0.001953125 : f32
    %83 = vector.broadcast %cst_180 : f32 to vector<1x1x1x128xf32>
    %84 = arith.mulf %79, %83 : vector<1x1x1x128xf32>
    %cst_181 = arith.constant 0.001953125 : f32
    %85 = vector.broadcast %cst_181 : f32 to vector<1x1x1x128xf32>
    %86 = arith.mulf %82, %85 : vector<1x1x1x128xf32>
    %87 = arith.mulf %84, %84 : vector<1x1x1x128xf32>
    %88 = arith.subf %86, %87 : vector<1x1x1x128xf32>
    %c0_182 = arith.constant 0 : index
    %c0_183 = arith.constant 0 : index
    %c0_184 = arith.constant 0 : index
    %c0_185 = arith.constant 0 : index
    %89 = vector.load %arg5[%c0_182, %c0_183, %c0_184, %c0_185] : memref<1x1x1x128xf32, #tpu.memory_space<vmem>>, vector<1x1x1x128xf32>
    %cst_186 = arith.constant 9.99999974E-6 : f32
    %90 = vector.broadcast %cst_186 : f32 to vector<1x1x1x128xf32>
    %91 = arith.addf %88, %90 : vector<1x1x1x128xf32>
    %92 = math.rsqrt %91 : vector<1x1x1x128xf32>
    %93 = arith.mulf %89, %92 : vector<1x1x1x128xf32>
    %c0_187 = arith.constant 0 : index
    %c0_188 = arith.constant 0 : index
    %c0_189 = arith.constant 0 : index
    %c0_190 = arith.constant 0 : index
    %94 = vector.load %arg6[%c0_187, %c0_188, %c0_189, %c0_190] : memref<1x1x1x128xf32, #tpu.memory_space<vmem>>, vector<1x1x1x128xf32>
    %95 = arith.mulf %84, %93 : vector<1x1x1x128xf32>
    %96 = arith.subf %94, %95 : vector<1x1x1x128xf32>
    %97 = vector.broadcast %93 : vector<1x1x1x128xf32> to vector<2x16x16x128xf32>
    %98 = arith.mulf %77, %97 : vector<2x16x16x128xf32>
    %99 = vector.broadcast %96 : vector<1x1x1x128xf32> to vector<2x16x16x128xf32>
    %100 = arith.addf %98, %99 : vector<2x16x16x128xf32>
    %cst_191 = arith.constant 0.000000e+00 : f32
    %101 = vector.broadcast %cst_191 : f32 to vector<2x16x16x128xf32>
    %102 = arith.maximumf %100, %101 : vector<2x16x16x128xf32>
    %c0_192 = arith.constant 0 : index
    %c0_193 = arith.constant 0 : index
    %c0_194 = arith.constant 0 : index
    %c0_195 = arith.constant 0 : index
    %103 = vector.load %arg7[%c0_192, %c0_193, %c0_194, %c0_195] : memref<2x16x16x128xf32, #tpu.memory_space<vmem>>, vector<2x16x16x128xf32>
    tpu.vector_store %arg7[%c0_192, %c0_193, %c0_194, %c0_195], %102 {strides = array<i32>} : memref<2x16x16x128xf32, #tpu.memory_space<vmem>>, vector<2x16x16x128xf32>,
    return
  }
}

</mosaic_0001>

<llo_original>
// kernel: tpu_custom_call.1
$region0: #{tpu_custom_call.1}
  #allocation0 [shape = 'u32[]', space=smem, size = 0x4, offset = 0x4, fixed_abs, tag = 'smem constant byte address 0x4 - core index']
  #allocation1 [shape = 'u32[144,128]{1,0:T(1,128)}', space=vmem, size = 0x12000, scoped, tag = 'internal scratch']
  #allocation2 [shape = 'f32[2,18,18,4]{3,2,1,0:T(8,128)}', space=vmem, size = 0x6c000, scoped, tag = 'scratch operand']
  #allocation3 [shape = 'f32[2,16,16,36]{3,2,1,0:T(8,128)}', space=vmem, size = 0x40000, scoped, tag = 'scratch operand']
  #allocation4 [shape = 'f32[2,18,18,8]{3,2,1,0:T(8,128)}', space=vmem, size = 0x6c000, scoped, tag = 'scratch operand']
  #allocation5 [shape = 'f32[2,16,16,72]{3,2,1,0:T(8,128)}', space=vmem, size = 0x40000, scoped, tag = 'scratch operand']
  %s0 = inlined_call_operand.vmem [shape: bf16[2,16,16,4], index: 0, kind: input, shape index: {}]
  %s1 = inlined_call_operand.vmem [shape: bf16[36,128], index: 1, kind: input, shape index: {}]
  %s2 = inlined_call_operand.vmem [shape: bf16[72,128], index: 2, kind: input, shape index: {}]
  %s3 = inlined_call_operand.vmem [shape: f32[1,1,1,128], index: 3, kind: input, shape index: {}]
  %s4 = inlined_call_operand.vmem [shape: f32[1,1,1,128], index: 4, kind: input, shape index: {}]
  %s5 = inlined_call_operand.vmem [shape: f32[1,1,1,128], index: 5, kind: input, shape index: {}]
  %s6 = inlined_call_operand.vmem [shape: f32[1,1,1,128], index: 6, kind: input, shape index: {}]
  %s7 = inlined_call_operand.hbm [shape: f32[2,16,16,128], index: 7, kind: output, shape index: {}]
  %s8 = sld [smem:[#allocation0]]
  $region38: #{tpu_custom_call.1} parent=0
    _
  %s10 = ssub.s32 1, %s8
  %s11 = scalar_select 0, %s10, %s8
  $region1: #{tpu_custom_call.1} parent=0
    #allocation6 [shape = 'u8[262144]{0}', space=vmem, size = 0x40000, scoped, tag = 'output window, operand 0, single buffered']
    #allocation7 [shape = 's32[1]{0}', space=sflag, size = 0x4, scoped, tag = 'scoped memory for tpu_custom_call.1']
    %12 = vsyncpa [#allocation7], 0
    // Predicated region
    $region2: #{tpu_custom_call.1} parent=1 // pred_check
      _
    $region3: #{tpu_custom_call.1} parent=1 // pred_check_branch
      %14 = sbr.rel (0) target = $region5
    $region4: #{tpu_custom_call.1} parent=1 // pred_region
      _
    $region5: #{tpu_custom_call.1} parent=1 // pred_fallthru
      _
    // Predicated region
    $region6: #{tpu_custom_call.1} parent=1 // pred_check
      _
    $region7: #{tpu_custom_call.1} parent=1 // pred_check_branch
      %16 = sbr.rel (0) target = $region9
    $region8: #{tpu_custom_call.1} parent=1 // pred_region
      _
    $region9: #{tpu_custom_call.1} parent=1 // pred_fallthru
      _
    // Predicated region
    $region10: #{tpu_custom_call.1} parent=1 // pred_check
      _
    $region11: #{tpu_custom_call.1} parent=1 // pred_check_branch
      %18 = sbr.rel (0) target = $region13
    $region12: #{tpu_custom_call.1} parent=1 // pred_region
      _
    $region13: #{tpu_custom_call.1} parent=1 // pred_fallthru
      _
    // Predicated region
    $region14: #{tpu_custom_call.1} parent=1 // pred_check
      _
    $region15: #{tpu_custom_call.1} parent=1 // pred_check_branch
      %20 = sbr.rel (0) target = $region17
    $region16: #{tpu_custom_call.1} parent=1 // pred_region
      _
    $region17: #{tpu_custom_call.1} parent=1 // pred_fallthru
      _
    // Predicated region
    $region18: #{tpu_custom_call.1} parent=1 // pred_check
      _
    $region19: #{tpu_custom_call.1} parent=1 // pred_check_branch
      %22 = sbr.rel (0) target = $region21
    $region20: #{tpu_custom_call.1} parent=1 // pred_region
      _
    $region21: #{tpu_custom_call.1} parent=1 // pred_fallthru
      _
    // Predicated region
    $region22: #{tpu_custom_call.1} parent=1 // pred_check
      _
    $region23: #{tpu_custom_call.1} parent=1 // pred_check_branch
      %24 = sbr.rel (0) target = $region25
    $region24: #{tpu_custom_call.1} parent=1 // pred_region
      _
    $region25: #{tpu_custom_call.1} parent=1 // pred_fallthru
      _
    // Predicated region
    $region26: #{tpu_custom_call.1} parent=1 // pred_check
      _
    $region27: #{tpu_custom_call.1} parent=1 // pred_check_branch
      %26 = sbr.rel (0) target = $region29
    $region28: #{tpu_custom_call.1} parent=1 // pred_region
      _
    $region29: #{tpu_custom_call.1} parent=1 // pred_fallthru
      _
    %vm28 = vcmask 31744
    %29 = vst.msk [vmem:[#allocation2] sm:$0xff] %vm28, 0.0
    %30 = vst.msk [vmem:[#allocation2 + $0x8] sm:$0xff] %vm28, 0.0
    %vm31 = vcmask 25600
    %32 = vst.msk [vmem:[#allocation2 + $0x10] sm:$0x3] %vm31, 0.0
    %33 = vst.msk [vmem:[#allocation2 + $0x18] sm:$0xff] %vm28, 0.0
    %34 = vst.msk [vmem:[#allocation2 + $0x20] sm:$0xff] %vm28, 0.0
    %35 = vst.msk [vmem:[#allocation2 + $0x28] sm:$0x3] %vm31, 0.0
    %36 = vst.msk [vmem:[#allocation2 + $0x30] sm:$0xff] %vm28, 0.0
    %37 = vst.msk [vmem:[#allocation2 + $0x38] sm:$0xff] %vm28, 0.0
    %38 = vst.msk [vmem:[#allocation2 + $0x40] sm:$0x3] %vm31, 0.0
    %39 = vst.msk [vmem:[#allocation2 + $0x48] sm:$0xff] %vm28, 0.0
    %40 = vst.msk [vmem:[#allocation2 + $0x50] sm:$0xff] %vm28, 0.0
    %41 = vst.msk [vmem:[#allocation2 + $0x58] sm:$0x3] %vm31, 0.0
    %42 = vst.msk [vmem:[#allocation2 + $0x60] sm:$0xff] %vm28, 0.0
    %43 = vst.msk [vmem:[#allocation2 + $0x68] sm:$0xff] %vm28, 0.0
    %44 = vst.msk [vmem:[#allocation2 + $0x70] sm:$0x3] %vm31, 0.0
    %45 = vst.msk [vmem:[#allocation2 + $0x78] sm:$0xff] %vm28, 0.0
    %46 = vst.msk [vmem:[#allocation2 + $0x80] sm:$0xff] %vm28, 0.0
    %47 = vst.msk [vmem:[#allocation2 + $0x88] sm:$0x3] %vm31, 0.0
    %48 = vst.msk [vmem:[#allocation2 + $0x90] sm:$0xff] %vm28, 0.0
    %49 = vst.msk [vmem:[#allocation2 + $0x98] sm:$0xff] %vm28, 0.0
    %50 = vst.msk [vmem:[#allocation2 + $0xa0] sm:$0x3] %vm31, 0.0
    %51 = vst.msk [vmem:[#allocation2 + $0xa8] sm:$0xff] %vm28, 0.0
    %52 = vst.msk [vmem:[#allocation2 + $0xb0] sm:$0xff] %vm28, 0.0
    %53 = vst.msk [vmem:[#allocation2 + $0xb8] sm:$0x3] %vm31, 0.0
    %54 = vst.msk [vmem:[#allocation2 + $0xc0] sm:$0xff] %vm28, 0.0
    %55 = vst.msk [vmem:[#allocation2 + $0xc8] sm:$0xff] %vm28, 0.0
    %56 = vst.msk [vmem:[#allocation2 + $0xd0] sm:$0x3] %vm31, 0.0
    %57 = vst.msk [vmem:[#allocation2 + $0xd8] sm:$0xff] %vm28, 0.0
    %58 = vst.msk [vmem:[#allocation2 + $0xe0] sm:$0xff] %vm28, 0.0
    %59 = vst.msk [vmem:[#allocation2 + $0xe8] sm:$0x3] %vm31, 0.0
    %60 = vst.msk [vmem:[#allocation2 + $0xf0] sm:$0xff] %vm28, 0.0
    %61 = vst.msk [vmem:[#allocation2 + $0xf8] sm:$0xff] %vm28, 0.0
    %62 = vst.msk [vmem:[#allocation2 + $0x100] sm:$0x3] %vm31, 0.0
    %63 = vst.msk [vmem:[#allocation2 + $0x108] sm:$0xff] %vm28, 0.0
    %64 = vst.msk [vmem:[#allocation2 + $0x110] sm:$0xff] %vm28, 0.0
    %65 = vst.msk [vmem:[#allocation2 + $0x118] sm:$0x3] %vm31, 0.0
    %66 = vst.msk [vmem:[#allocation2 + $0x120] sm:$0xff] %vm28, 0.0
    %67 = vst.msk [vmem:[#allocation2 + $0x128] sm:$0xff] %vm28, 0.0
    %68 = vst.msk [vmem:[#allocation2 + $0x130] sm:$0x3] %vm31, 0.0
    %69 = vst.msk [vmem:[#allocation2 + $0x138] sm:$0xff] %vm28, 0.0
    %70 = vst.msk [vmem:[#allocation2 + $0x140] sm:$0xff] %vm28, 0.0
    %71 = vst.msk [vmem:[#allocation2 + $0x148] sm:$0x3] %vm31, 0.0
    %72 = vst.msk [vmem:[#allocation2 + $0x150] sm:$0xff] %vm28, 0.0
    %73 = vst.msk [vmem:[#allocation2 + $0x158] sm:$0xff] %vm28, 0.0
    %74 = vst.msk [vmem:[#allocation2 + $0x160] sm:$0x3] %vm31, 0.0
    %75 = vst.msk [vmem:[#allocation2 + $0x168] sm:$0xff] %vm28, 0.0
    %76 = vst.msk [vmem:[#allocation2 + $0x170] sm:$0xff] %vm28, 0.0
    %77 = vst.msk [vmem:[#allocation2 + $0x178] sm:$0x3] %vm31, 0.0
    %78 = vst.msk [vmem:[#allocation2 + $0x180] sm:$0xff] %vm28, 0.0
    %79 = vst.msk [vmem:[#allocation2 + $0x188] sm:$0xff] %vm28, 0.0
    %80 = vst.msk [vmem:[#allocation2 + $0x190] sm:$0x3] %vm31, 0.0
    %81 = vst.msk [vmem:[#allocation2 + $0x198] sm:$0xff] %vm28, 0.0
    %82 = vst.msk [vmem:[#allocation2 + $0x1a0] sm:$0xff] %vm28, 0.0
    %83 = vst.msk [vmem:[#allocation2 + $0x1a8] sm:$0x3] %vm31, 0.0
    %84 = vst.msk [vmem:[#allocation2 + $0x1b0] sm:$0xff] %vm28, 0.0
    %85 = vst.msk [vmem:[#allocation2 + $0x1b8] sm:$0xff] %vm28, 0.0
    %86 = vst.msk [vmem:[#allocation2 + $0x1c0] sm:$0x3] %vm31, 0.0
    %87 = vst.msk [vmem:[#allocation2 + $0x1c8] sm:$0xff] %vm28, 0.0
    %88 = vst.msk [vmem:[#allocation2 + $0x1d0] sm:$0xff] %vm28, 0.0
    %89 = vst.msk [vmem:[#allocation2 + $0x1d8] sm:$0x3] %vm31, 0.0
    %90 = vst.msk [vmem:[#allocation2 + $0x1e0] sm:$0xff] %vm28, 0.0
    %91 = vst.msk [vmem:[#allocation2 + $0x1e8] sm:$0xff] %vm28, 0.0
    %92 = vst.msk [vmem:[#allocation2 + $0x1f0] sm:$0x3] %vm31, 0.0
    %93 = vst.msk [vmem:[#allocation2 + $0x1f8] sm:$0xff] %vm28, 0.0
    %94 = vst.msk [vmem:[#allocation2 + $0x200] sm:$0xff] %vm28, 0.0
    %95 = vst.msk [vmem:[#allocation2 + $0x208] sm:$0x3] %vm31, 0.0
    %96 = vst.msk [vmem:[#allocation2 + $0x210] sm:$0xff] %vm28, 0.0
    %97 = vst.msk [vmem:[#allocation2 + $0x218] sm:$0xff] %vm28, 0.0
    %98 = vst.msk [vmem:[#allocation2 + $0x220] sm:$0x3] %vm31, 0.0
    %99 = vst.msk [vmem:[#allocation2 + $0x228] sm:$0xff] %vm28, 0.0
    %100 = vst.msk [vmem:[#allocation2 + $0x230] sm:$0xff] %vm28, 0.0
    %101 = vst.msk [vmem:[#allocation2 + $0x238] sm:$0x3] %vm31, 0.0
    %102 = vst.msk [vmem:[#allocation2 + $0x240] sm:$0xff] %vm28, 0.0
    %103 = vst.msk [vmem:[#allocation2 + $0x248] sm:$0xff] %vm28, 0.0
    %104 = vst.msk [vmem:[#allocation2 + $0x250] sm:$0x3] %vm31, 0.0
    %105 = vst.msk [vmem:[#allocation2 + $0x258] sm:$0xff] %vm28, 0.0
    %106 = vst.msk [vmem:[#allocation2 + $0x260] sm:$0xff] %vm28, 0.0
    %107 = vst.msk [vmem:[#allocation2 + $0x268] sm:$0x3] %vm31, 0.0
    %108 = vst.msk [vmem:[#allocation2 + $0x270] sm:$0xff] %vm28, 0.0
    %109 = vst.msk [vmem:[#allocation2 + $0x278] sm:$0xff] %vm28, 0.0
    %110 = vst.msk [vmem:[#allocation2 + $0x280] sm:$0x3] %vm31, 0.0
    %111 = vst.msk [vmem:[#allocation2 + $0x288] sm:$0xff] %vm28, 0.0
    %112 = vst.msk [vmem:[#allocation2 + $0x290] sm:$0xff] %vm28, 0.0
    %113 = vst.msk [vmem:[#allocation2 + $0x298] sm:$0x3] %vm31, 0.0
    %114 = vst.msk [vmem:[#allocation2 + $0x2a0] sm:$0xff] %vm28, 0.0
    %115 = vst.msk [vmem:[#allocation2 + $0x2a8] sm:$0xff] %vm28, 0.0
    %116 = vst.msk [vmem:[#allocation2 + $0x2b0] sm:$0x3] %vm31, 0.0
    %117 = vst.msk [vmem:[#allocation2 + $0x2b8] sm:$0xff] %vm28, 0.0
    %118 = vst.msk [vmem:[#allocation2 + $0x2c0] sm:$0xff] %vm28, 0.0
    %119 = vst.msk [vmem:[#allocation2 + $0x2c8] sm:$0x3] %vm31, 0.0
    %120 = vst.msk [vmem:[#allocation2 + $0x2d0] sm:$0xff] %vm28, 0.0
    %121 = vst.msk [vmem:[#allocation2 + $0x2d8] sm:$0xff] %vm28, 0.0
    %122 = vst.msk [vmem:[#allocation2 + $0x2e0] sm:$0x3] %vm31, 0.0
    %123 = vst.msk [vmem:[#allocation2 + $0x2e8] sm:$0xff] %vm28, 0.0
    %124 = vst.msk [vmem:[#allocation2 + $0x2f0] sm:$0xff] %vm28, 0.0
    %125 = vst.msk [vmem:[#allocation2 + $0x2f8] sm:$0x3] %vm31, 0.0
    %126 = vst.msk [vmem:[#allocation2 + $0x300] sm:$0xff] %vm28, 0.0
    %127 = vst.msk [vmem:[#allocation2 + $0x308] sm:$0xff] %vm28, 0.0
    %128 = vst.msk [vmem:[#allocation2 + $0x310] sm:$0x3] %vm31, 0.0
    %129 = vst.msk [vmem:[#allocation2 + $0x318] sm:$0xff] %vm28, 0.0
    %130 = vst.msk [vmem:[#allocation2 + $0x320] sm:$0xff] %vm28, 0.0
    %131 = vst.msk [vmem:[#allocation2 + $0x328] sm:$0x3] %vm31, 0.0
    %132 = vst.msk [vmem:[#allocation2 + $0x330] sm:$0xff] %vm28, 0.0
    %133 = vst.msk [vmem:[#allocation2 + $0x338] sm:$0xff] %vm28, 0.0
    %134 = vst.msk [vmem:[#allocation2 + $0x340] sm:$0x3] %vm31, 0.0
    %135 = vst.msk [vmem:[#allocation2 + $0x348] sm:$0xff] %vm28, 0.0
    %136 = vst.msk [vmem:[#allocation2 + $0x350] sm:$0xff] %vm28, 0.0
    %137 = vst.msk [vmem:[#allocation2 + $0x358] sm:$0x3] %vm31, 0.0
    %v138 = vld [vmem:[%s0] sm:$0xf]
    %v139 = vld [vmem:[%s0 + $0x4] sm:$0xf]
    %v140 = vld [vmem:[%s0 + $0x8] sm:$0xf]
    %v141 = vld [vmem:[%s0 + $0xc] sm:$0xf]
    %v142 = vld [vmem:[%s0 + $0x10] sm:$0xf]
    %v143 = vld [vmem:[%s0 + $0x14] sm:$0xf]
    %v144 = vld [vmem:[%s0 + $0x18] sm:$0xf]
    %v145 = vld [vmem:[%s0 + $0x1c] sm:$0xf]
    %v146 = vld [vmem:[%s0 + $0x20] sm:$0xf]
    %v147 = vld [vmem:[%s0 + $0x24] sm:$0xf]
    %v148 = vld [vmem:[%s0 + $0x28] sm:$0xf]
    %v149 = vld [vmem:[%s0 + $0x2c] sm:$0xf]
    %v150 = vld [vmem:[%s0 + $0x30] sm:$0xf]
    %v151 = vld [vmem:[%s0 + $0x34] sm:$0xf]
    %v152 = vld [vmem:[%s0 + $0x38] sm:$0xf]
    %v153 = vld [vmem:[%s0 + $0x3c] sm:$0xf]
    %v154 = vld [vmem:[%s0 + $0x40] sm:$0xf]
    %v155 = vld [vmem:[%s0 + $0x44] sm:$0xf]
    %v156 = vld [vmem:[%s0 + $0x48] sm:$0xf]
    %v157 = vld [vmem:[%s0 + $0x4c] sm:$0xf]
    %v158 = vld [vmem:[%s0 + $0x50] sm:$0xf]
    %v159 = vld [vmem:[%s0 + $0x54] sm:$0xf]
    %v160 = vld [vmem:[%s0 + $0x58] sm:$0xf]
    %v161 = vld [vmem:[%s0 + $0x5c] sm:$0xf]
    %v162 = vld [vmem:[%s0 + $0x60] sm:$0xf]
    %v163 = vld [vmem:[%s0 + $0x64] sm:$0xf]
    %v164 = vld [vmem:[%s0 + $0x68] sm:$0xf]
    %v165 = vld [vmem:[%s0 + $0x6c] sm:$0xf]
    %v166 = vld [vmem:[%s0 + $0x70] sm:$0xf]
    %v167 = vld [vmem:[%s0 + $0x74] sm:$0xf]
    %v168 = vld [vmem:[%s0 + $0x78] sm:$0xf]
    %v169 = vld [vmem:[%s0 + $0x7c] sm:$0xf]
    %v170 = vld [vmem:[%s0 + $0x80] sm:$0xf]
    %v171 = vld [vmem:[%s0 + $0x84] sm:$0xf]
    %v172 = vld [vmem:[%s0 + $0x88] sm:$0xf]
    %v173 = vld [vmem:[%s0 + $0x8c] sm:$0xf]
    %v174 = vld [vmem:[%s0 + $0x90] sm:$0xf]
    %v175 = vld [vmem:[%s0 + $0x94] sm:$0xf]
    %v176 = vld [vmem:[%s0 + $0x98] sm:$0xf]
    %v177 = vld [vmem:[%s0 + $0x9c] sm:$0xf]
    %v178 = vld [vmem:[%s0 + $0xa0] sm:$0xf]
    %v179 = vld [vmem:[%s0 + $0xa4] sm:$0xf]
    %v180 = vld [vmem:[%s0 + $0xa8] sm:$0xf]
    %v181 = vld [vmem:[%s0 + $0xac] sm:$0xf]
    %v182 = vld [vmem:[%s0 + $0xb0] sm:$0xf]
    %v183 = vld [vmem:[%s0 + $0xb4] sm:$0xf]
    %v184 = vld [vmem:[%s0 + $0xb8] sm:$0xf]
    %v185 = vld [vmem:[%s0 + $0xbc] sm:$0xf]
    %v186 = vld [vmem:[%s0 + $0xc0] sm:$0xf]
    %v187 = vld [vmem:[%s0 + $0xc4] sm:$0xf]
    %v188 = vld [vmem:[%s0 + $0xc8] sm:$0xf]
    %v189 = vld [vmem:[%s0 + $0xcc] sm:$0xf]
    %v190 = vld [vmem:[%s0 + $0xd0] sm:$0xf]
    %v191 = vld [vmem:[%s0 + $0xd4] sm:$0xf]
    %v192 = vld [vmem:[%s0 + $0xd8] sm:$0xf]
    %v193 = vld [vmem:[%s0 + $0xdc] sm:$0xf]
    %v194 = vld [vmem:[%s0 + $0xe0] sm:$0xf]
    %v195 = vld [vmem:[%s0 + $0xe4] sm:$0xf]
    %v196 = vld [vmem:[%s0 + $0xe8] sm:$0xf]
    %v197 = vld [vmem:[%s0 + $0xec] sm:$0xf]
    %v198 = vld [vmem:[%s0 + $0xf0] sm:$0xf]
    %v199 = vld [vmem:[%s0 + $0xf4] sm:$0xf]
    %v200 = vld [vmem:[%s0 + $0xf8] sm:$0xf]
    %v201 = vld [vmem:[%s0 + $0xfc] sm:$0xf]
    %v202 = vunpack.c.l.bf16 %v138
    %v203 = vunpack.c.l.bf16 %v139
    %v204 = vunpack.c.l.bf16 %v140
    %v205 = vunpack.c.l.bf16 %v141
    %v206 = vunpack.c.l.bf16 %v142
    %v207 = vunpack.c.l.bf16 %v143
    %v208 = vunpack.c.l.bf16 %v144
    %v209 = vunpack.c.l.bf16 %v145
    %v210 = vunpack.c.l.bf16 %v146
    %v211 = vunpack.c.l.bf16 %v147
    %v212 = vunpack.c.l.bf16 %v148
    %v213 = vunpack.c.l.bf16 %v149
    %v214 = vunpack.c.l.bf16 %v150
    %v215 = vunpack.c.l.bf16 %v151
    %v216 = vunpack.c.l.bf16 %v152
    %v217 = vunpack.c.l.bf16 %v153
    %v218 = vunpack.c.l.bf16 %v154
    %v219 = vunpack.c.l.bf16 %v155
    %v220 = vunpack.c.l.bf16 %v156
    %v221 = vunpack.c.l.bf16 %v157
    %v222 = vunpack.c.l.bf16 %v158
    %v223 = vunpack.c.l.bf16 %v159
    %v224 = vunpack.c.l.bf16 %v160
    %v225 = vunpack.c.l.bf16 %v161
    %v226 = vunpack.c.l.bf16 %v162
    %v227 = vunpack.c.l.bf16 %v163
    %v228 = vunpack.c.l.bf16 %v164
    %v229 = vunpack.c.l.bf16 %v165
    %v230 = vunpack.c.l.bf16 %v166
    %v231 = vunpack.c.l.bf16 %v167
    %v232 = vunpack.c.l.bf16 %v168
    %v233 = vunpack.c.l.bf16 %v169
    %v234 = vunpack.c.l.bf16 %v170
    %v235 = vunpack.c.l.bf16 %v171
    %v236 = vunpack.c.l.bf16 %v172
    %v237 = vunpack.c.l.bf16 %v173
    %v238 = vunpack.c.l.bf16 %v174
    %v239 = vunpack.c.l.bf16 %v175
    %v240 = vunpack.c.l.bf16 %v176
    %v241 = vunpack.c.l.bf16 %v177
    %v242 = vunpack.c.l.bf16 %v178
    %v243 = vunpack.c.l.bf16 %v179
    %v244 = vunpack.c.l.bf16 %v180
    %v245 = vunpack.c.l.bf16 %v181
    %v246 = vunpack.c.l.bf16 %v182
    %v247 = vunpack.c.l.bf16 %v183
    %v248 = vunpack.c.l.bf16 %v184
    %v249 = vunpack.c.l.bf16 %v185
    %v250 = vunpack.c.l.bf16 %v186
    %v251 = vunpack.c.l.bf16 %v187
    %v252 = vunpack.c.l.bf16 %v188
    %v253 = vunpack.c.l.bf16 %v189
    %v254 = vunpack.c.l.bf16 %v190
    %v255 = vunpack.c.l.bf16 %v191
    %v256 = vunpack.c.l.bf16 %v192
    %v257 = vunpack.c.l.bf16 %v193
    %v258 = vunpack.c.l.bf16 %v194
    %v259 = vunpack.c.l.bf16 %v195
    %v260 = vunpack.c.l.bf16 %v196
    %v261 = vunpack.c.l.bf16 %v197
    %v262 = vunpack.c.l.bf16 %v198
    %v263 = vunpack.c.l.bf16 %v199
    %v264 = vunpack.c.l.bf16 %v200
    %v265 = vunpack.c.l.bf16 %v201
    %s266 = scalar_lea.vmem [#allocation2], 24
    %267 = vst.msk [vmem:[%s266 + $0x1] sm:$0xff] %vm28, %v202
    %268 = vst.msk [vmem:[%s266 + $0x9] sm:$0xff] %vm28, %v203
    %269 = vst.msk [vmem:[%s266 + $0x19] sm:$0xff] %vm28, %v204
    %270 = vst.msk [vmem:[%s266 + $0x21] sm:$0xff] %vm28, %v205
    %271 = vst.msk [vmem:[%s266 + $0x31] sm:$0xff] %vm28, %v206
    %272 = vst.msk [vmem:[%s266 + $0x39] sm:$0xff] %vm28, %v207
    %273 = vst.msk [vmem:[%s266 + $0x49] sm:$0xff] %vm28, %v208
    %274 = vst.msk [vmem:[%s266 + $0x51] sm:$0xff] %vm28, %v209
    %275 = vst.msk [vmem:[%s266 + $0x61] sm:$0xff] %vm28, %v210
    %276 = vst.msk [vmem:[%s266 + $0x69] sm:$0xff] %vm28, %v211
    %277 = vst.msk [vmem:[%s266 + $0x79] sm:$0xff] %vm28, %v212
    %278 = vst.msk [vmem:[%s266 + $0x81] sm:$0xff] %vm28, %v213
    %279 = vst.msk [vmem:[%s266 + $0x91] sm:$0xff] %vm28, %v214
    %280 = vst.msk [vmem:[%s266 + $0x99] sm:$0xff] %vm28, %v215
    %281 = vst.msk [vmem:[%s266 + $0xa9] sm:$0xff] %vm28, %v216
    %282 = vst.msk [vmem:[%s266 + $0xb1] sm:$0xff] %vm28, %v217
    %283 = vst.msk [vmem:[%s266 + $0xc1] sm:$0xff] %vm28, %v218
    %284 = vst.msk [vmem:[%s266 + $0xc9] sm:$0xff] %vm28, %v219
    %285 = vst.msk [vmem:[%s266 + $0xd9] sm:$0xff] %vm28, %v220
    %286 = vst.msk [vmem:[%s266 + $0xe1] sm:$0xff] %vm28, %v221
    %287 = vst.msk [vmem:[%s266 + $0xf1] sm:$0xff] %vm28, %v222
    %288 = vst.msk [vmem:[%s266 + $0xf9] sm:$0xff] %vm28, %v223
    %289 = vst.msk [vmem:[%s266 + $0x109] sm:$0xff] %vm28, %v224
    %290 = vst.msk [vmem:[%s266 + $0x111] sm:$0xff] %vm28, %v225
    %291 = vst.msk [vmem:[%s266 + $0x121] sm:$0xff] %vm28, %v226
    %292 = vst.msk [vmem:[%s266 + $0x129] sm:$0xff] %vm28, %v227
    %293 = vst.msk [vmem:[%s266 + $0x139] sm:$0xff] %vm28, %v228
    %294 = vst.msk [vmem:[%s266 + $0x141] sm:$0xff] %vm28, %v229
    %295 = vst.msk [vmem:[%s266 + $0x151] sm:$0xff] %vm28, %v230
    %296 = vst.msk [vmem:[%s266 + $0x159] sm:$0xff] %vm28, %v231
    %297 = vst.msk [vmem:[%s266 + $0x169] sm:$0xff] %vm28, %v232
    %298 = vst.msk [vmem:[%s266 + $0x171] sm:$0xff] %vm28, %v233
    %299 = vst.msk [vmem:[%s266 + $0x1b1] sm:$0xff] %vm28, %v234
    %300 = vst.msk [vmem:[%s266 + $0x1b9] sm:$0xff] %vm28, %v235
    %301 = vst.msk [vmem:[%s266 + $0x1c9] sm:$0xff] %vm28, %v236
    %302 = vst.msk [vmem:[%s266 + $0x1d1] sm:$0xff] %vm28, %v237
    %303 = vst.msk [vmem:[%s266 + $0x1e1] sm:$0xff] %vm28, %v238
    %304 = vst.msk [vmem:[%s266 + $0x1e9] sm:$0xff] %vm28, %v239
    %305 = vst.msk [vmem:[%s266 + $0x1f9] sm:$0xff] %vm28, %v240
    %306 = vst.msk [vmem:[%s266 + $0x201] sm:$0xff] %vm28, %v241
    %307 = vst.msk [vmem:[%s266 + $0x211] sm:$0xff] %vm28, %v242
    %308 = vst.msk [vmem:[%s266 + $0x219] sm:$0xff] %vm28, %v243
    %309 = vst.msk [vmem:[%s266 + $0x229] sm:$0xff] %vm28, %v244
    %310 = vst.msk [vmem:[%s266 + $0x231] sm:$0xff] %vm28, %v245
    %311 = vst.msk [vmem:[%s266 + $0x241] sm:$0xff] %vm28, %v246
    %312 = vst.msk [vmem:[%s266 + $0x249] sm:$0xff] %vm28, %v247
    %313 = vst.msk [vmem:[%s266 + $0x259] sm:$0xff] %vm28, %v248
    %314 = vst.msk [vmem:[%s266 + $0x261] sm:$0xff] %vm28, %v249
    %315 = vst.msk [vmem:[%s266 + $0x271] sm:$0xff] %vm28, %v250
    %316 = vst.msk [vmem:[%s266 + $0x279] sm:$0xff] %vm28, %v251
    %317 = vst.msk [vmem:[%s266 + $0x289] sm:$0xff] %vm28, %v252
    %318 = vst.msk [vmem:[%s266 + $0x291] sm:$0xff] %vm28, %v253
    %319 = vst.msk [vmem:[%s266 + $0x2a1] sm:$0xff] %vm28, %v254
    %320 = vst.msk [vmem:[%s266 + $0x2a9] sm:$0xff] %vm28, %v255
    %321 = vst.msk [vmem:[%s266 + $0x2b9] sm:$0xff] %vm28, %v256
    %322 = vst.msk [vmem:[%s266 + $0x2c1] sm:$0xff] %vm28, %v257
    %323 = vst.msk [vmem:[%s266 + $0x2d1] sm:$0xff] %vm28, %v258
    %324 = vst.msk [vmem:[%s266 + $0x2d9] sm:$0xff] %vm28, %v259
    %325 = vst.msk [vmem:[%s266 + $0x2e9] sm:$0xff] %vm28, %v260
    %326 = vst.msk [vmem:[%s266 + $0x2f1] sm:$0xff] %vm28, %v261
    %327 = vst.msk [vmem:[%s266 + $0x301] sm:$0xff] %vm28, %v262
    %328 = vst.msk [vmem:[%s266 + $0x309] sm:$0xff] %vm28, %v263
    %329 = vst.msk [vmem:[%s266 + $0x319] sm:$0xff] %vm28, %v264
    %330 = vst.msk [vmem:[%s266 + $0x321] sm:$0xff] %vm28, %v265
    %v331 = vld [vmem:[#allocation2] sm:$0xff]
    %v332 = vld [vmem:[#allocation2 + $0x8] sm:$0xff]
    %v333 = vld [vmem:[#allocation2 + $0x18] sm:$0xff]
    %v334 = vld [vmem:[#allocation2 + $0x20] sm:$0xff]
    %v335 = vld [vmem:[#allocation2 + $0x30] sm:$0xff]
    %v336 = vld [vmem:[#allocation2 + $0x38] sm:$0xff]
    %v337 = vld [vmem:[#allocation2 + $0x48] sm:$0xff]
    %v338 = vld [vmem:[#allocation2 + $0x50] sm:$0xff]
    %v339 = vld [vmem:[#allocation2 + $0x60] sm:$0xff]
    %v340 = vld [vmem:[#allocation2 + $0x68] sm:$0xff]
    %v341 = vld [vmem:[#allocation2 + $0x78] sm:$0xff]
    %v342 = vld [vmem:[#allocation2 + $0x80] sm:$0xff]
    %v343 = vld [vmem:[#allocation2 + $0x90] sm:$0xff]
    %v344 = vld [vmem:[#allocation2 + $0x98] sm:$0xff]
    %v345 = vld [vmem:[#allocation2 + $0xa8] sm:$0xff]
    %v346 = vld [vmem:[#allocation2 + $0xb0] sm:$0xff]
    %v347 = vld [vmem:[#allocation2 + $0xc0] sm:$0xff]
    %v348 = vld [vmem:[#allocation2 + $0xc8] sm:$0xff]
    %v349 = vld [vmem:[#allocation2 + $0xd8] sm:$0xff]
    %v350 = vld [vmem:[#allocation2 + $0xe0] sm:$0xff]
    %v351 = vld [vmem:[#allocation2 + $0xf0] sm:$0xff]
    %v352 = vld [vmem:[#allocation2 + $0xf8] sm:$0xff]
    %v353 = vld [vmem:[#allocation2 + $0x108] sm:$0xff]
    %v354 = vld [vmem:[#allocation2 + $0x110] sm:$0xff]
    %v355 = vld [vmem:[#allocation2 + $0x120] sm:$0xff]
    %v356 = vld [vmem:[#allocation2 + $0x128] sm:$0xff]
    %v357 = vld [vmem:[#allocation2 + $0x138] sm:$0xff]
    %v358 = vld [vmem:[#allocation2 + $0x140] sm:$0xff]
    %v359 = vld [vmem:[#allocation2 + $0x150] sm:$0xff]
    %v360 = vld [vmem:[#allocation2 + $0x158] sm:$0xff]
    %v361 = vld [vmem:[#allocation2 + $0x168] sm:$0xff]
    %v362 = vld [vmem:[#allocation2 + $0x170] sm:$0xff]
    %v363 = vld [vmem:[#allocation2 + $0x1b0] sm:$0xff]
    %v364 = vld [vmem:[#allocation2 + $0x1b8] sm:$0xff]
    %v365 = vld [vmem:[#allocation2 + $0x1c8] sm:$0xff]
    %v366 = vld [vmem:[#allocation2 + $0x1d0] sm:$0xff]
    %v367 = vld [vmem:[#allocation2 + $0x1e0] sm:$0xff]
    %v368 = vld [vmem:[#allocation2 + $0x1e8] sm:$0xff]
    %v369 = vld [vmem:[#allocation2 + $0x1f8] sm:$0xff]
    %v370 = vld [vmem:[#allocation2 + $0x200] sm:$0xff]
    %v371 = vld [vmem:[#allocation2 + $0x210] sm:$0xff]
    %v372 = vld [vmem:[#allocation2 + $0x218] sm:$0xff]
    %v373 = vld [vmem:[#allocation2 + $0x228] sm:$0xff]
    %v374 = vld [vmem:[#allocation2 + $0x230] sm:$0xff]
    %v375 = vld [vmem:[#allocation2 + $0x240] sm:$0xff]
    %v376 = vld [vmem:[#allocation2 + $0x248] sm:$0xff]
    %v377 = vld [vmem:[#allocation2 + $0x258] sm:$0xff]
    %v378 = vld [vmem:[#allocation2 + $0x260] sm:$0xff]
    %v379 = vld [vmem:[#allocation2 + $0x270] sm:$0xff]
    %v380 = vld [vmem:[#allocation2 + $0x278] sm:$0xff]
    %v381 = vld [vmem:[#allocation2 + $0x288] sm:$0xff]
    %v382 = vld [vmem:[#allocation2 + $0x290] sm:$0xff]
    %v383 = vld [vmem:[#allocation2 + $0x2a0] sm:$0xff]
    %v384 = vld [vmem:[#allocation2 + $0x2a8] sm:$0xff]
    %v385 = vld [vmem:[#allocation2 + $0x2b8] sm:$0xff]
    %v386 = vld [vmem:[#allocation2 + $0x2c0] sm:$0xff]
    %v387 = vld [vmem:[#allocation2 + $0x2d0] sm:$0xff]
    %v388 = vld [vmem:[#allocation2 + $0x2d8] sm:$0xff]
    %v389 = vld [vmem:[#allocation2 + $0x2e8] sm:$0xff]
    %v390 = vld [vmem:[#allocation2 + $0x2f0] sm:$0xff]
    %v391 = vld [vmem:[#allocation2 + $0x300] sm:$0xff]
    %v392 = vld [vmem:[#allocation2 + $0x308] sm:$0xff]
    %v393 = vld [vmem:[#allocation2 + $0x318] sm:$0xff]
    %v394 = vld [vmem:[#allocation2 + $0x320] sm:$0xff]
    %395 = vst.msk [vmem:[#allocation3] sm:$0xff] %vm28, %v331
    %396 = vst.msk [vmem:[#allocation3 + $0x8] sm:$0xff] %vm28, %v332
    %397 = vst.msk [vmem:[#allocation3 + $0x10] sm:$0xff] %vm28, %v333
    %398 = vst.msk [vmem:[#allocation3 + $0x18] sm:$0xff] %vm28, %v334
    %399 = vst.msk [vmem:[#allocation3 + $0x20] sm:$0xff] %vm28, %v335
    %400 = vst.msk [vmem:[#allocation3 + $0x28] sm:$0xff] %vm28, %v336
    %401 = vst.msk [vmem:[#allocation3 + $0x30] sm:$0xff] %vm28, %v337
    %402 = vst.msk [vmem:[#allocation3 + $0x38] sm:$0xff] %vm28, %v338
    %403 = vst.msk [vmem:[#allocation3 + $0x40] sm:$0xff] %vm28, %v339
    %404 = vst.msk [vmem:[#allocation3 + $0x48] sm:$0xff] %vm28, %v340
    %405 = vst.msk [vmem:[#allocation3 + $0x50] sm:$0xff] %vm28, %v341
    %406 = vst.msk [vmem:[#allocation3 + $0x58] sm:$0xff] %vm28, %v342
    %407 = vst.msk [vmem:[#allocation3 + $0x60] sm:$0xff] %vm28, %v343
    %408 = vst.msk [vmem:[#allocation3 + $0x68] sm:$0xff] %vm28, %v344
    %409 = vst.msk [vmem:[#allocation3 + $0x70] sm:$0xff] %vm28, %v345
    %410 = vst.msk [vmem:[#allocation3 + $0x78] sm:$0xff] %vm28, %v346
    %411 = vst.msk [vmem:[#allocation3 + $0x80] sm:$0xff] %vm28, %v347
    %412 = vst.msk [vmem:[#allocation3 + $0x88] sm:$0xff] %vm28, %v348
    %413 = vst.msk [vmem:[#allocation3 + $0x90] sm:$0xff] %vm28, %v349
    %414 = vst.msk [vmem:[#allocation3 + $0x98] sm:$0xff] %vm28, %v350
    %415 = vst.msk [vmem:[#allocation3 + $0xa0] sm:$0xff] %vm28, %v351
    %416 = vst.msk [vmem:[#allocation3 + $0xa8] sm:$0xff] %vm28, %v352
    %417 = vst.msk [vmem:[#allocation3 + $0xb0] sm:$0xff] %vm28, %v353
    %418 = vst.msk [vmem:[#allocation3 + $0xb8] sm:$0xff] %vm28, %v354
    %419 = vst.msk [vmem:[#allocation3 + $0xc0] sm:$0xff] %vm28, %v355
    %420 = vst.msk [vmem:[#allocation3 + $0xc8] sm:$0xff] %vm28, %v356
    %421 = vst.msk [vmem:[#allocation3 + $0xd0] sm:$0xff] %vm28, %v357
    %422 = vst.msk [vmem:[#allocation3 + $0xd8] sm:$0xff] %vm28, %v358
    %423 = vst.msk [vmem:[#allocation3 + $0xe0] sm:$0xff] %vm28, %v359
    %424 = vst.msk [vmem:[#allocation3 + $0xe8] sm:$0xff] %vm28, %v360
    %425 = vst.msk [vmem:[#allocation3 + $0xf0] sm:$0xff] %vm28, %v361
    %426 = vst.msk [vmem:[#allocation3 + $0xf8] sm:$0xff] %vm28, %v362
    %427 = vst.msk [vmem:[#allocation3 + $0x100] sm:$0xff] %vm28, %v363
    %428 = vst.msk [vmem:[#allocation3 + $0x108] sm:$0xff] %vm28, %v364
    %429 = vst.msk [vmem:[#allocation3 + $0x110] sm:$0xff] %vm28, %v365
    %430 = vst.msk [vmem:[#allocation3 + $0x118] sm:$0xff] %vm28, %v366
    %431 = vst.msk [vmem:[#allocation3 + $0x120] sm:$0xff] %vm28, %v367
    %432 = vst.msk [vmem:[#allocation3 + $0x128] sm:$0xff] %vm28, %v368
    %433 = vst.msk [vmem:[#allocation3 + $0x130] sm:$0xff] %vm28, %v369
    %434 = vst.msk [vmem:[#allocation3 + $0x138] sm:$0xff] %vm28, %v370
    %435 = vst.msk [vmem:[#allocation3 + $0x140] sm:$0xff] %vm28, %v371
    %436 = vst.msk [vmem:[#allocation3 + $0x148] sm:$0xff] %vm28, %v372
    %437 = vst.msk [vmem:[#allocation3 + $0x150] sm:$0xff] %vm28, %v373
    %438 = vst.msk [vmem:[#allocation3 + $0x158] sm:$0xff] %vm28, %v374
    %439 = vst.msk [vmem:[#allocation3 + $0x160] sm:$0xff] %vm28, %v375
    %440 = vst.msk [vmem:[#allocation3 + $0x168] sm:$0xff] %vm28, %v376
    %441 = vst.msk [vmem:[#allocation3 + $0x170] sm:$0xff] %vm28, %v377
    %442 = vst.msk [vmem:[#allocation3 + $0x178] sm:$0xff] %vm28, %v378
    %443 = vst.msk [vmem:[#allocation3 + $0x180] sm:$0xff] %vm28, %v379
    %444 = vst.msk [vmem:[#allocation3 + $0x188] sm:$0xff] %vm28, %v380
    %445 = vst.msk [vmem:[#allocation3 + $0x190] sm:$0xff] %vm28, %v381
    %446 = vst.msk [vmem:[#allocation3 + $0x198] sm:$0xff] %vm28, %v382
    %447 = vst.msk [vmem:[#allocation3 + $0x1a0] sm:$0xff] %vm28, %v383
    %448 = vst.msk [vmem:[#allocation3 + $0x1a8] sm:$0xff] %vm28, %v384
    %449 = vst.msk [vmem:[#allocation3 + $0x1b0] sm:$0xff] %vm28, %v385
    %450 = vst.msk [vmem:[#allocation3 + $0x1b8] sm:$0xff] %vm28, %v386
    %451 = vst.msk [vmem:[#allocation3 + $0x1c0] sm:$0xff] %vm28, %v387
    %452 = vst.msk [vmem:[#allocation3 + $0x1c8] sm:$0xff] %vm28, %v388
    %453 = vst.msk [vmem:[#allocation3 + $0x1d0] sm:$0xff] %vm28, %v389
    %454 = vst.msk [vmem:[#allocation3 + $0x1d8] sm:$0xff] %vm28, %v390
    %455 = vst.msk [vmem:[#allocation3 + $0x1e0] sm:$0xff] %vm28, %v391
    %456 = vst.msk [vmem:[#allocation3 + $0x1e8] sm:$0xff] %vm28, %v392
    %457 = vst.msk [vmem:[#allocation3 + $0x1f0] sm:$0xff] %vm28, %v393
    %458 = vst.msk [vmem:[#allocation3 + $0x1f8] sm:$0xff] %vm28, %v394
    %v459 = vld [vmem:[#allocation2 + $0x1] sm:$0xff]
    %v460 = vld [vmem:[#allocation2 + $0x9] sm:$0xff]
    %v461 = vld [vmem:[#allocation2 + $0x19] sm:$0xff]
    %v462 = vld [vmem:[#allocation2 + $0x21] sm:$0xff]
    %v463 = vld [vmem:[#allocation2 + $0x31] sm:$0xff]
    %v464 = vld [vmem:[#allocation2 + $0x39] sm:$0xff]
    %v465 = vld [vmem:[#allocation2 + $0x49] sm:$0xff]
    %v466 = vld [vmem:[#allocation2 + $0x51] sm:$0xff]
    %v467 = vld [vmem:[#allocation2 + $0x61] sm:$0xff]
    %v468 = vld [vmem:[#allocation2 + $0x69] sm:$0xff]
    %v469 = vld [vmem:[#allocation2 + $0x79] sm:$0xff]
    %v470 = vld [vmem:[#allocation2 + $0x81] sm:$0xff]
    %v471 = vld [vmem:[#allocation2 + $0x91] sm:$0xff]
    %v472 = vld [vmem:[#allocation2 + $0x99] sm:$0xff]
    %v473 = vld [vmem:[#allocation2 + $0xa9] sm:$0xff]
    %v474 = vld [vmem:[#allocation2 + $0xb1] sm:$0xff]
    %v475 = vld [vmem:[#allocation2 + $0xc1] sm:$0xff]
    %v476 = vld [vmem:[#allocation2 + $0xc9] sm:$0xff]
    %v477 = vld [vmem:[#allocation2 + $0xd9] sm:$0xff]
    %v478 = vld [vmem:[#allocation2 + $0xe1] sm:$0xff]
    %v479 = vld [vmem:[#allocation2 + $0xf1] sm:$0xff]
    %v480 = vld [vmem:[#allocation2 + $0xf9] sm:$0xff]
    %v481 = vld [vmem:[#allocation2 + $0x109] sm:$0xff]
    %v482 = vld [vmem:[#allocation2 + $0x111] sm:$0xff]
    %v483 = vld [vmem:[#allocation2 + $0x121] sm:$0xff]
    %v484 = vld [vmem:[#allocation2 + $0x129] sm:$0xff]
    %v485 = vld [vmem:[#allocation2 + $0x139] sm:$0xff]
    %v486 = vld [vmem:[#allocation2 + $0x141] sm:$0xff]
    %v487 = vld [vmem:[#allocation2 + $0x151] sm:$0xff]
    %v488 = vld [vmem:[#allocation2 + $0x159] sm:$0xff]
    %v489 = vld [vmem:[#allocation2 + $0x169] sm:$0xff]
    %v490 = vld [vmem:[#allocation2 + $0x171] sm:$0xff]
    %v491 = vld [vmem:[#allocation2 + $0x1b1] sm:$0xff]
    %v492 = vld [vmem:[#allocation2 + $0x1b9] sm:$0xff]
    %v493 = vld [vmem:[#allocation2 + $0x1c9] sm:$0xff]
    %v494 = vld [vmem:[#allocation2 + $0x1d1] sm:$0xff]
    %v495 = vld [vmem:[#allocation2 + $0x1e1] sm:$0xff]
    %v496 = vld [vmem:[#allocation2 + $0x1e9] sm:$0xff]
    %v497 = vld [vmem:[#allocation2 + $0x1f9] sm:$0xff]
    %v498 = vld [vmem:[#allocation2 + $0x201] sm:$0xff]
    %v499 = vld [vmem:[#allocation2 + $0x211] sm:$0xff]
    %v500 = vld [vmem:[#allocation2 + $0x219] sm:$0xff]
    %v501 = vld [vmem:[#allocation2 + $0x229] sm:$0xff]
    %v502 = vld [vmem:[#allocation2 + $0x231] sm:$0xff]
    %v503 = vld [vmem:[#allocation2 + $0x241] sm:$0xff]
    %v504 = vld [vmem:[#allocation2 + $0x249] sm:$0xff]
    %v505 = vld [vmem:[#allocation2 + $0x259] sm:$0xff]
    %v506 = vld [vmem:[#allocation2 + $0x261] sm:$0xff]
    %v507 = vld [vmem:[#allocation2 + $0x271] sm:$0xff]
    %v508 = vld [vmem:[#allocation2 + $0x279] sm:$0xff]
    %v509 = vld [vmem:[#allocation2 + $0x289] sm:$0xff]
    %v510 = vld [vmem:[#allocation2 + $0x291] sm:$0xff]
    %v511 = vld [vmem:[#allocation2 + $0x2a1] sm:$0xff]
    %v512 = vld [vmem:[#allocation2 + $0x2a9] sm:$0xff]
    %v513 = vld [vmem:[#allocation2 + $0x2b9] sm:$0xff]
    %v514 = vld [vmem:[#allocation2 + $0x2c1] sm:$0xff]
    %v515 = vld [vmem:[#allocation2 + $0x2d1] sm:$0xff]
    %v516 = vld [vmem:[#allocation2 + $0x2d9] sm:$0xff]
    %v517 = vld [vmem:[#allocation2 + $0x2e9] sm:$0xff]
    %v518 = vld [vmem:[#allocation2 + $0x2f1] sm:$0xff]
    %v519 = vld [vmem:[#allocation2 + $0x301] sm:$0xff]
    %v520 = vld [vmem:[#allocation2 + $0x309] sm:$0xff]
    %v521 = vld [vmem:[#allocation2 + $0x319] sm:$0xff]
    %v522 = vld [vmem:[#allocation2 + $0x321] sm:$0xff]
    %587 = vrot.lane.b32.xlu0 %v459, 4
    %v588 = vpop.permute.xlu0 %587
    %589 = vrot.lane.b32.xlu0 %v460, 4
    %v590 = vpop.permute.xlu0 %589
    %591 = vrot.lane.b32.xlu0 %v461, 4
    %v592 = vpop.permute.xlu0 %591
    %593 = vrot.lane.b32.xlu0 %v462, 4
    %v594 = vpop.permute.xlu0 %593
    %595 = vrot.lane.b32.xlu0 %v463, 4
    %v596 = vpop.permute.xlu0 %595
    %597 = vrot.lane.b32.xlu0 %v464, 4
    %v598 = vpop.permute.xlu0 %597
    %599 = vrot.lane.b32.xlu0 %v465, 4
    %v600 = vpop.permute.xlu0 %599
    %601 = vrot.lane.b32.xlu0 %v466, 4
    %v602 = vpop.permute.xlu0 %601
    %603 = vrot.lane.b32.xlu0 %v467, 4
    %v604 = vpop.permute.xlu0 %603
    %605 = vrot.lane.b32.xlu0 %v468, 4
    %v606 = vpop.permute.xlu0 %605
    %607 = vrot.lane.b32.xlu0 %v469, 4
    %v608 = vpop.permute.xlu0 %607
    %609 = vrot.lane.b32.xlu0 %v470, 4
    %v610 = vpop.permute.xlu0 %609
    %611 = vrot.lane.b32.xlu0 %v471, 4
    %v612 = vpop.permute.xlu0 %611
    %613 = vrot.lane.b32.xlu0 %v472, 4
    %v614 = vpop.permute.xlu0 %613
    %615 = vrot.lane.b32.xlu0 %v473, 4
    %v616 = vpop.permute.xlu0 %615
    %617 = vrot.lane.b32.xlu0 %v474, 4
    %v618 = vpop.permute.xlu0 %617
    %619 = vrot.lane.b32.xlu0 %v475, 4
    %v620 = vpop.permute.xlu0 %619
    %621 = vrot.lane.b32.xlu0 %v476, 4
    %v622 = vpop.permute.xlu0 %621
    %623 = vrot.lane.b32.xlu0 %v477, 4
    %v624 = vpop.permute.xlu0 %623
    %625 = vrot.lane.b32.xlu0 %v478, 4
    %v626 = vpop.permute.xlu0 %625
    %627 = vrot.lane.b32.xlu0 %v479, 4
    %v628 = vpop.permute.xlu0 %627
    %629 = vrot.lane.b32.xlu0 %v480, 4
    %v630 = vpop.permute.xlu0 %629
    %631 = vrot.lane.b32.xlu0 %v481, 4
    %v632 = vpop.permute.xlu0 %631
    %633 = vrot.lane.b32.xlu0 %v482, 4
    %v634 = vpop.permute.xlu0 %633
    %635 = vrot.lane.b32.xlu0 %v483, 4
    %v636 = vpop.permute.xlu0 %635
    %637 = vrot.lane.b32.xlu0 %v484, 4
    %v638 = vpop.permute.xlu0 %637
    %639 = vrot.lane.b32.xlu0 %v485, 4
    %v640 = vpop.permute.xlu0 %639
    %641 = vrot.lane.b32.xlu0 %v486, 4
    %v642 = vpop.permute.xlu0 %641
    %643 = vrot.lane.b32.xlu0 %v487, 4
    %v644 = vpop.permute.xlu0 %643
    %645 = vrot.lane.b32.xlu0 %v488, 4
    %v646 = vpop.permute.xlu0 %645
    %647 = vrot.lane.b32.xlu0 %v489, 4
    %v648 = vpop.permute.xlu0 %647
    %649 = vrot.lane.b32.xlu0 %v490, 4
    %v650 = vpop.permute.xlu0 %649
    %651 = vrot.lane.b32.xlu0 %v491, 4
    %v652 = vpop.permute.xlu0 %651
    %653 = vrot.lane.b32.xlu0 %v492, 4
    %v654 = vpop.permute.xlu0 %653
    %655 = vrot.lane.b32.xlu0 %v493, 4
    %v656 = vpop.permute.xlu0 %655
    %657 = vrot.lane.b32.xlu0 %v494, 4
    %v658 = vpop.permute.xlu0 %657
    %659 = vrot.lane.b32.xlu0 %v495, 4
    %v660 = vpop.permute.xlu0 %659
    %661 = vrot.lane.b32.xlu0 %v496, 4
    %v662 = vpop.permute.xlu0 %661
    %663 = vrot.lane.b32.xlu0 %v497, 4
    %v664 = vpop.permute.xlu0 %663
    %665 = vrot.lane.b32.xlu0 %v498, 4
    %v666 = vpop.permute.xlu0 %665
    %667 = vrot.lane.b32.xlu0 %v499, 4
    %v668 = vpop.permute.xlu0 %667
    %669 = vrot.lane.b32.xlu0 %v500, 4
    %v670 = vpop.permute.xlu0 %669
    %671 = vrot.lane.b32.xlu0 %v501, 4
    %v672 = vpop.permute.xlu0 %671
    %673 = vrot.lane.b32.xlu0 %v502, 4
    %v674 = vpop.permute.xlu0 %673
    %675 = vrot.lane.b32.xlu0 %v503, 4
    %v676 = vpop.permute.xlu0 %675
    %677 = vrot.lane.b32.xlu0 %v504, 4
    %v678 = vpop.permute.xlu0 %677
    %679 = vrot.lane.b32.xlu0 %v505, 4
    %v680 = vpop.permute.xlu0 %679
    %681 = vrot.lane.b32.xlu0 %v506, 4
    %v682 = vpop.permute.xlu0 %681
    %683 = vrot.lane.b32.xlu0 %v507, 4
    %v684 = vpop.permute.xlu0 %683
    %685 = vrot.lane.b32.xlu0 %v508, 4
    %v686 = vpop.permute.xlu0 %685
    %687 = vrot.lane.b32.xlu0 %v509, 4
    %v688 = vpop.permute.xlu0 %687
    %689 = vrot.lane.b32.xlu0 %v510, 4
    %v690 = vpop.permute.xlu0 %689
    %691 = vrot.lane.b32.xlu0 %v511, 4
    %v692 = vpop.permute.xlu0 %691
    %693 = vrot.lane.b32.xlu0 %v512, 4
    %v694 = vpop.permute.xlu0 %693
    %695 = vrot.lane.b32.xlu0 %v513, 4
    %v696 = vpop.permute.xlu0 %695
    %697 = vrot.lane.b32.xlu0 %v514, 4
    %v698 = vpop.permute.xlu0 %697
    %699 = vrot.lane.b32.xlu0 %v515, 4
    %v700 = vpop.permute.xlu0 %699
    %701 = vrot.lane.b32.xlu0 %v516, 4
    %v702 = vpop.permute.xlu0 %701
    %703 = vrot.lane.b32.xlu0 %v517, 4
    %v704 = vpop.permute.xlu0 %703
    %705 = vrot.lane.b32.xlu0 %v518, 4
    %v706 = vpop.permute.xlu0 %705
    %707 = vrot.lane.b32.xlu0 %v519, 4
    %v708 = vpop.permute.xlu0 %707
    %709 = vrot.lane.b32.xlu0 %v520, 4
    %v710 = vpop.permute.xlu0 %709
    %711 = vrot.lane.b32.xlu0 %v521, 4
    %v712 = vpop.permute.xlu0 %711
    %713 = vrot.lane.b32.xlu0 %v522, 4
    %v714 = vpop.permute.xlu0 %713
    %vm779 = vcmask 64544
    %780 = vst.msk [vmem:[#allocation3] sm:$0xff] %vm779, %v588
    %781 = vst.msk [vmem:[#allocation3 + $0x8] sm:$0xff] %vm779, %v590
    %782 = vst.msk [vmem:[#allocation3 + $0x10] sm:$0xff] %vm779, %v592
    %783 = vst.msk [vmem:[#allocation3 + $0x18] sm:$0xff] %vm779, %v594
    %784 = vst.msk [vmem:[#allocation3 + $0x20] sm:$0xff] %vm779, %v596
    %785 = vst.msk [vmem:[#allocation3 + $0x28] sm:$0xff] %vm779, %v598
    %786 = vst.msk [vmem:[#allocation3 + $0x30] sm:$0xff] %vm779, %v600
    %787 = vst.msk [vmem:[#allocation3 + $0x38] sm:$0xff] %vm779, %v602
    %788 = vst.msk [vmem:[#allocation3 + $0x40] sm:$0xff] %vm779, %v604
    %789 = vst.msk [vmem:[#allocation3 + $0x48] sm:$0xff] %vm779, %v606
    %790 = vst.msk [vmem:[#allocation3 + $0x50] sm:$0xff] %vm779, %v608
    %791 = vst.msk [vmem:[#allocation3 + $0x58] sm:$0xff] %vm779, %v610
    %792 = vst.msk [vmem:[#allocation3 + $0x60] sm:$0xff] %vm779, %v612
    %793 = vst.msk [vmem:[#allocation3 + $0x68] sm:$0xff] %vm779, %v614
    %794 = vst.msk [vmem:[#allocation3 + $0x70] sm:$0xff] %vm779, %v616
    %795 = vst.msk [vmem:[#allocation3 + $0x78] sm:$0xff] %vm779, %v618
    %796 = vst.msk [vmem:[#allocation3 + $0x80] sm:$0xff] %vm779, %v620
    %797 = vst.msk [vmem:[#allocation3 + $0x88] sm:$0xff] %vm779, %v622
    %798 = vst.msk [vmem:[#allocation3 + $0x90] sm:$0xff] %vm779, %v624
    %799 = vst.msk [vmem:[#allocation3 + $0x98] sm:$0xff] %vm779, %v626
    %800 = vst.msk [vmem:[#allocation3 + $0xa0] sm:$0xff] %vm779, %v628
    %801 = vst.msk [vmem:[#allocation3 + $0xa8] sm:$0xff] %vm779, %v630
    %802 = vst.msk [vmem:[#allocation3 + $0xb0] sm:$0xff] %vm779, %v632
    %803 = vst.msk [vmem:[#allocation3 + $0xb8] sm:$0xff] %vm779, %v634
    %804 = vst.msk [vmem:[#allocation3 + $0xc0] sm:$0xff] %vm779, %v636
    %805 = vst.msk [vmem:[#allocation3 + $0xc8] sm:$0xff] %vm779, %v638
    %806 = vst.msk [vmem:[#allocation3 + $0xd0] sm:$0xff] %vm779, %v640
    %807 = vst.msk [vmem:[#allocation3 + $0xd8] sm:$0xff] %vm779, %v642
    %808 = vst.msk [vmem:[#allocation3 + $0xe0] sm:$0xff] %vm779, %v644
    %809 = vst.msk [vmem:[#allocation3 + $0xe8] sm:$0xff] %vm779, %v646
    %810 = vst.msk [vmem:[#allocation3 + $0xf0] sm:$0xff] %vm779, %v648
    %811 = vst.msk [vmem:[#allocation3 + $0xf8] sm:$0xff] %vm779, %v650
    %812 = vst.msk [vmem:[#allocation3 + $0x100] sm:$0xff] %vm779, %v652
    %813 = vst.msk [vmem:[#allocation3 + $0x108] sm:$0xff] %vm779, %v654
    %814 = vst.msk [vmem:[#allocation3 + $0x110] sm:$0xff] %vm779, %v656
    %815 = vst.msk [vmem:[#allocation3 + $0x118] sm:$0xff] %vm779, %v658
    %816 = vst.msk [vmem:[#allocation3 + $0x120] sm:$0xff] %vm779, %v660
    %817 = vst.msk [vmem:[#allocation3 + $0x128] sm:$0xff] %vm779, %v662
    %818 = vst.msk [vmem:[#allocation3 + $0x130] sm:$0xff] %vm779, %v664
    %819 = vst.msk [vmem:[#allocation3 + $0x138] sm:$0xff] %vm779, %v666
    %820 = vst.msk [vmem:[#allocation3 + $0x140] sm:$0xff] %vm779, %v668
    %821 = vst.msk [vmem:[#allocation3 + $0x148] sm:$0xff] %vm779, %v670
    %822 = vst.msk [vmem:[#allocation3 + $0x150] sm:$0xff] %vm779, %v672
    %823 = vst.msk [vmem:[#allocation3 + $0x158] sm:$0xff] %vm779, %v674
    %824 = vst.msk [vmem:[#allocation3 + $0x160] sm:$0xff] %vm779, %v676
    %825 = vst.msk [vmem:[#allocation3 + $0x168] sm:$0xff] %vm779, %v678
    %826 = vst.msk [vmem:[#allocation3 + $0x170] sm:$0xff] %vm779, %v680
    %827 = vst.msk [vmem:[#allocation3 + $0x178] sm:$0xff] %vm779, %v682
    %828 = vst.msk [vmem:[#allocation3 + $0x180] sm:$0xff] %vm779, %v684
    %829 = vst.msk [vmem:[#allocation3 + $0x188] sm:$0xff] %vm779, %v686
    %830 = vst.msk [vmem:[#allocation3 + $0x190] sm:$0xff] %vm779, %v688
    %831 = vst.msk [vmem:[#allocation3 + $0x198] sm:$0xff] %vm779, %v690
    %832 = vst.msk [vmem:[#allocation3 + $0x1a0] sm:$0xff] %vm779, %v692
    %833 = vst.msk [vmem:[#allocation3 + $0x1a8] sm:$0xff] %vm779, %v694
    %834 = vst.msk [vmem:[#allocation3 + $0x1b0] sm:$0xff] %vm779, %v696
    %835 = vst.msk [vmem:[#allocation3 + $0x1b8] sm:$0xff] %vm779, %v698
    %836 = vst.msk [vmem:[#allocation3 + $0x1c0] sm:$0xff] %vm779, %v700
    %837 = vst.msk [vmem:[#allocation3 + $0x1c8] sm:$0xff] %vm779, %v702
    %838 = vst.msk [vmem:[#allocation3 + $0x1d0] sm:$0xff] %vm779, %v704
    %839 = vst.msk [vmem:[#allocation3 + $0x1d8] sm:$0xff] %vm779, %v706
    %840 = vst.msk [vmem:[#allocation3 + $0x1e0] sm:$0xff] %vm779, %v708
    %841 = vst.msk [vmem:[#allocation3 + $0x1e8] sm:$0xff] %vm779, %v710
    %842 = vst.msk [vmem:[#allocation3 + $0x1f0] sm:$0xff] %vm779, %v712
    %843 = vst.msk [vmem:[#allocation3 + $0x1f8] sm:$0xff] %vm779, %v714
    %v844 = vld [vmem:[#allocation2 + $0x2] sm:$0xff]
    %v845 = vld [vmem:[#allocation2 + $0xa] sm:$0xff]
    %v846 = vld [vmem:[#allocation2 + $0x1a] sm:$0xff]
    %v847 = vld [vmem:[#allocation2 + $0x22] sm:$0xff]
    %v848 = vld [vmem:[#allocation2 + $0x32] sm:$0xff]
    %v849 = vld [vmem:[#allocation2 + $0x3a] sm:$0xff]
    %v850 = vld [vmem:[#allocation2 + $0x4a] sm:$0xff]
    %v851 = vld [vmem:[#allocation2 + $0x52] sm:$0xff]
    %v852 = vld [vmem:[#allocation2 + $0x62] sm:$0xff]
    %v853 = vld [vmem:[#allocation2 + $0x6a] sm:$0xff]
    %v854 = vld [vmem:[#allocation2 + $0x7a] sm:$0xff]
    %v855 = vld [vmem:[#allocation2 + $0x82] sm:$0xff]
    %v856 = vld [vmem:[#allocation2 + $0x92] sm:$0xff]
    %v857 = vld [vmem:[#allocation2 + $0x9a] sm:$0xff]
    %v858 = vld [vmem:[#allocation2 + $0xaa] sm:$0xff]
    %v859 = vld [vmem:[#allocation2 + $0xb2] sm:$0xff]
    %v860 = vld [vmem:[#allocation2 + $0xc2] sm:$0xff]
    %v861 = vld [vmem:[#allocation2 + $0xca] sm:$0xff]
    %v862 = vld [vmem:[#allocation2 + $0xda] sm:$0xff]
    %v863 = vld [vmem:[#allocation2 + $0xe2] sm:$0xff]
    %v864 = vld [vmem:[#allocation2 + $0xf2] sm:$0xff]
    %v865 = vld [vmem:[#allocation2 + $0xfa] sm:$0xff]
    %v866 = vld [vmem:[#allocation2 + $0x10a] sm:$0xff]
    %v867 = vld [vmem:[#allocation2 + $0x112] sm:$0xff]
    %v868 = vld [vmem:[#allocation2 + $0x122] sm:$0xff]
    %v869 = vld [vmem:[#allocation2 + $0x12a] sm:$0xff]
    %v870 = vld [vmem:[#allocation2 + $0x13a] sm:$0xff]
    %v871 = vld [vmem:[#allocation2 + $0x142] sm:$0xff]
    %v872 = vld [vmem:[#allocation2 + $0x152] sm:$0xff]
    %v873 = vld [vmem:[#allocation2 + $0x15a] sm:$0xff]
    %v874 = vld [vmem:[#allocation2 + $0x16a] sm:$0xff]
    %v875 = vld [vmem:[#allocation2 + $0x172] sm:$0xff]
    %v876 = vld [vmem:[#allocation2 + $0x1b2] sm:$0xff]
    %v877 = vld [vmem:[#allocation2 + $0x1ba] sm:$0xff]
    %v878 = vld [vmem:[#allocation2 + $0x1ca] sm:$0xff]
    %v879 = vld [vmem:[#allocation2 + $0x1d2] sm:$0xff]
    %v880 = vld [vmem:[#allocation2 + $0x1e2] sm:$0xff]
    %v881 = vld [vmem:[#allocation2 + $0x1ea] sm:$0xff]
    %v882 = vld [vmem:[#allocation2 + $0x1fa] sm:$0xff]
    %v883 = vld [vmem:[#allocation2 + $0x202] sm:$0xff]
    %v884 = vld [vmem:[#allocation2 + $0x212] sm:$0xff]
    %v885 = vld [vmem:[#allocation2 + $0x21a] sm:$0xff]
    %v886 = vld [vmem:[#allocation2 + $0x22a] sm:$0xff]
    %v887 = vld [vmem:[#allocation2 + $0x232] sm:$0xff]
    %v888 = vld [vmem:[#allocation2 + $0x242] sm:$0xff]
    %v889 = vld [vmem:[#allocation2 + $0x24a] sm:$0xff]
    %v890 = vld [vmem:[#allocation2 + $0x25a] sm:$0xff]
    %v891 = vld [vmem:[#allocation2 + $0x262] sm:$0xff]
    %v892 = vld [vmem:[#allocation2 + $0x272] sm:$0xff]
    %v893 = vld [vmem:[#allocation2 + $0x27a] sm:$0xff]
    %v894 = vld [vmem:[#allocation2 + $0x28a] sm:$0xff]
    %v895 = vld [vmem:[#allocation2 + $0x292] sm:$0xff]
    %v896 = vld [vmem:[#allocation2 + $0x2a2] sm:$0xff]
    %v897 = vld [vmem:[#allocation2 + $0x2aa] sm:$0xff]
    %v898 = vld [vmem:[#allocation2 + $0x2ba] sm:$0xff]
    %v899 = vld [vmem:[#allocation2 + $0x2c2] sm:$0xff]
    %v900 = vld [vmem:[#allocation2 + $0x2d2] sm:$0xff]
    %v901 = vld [vmem:[#allocation2 + $0x2da] sm:$0xff]
    %v902 = vld [vmem:[#allocation2 + $0x2ea] sm:$0xff]
    %v903 = vld [vmem:[#allocation2 + $0x2f2] sm:$0xff]
    %v904 = vld [vmem:[#allocation2 + $0x302] sm:$0xff]
    %v905 = vld [vmem:[#allocation2 + $0x30a] sm:$0xff]
    %v906 = vld [vmem:[#allocation2 + $0x31a] sm:$0xff]
    %v907 = vld [vmem:[#allocation2 + $0x322] sm:$0xff]
    %972 = vrot.lane.b32.xlu0 %v844, 8
    %v973 = vpop.permute.xlu0 %972
    %974 = vrot.lane.b32.xlu0 %v845, 8
    %v975 = vpop.permute.xlu0 %974
    %976 = vrot.lane.b32.xlu0 %v846, 8
    %v977 = vpop.permute.xlu0 %976
    %978 = vrot.lane.b32.xlu0 %v847, 8
    %v979 = vpop.permute.xlu0 %978
    %980 = vrot.lane.b32.xlu0 %v848, 8
    %v981 = vpop.permute.xlu0 %980
    %982 = vrot.lane.b32.xlu0 %v849, 8
    %v983 = vpop.permute.xlu0 %982
    %984 = vrot.lane.b32.xlu0 %v850, 8
    %v985 = vpop.permute.xlu0 %984
    %986 = vrot.lane.b32.xlu0 %v851, 8
    %v987 = vpop.permute.xlu0 %986
    %988 = vrot.lane.b32.xlu0 %v852, 8
    %v989 = vpop.permute.xlu0 %988
    %990 = vrot.lane.b32.xlu0 %v853, 8
    %v991 = vpop.permute.xlu0 %990
    %992 = vrot.lane.b32.xlu0 %v854, 8
    %v993 = vpop.permute.xlu0 %992
    %994 = vrot.lane.b32.xlu0 %v855, 8
    %v995 = vpop.permute.xlu0 %994
    %996 = vrot.lane.b32.xlu0 %v856, 8
    %v997 = vpop.permute.xlu0 %996
    %998 = vrot.lane.b32.xlu0 %v857, 8
    %v999 = vpop.permute.xlu0 %998
    %1000 = vrot.lane.b32.xlu0 %v858, 8
    %v1001 = vpop.permute.xlu0 %1000
    %1002 = vrot.lane.b32.xlu0 %v859, 8
    %v1003 = vpop.permute.xlu0 %1002
    %1004 = vrot.lane.b32.xlu0 %v860, 8
    %v1005 = vpop.permute.xlu0 %1004
    %1006 = vrot.lane.b32.xlu0 %v861, 8
    %v1007 = vpop.permute.xlu0 %1006
    %1008 = vrot.lane.b32.xlu0 %v862, 8
    %v1009 = vpop.permute.xlu0 %1008
    %1010 = vrot.lane.b32.xlu0 %v863, 8
    %v1011 = vpop.permute.xlu0 %1010
    %1012 = vrot.lane.b32.xlu0 %v864, 8
    %v1013 = vpop.permute.xlu0 %1012
    %1014 = vrot.lane.b32.xlu0 %v865, 8
    %v1015 = vpop.permute.xlu0 %1014
    %1016 = vrot.lane.b32.xlu0 %v866, 8
    %v1017 = vpop.permute.xlu0 %1016
    %1018 = vrot.lane.b32.xlu0 %v867, 8
    %v1019 = vpop.permute.xlu0 %1018
    %1020 = vrot.lane.b32.xlu0 %v868, 8
    %v1021 = vpop.permute.xlu0 %1020
    %1022 = vrot.lane.b32.xlu0 %v869, 8
    %v1023 = vpop.permute.xlu0 %1022
    %1024 = vrot.lane.b32.xlu0 %v870, 8
    %v1025 = vpop.permute.xlu0 %1024
    %1026 = vrot.lane.b32.xlu0 %v871, 8
    %v1027 = vpop.permute.xlu0 %1026
    %1028 = vrot.lane.b32.xlu0 %v872, 8
    %v1029 = vpop.permute.xlu0 %1028
    %1030 = vrot.lane.b32.xlu0 %v873, 8
    %v1031 = vpop.permute.xlu0 %1030
    %1032 = vrot.lane.b32.xlu0 %v874, 8
    %v1033 = vpop.permute.xlu0 %1032
    %1034 = vrot.lane.b32.xlu0 %v875, 8
    %v1035 = vpop.permute.xlu0 %1034
    %1036 = vrot.lane.b32.xlu0 %v876, 8
    %v1037 = vpop.permute.xlu0 %1036
    %1038 = vrot.lane.b32.xlu0 %v877, 8
    %v1039 = vpop.permute.xlu0 %1038
    %1040 = vrot.lane.b32.xlu0 %v878, 8
    %v1041 = vpop.permute.xlu0 %1040
    %1042 = vrot.lane.b32.xlu0 %v879, 8
    %v1043 = vpop.permute.xlu0 %1042
    %1044 = vrot.lane.b32.xlu0 %v880, 8
    %v1045 = vpop.permute.xlu0 %1044
    %1046 = vrot.lane.b32.xlu0 %v881, 8
    %v1047 = vpop.permute.xlu0 %1046
    %1048 = vrot.lane.b32.xlu0 %v882, 8
    %v1049 = vpop.permute.xlu0 %1048
    %1050 = vrot.lane.b32.xlu0 %v883, 8
    %v1051 = vpop.permute.xlu0 %1050
    %1052 = vrot.lane.b32.xlu0 %v884, 8
    %v1053 = vpop.permute.xlu0 %1052
    %1054 = vrot.lane.b32.xlu0 %v885, 8
    %v1055 = vpop.permute.xlu0 %1054
    %1056 = vrot.lane.b32.xlu0 %v886, 8
    %v1057 = vpop.permute.xlu0 %1056
    %1058 = vrot.lane.b32.xlu0 %v887, 8
    %v1059 = vpop.permute.xlu0 %1058
    %1060 = vrot.lane.b32.xlu0 %v888, 8
    %v1061 = vpop.permute.xlu0 %1060
    %1062 = vrot.lane.b32.xlu0 %v889, 8
    %v1063 = vpop.permute.xlu0 %1062
    %1064 = vrot.lane.b32.xlu0 %v890, 8
    %v1065 = vpop.permute.xlu0 %1064
    %1066 = vrot.lane.b32.xlu0 %v891, 8
    %v1067 = vpop.permute.xlu0 %1066
    %1068 = vrot.lane.b32.xlu0 %v892, 8
    %v1069 = vpop.permute.xlu0 %1068
    %1070 = vrot.lane.b32.xlu0 %v893, 8
    %v1071 = vpop.permute.xlu0 %1070
    %1072 = vrot.lane.b32.xlu0 %v894, 8
    %v1073 = vpop.permute.xlu0 %1072
    %1074 = vrot.lane.b32.xlu0 %v895, 8
    %v1075 = vpop.permute.xlu0 %1074
    %1076 = vrot.lane.b32.xlu0 %v896, 8
    %v1077 = vpop.permute.xlu0 %1076
    %1078 = vrot.lane.b32.xlu0 %v897, 8
    %v1079 = vpop.permute.xlu0 %1078
    %1080 = vrot.lane.b32.xlu0 %v898, 8
    %v1081 = vpop.permute.xlu0 %1080
    %1082 = vrot.lane.b32.xlu0 %v899, 8
    %v1083 = vpop.permute.xlu0 %1082
    %1084 = vrot.lane.b32.xlu0 %v900, 8
    %v1085 = vpop.permute.xlu0 %1084
    %1086 = vrot.lane.b32.xlu0 %v901, 8
    %v1087 = vpop.permute.xlu0 %1086
    %1088 = vrot.lane.b32.xlu0 %v902, 8
    %v1089 = vpop.permute.xlu0 %1088
    %1090 = vrot.lane.b32.xlu0 %v903, 8
    %v1091 = vpop.permute.xlu0 %1090
    %1092 = vrot.lane.b32.xlu0 %v904, 8
    %v1093 = vpop.permute.xlu0 %1092
    %1094 = vrot.lane.b32.xlu0 %v905, 8
    %v1095 = vpop.permute.xlu0 %1094
    %1096 = vrot.lane.b32.xlu0 %v906, 8
    %v1097 = vpop.permute.xlu0 %1096
    %1098 = vrot.lane.b32.xlu0 %v907, 8
    %v1099 = vpop.permute.xlu0 %1098
    %vm1164 = vcmask 97344
    %1165 = vst.msk [vmem:[#allocation3] sm:$0xff] %vm1164, %v973
    %1166 = vst.msk [vmem:[#allocation3 + $0x8] sm:$0xff] %vm1164, %v975
    %1167 = vst.msk [vmem:[#allocation3 + $0x10] sm:$0xff] %vm1164, %v977
    %1168 = vst.msk [vmem:[#allocation3 + $0x18] sm:$0xff] %vm1164, %v979
    %1169 = vst.msk [vmem:[#allocation3 + $0x20] sm:$0xff] %vm1164, %v981
    %1170 = vst.msk [vmem:[#allocation3 + $0x28] sm:$0xff] %vm1164, %v983
    %1171 = vst.msk [vmem:[#allocation3 + $0x30] sm:$0xff] %vm1164, %v985
    %1172 = vst.msk [vmem:[#allocation3 + $0x38] sm:$0xff] %vm1164, %v987
    %1173 = vst.msk [vmem:[#allocation3 + $0x40] sm:$0xff] %vm1164, %v989
    %1174 = vst.msk [vmem:[#allocation3 + $0x48] sm:$0xff] %vm1164, %v991
    %1175 = vst.msk [vmem:[#allocation3 + $0x50] sm:$0xff] %vm1164, %v993
    %1176 = vst.msk [vmem:[#allocation3 + $0x58] sm:$0xff] %vm1164, %v995
    %1177 = vst.msk [vmem:[#allocation3 + $0x60] sm:$0xff] %vm1164, %v997
    %1178 = vst.msk [vmem:[#allocation3 + $0x68] sm:$0xff] %vm1164, %v999
    %1179 = vst.msk [vmem:[#allocation3 + $0x70] sm:$0xff] %vm1164, %v1001
    %1180 = vst.msk [vmem:[#allocation3 + $0x78] sm:$0xff] %vm1164, %v1003
    %1181 = vst.msk [vmem:[#allocation3 + $0x80] sm:$0xff] %vm1164, %v1005
    %1182 = vst.msk [vmem:[#allocation3 + $0x88] sm:$0xff] %vm1164, %v1007
    %1183 = vst.msk [vmem:[#allocation3 + $0x90] sm:$0xff] %vm1164, %v1009
    %1184 = vst.msk [vmem:[#allocation3 + $0x98] sm:$0xff] %vm1164, %v1011
    %1185 = vst.msk [vmem:[#allocation3 + $0xa0] sm:$0xff] %vm1164, %v1013
    %1186 = vst.msk [vmem:[#allocation3 + $0xa8] sm:$0xff] %vm1164, %v1015
    %1187 = vst.msk [vmem:[#allocation3 + $0xb0] sm:$0xff] %vm1164, %v1017
    %1188 = vst.msk [vmem:[#allocation3 + $0xb8] sm:$0xff] %vm1164, %v1019
    %1189 = vst.msk [vmem:[#allocation3 + $0xc0] sm:$0xff] %vm1164, %v1021
    %1190 = vst.msk [vmem:[#allocation3 + $0xc8] sm:$0xff] %vm1164, %v1023
    %1191 = vst.msk [vmem:[#allocation3 + $0xd0] sm:$0xff] %vm1164, %v1025
    %1192 = vst.msk [vmem:[#allocation3 + $0xd8] sm:$0xff] %vm1164, %v1027
    %1193 = vst.msk [vmem:[#allocation3 + $0xe0] sm:$0xff] %vm1164, %v1029
    %1194 = vst.msk [vmem:[#allocation3 + $0xe8] sm:$0xff] %vm1164, %v1031
    %1195 = vst.msk [vmem:[#allocation3 + $0xf0] sm:$0xff] %vm1164, %v1033
    %1196 = vst.msk [vmem:[#allocation3 + $0xf8] sm:$0xff] %vm1164, %v1035
    %1197 = vst.msk [vmem:[#allocation3 + $0x100] sm:$0xff] %vm1164, %v1037
    %1198 = vst.msk [vmem:[#allocation3 + $0x108] sm:$0xff] %vm1164, %v1039
    %1199 = vst.msk [vmem:[#allocation3 + $0x110] sm:$0xff] %vm1164, %v1041
    %1200 = vst.msk [vmem:[#allocation3 + $0x118] sm:$0xff] %vm1164, %v1043
    %1201 = vst.msk [vmem:[#allocation3 + $0x120] sm:$0xff] %vm1164, %v1045
    %1202 = vst.msk [vmem:[#allocation3 + $0x128] sm:$0xff] %vm1164, %v1047
    %1203 = vst.msk [vmem:[#allocation3 + $0x130] sm:$0xff] %vm1164, %v1049
    %1204 = vst.msk [vmem:[#allocation3 + $0x138] sm:$0xff] %vm1164, %v1051
    %1205 = vst.msk [vmem:[#allocation3 + $0x140] sm:$0xff] %vm1164, %v1053
    %1206 = vst.msk [vmem:[#allocation3 + $0x148] sm:$0xff] %vm1164, %v1055
    %1207 = vst.msk [vmem:[#allocation3 + $0x150] sm:$0xff] %vm1164, %v1057
    %1208 = vst.msk [vmem:[#allocation3 + $0x158] sm:$0xff] %vm1164, %v1059
    %1209 = vst.msk [vmem:[#allocation3 + $0x160] sm:$0xff] %vm1164, %v1061
    %1210 = vst.msk [vmem:[#allocation3 + $0x168] sm:$0xff] %vm1164, %v1063
    %1211 = vst.msk [vmem:[#allocation3 + $0x170] sm:$0xff] %vm1164, %v1065
    %1212 = vst.msk [vmem:[#allocation3 + $0x178] sm:$0xff] %vm1164, %v1067
    %1213 = vst.msk [vmem:[#allocation3 + $0x180] sm:$0xff] %vm1164, %v1069
    %1214 = vst.msk [vmem:[#allocation3 + $0x188] sm:$0xff] %vm1164, %v1071
    %1215 = vst.msk [vmem:[#allocation3 + $0x190] sm:$0xff] %vm1164, %v1073
    %1216 = vst.msk [vmem:[#allocation3 + $0x198] sm:$0xff] %vm1164, %v1075
    %1217 = vst.msk [vmem:[#allocation3 + $0x1a0] sm:$0xff] %vm1164, %v1077
    %1218 = vst.msk [vmem:[#allocation3 + $0x1a8] sm:$0xff] %vm1164, %v1079
    %1219 = vst.msk [vmem:[#allocation3 + $0x1b0] sm:$0xff] %vm1164, %v1081
    %1220 = vst.msk [vmem:[#allocation3 + $0x1b8] sm:$0xff] %vm1164, %v1083
    %1221 = vst.msk [vmem:[#allocation3 + $0x1c0] sm:$0xff] %vm1164, %v1085
    %1222 = vst.msk [vmem:[#allocation3 + $0x1c8] sm:$0xff] %vm1164, %v1087
    %1223 = vst.msk [vmem:[#allocation3 + $0x1d0] sm:$0xff] %vm1164, %v1089
    %1224 = vst.msk [vmem:[#allocation3 + $0x1d8] sm:$0xff] %vm1164, %v1091
    %1225 = vst.msk [vmem:[#allocation3 + $0x1e0] sm:$0xff] %vm1164, %v1093
    %1226 = vst.msk [vmem:[#allocation3 + $0x1e8] sm:$0xff] %vm1164, %v1095
    %1227 = vst.msk [vmem:[#allocation3 + $0x1f0] sm:$0xff] %vm1164, %v1097
    %1228 = vst.msk [vmem:[#allocation3 + $0x1f8] sm:$0xff] %vm1164, %v1099
    %v1229 = vld [vmem:[%s266] sm:$0xff]
    %v1230 = vld [vmem:[%s266 + $0x8] sm:$0xff]
    %v1231 = vld [vmem:[%s266 + $0x18] sm:$0xff]
    %v1232 = vld [vmem:[%s266 + $0x20] sm:$0xff]
    %v1233 = vld [vmem:[%s266 + $0x30] sm:$0xff]
    %v1234 = vld [vmem:[%s266 + $0x38] sm:$0xff]
    %v1235 = vld [vmem:[%s266 + $0x48] sm:$0xff]
    %v1236 = vld [vmem:[%s266 + $0x50] sm:$0xff]
    %v1237 = vld [vmem:[%s266 + $0x60] sm:$0xff]
    %v1238 = vld [vmem:[%s266 + $0x68] sm:$0xff]
    %v1239 = vld [vmem:[%s266 + $0x78] sm:$0xff]
    %v1240 = vld [vmem:[%s266 + $0x80] sm:$0xff]
    %v1241 = vld [vmem:[%s266 + $0x90] sm:$0xff]
    %v1242 = vld [vmem:[%s266 + $0x98] sm:$0xff]
    %v1243 = vld [vmem:[%s266 + $0xa8] sm:$0xff]
    %v1244 = vld [vmem:[%s266 + $0xb0] sm:$0xff]
    %v1245 = vld [vmem:[%s266 + $0xc0] sm:$0xff]
    %v1246 = vld [vmem:[%s266 + $0xc8] sm:$0xff]
    %v1247 = vld [vmem:[%s266 + $0xd8] sm:$0xff]
    %v1248 = vld [vmem:[%s266 + $0xe0] sm:$0xff]
    %v1249 = vld [vmem:[%s266 + $0xf0] sm:$0xff]
    %v1250 = vld [vmem:[%s266 + $0xf8] sm:$0xff]
    %v1251 = vld [vmem:[%s266 + $0x108] sm:$0xff]
    %v1252 = vld [vmem:[%s266 + $0x110] sm:$0xff]
    %v1253 = vld [vmem:[%s266 + $0x120] sm:$0xff]
    %v1254 = vld [vmem:[%s266 + $0x128] sm:$0xff]
    %v1255 = vld [vmem:[%s266 + $0x138] sm:$0xff]
    %v1256 = vld [vmem:[%s266 + $0x140] sm:$0xff]
    %v1257 = vld [vmem:[%s266 + $0x150] sm:$0xff]
    %v1258 = vld [vmem:[%s266 + $0x158] sm:$0xff]
    %v1259 = vld [vmem:[%s266 + $0x168] sm:$0xff]
    %v1260 = vld [vmem:[%s266 + $0x170] sm:$0xff]
    %v1261 = vld [vmem:[%s266 + $0x1b0] sm:$0xff]
    %v1262 = vld [vmem:[%s266 + $0x1b8] sm:$0xff]
    %v1263 = vld [vmem:[%s266 + $0x1c8] sm:$0xff]
    %v1264 = vld [vmem:[%s266 + $0x1d0] sm:$0xff]
    %v1265 = vld [vmem:[%s266 + $0x1e0] sm:$0xff]
    %v1266 = vld [vmem:[%s266 + $0x1e8] sm:$0xff]
    %v1267 = vld [vmem:[%s266 + $0x1f8] sm:$0xff]
    %v1268 = vld [vmem:[%s266 + $0x200] sm:$0xff]
    %v1269 = vld [vmem:[%s266 + $0x210] sm:$0xff]
    %v1270 = vld [vmem:[%s266 + $0x218] sm:$0xff]
    %v1271 = vld [vmem:[%s266 + $0x228] sm:$0xff]
    %v1272 = vld [vmem:[%s266 + $0x230] sm:$0xff]
    %v1273 = vld [vmem:[%s266 + $0x240] sm:$0xff]
    %v1274 = vld [vmem:[%s266 + $0x248] sm:$0xff]
    %v1275 = vld [vmem:[%s266 + $0x258] sm:$0xff]
    %v1276 = vld [vmem:[%s266 + $0x260] sm:$0xff]
    %v1277 = vld [vmem:[%s266 + $0x270] sm:$0xff]
    %v1278 = vld [vmem:[%s266 + $0x278] sm:$0xff]
    %v1279 = vld [vmem:[%s266 + $0x288] sm:$0xff]
    %v1280 = vld [vmem:[%s266 + $0x290] sm:$0xff]
    %v1281 = vld [vmem:[%s266 + $0x2a0] sm:$0xff]
    %v1282 = vld [vmem:[%s266 + $0x2a8] sm:$0xff]
    %v1283 = vld [vmem:[%s266 + $0x2b8] sm:$0xff]
    %v1284 = vld [vmem:[%s266 + $0x2c0] sm:$0xff]
    %v1285 = vld [vmem:[%s266 + $0x2d0] sm:$0xff]
    %v1286 = vld [vmem:[%s266 + $0x2d8] sm:$0xff]
    %v1287 = vld [vmem:[%s266 + $0x2e8] sm:$0xff]
    %v1288 = vld [vmem:[%s266 + $0x2f0] sm:$0xff]
    %v1289 = vld [vmem:[%s266 + $0x300] sm:$0xff]
    %v1290 = vld [vmem:[%s266 + $0x308] sm:$0xff]
    %v1291 = vld [vmem:[%s266 + $0x318] sm:$0xff]
    %v1292 = vld [vmem:[%s266 + $0x320] sm:$0xff]
    %1357 = vrot.lane.b32.xlu0 %v1229, 12
    %v1358 = vpop.permute.xlu0 %1357
    %1359 = vrot.lane.b32.xlu0 %v1230, 12
    %v1360 = vpop.permute.xlu0 %1359
    %1361 = vrot.lane.b32.xlu0 %v1231, 12
    %v1362 = vpop.permute.xlu0 %1361
    %1363 = vrot.lane.b32.xlu0 %v1232, 12
    %v1364 = vpop.permute.xlu0 %1363
    %1365 = vrot.lane.b32.xlu0 %v1233, 12
    %v1366 = vpop.permute.xlu0 %1365
    %1367 = vrot.lane.b32.xlu0 %v1234, 12
    %v1368 = vpop.permute.xlu0 %1367
    %1369 = vrot.lane.b32.xlu0 %v1235, 12
    %v1370 = vpop.permute.xlu0 %1369
    %1371 = vrot.lane.b32.xlu0 %v1236, 12
    %v1372 = vpop.permute.xlu0 %1371
    %1373 = vrot.lane.b32.xlu0 %v1237, 12
    %v1374 = vpop.permute.xlu0 %1373
    %1375 = vrot.lane.b32.xlu0 %v1238, 12
    %v1376 = vpop.permute.xlu0 %1375
    %1377 = vrot.lane.b32.xlu0 %v1239, 12
    %v1378 = vpop.permute.xlu0 %1377
    %1379 = vrot.lane.b32.xlu0 %v1240, 12
    %v1380 = vpop.permute.xlu0 %1379
    %1381 = vrot.lane.b32.xlu0 %v1241, 12
    %v1382 = vpop.permute.xlu0 %1381
    %1383 = vrot.lane.b32.xlu0 %v1242, 12
    %v1384 = vpop.permute.xlu0 %1383
    %1385 = vrot.lane.b32.xlu0 %v1243, 12
    %v1386 = vpop.permute.xlu0 %1385
    %1387 = vrot.lane.b32.xlu0 %v1244, 12
    %v1388 = vpop.permute.xlu0 %1387
    %1389 = vrot.lane.b32.xlu0 %v1245, 12
    %v1390 = vpop.permute.xlu0 %1389
    %1391 = vrot.lane.b32.xlu0 %v1246, 12
    %v1392 = vpop.permute.xlu0 %1391
    %1393 = vrot.lane.b32.xlu0 %v1247, 12
    %v1394 = vpop.permute.xlu0 %1393
    %1395 = vrot.lane.b32.xlu0 %v1248, 12
    %v1396 = vpop.permute.xlu0 %1395
    %1397 = vrot.lane.b32.xlu0 %v1249, 12
    %v1398 = vpop.permute.xlu0 %1397
    %1399 = vrot.lane.b32.xlu0 %v1250, 12
    %v1400 = vpop.permute.xlu0 %1399
    %1401 = vrot.lane.b32.xlu0 %v1251, 12
    %v1402 = vpop.permute.xlu0 %1401
    %1403 = vrot.lane.b32.xlu0 %v1252, 12
    %v1404 = vpop.permute.xlu0 %1403
    %1405 = vrot.lane.b32.xlu0 %v1253, 12
    %v1406 = vpop.permute.xlu0 %1405
    %1407 = vrot.lane.b32.xlu0 %v1254, 12
    %v1408 = vpop.permute.xlu0 %1407
    %1409 = vrot.lane.b32.xlu0 %v1255, 12
    %v1410 = vpop.permute.xlu0 %1409
    %1411 = vrot.lane.b32.xlu0 %v1256, 12
    %v1412 = vpop.permute.xlu0 %1411
    %1413 = vrot.lane.b32.xlu0 %v1257, 12
    %v1414 = vpop.permute.xlu0 %1413
    %1415 = vrot.lane.b32.xlu0 %v1258, 12
    %v1416 = vpop.permute.xlu0 %1415
    %1417 = vrot.lane.b32.xlu0 %v1259, 12
    %v1418 = vpop.permute.xlu0 %1417
    %1419 = vrot.lane.b32.xlu0 %v1260, 12
    %v1420 = vpop.permute.xlu0 %1419
    %1421 = vrot.lane.b32.xlu0 %v1261, 12
    %v1422 = vpop.permute.xlu0 %1421
    %1423 = vrot.lane.b32.xlu0 %v1262, 12
    %v1424 = vpop.permute.xlu0 %1423
    %1425 = vrot.lane.b32.xlu0 %v1263, 12
    %v1426 = vpop.permute.xlu0 %1425
    %1427 = vrot.lane.b32.xlu0 %v1264, 12
    %v1428 = vpop.permute.xlu0 %1427
    %1429 = vrot.lane.b32.xlu0 %v1265, 12
    %v1430 = vpop.permute.xlu0 %1429
    %1431 = vrot.lane.b32.xlu0 %v1266, 12
    %v1432 = vpop.permute.xlu0 %1431
    %1433 = vrot.lane.b32.xlu0 %v1267, 12
    %v1434 = vpop.permute.xlu0 %1433
    %1435 = vrot.lane.b32.xlu0 %v1268, 12
    %v1436 = vpop.permute.xlu0 %1435
    %1437 = vrot.lane.b32.xlu0 %v1269, 12
    %v1438 = vpop.permute.xlu0 %1437
    %1439 = vrot.lane.b32.xlu0 %v1270, 12
    %v1440 = vpop.permute.xlu0 %1439
    %1441 = vrot.lane.b32.xlu0 %v1271, 12
    %v1442 = vpop.permute.xlu0 %1441
    %1443 = vrot.lane.b32.xlu0 %v1272, 12
    %v1444 = vpop.permute.xlu0 %1443
    %1445 = vrot.lane.b32.xlu0 %v1273, 12
    %v1446 = vpop.permute.xlu0 %1445
    %1447 = vrot.lane.b32.xlu0 %v1274, 12
    %v1448 = vpop.permute.xlu0 %1447
    %1449 = vrot.lane.b32.xlu0 %v1275, 12
    %v1450 = vpop.permute.xlu0 %1449
    %1451 = vrot.lane.b32.xlu0 %v1276, 12
    %v1452 = vpop.permute.xlu0 %1451
    %1453 = vrot.lane.b32.xlu0 %v1277, 12
    %v1454 = vpop.permute.xlu0 %1453
    %1455 = vrot.lane.b32.xlu0 %v1278, 12
    %v1456 = vpop.permute.xlu0 %1455
    %1457 = vrot.lane.b32.xlu0 %v1279, 12
    %v1458 = vpop.permute.xlu0 %1457
    %1459 = vrot.lane.b32.xlu0 %v1280, 12
    %v1460 = vpop.permute.xlu0 %1459
    %1461 = vrot.lane.b32.xlu0 %v1281, 12
    %v1462 = vpop.permute.xlu0 %1461
    %1463 = vrot.lane.b32.xlu0 %v1282, 12
    %v1464 = vpop.permute.xlu0 %1463
    %1465 = vrot.lane.b32.xlu0 %v1283, 12
    %v1466 = vpop.permute.xlu0 %1465
    %1467 = vrot.lane.b32.xlu0 %v1284, 12
    %v1468 = vpop.permute.xlu0 %1467
    %1469 = vrot.lane.b32.xlu0 %v1285, 12
    %v1470 = vpop.permute.xlu0 %1469
    %1471 = vrot.lane.b32.xlu0 %v1286, 12
    %v1472 = vpop.permute.xlu0 %1471
    %1473 = vrot.lane.b32.xlu0 %v1287, 12
    %v1474 = vpop.permute.xlu0 %1473
    %1475 = vrot.lane.b32.xlu0 %v1288, 12
    %v1476 = vpop.permute.xlu0 %1475
    %1477 = vrot.lane.b32.xlu0 %v1289, 12
    %v1478 = vpop.permute.xlu0 %1477
    %1479 = vrot.lane.b32.xlu0 %v1290, 12
    %v1480 = vpop.permute.xlu0 %1479
    %1481 = vrot.lane.b32.xlu0 %v1291, 12
    %v1482 = vpop.permute.xlu0 %1481
    %1483 = vrot.lane.b32.xlu0 %v1292, 12
    %v1484 = vpop.permute.xlu0 %1483
    %vm1549 = vcmask 130144
    %1550 = vst.msk [vmem:[#allocation3] sm:$0xff] %vm1549, %v1358
    %1551 = vst.msk [vmem:[#allocation3 + $0x8] sm:$0xff] %vm1549, %v1360
    %1552 = vst.msk [vmem:[#allocation3 + $0x10] sm:$0xff] %vm1549, %v1362
    %1553 = vst.msk [vmem:[#allocation3 + $0x18] sm:$0xff] %vm1549, %v1364
    %1554 = vst.msk [vmem:[#allocation3 + $0x20] sm:$0xff] %vm1549, %v1366
    %1555 = vst.msk [vmem:[#allocation3 + $0x28] sm:$0xff] %vm1549, %v1368
    %1556 = vst.msk [vmem:[#allocation3 + $0x30] sm:$0xff] %vm1549, %v1370
    %1557 = vst.msk [vmem:[#allocation3 + $0x38] sm:$0xff] %vm1549, %v1372
    %1558 = vst.msk [vmem:[#allocation3 + $0x40] sm:$0xff] %vm1549, %v1374
    %1559 = vst.msk [vmem:[#allocation3 + $0x48] sm:$0xff] %vm1549, %v1376
    %1560 = vst.msk [vmem:[#allocation3 + $0x50] sm:$0xff] %vm1549, %v1378
    %1561 = vst.msk [vmem:[#allocation3 + $0x58] sm:$0xff] %vm1549, %v1380
    %1562 = vst.msk [vmem:[#allocation3 + $0x60] sm:$0xff] %vm1549, %v1382
    %1563 = vst.msk [vmem:[#allocation3 + $0x68] sm:$0xff] %vm1549, %v1384
    %1564 = vst.msk [vmem:[#allocation3 + $0x70] sm:$0xff] %vm1549, %v1386
    %1565 = vst.msk [vmem:[#allocation3 + $0x78] sm:$0xff] %vm1549, %v1388
    %1566 = vst.msk [vmem:[#allocation3 + $0x80] sm:$0xff] %vm1549, %v1390
    %1567 = vst.msk [vmem:[#allocation3 + $0x88] sm:$0xff] %vm1549, %v1392
    %1568 = vst.msk [vmem:[#allocation3 + $0x90] sm:$0xff] %vm1549, %v1394
    %1569 = vst.msk [vmem:[#allocation3 + $0x98] sm:$0xff] %vm1549, %v1396
    %1570 = vst.msk [vmem:[#allocation3 + $0xa0] sm:$0xff] %vm1549, %v1398
    %1571 = vst.msk [vmem:[#allocation3 + $0xa8] sm:$0xff] %vm1549, %v1400
    %1572 = vst.msk [vmem:[#allocation3 + $0xb0] sm:$0xff] %vm1549, %v1402
    %1573 = vst.msk [vmem:[#allocation3 + $0xb8] sm:$0xff] %vm1549, %v1404
    %1574 = vst.msk [vmem:[#allocation3 + $0xc0] sm:$0xff] %vm1549, %v1406
    %1575 = vst.msk [vmem:[#allocation3 + $0xc8] sm:$0xff] %vm1549, %v1408
    %1576 = vst.msk [vmem:[#allocation3 + $0xd0] sm:$0xff] %vm1549, %v1410
    %1577 = vst.msk [vmem:[#allocation3 + $0xd8] sm:$0xff] %vm1549, %v1412
    %1578 = vst.msk [vmem:[#allocation3 + $0xe0] sm:$0xff] %vm1549, %v1414
    %1579 = vst.msk [vmem:[#allocation3 + $0xe8] sm:$0xff] %vm1549, %v1416
    %1580 = vst.msk [vmem:[#allocation3 + $0xf0] sm:$0xff] %vm1549, %v1418
    %1581 = vst.msk [vmem:[#allocation3 + $0xf8] sm:$0xff] %vm1549, %v1420
    %1582 = vst.msk [vmem:[#allocation3 + $0x100] sm:$0xff] %vm1549, %v1422
    %1583 = vst.msk [vmem:[#allocation3 + $0x108] sm:$0xff] %vm1549, %v1424
    %1584 = vst.msk [vmem:[#allocation3 + $0x110] sm:$0xff] %vm1549, %v1426
    %1585 = vst.msk [vmem:[#allocation3 + $0x118] sm:$0xff] %vm1549, %v1428
    %1586 = vst.msk [vmem:[#allocation3 + $0x120] sm:$0xff] %vm1549, %v1430
    %1587 = vst.msk [vmem:[#allocation3 + $0x128] sm:$0xff] %vm1549, %v1432
    %1588 = vst.msk [vmem:[#allocation3 + $0x130] sm:$0xff] %vm1549, %v1434
    %1589 = vst.msk [vmem:[#allocation3 + $0x138] sm:$0xff] %vm1549, %v1436
    %1590 = vst.msk [vmem:[#allocation3 + $0x140] sm:$0xff] %vm1549, %v1438
    %1591 = vst.msk [vmem:[#allocation3 + $0x148] sm:$0xff] %vm1549, %v1440
    %1592 = vst.msk [vmem:[#allocation3 + $0x150] sm:$0xff] %vm1549, %v1442
    %1593 = vst.msk [vmem:[#allocation3 + $0x158] sm:$0xff] %vm1549, %v1444
    %1594 = vst.msk [vmem:[#allocation3 + $0x160] sm:$0xff] %vm1549, %v1446
    %1595 = vst.msk [vmem:[#allocation3 + $0x168] sm:$0xff] %vm1549, %v1448
    %1596 = vst.msk [vmem:[#allocation3 + $0x170] sm:$0xff] %vm1549, %v1450
    %1597 = vst.msk [vmem:[#allocation3 + $0x178] sm:$0xff] %vm1549, %v1452
    %1598 = vst.msk [vmem:[#allocation3 + $0x180] sm:$0xff] %vm1549, %v1454
    %1599 = vst.msk [vmem:[#allocation3 + $0x188] sm:$0xff] %vm1549, %v1456
    %1600 = vst.msk [vmem:[#allocation3 + $0x190] sm:$0xff] %vm1549, %v1458
    %1601 = vst.msk [vmem:[#allocation3 + $0x198] sm:$0xff] %vm1549, %v1460
    %1602 = vst.msk [vmem:[#allocation3 + $0x1a0] sm:$0xff] %vm1549, %v1462
    %1603 = vst.msk [vmem:[#allocation3 + $0x1a8] sm:$0xff] %vm1549, %v1464
    %1604 = vst.msk [vmem:[#allocation3 + $0x1b0] sm:$0xff] %vm1549, %v1466
    %1605 = vst.msk [vmem:[#allocation3 + $0x1b8] sm:$0xff] %vm1549, %v1468
    %1606 = vst.msk [vmem:[#allocation3 + $0x1c0] sm:$0xff] %vm1549, %v1470
    %1607 = vst.msk [vmem:[#allocation3 + $0x1c8] sm:$0xff] %vm1549, %v1472
    %1608 = vst.msk [vmem:[#allocation3 + $0x1d0] sm:$0xff] %vm1549, %v1474
    %1609 = vst.msk [vmem:[#allocation3 + $0x1d8] sm:$0xff] %vm1549, %v1476
    %1610 = vst.msk [vmem:[#allocation3 + $0x1e0] sm:$0xff] %vm1549, %v1478
    %1611 = vst.msk [vmem:[#allocation3 + $0x1e8] sm:$0xff] %vm1549, %v1480
    %1612 = vst.msk [vmem:[#allocation3 + $0x1f0] sm:$0xff] %vm1549, %v1482
    %1613 = vst.msk [vmem:[#allocation3 + $0x1f8] sm:$0xff] %vm1549, %v1484
    %v1614 = vld [vmem:[%s266 + $0x1] sm:$0xff]
    %v1615 = vld [vmem:[%s266 + $0x9] sm:$0xff]
    %v1616 = vld [vmem:[%s266 + $0x19] sm:$0xff]
    %v1617 = vld [vmem:[%s266 + $0x21] sm:$0xff]
    %v1618 = vld [vmem:[%s266 + $0x31] sm:$0xff]
    %v1619 = vld [vmem:[%s266 + $0x39] sm:$0xff]
    %v1620 = vld [vmem:[%s266 + $0x49] sm:$0xff]
    %v1621 = vld [vmem:[%s266 + $0x51] sm:$0xff]
    %v1622 = vld [vmem:[%s266 + $0x61] sm:$0xff]
    %v1623 = vld [vmem:[%s266 + $0x69] sm:$0xff]
    %v1624 = vld [vmem:[%s266 + $0x79] sm:$0xff]
    %v1625 = vld [vmem:[%s266 + $0x81] sm:$0xff]
    %v1626 = vld [vmem:[%s266 + $0x91] sm:$0xff]
    %v1627 = vld [vmem:[%s266 + $0x99] sm:$0xff]
    %v1628 = vld [vmem:[%s266 + $0xa9] sm:$0xff]
    %v1629 = vld [vmem:[%s266 + $0xb1] sm:$0xff]
    %v1630 = vld [vmem:[%s266 + $0xc1] sm:$0xff]
    %v1631 = vld [vmem:[%s266 + $0xc9] sm:$0xff]
    %v1632 = vld [vmem:[%s266 + $0xd9] sm:$0xff]
    %v1633 = vld [vmem:[%s266 + $0xe1] sm:$0xff]
    %v1634 = vld [vmem:[%s266 + $0xf1] sm:$0xff]
    %v1635 = vld [vmem:[%s266 + $0xf9] sm:$0xff]
    %v1636 = vld [vmem:[%s266 + $0x109] sm:$0xff]
    %v1637 = vld [vmem:[%s266 + $0x111] sm:$0xff]
    %v1638 = vld [vmem:[%s266 + $0x121] sm:$0xff]
    %v1639 = vld [vmem:[%s266 + $0x129] sm:$0xff]
    %v1640 = vld [vmem:[%s266 + $0x139] sm:$0xff]
    %v1641 = vld [vmem:[%s266 + $0x141] sm:$0xff]
    %v1642 = vld [vmem:[%s266 + $0x151] sm:$0xff]
    %v1643 = vld [vmem:[%s266 + $0x159] sm:$0xff]
    %v1644 = vld [vmem:[%s266 + $0x169] sm:$0xff]
    %v1645 = vld [vmem:[%s266 + $0x171] sm:$0xff]
    %v1646 = vld [vmem:[%s266 + $0x1b1] sm:$0xff]
    %v1647 = vld [vmem:[%s266 + $0x1b9] sm:$0xff]
    %v1648 = vld [vmem:[%s266 + $0x1c9] sm:$0xff]
    %v1649 = vld [vmem:[%s266 + $0x1d1] sm:$0xff]
    %v1650 = vld [vmem:[%s266 + $0x1e1] sm:$0xff]
    %v1651 = vld [vmem:[%s266 + $0x1e9] sm:$0xff]
    %v1652 = vld [vmem:[%s266 + $0x1f9] sm:$0xff]
    %v1653 = vld [vmem:[%s266 + $0x201] sm:$0xff]
    %v1654 = vld [vmem:[%s266 + $0x211] sm:$0xff]
    %v1655 = vld [vmem:[%s266 + $0x219] sm:$0xff]
    %v1656 = vld [vmem:[%s266 + $0x229] sm:$0xff]
    %v1657 = vld [vmem:[%s266 + $0x231] sm:$0xff]
    %v1658 = vld [vmem:[%s266 + $0x241] sm:$0xff]
    %v1659 = vld [vmem:[%s266 + $0x249] sm:$0xff]
    %v1660 = vld [vmem:[%s266 + $0x259] sm:$0xff]
    %v1661 = vld [vmem:[%s266 + $0x261] sm:$0xff]
    %v1662 = vld [vmem:[%s266 + $0x271] sm:$0xff]
    %v1663 = vld [vmem:[%s266 + $0x279] sm:$0xff]
    %v1664 = vld [vmem:[%s266 + $0x289] sm:$0xff]
    %v1665 = vld [vmem:[%s266 + $0x291] sm:$0xff]
    %v1666 = vld [vmem:[%s266 + $0x2a1] sm:$0xff]
    %v1667 = vld [vmem:[%s266 + $0x2a9] sm:$0xff]
    %v1668 = vld [vmem:[%s266 + $0x2b9] sm:$0xff]
    %v1669 = vld [vmem:[%s266 + $0x2c1] sm:$0xff]
    %v1670 = vld [vmem:[%s266 + $0x2d1] sm:$0xff]
    %v1671 = vld [vmem:[%s266 + $0x2d9] sm:$0xff]
    %v1672 = vld [vmem:[%s266 + $0x2e9] sm:$0xff]
    %v1673 = vld [vmem:[%s266 + $0x2f1] sm:$0xff]
    %v1674 = vld [vmem:[%s266 + $0x301] sm:$0xff]
    %v1675 = vld [vmem:[%s266 + $0x309] sm:$0xff]
    %v1676 = vld [vmem:[%s266 + $0x319] sm:$0xff]
    %v1677 = vld [vmem:[%s266 + $0x321] sm:$0xff]
    %1742 = vrot.lane.b32.xlu0 %v1614, 16
    %v1743 = vpop.permute.xlu0 %1742
    %1744 = vrot.lane.b32.xlu0 %v1615, 16
    %v1745 = vpop.permute.xlu0 %1744
    %1746 = vrot.lane.b32.xlu0 %v1616, 16
    %v1747 = vpop.permute.xlu0 %1746
    %1748 = vrot.lane.b32.xlu0 %v1617, 16
    %v1749 = vpop.permute.xlu0 %1748
    %1750 = vrot.lane.b32.xlu0 %v1618, 16
    %v1751 = vpop.permute.xlu0 %1750
    %1752 = vrot.lane.b32.xlu0 %v1619, 16
    %v1753 = vpop.permute.xlu0 %1752
    %1754 = vrot.lane.b32.xlu0 %v1620, 16
    %v1755 = vpop.permute.xlu0 %1754
    %1756 = vrot.lane.b32.xlu0 %v1621, 16
    %v1757 = vpop.permute.xlu0 %1756
    %1758 = vrot.lane.b32.xlu0 %v1622, 16
    %v1759 = vpop.permute.xlu0 %1758
    %1760 = vrot.lane.b32.xlu0 %v1623, 16
    %v1761 = vpop.permute.xlu0 %1760
    %1762 = vrot.lane.b32.xlu0 %v1624, 16
    %v1763 = vpop.permute.xlu0 %1762
    %1764 = vrot.lane.b32.xlu0 %v1625, 16
    %v1765 = vpop.permute.xlu0 %1764
    %1766 = vrot.lane.b32.xlu0 %v1626, 16
    %v1767 = vpop.permute.xlu0 %1766
    %1768 = vrot.lane.b32.xlu0 %v1627, 16
    %v1769 = vpop.permute.xlu0 %1768
    %1770 = vrot.lane.b32.xlu0 %v1628, 16
    %v1771 = vpop.permute.xlu0 %1770
    %1772 = vrot.lane.b32.xlu0 %v1629, 16
    %v1773 = vpop.permute.xlu0 %1772
    %1774 = vrot.lane.b32.xlu0 %v1630, 16
    %v1775 = vpop.permute.xlu0 %1774
    %1776 = vrot.lane.b32.xlu0 %v1631, 16
    %v1777 = vpop.permute.xlu0 %1776
    %1778 = vrot.lane.b32.xlu0 %v1632, 16
    %v1779 = vpop.permute.xlu0 %1778
    %1780 = vrot.lane.b32.xlu0 %v1633, 16
    %v1781 = vpop.permute.xlu0 %1780
    %1782 = vrot.lane.b32.xlu0 %v1634, 16
    %v1783 = vpop.permute.xlu0 %1782
    %1784 = vrot.lane.b32.xlu0 %v1635, 16
    %v1785 = vpop.permute.xlu0 %1784
    %1786 = vrot.lane.b32.xlu0 %v1636, 16
    %v1787 = vpop.permute.xlu0 %1786
    %1788 = vrot.lane.b32.xlu0 %v1637, 16
    %v1789 = vpop.permute.xlu0 %1788
    %1790 = vrot.lane.b32.xlu0 %v1638, 16
    %v1791 = vpop.permute.xlu0 %1790
    %1792 = vrot.lane.b32.xlu0 %v1639, 16
    %v1793 = vpop.permute.xlu0 %1792
    %1794 = vrot.lane.b32.xlu0 %v1640, 16
    %v1795 = vpop.permute.xlu0 %1794
    %1796 = vrot.lane.b32.xlu0 %v1641, 16
    %v1797 = vpop.permute.xlu0 %1796
    %1798 = vrot.lane.b32.xlu0 %v1642, 16
    %v1799 = vpop.permute.xlu0 %1798
    %1800 = vrot.lane.b32.xlu0 %v1643, 16
    %v1801 = vpop.permute.xlu0 %1800
    %1802 = vrot.lane.b32.xlu0 %v1644, 16
    %v1803 = vpop.permute.xlu0 %1802
    %1804 = vrot.lane.b32.xlu0 %v1645, 16
    %v1805 = vpop.permute.xlu0 %1804
    %1806 = vrot.lane.b32.xlu0 %v1646, 16
    %v1807 = vpop.permute.xlu0 %1806
    %1808 = vrot.lane.b32.xlu0 %v1647, 16
    %v1809 = vpop.permute.xlu0 %1808
    %1810 = vrot.lane.b32.xlu0 %v1648, 16
    %v1811 = vpop.permute.xlu0 %1810
    %1812 = vrot.lane.b32.xlu0 %v1649, 16
    %v1813 = vpop.permute.xlu0 %1812
    %1814 = vrot.lane.b32.xlu0 %v1650, 16
    %v1815 = vpop.permute.xlu0 %1814
    %1816 = vrot.lane.b32.xlu0 %v1651, 16
    %v1817 = vpop.permute.xlu0 %1816
    %1818 = vrot.lane.b32.xlu0 %v1652, 16
    %v1819 = vpop.permute.xlu0 %1818
    %1820 = vrot.lane.b32.xlu0 %v1653, 16
    %v1821 = vpop.permute.xlu0 %1820
    %1822 = vrot.lane.b32.xlu0 %v1654, 16
    %v1823 = vpop.permute.xlu0 %1822
    %1824 = vrot.lane.b32.xlu0 %v1655, 16
    %v1825 = vpop.permute.xlu0 %1824
    %1826 = vrot.lane.b32.xlu0 %v1656, 16
    %v1827 = vpop.permute.xlu0 %1826
    %1828 = vrot.lane.b32.xlu0 %v1657, 16
    %v1829 = vpop.permute.xlu0 %1828
    %1830 = vrot.lane.b32.xlu0 %v1658, 16
    %v1831 = vpop.permute.xlu0 %1830
    %1832 = vrot.lane.b32.xlu0 %v1659, 16
    %v1833 = vpop.permute.xlu0 %1832
    %1834 = vrot.lane.b32.xlu0 %v1660, 16
    %v1835 = vpop.permute.xlu0 %1834
    %1836 = vrot.lane.b32.xlu0 %v1661, 16
    %v1837 = vpop.permute.xlu0 %1836
    %1838 = vrot.lane.b32.xlu0 %v1662, 16
    %v1839 = vpop.permute.xlu0 %1838
    %1840 = vrot.lane.b32.xlu0 %v1663, 16
    %v1841 = vpop.permute.xlu0 %1840
    %1842 = vrot.lane.b32.xlu0 %v1664, 16
    %v1843 = vpop.permute.xlu0 %1842
    %1844 = vrot.lane.b32.xlu0 %v1665, 16
    %v1845 = vpop.permute.xlu0 %1844
    %1846 = vrot.lane.b32.xlu0 %v1666, 16
    %v1847 = vpop.permute.xlu0 %1846
    %1848 = vrot.lane.b32.xlu0 %v1667, 16
    %v1849 = vpop.permute.xlu0 %1848
    %1850 = vrot.lane.b32.xlu0 %v1668, 16
    %v1851 = vpop.permute.xlu0 %1850
    %1852 = vrot.lane.b32.xlu0 %v1669, 16
    %v1853 = vpop.permute.xlu0 %1852
    %1854 = vrot.lane.b32.xlu0 %v1670, 16
    %v1855 = vpop.permute.xlu0 %1854
    %1856 = vrot.lane.b32.xlu0 %v1671, 16
    %v1857 = vpop.permute.xlu0 %1856
    %1858 = vrot.lane.b32.xlu0 %v1672, 16
    %v1859 = vpop.permute.xlu0 %1858
    %1860 = vrot.lane.b32.xlu0 %v1673, 16
    %v1861 = vpop.permute.xlu0 %1860
    %1862 = vrot.lane.b32.xlu0 %v1674, 16
    %v1863 = vpop.permute.xlu0 %1862
    %1864 = vrot.lane.b32.xlu0 %v1675, 16
    %v1865 = vpop.permute.xlu0 %1864
    %1866 = vrot.lane.b32.xlu0 %v1676, 16
    %v1867 = vpop.permute.xlu0 %1866
    %1868 = vrot.lane.b32.xlu0 %v1677, 16
    %v1869 = vpop.permute.xlu0 %1868
    %vm1934 = vcmask 162944
    %1935 = vst.msk [vmem:[#allocation3] sm:$0xff] %vm1934, %v1743
    %1936 = vst.msk [vmem:[#allocation3 + $0x8] sm:$0xff] %vm1934, %v1745
    %1937 = vst.msk [vmem:[#allocation3 + $0x10] sm:$0xff] %vm1934, %v1747
    %1938 = vst.msk [vmem:[#allocation3 + $0x18] sm:$0xff] %vm1934, %v1749
    %1939 = vst.msk [vmem:[#allocation3 + $0x20] sm:$0xff] %vm1934, %v1751
    %1940 = vst.msk [vmem:[#allocation3 + $0x28] sm:$0xff] %vm1934, %v1753
    %1941 = vst.msk [vmem:[#allocation3 + $0x30] sm:$0xff] %vm1934, %v1755
    %1942 = vst.msk [vmem:[#allocation3 + $0x38] sm:$0xff] %vm1934, %v1757
    %1943 = vst.msk [vmem:[#allocation3 + $0x40] sm:$0xff] %vm1934, %v1759
    %1944 = vst.msk [vmem:[#allocation3 + $0x48] sm:$0xff] %vm1934, %v1761
    %1945 = vst.msk [vmem:[#allocation3 + $0x50] sm:$0xff] %vm1934, %v1763
    %1946 = vst.msk [vmem:[#allocation3 + $0x58] sm:$0xff] %vm1934, %v1765
    %1947 = vst.msk [vmem:[#allocation3 + $0x60] sm:$0xff] %vm1934, %v1767
    %1948 = vst.msk [vmem:[#allocation3 + $0x68] sm:$0xff] %vm1934, %v1769
    %1949 = vst.msk [vmem:[#allocation3 + $0x70] sm:$0xff] %vm1934, %v1771
    %1950 = vst.msk [vmem:[#allocation3 + $0x78] sm:$0xff] %vm1934, %v1773
    %1951 = vst.msk [vmem:[#allocation3 + $0x80] sm:$0xff] %vm1934, %v1775
    %1952 = vst.msk [vmem:[#allocation3 + $0x88] sm:$0xff] %vm1934, %v1777
    %1953 = vst.msk [vmem:[#allocation3 + $0x90] sm:$0xff] %vm1934, %v1779
    %1954 = vst.msk [vmem:[#allocation3 + $0x98] sm:$0xff] %vm1934, %v1781
    %1955 = vst.msk [vmem:[#allocation3 + $0xa0] sm:$0xff] %vm1934, %v1783
    %1956 = vst.msk [vmem:[#allocation3 + $0xa8] sm:$0xff] %vm1934, %v1785
    %1957 = vst.msk [vmem:[#allocation3 + $0xb0] sm:$0xff] %vm1934, %v1787
    %1958 = vst.msk [vmem:[#allocation3 + $0xb8] sm:$0xff] %vm1934, %v1789
    %1959 = vst.msk [vmem:[#allocation3 + $0xc0] sm:$0xff] %vm1934, %v1791
    %1960 = vst.msk [vmem:[#allocation3 + $0xc8] sm:$0xff] %vm1934, %v1793
    %1961 = vst.msk [vmem:[#allocation3 + $0xd0] sm:$0xff] %vm1934, %v1795
    %1962 = vst.msk [vmem:[#allocation3 + $0xd8] sm:$0xff] %vm1934, %v1797
    %1963 = vst.msk [vmem:[#allocation3 + $0xe0] sm:$0xff] %vm1934, %v1799
    %1964 = vst.msk [vmem:[#allocation3 + $0xe8] sm:$0xff] %vm1934, %v1801
    %1965 = vst.msk [vmem:[#allocation3 + $0xf0] sm:$0xff] %vm1934, %v1803
    %1966 = vst.msk [vmem:[#allocation3 + $0xf8] sm:$0xff] %vm1934, %v1805
    %1967 = vst.msk [vmem:[#allocation3 + $0x100] sm:$0xff] %vm1934, %v1807
    %1968 = vst.msk [vmem:[#allocation3 + $0x108] sm:$0xff] %vm1934, %v1809
    %1969 = vst.msk [vmem:[#allocation3 + $0x110] sm:$0xff] %vm1934, %v1811
    %1970 = vst.msk [vmem:[#allocation3 + $0x118] sm:$0xff] %vm1934, %v1813
    %1971 = vst.msk [vmem:[#allocation3 + $0x120] sm:$0xff] %vm1934, %v1815
    %1972 = vst.msk [vmem:[#allocation3 + $0x128] sm:$0xff] %vm1934, %v1817
    %1973 = vst.msk [vmem:[#allocation3 + $0x130] sm:$0xff] %vm1934, %v1819
    %1974 = vst.msk [vmem:[#allocation3 + $0x138] sm:$0xff] %vm1934, %v1821
    %1975 = vst.msk [vmem:[#allocation3 + $0x140] sm:$0xff] %vm1934, %v1823
    %1976 = vst.msk [vmem:[#allocation3 + $0x148] sm:$0xff] %vm1934, %v1825
    %1977 = vst.msk [vmem:[#allocation3 + $0x150] sm:$0xff] %vm1934, %v1827
    %1978 = vst.msk [vmem:[#allocation3 + $0x158] sm:$0xff] %vm1934, %v1829
    %1979 = vst.msk [vmem:[#allocation3 + $0x160] sm:$0xff] %vm1934, %v1831
    %1980 = vst.msk [vmem:[#allocation3 + $0x168] sm:$0xff] %vm1934, %v1833
    %1981 = vst.msk [vmem:[#allocation3 + $0x170] sm:$0xff] %vm1934, %v1835
    %1982 = vst.msk [vmem:[#allocation3 + $0x178] sm:$0xff] %vm1934, %v1837
    %1983 = vst.msk [vmem:[#allocation3 + $0x180] sm:$0xff] %vm1934, %v1839
    %1984 = vst.msk [vmem:[#allocation3 + $0x188] sm:$0xff] %vm1934, %v1841
    %1985 = vst.msk [vmem:[#allocation3 + $0x190] sm:$0xff] %vm1934, %v1843
    %1986 = vst.msk [vmem:[#allocation3 + $0x198] sm:$0xff] %vm1934, %v1845
    %1987 = vst.msk [vmem:[#allocation3 + $0x1a0] sm:$0xff] %vm1934, %v1847
    %1988 = vst.msk [vmem:[#allocation3 + $0x1a8] sm:$0xff] %vm1934, %v1849
    %1989 = vst.msk [vmem:[#allocation3 + $0x1b0] sm:$0xff] %vm1934, %v1851
    %1990 = vst.msk [vmem:[#allocation3 + $0x1b8] sm:$0xff] %vm1934, %v1853
    %1991 = vst.msk [vmem:[#allocation3 + $0x1c0] sm:$0xff] %vm1934, %v1855
    %1992 = vst.msk [vmem:[#allocation3 + $0x1c8] sm:$0xff] %vm1934, %v1857
    %1993 = vst.msk [vmem:[#allocation3 + $0x1d0] sm:$0xff] %vm1934, %v1859
    %1994 = vst.msk [vmem:[#allocation3 + $0x1d8] sm:$0xff] %vm1934, %v1861
    %1995 = vst.msk [vmem:[#allocation3 + $0x1e0] sm:$0xff] %vm1934, %v1863
    %1996 = vst.msk [vmem:[#allocation3 + $0x1e8] sm:$0xff] %vm1934, %v1865
    %1997 = vst.msk [vmem:[#allocation3 + $0x1f0] sm:$0xff] %vm1934, %v1867
    %1998 = vst.msk [vmem:[#allocation3 + $0x1f8] sm:$0xff] %vm1934, %v1869
    %v1999 = vld [vmem:[%s266 + $0x2] sm:$0xff]
    %v2000 = vld [vmem:[%s266 + $0xa] sm:$0xff]
    %v2001 = vld [vmem:[%s266 + $0x1a] sm:$0xff]
    %v2002 = vld [vmem:[%s266 + $0x22] sm:$0xff]
    %v2003 = vld [vmem:[%s266 + $0x32] sm:$0xff]
    %v2004 = vld [vmem:[%s266 + $0x3a] sm:$0xff]
    %v2005 = vld [vmem:[%s266 + $0x4a] sm:$0xff]
    %v2006 = vld [vmem:[%s266 + $0x52] sm:$0xff]
    %v2007 = vld [vmem:[%s266 + $0x62] sm:$0xff]
    %v2008 = vld [vmem:[%s266 + $0x6a] sm:$0xff]
    %v2009 = vld [vmem:[%s266 + $0x7a] sm:$0xff]
    %v2010 = vld [vmem:[%s266 + $0x82] sm:$0xff]
    %v2011 = vld [vmem:[%s266 + $0x92] sm:$0xff]
    %v2012 = vld [vmem:[%s266 + $0x9a] sm:$0xff]
    %v2013 = vld [vmem:[%s266 + $0xaa] sm:$0xff]
    %v2014 = vld [vmem:[%s266 + $0xb2] sm:$0xff]
    %v2015 = vld [vmem:[%s266 + $0xc2] sm:$0xff]
    %v2016 = vld [vmem:[%s266 + $0xca] sm:$0xff]
    %v2017 = vld [vmem:[%s266 + $0xda] sm:$0xff]
    %v2018 = vld [vmem:[%s266 + $0xe2] sm:$0xff]
    %v2019 = vld [vmem:[%s266 + $0xf2] sm:$0xff]
    %v2020 = vld [vmem:[%s266 + $0xfa] sm:$0xff]
    %v2021 = vld [vmem:[%s266 + $0x10a] sm:$0xff]
    %v2022 = vld [vmem:[%s266 + $0x112] sm:$0xff]
    %v2023 = vld [vmem:[%s266 + $0x122] sm:$0xff]
    %v2024 = vld [vmem:[%s266 + $0x12a] sm:$0xff]
    %v2025 = vld [vmem:[%s266 + $0x13a] sm:$0xff]
    %v2026 = vld [vmem:[%s266 + $0x142] sm:$0xff]
    %v2027 = vld [vmem:[%s266 + $0x152] sm:$0xff]
    %v2028 = vld [vmem:[%s266 + $0x15a] sm:$0xff]
    %v2029 = vld [vmem:[%s266 + $0x16a] sm:$0xff]
    %v2030 = vld [vmem:[%s266 + $0x172] sm:$0xff]
    %v2031 = vld [vmem:[%s266 + $0x1b2] sm:$0xff]
    %v2032 = vld [vmem:[%s266 + $0x1ba] sm:$0xff]
    %v2033 = vld [vmem:[%s266 + $0x1ca] sm:$0xff]
    %v2034 = vld [vmem:[%s266 + $0x1d2] sm:$0xff]
    %v2035 = vld [vmem:[%s266 + $0x1e2] sm:$0xff]
    %v2036 = vld [vmem:[%s266 + $0x1ea] sm:$0xff]
    %v2037 = vld [vmem:[%s266 + $0x1fa] sm:$0xff]
    %v2038 = vld [vmem:[%s266 + $0x202] sm:$0xff]
    %v2039 = vld [vmem:[%s266 + $0x212] sm:$0xff]
    %v2040 = vld [vmem:[%s266 + $0x21a] sm:$0xff]
    %v2041 = vld [vmem:[%s266 + $0x22a] sm:$0xff]
    %v2042 = vld [vmem:[%s266 + $0x232] sm:$0xff]
    %v2043 = vld [vmem:[%s266 + $0x242] sm:$0xff]
    %v2044 = vld [vmem:[%s266 + $0x24a] sm:$0xff]
    %v2045 = vld [vmem:[%s266 + $0x25a] sm:$0xff]
    %v2046 = vld [vmem:[%s266 + $0x262] sm:$0xff]
    %v2047 = vld [vmem:[%s266 + $0x272] sm:$0xff]
    %v2048 = vld [vmem:[%s266 + $0x27a] sm:$0xff]
    %v2049 = vld [vmem:[%s266 + $0x28a] sm:$0xff]
    %v2050 = vld [vmem:[%s266 + $0x292] sm:$0xff]
    %v2051 = vld [vmem:[%s266 + $0x2a2] sm:$0xff]
    %v2052 = vld [vmem:[%s266 + $0x2aa] sm:$0xff]
    %v2053 = vld [vmem:[%s266 + $0x2ba] sm:$0xff]
    %v2054 = vld [vmem:[%s266 + $0x2c2] sm:$0xff]
    %v2055 = vld [vmem:[%s266 + $0x2d2] sm:$0xff]
    %v2056 = vld [vmem:[%s266 + $0x2da] sm:$0xff]
    %v2057 = vld [vmem:[%s266 + $0x2ea] sm:$0xff]
    %v2058 = vld [vmem:[%s266 + $0x2f2] sm:$0xff]
    %v2059 = vld [vmem:[%s266 + $0x302] sm:$0xff]
    %v2060 = vld [vmem:[%s266 + $0x30a] sm:$0xff]
    %v2061 = vld [vmem:[%s266 + $0x31a] sm:$0xff]
    %v2062 = vld [vmem:[%s266 + $0x322] sm:$0xff]
    %2127 = vrot.lane.b32.xlu0 %v1999, 20
    %v2128 = vpop.permute.xlu0 %2127
    %2129 = vrot.lane.b32.xlu0 %v2000, 20
    %v2130 = vpop.permute.xlu0 %2129
    %2131 = vrot.lane.b32.xlu0 %v2001, 20
    %v2132 = vpop.permute.xlu0 %2131
    %2133 = vrot.lane.b32.xlu0 %v2002, 20
    %v2134 = vpop.permute.xlu0 %2133
    %2135 = vrot.lane.b32.xlu0 %v2003, 20
    %v2136 = vpop.permute.xlu0 %2135
    %2137 = vrot.lane.b32.xlu0 %v2004, 20
    %v2138 = vpop.permute.xlu0 %2137
    %2139 = vrot.lane.b32.xlu0 %v2005, 20
    %v2140 = vpop.permute.xlu0 %2139
    %2141 = vrot.lane.b32.xlu0 %v2006, 20
    %v2142 = vpop.permute.xlu0 %2141
    %2143 = vrot.lane.b32.xlu0 %v2007, 20
    %v2144 = vpop.permute.xlu0 %2143
    %2145 = vrot.lane.b32.xlu0 %v2008, 20
    %v2146 = vpop.permute.xlu0 %2145
    %2147 = vrot.lane.b32.xlu0 %v2009, 20
    %v2148 = vpop.permute.xlu0 %2147
    %2149 = vrot.lane.b32.xlu0 %v2010, 20
    %v2150 = vpop.permute.xlu0 %2149
    %2151 = vrot.lane.b32.xlu0 %v2011, 20
    %v2152 = vpop.permute.xlu0 %2151
    %2153 = vrot.lane.b32.xlu0 %v2012, 20
    %v2154 = vpop.permute.xlu0 %2153
    %2155 = vrot.lane.b32.xlu0 %v2013, 20
    %v2156 = vpop.permute.xlu0 %2155
    %2157 = vrot.lane.b32.xlu0 %v2014, 20
    %v2158 = vpop.permute.xlu0 %2157
    %2159 = vrot.lane.b32.xlu0 %v2015, 20
    %v2160 = vpop.permute.xlu0 %2159
    %2161 = vrot.lane.b32.xlu0 %v2016, 20
    %v2162 = vpop.permute.xlu0 %2161
    %2163 = vrot.lane.b32.xlu0 %v2017, 20
    %v2164 = vpop.permute.xlu0 %2163
    %2165 = vrot.lane.b32.xlu0 %v2018, 20
    %v2166 = vpop.permute.xlu0 %2165
    %2167 = vrot.lane.b32.xlu0 %v2019, 20
    %v2168 = vpop.permute.xlu0 %2167
    %2169 = vrot.lane.b32.xlu0 %v2020, 20
    %v2170 = vpop.permute.xlu0 %2169
    %2171 = vrot.lane.b32.xlu0 %v2021, 20
    %v2172 = vpop.permute.xlu0 %2171
    %2173 = vrot.lane.b32.xlu0 %v2022, 20
    %v2174 = vpop.permute.xlu0 %2173
    %2175 = vrot.lane.b32.xlu0 %v2023, 20
    %v2176 = vpop.permute.xlu0 %2175
    %2177 = vrot.lane.b32.xlu0 %v2024, 20
    %v2178 = vpop.permute.xlu0 %2177
    %2179 = vrot.lane.b32.xlu0 %v2025, 20
    %v2180 = vpop.permute.xlu0 %2179
    %2181 = vrot.lane.b32.xlu0 %v2026, 20
    %v2182 = vpop.permute.xlu0 %2181
    %2183 = vrot.lane.b32.xlu0 %v2027, 20
    %v2184 = vpop.permute.xlu0 %2183
    %2185 = vrot.lane.b32.xlu0 %v2028, 20
    %v2186 = vpop.permute.xlu0 %2185
    %2187 = vrot.lane.b32.xlu0 %v2029, 20
    %v2188 = vpop.permute.xlu0 %2187
    %2189 = vrot.lane.b32.xlu0 %v2030, 20
    %v2190 = vpop.permute.xlu0 %2189
    %2191 = vrot.lane.b32.xlu0 %v2031, 20
    %v2192 = vpop.permute.xlu0 %2191
    %2193 = vrot.lane.b32.xlu0 %v2032, 20
    %v2194 = vpop.permute.xlu0 %2193
    %2195 = vrot.lane.b32.xlu0 %v2033, 20
    %v2196 = vpop.permute.xlu0 %2195
    %2197 = vrot.lane.b32.xlu0 %v2034, 20
    %v2198 = vpop.permute.xlu0 %2197
    %2199 = vrot.lane.b32.xlu0 %v2035, 20
    %v2200 = vpop.permute.xlu0 %2199
    %2201 = vrot.lane.b32.xlu0 %v2036, 20
    %v2202 = vpop.permute.xlu0 %2201
    %2203 = vrot.lane.b32.xlu0 %v2037, 20
    %v2204 = vpop.permute.xlu0 %2203
    %2205 = vrot.lane.b32.xlu0 %v2038, 20
    %v2206 = vpop.permute.xlu0 %2205
    %2207 = vrot.lane.b32.xlu0 %v2039, 20
    %v2208 = vpop.permute.xlu0 %2207
    %2209 = vrot.lane.b32.xlu0 %v2040, 20
    %v2210 = vpop.permute.xlu0 %2209
    %2211 = vrot.lane.b32.xlu0 %v2041, 20
    %v2212 = vpop.permute.xlu0 %2211
    %2213 = vrot.lane.b32.xlu0 %v2042, 20
    %v2214 = vpop.permute.xlu0 %2213
    %2215 = vrot.lane.b32.xlu0 %v2043, 20
    %v2216 = vpop.permute.xlu0 %2215
    %2217 = vrot.lane.b32.xlu0 %v2044, 20
    %v2218 = vpop.permute.xlu0 %2217
    %2219 = vrot.lane.b32.xlu0 %v2045, 20
    %v2220 = vpop.permute.xlu0 %2219
    %2221 = vrot.lane.b32.xlu0 %v2046, 20
    %v2222 = vpop.permute.xlu0 %2221
    %2223 = vrot.lane.b32.xlu0 %v2047, 20
    %v2224 = vpop.permute.xlu0 %2223
    %2225 = vrot.lane.b32.xlu0 %v2048, 20
    %v2226 = vpop.permute.xlu0 %2225
    %2227 = vrot.lane.b32.xlu0 %v2049, 20
    %v2228 = vpop.permute.xlu0 %2227
    %2229 = vrot.lane.b32.xlu0 %v2050, 20
    %v2230 = vpop.permute.xlu0 %2229
    %2231 = vrot.lane.b32.xlu0 %v2051, 20
    %v2232 = vpop.permute.xlu0 %2231
    %2233 = vrot.lane.b32.xlu0 %v2052, 20
    %v2234 = vpop.permute.xlu0 %2233
    %2235 = vrot.lane.b32.xlu0 %v2053, 20
    %v2236 = vpop.permute.xlu0 %2235
    %2237 = vrot.lane.b32.xlu0 %v2054, 20
    %v2238 = vpop.permute.xlu0 %2237
    %2239 = vrot.lane.b32.xlu0 %v2055, 20
    %v2240 = vpop.permute.xlu0 %2239
    %2241 = vrot.lane.b32.xlu0 %v2056, 20
    %v2242 = vpop.permute.xlu0 %2241
    %2243 = vrot.lane.b32.xlu0 %v2057, 20
    %v2244 = vpop.permute.xlu0 %2243
    %2245 = vrot.lane.b32.xlu0 %v2058, 20
    %v2246 = vpop.permute.xlu0 %2245
    %2247 = vrot.lane.b32.xlu0 %v2059, 20
    %v2248 = vpop.permute.xlu0 %2247
    %2249 = vrot.lane.b32.xlu0 %v2060, 20
    %v2250 = vpop.permute.xlu0 %2249
    %2251 = vrot.lane.b32.xlu0 %v2061, 20
    %v2252 = vpop.permute.xlu0 %2251
    %2253 = vrot.lane.b32.xlu0 %v2062, 20
    %v2254 = vpop.permute.xlu0 %2253
    %vm2319 = vcmask 195744
    %2320 = vst.msk [vmem:[#allocation3] sm:$0xff] %vm2319, %v2128
    %2321 = vst.msk [vmem:[#allocation3 + $0x8] sm:$0xff] %vm2319, %v2130
    %2322 = vst.msk [vmem:[#allocation3 + $0x10] sm:$0xff] %vm2319, %v2132
    %2323 = vst.msk [vmem:[#allocation3 + $0x18] sm:$0xff] %vm2319, %v2134
    %2324 = vst.msk [vmem:[#allocation3 + $0x20] sm:$0xff] %vm2319, %v2136
    %2325 = vst.msk [vmem:[#allocation3 + $0x28] sm:$0xff] %vm2319, %v2138
    %2326 = vst.msk [vmem:[#allocation3 + $0x30] sm:$0xff] %vm2319, %v2140
    %2327 = vst.msk [vmem:[#allocation3 + $0x38] sm:$0xff] %vm2319, %v2142
    %2328 = vst.msk [vmem:[#allocation3 + $0x40] sm:$0xff] %vm2319, %v2144
    %2329 = vst.msk [vmem:[#allocation3 + $0x48] sm:$0xff] %vm2319, %v2146
    %2330 = vst.msk [vmem:[#allocation3 + $0x50] sm:$0xff] %vm2319, %v2148
    %2331 = vst.msk [vmem:[#allocation3 + $0x58] sm:$0xff] %vm2319, %v2150
    %2332 = vst.msk [vmem:[#allocation3 + $0x60] sm:$0xff] %vm2319, %v2152
    %2333 = vst.msk [vmem:[#allocation3 + $0x68] sm:$0xff] %vm2319, %v2154
    %2334 = vst.msk [vmem:[#allocation3 + $0x70] sm:$0xff] %vm2319, %v2156
    %2335 = vst.msk [vmem:[#allocation3 + $0x78] sm:$0xff] %vm2319, %v2158
    %2336 = vst.msk [vmem:[#allocation3 + $0x80] sm:$0xff] %vm2319, %v2160
    %2337 = vst.msk [vmem:[#allocation3 + $0x88] sm:$0xff] %vm2319, %v2162
    %2338 = vst.msk [vmem:[#allocation3 + $0x90] sm:$0xff] %vm2319, %v2164
    %2339 = vst.msk [vmem:[#allocation3 + $0x98] sm:$0xff] %vm2319, %v2166
    %2340 = vst.msk [vmem:[#allocation3 + $0xa0] sm:$0xff] %vm2319, %v2168
    %2341 = vst.msk [vmem:[#allocation3 + $0xa8] sm:$0xff] %vm2319, %v2170
    %2342 = vst.msk [vmem:[#allocation3 + $0xb0] sm:$0xff] %vm2319, %v2172
    %2343 = vst.msk [vmem:[#allocation3 + $0xb8] sm:$0xff] %vm2319, %v2174
    %2344 = vst.msk [vmem:[#allocation3 + $0xc0] sm:$0xff] %vm2319, %v2176
    %2345 = vst.msk [vmem:[#allocation3 + $0xc8] sm:$0xff] %vm2319, %v2178
    %2346 = vst.msk [vmem:[#allocation3 + $0xd0] sm:$0xff] %vm2319, %v2180
    %2347 = vst.msk [vmem:[#allocation3 + $0xd8] sm:$0xff] %vm2319, %v2182
    %2348 = vst.msk [vmem:[#allocation3 + $0xe0] sm:$0xff] %vm2319, %v2184
    %2349 = vst.msk [vmem:[#allocation3 + $0xe8] sm:$0xff] %vm2319, %v2186
    %2350 = vst.msk [vmem:[#allocation3 + $0xf0] sm:$0xff] %vm2319, %v2188
    %2351 = vst.msk [vmem:[#allocation3 + $0xf8] sm:$0xff] %vm2319, %v2190
    %2352 = vst.msk [vmem:[#allocation3 + $0x100] sm:$0xff] %vm2319, %v2192
    %2353 = vst.msk [vmem:[#allocation3 + $0x108] sm:$0xff] %vm2319, %v2194
    %2354 = vst.msk [vmem:[#allocation3 + $0x110] sm:$0xff] %vm2319, %v2196
    %2355 = vst.msk [vmem:[#allocation3 + $0x118] sm:$0xff] %vm2319, %v2198
    %2356 = vst.msk [vmem:[#allocation3 + $0x120] sm:$0xff] %vm2319, %v2200
    %2357 = vst.msk [vmem:[#allocation3 + $0x128] sm:$0xff] %vm2319, %v2202
    %2358 = vst.msk [vmem:[#allocation3 + $0x130] sm:$0xff] %vm2319, %v2204
    %2359 = vst.msk [vmem:[#allocation3 + $0x138] sm:$0xff] %vm2319, %v2206
    %2360 = vst.msk [vmem:[#allocation3 + $0x140] sm:$0xff] %vm2319, %v2208
    %2361 = vst.msk [vmem:[#allocation3 + $0x148] sm:$0xff] %vm2319, %v2210
    %2362 = vst.msk [vmem:[#allocation3 + $0x150] sm:$0xff] %vm2319, %v2212
    %2363 = vst.msk [vmem:[#allocation3 + $0x158] sm:$0xff] %vm2319, %v2214
    %2364 = vst.msk [vmem:[#allocation3 + $0x160] sm:$0xff] %vm2319, %v2216
    %2365 = vst.msk [vmem:[#allocation3 + $0x168] sm:$0xff] %vm2319, %v2218
    %2366 = vst.msk [vmem:[#allocation3 + $0x170] sm:$0xff] %vm2319, %v2220
    %2367 = vst.msk [vmem:[#allocation3 + $0x178] sm:$0xff] %vm2319, %v2222
    %2368 = vst.msk [vmem:[#allocation3 + $0x180] sm:$0xff] %vm2319, %v2224
    %2369 = vst.msk [vmem:[#allocation3 + $0x188] sm:$0xff] %vm2319, %v2226
    %2370 = vst.msk [vmem:[#allocation3 + $0x190] sm:$0xff] %vm2319, %v2228
    %2371 = vst.msk [vmem:[#allocation3 + $0x198] sm:$0xff] %vm2319, %v2230
    %2372 = vst.msk [vmem:[#allocation3 + $0x1a0] sm:$0xff] %vm2319, %v2232
    %2373 = vst.msk [vmem:[#allocation3 + $0x1a8] sm:$0xff] %vm2319, %v2234
    %2374 = vst.msk [vmem:[#allocation3 + $0x1b0] sm:$0xff] %vm2319, %v2236
    %2375 = vst.msk [vmem:[#allocation3 + $0x1b8] sm:$0xff] %vm2319, %v2238
    %2376 = vst.msk [vmem:[#allocation3 + $0x1c0] sm:$0xff] %vm2319, %v2240
    %2377 = vst.msk [vmem:[#allocation3 + $0x1c8] sm:$0xff] %vm2319, %v2242
    %2378 = vst.msk [vmem:[#allocation3 + $0x1d0] sm:$0xff] %vm2319, %v2244
    %2379 = vst.msk [vmem:[#allocation3 + $0x1d8] sm:$0xff] %vm2319, %v2246
    %2380 = vst.msk [vmem:[#allocation3 + $0x1e0] sm:$0xff] %vm2319, %v2248
    %2381 = vst.msk [vmem:[#allocation3 + $0x1e8] sm:$0xff] %vm2319, %v2250
    %2382 = vst.msk [vmem:[#allocation3 + $0x1f0] sm:$0xff] %vm2319, %v2252
    %2383 = vst.msk [vmem:[#allocation3 + $0x1f8] sm:$0xff] %vm2319, %v2254
    %s2384 = scalar_lea.vmem [#allocation2], 48
    %v2385 = vld [vmem:[%s2384] sm:$0xff]
    %v2386 = vld [vmem:[%s2384 + $0x8] sm:$0xff]
    %v2387 = vld [vmem:[%s2384 + $0x18] sm:$0xff]
    %v2388 = vld [vmem:[%s2384 + $0x20] sm:$0xff]
    %v2389 = vld [vmem:[%s2384 + $0x30] sm:$0xff]
    %v2390 = vld [vmem:[%s2384 + $0x38] sm:$0xff]
    %v2391 = vld [vmem:[%s2384 + $0x48] sm:$0xff]
    %v2392 = vld [vmem:[%s2384 + $0x50] sm:$0xff]
    %v2393 = vld [vmem:[%s2384 + $0x60] sm:$0xff]
    %v2394 = vld [vmem:[%s2384 + $0x68] sm:$0xff]
    %v2395 = vld [vmem:[%s2384 + $0x78] sm:$0xff]
    %v2396 = vld [vmem:[%s2384 + $0x80] sm:$0xff]
    %v2397 = vld [vmem:[%s2384 + $0x90] sm:$0xff]
    %v2398 = vld [vmem:[%s2384 + $0x98] sm:$0xff]
    %v2399 = vld [vmem:[%s2384 + $0xa8] sm:$0xff]
    %v2400 = vld [vmem:[%s2384 + $0xb0] sm:$0xff]
    %v2401 = vld [vmem:[%s2384 + $0xc0] sm:$0xff]
    %v2402 = vld [vmem:[%s2384 + $0xc8] sm:$0xff]
    %v2403 = vld [vmem:[%s2384 + $0xd8] sm:$0xff]
    %v2404 = vld [vmem:[%s2384 + $0xe0] sm:$0xff]
    %v2405 = vld [vmem:[%s2384 + $0xf0] sm:$0xff]
    %v2406 = vld [vmem:[%s2384 + $0xf8] sm:$0xff]
    %v2407 = vld [vmem:[%s2384 + $0x108] sm:$0xff]
    %v2408 = vld [vmem:[%s2384 + $0x110] sm:$0xff]
    %v2409 = vld [vmem:[%s2384 + $0x120] sm:$0xff]
    %v2410 = vld [vmem:[%s2384 + $0x128] sm:$0xff]
    %v2411 = vld [vmem:[%s2384 + $0x138] sm:$0xff]
    %v2412 = vld [vmem:[%s2384 + $0x140] sm:$0xff]
    %v2413 = vld [vmem:[%s2384 + $0x150] sm:$0xff]
    %v2414 = vld [vmem:[%s2384 + $0x158] sm:$0xff]
    %v2415 = vld [vmem:[%s2384 + $0x168] sm:$0xff]
    %v2416 = vld [vmem:[%s2384 + $0x170] sm:$0xff]
    %v2417 = vld [vmem:[%s2384 + $0x1b0] sm:$0xff]
    %v2418 = vld [vmem:[%s2384 + $0x1b8] sm:$0xff]
    %v2419 = vld [vmem:[%s2384 + $0x1c8] sm:$0xff]
    %v2420 = vld [vmem:[%s2384 + $0x1d0] sm:$0xff]
    %v2421 = vld [vmem:[%s2384 + $0x1e0] sm:$0xff]
    %v2422 = vld [vmem:[%s2384 + $0x1e8] sm:$0xff]
    %v2423 = vld [vmem:[%s2384 + $0x1f8] sm:$0xff]
    %v2424 = vld [vmem:[%s2384 + $0x200] sm:$0xff]
    %v2425 = vld [vmem:[%s2384 + $0x210] sm:$0xff]
    %v2426 = vld [vmem:[%s2384 + $0x218] sm:$0xff]
    %v2427 = vld [vmem:[%s2384 + $0x228] sm:$0xff]
    %v2428 = vld [vmem:[%s2384 + $0x230] sm:$0xff]
    %v2429 = vld [vmem:[%s2384 + $0x240] sm:$0xff]
    %v2430 = vld [vmem:[%s2384 + $0x248] sm:$0xff]
    %v2431 = vld [vmem:[%s2384 + $0x258] sm:$0xff]
    %v2432 = vld [vmem:[%s2384 + $0x260] sm:$0xff]
    %v2433 = vld [vmem:[%s2384 + $0x270] sm:$0xff]
    %v2434 = vld [vmem:[%s2384 + $0x278] sm:$0xff]
    %v2435 = vld [vmem:[%s2384 + $0x288] sm:$0xff]
    %v2436 = vld [vmem:[%s2384 + $0x290] sm:$0xff]
    %v2437 = vld [vmem:[%s2384 + $0x2a0] sm:$0xff]
    %v2438 = vld [vmem:[%s2384 + $0x2a8] sm:$0xff]
    %v2439 = vld [vmem:[%s2384 + $0x2b8] sm:$0xff]
    %v2440 = vld [vmem:[%s2384 + $0x2c0] sm:$0xff]
    %v2441 = vld [vmem:[%s2384 + $0x2d0] sm:$0xff]
    %v2442 = vld [vmem:[%s2384 + $0x2d8] sm:$0xff]
    %v2443 = vld [vmem:[%s2384 + $0x2e8] sm:$0xff]
    %v2444 = vld [vmem:[%s2384 + $0x2f0] sm:$0xff]
    %v2445 = vld [vmem:[%s2384 + $0x300] sm:$0xff]
    %v2446 = vld [vmem:[%s2384 + $0x308] sm:$0xff]
    %v2447 = vld [vmem:[%s2384 + $0x318] sm:$0xff]
    %v2448 = vld [vmem:[%s2384 + $0x320] sm:$0xff]
    %2513 = vrot.lane.b32.xlu0 %v2385, 24
    %v2514 = vpop.permute.xlu0 %2513
    %2515 = vrot.lane.b32.xlu0 %v2386, 24
    %v2516 = vpop.permute.xlu0 %2515
    %2517 = vrot.lane.b32.xlu0 %v2387, 24
    %v2518 = vpop.permute.xlu0 %2517
    %2519 = vrot.lane.b32.xlu0 %v2388, 24
    %v2520 = vpop.permute.xlu0 %2519
    %2521 = vrot.lane.b32.xlu0 %v2389, 24
    %v2522 = vpop.permute.xlu0 %2521
    %2523 = vrot.lane.b32.xlu0 %v2390, 24
    %v2524 = vpop.permute.xlu0 %2523
    %2525 = vrot.lane.b32.xlu0 %v2391, 24
    %v2526 = vpop.permute.xlu0 %2525
    %2527 = vrot.lane.b32.xlu0 %v2392, 24
    %v2528 = vpop.permute.xlu0 %2527
    %2529 = vrot.lane.b32.xlu0 %v2393, 24
    %v2530 = vpop.permute.xlu0 %2529
    %2531 = vrot.lane.b32.xlu0 %v2394, 24
    %v2532 = vpop.permute.xlu0 %2531
    %2533 = vrot.lane.b32.xlu0 %v2395, 24
    %v2534 = vpop.permute.xlu0 %2533
    %2535 = vrot.lane.b32.xlu0 %v2396, 24
    %v2536 = vpop.permute.xlu0 %2535
    %2537 = vrot.lane.b32.xlu0 %v2397, 24
    %v2538 = vpop.permute.xlu0 %2537
    %2539 = vrot.lane.b32.xlu0 %v2398, 24
    %v2540 = vpop.permute.xlu0 %2539
    %2541 = vrot.lane.b32.xlu0 %v2399, 24
    %v2542 = vpop.permute.xlu0 %2541
    %2543 = vrot.lane.b32.xlu0 %v2400, 24
    %v2544 = vpop.permute.xlu0 %2543
    %2545 = vrot.lane.b32.xlu0 %v2401, 24
    %v2546 = vpop.permute.xlu0 %2545
    %2547 = vrot.lane.b32.xlu0 %v2402, 24
    %v2548 = vpop.permute.xlu0 %2547
    %2549 = vrot.lane.b32.xlu0 %v2403, 24
    %v2550 = vpop.permute.xlu0 %2549
    %2551 = vrot.lane.b32.xlu0 %v2404, 24
    %v2552 = vpop.permute.xlu0 %2551
    %2553 = vrot.lane.b32.xlu0 %v2405, 24
    %v2554 = vpop.permute.xlu0 %2553
    %2555 = vrot.lane.b32.xlu0 %v2406, 24
    %v2556 = vpop.permute.xlu0 %2555
    %2557 = vrot.lane.b32.xlu0 %v2407, 24
    %v2558 = vpop.permute.xlu0 %2557
    %2559 = vrot.lane.b32.xlu0 %v2408, 24
    %v2560 = vpop.permute.xlu0 %2559
    %2561 = vrot.lane.b32.xlu0 %v2409, 24
    %v2562 = vpop.permute.xlu0 %2561
    %2563 = vrot.lane.b32.xlu0 %v2410, 24
    %v2564 = vpop.permute.xlu0 %2563
    %2565 = vrot.lane.b32.xlu0 %v2411, 24
    %v2566 = vpop.permute.xlu0 %2565
    %2567 = vrot.lane.b32.xlu0 %v2412, 24
    %v2568 = vpop.permute.xlu0 %2567
    %2569 = vrot.lane.b32.xlu0 %v2413, 24
    %v2570 = vpop.permute.xlu0 %2569
    %2571 = vrot.lane.b32.xlu0 %v2414, 24
    %v2572 = vpop.permute.xlu0 %2571
    %2573 = vrot.lane.b32.xlu0 %v2415, 24
    %v2574 = vpop.permute.xlu0 %2573
    %2575 = vrot.lane.b32.xlu0 %v2416, 24
    %v2576 = vpop.permute.xlu0 %2575
    %2577 = vrot.lane.b32.xlu0 %v2417, 24
    %v2578 = vpop.permute.xlu0 %2577
    %2579 = vrot.lane.b32.xlu0 %v2418, 24
    %v2580 = vpop.permute.xlu0 %2579
    %2581 = vrot.lane.b32.xlu0 %v2419, 24
    %v2582 = vpop.permute.xlu0 %2581
    %2583 = vrot.lane.b32.xlu0 %v2420, 24
    %v2584 = vpop.permute.xlu0 %2583
    %2585 = vrot.lane.b32.xlu0 %v2421, 24
    %v2586 = vpop.permute.xlu0 %2585
    %2587 = vrot.lane.b32.xlu0 %v2422, 24
    %v2588 = vpop.permute.xlu0 %2587
    %2589 = vrot.lane.b32.xlu0 %v2423, 24
    %v2590 = vpop.permute.xlu0 %2589
    %2591 = vrot.lane.b32.xlu0 %v2424, 24
    %v2592 = vpop.permute.xlu0 %2591
    %2593 = vrot.lane.b32.xlu0 %v2425, 24
    %v2594 = vpop.permute.xlu0 %2593
    %2595 = vrot.lane.b32.xlu0 %v2426, 24
    %v2596 = vpop.permute.xlu0 %2595
    %2597 = vrot.lane.b32.xlu0 %v2427, 24
    %v2598 = vpop.permute.xlu0 %2597
    %2599 = vrot.lane.b32.xlu0 %v2428, 24
    %v2600 = vpop.permute.xlu0 %2599
    %2601 = vrot.lane.b32.xlu0 %v2429, 24
    %v2602 = vpop.permute.xlu0 %2601
    %2603 = vrot.lane.b32.xlu0 %v2430, 24
    %v2604 = vpop.permute.xlu0 %2603
    %2605 = vrot.lane.b32.xlu0 %v2431, 24
    %v2606 = vpop.permute.xlu0 %2605
    %2607 = vrot.lane.b32.xlu0 %v2432, 24
    %v2608 = vpop.permute.xlu0 %2607
    %2609 = vrot.lane.b32.xlu0 %v2433, 24
    %v2610 = vpop.permute.xlu0 %2609
    %2611 = vrot.lane.b32.xlu0 %v2434, 24
    %v2612 = vpop.permute.xlu0 %2611
    %2613 = vrot.lane.b32.xlu0 %v2435, 24
    %v2614 = vpop.permute.xlu0 %2613
    %2615 = vrot.lane.b32.xlu0 %v2436, 24
    %v2616 = vpop.permute.xlu0 %2615
    %2617 = vrot.lane.b32.xlu0 %v2437, 24
    %v2618 = vpop.permute.xlu0 %2617
    %2619 = vrot.lane.b32.xlu0 %v2438, 24
    %v2620 = vpop.permute.xlu0 %2619
    %2621 = vrot.lane.b32.xlu0 %v2439, 24
    %v2622 = vpop.permute.xlu0 %2621
    %2623 = vrot.lane.b32.xlu0 %v2440, 24
    %v2624 = vpop.permute.xlu0 %2623
    %2625 = vrot.lane.b32.xlu0 %v2441, 24
    %v2626 = vpop.permute.xlu0 %2625
    %2627 = vrot.lane.b32.xlu0 %v2442, 24
    %v2628 = vpop.permute.xlu0 %2627
    %2629 = vrot.lane.b32.xlu0 %v2443, 24
    %v2630 = vpop.permute.xlu0 %2629
    %2631 = vrot.lane.b32.xlu0 %v2444, 24
    %v2632 = vpop.permute.xlu0 %2631
    %2633 = vrot.lane.b32.xlu0 %v2445, 24
    %v2634 = vpop.permute.xlu0 %2633
    %2635 = vrot.lane.b32.xlu0 %v2446, 24
    %v2636 = vpop.permute.xlu0 %2635
    %2637 = vrot.lane.b32.xlu0 %v2447, 24
    %v2638 = vpop.permute.xlu0 %2637
    %2639 = vrot.lane.b32.xlu0 %v2448, 24
    %v2640 = vpop.permute.xlu0 %2639
    %vm2705 = vcmask 228544
    %2706 = vst.msk [vmem:[#allocation3] sm:$0xff] %vm2705, %v2514
    %2707 = vst.msk [vmem:[#allocation3 + $0x8] sm:$0xff] %vm2705, %v2516
    %2708 = vst.msk [vmem:[#allocation3 + $0x10] sm:$0xff] %vm2705, %v2518
    %2709 = vst.msk [vmem:[#allocation3 + $0x18] sm:$0xff] %vm2705, %v2520
    %2710 = vst.msk [vmem:[#allocation3 + $0x20] sm:$0xff] %vm2705, %v2522
    %2711 = vst.msk [vmem:[#allocation3 + $0x28] sm:$0xff] %vm2705, %v2524
    %2712 = vst.msk [vmem:[#allocation3 + $0x30] sm:$0xff] %vm2705, %v2526
    %2713 = vst.msk [vmem:[#allocation3 + $0x38] sm:$0xff] %vm2705, %v2528
    %2714 = vst.msk [vmem:[#allocation3 + $0x40] sm:$0xff] %vm2705, %v2530
    %2715 = vst.msk [vmem:[#allocation3 + $0x48] sm:$0xff] %vm2705, %v2532
    %2716 = vst.msk [vmem:[#allocation3 + $0x50] sm:$0xff] %vm2705, %v2534
    %2717 = vst.msk [vmem:[#allocation3 + $0x58] sm:$0xff] %vm2705, %v2536
    %2718 = vst.msk [vmem:[#allocation3 + $0x60] sm:$0xff] %vm2705, %v2538
    %2719 = vst.msk [vmem:[#allocation3 + $0x68] sm:$0xff] %vm2705, %v2540
    %2720 = vst.msk [vmem:[#allocation3 + $0x70] sm:$0xff] %vm2705, %v2542
    %2721 = vst.msk [vmem:[#allocation3 + $0x78] sm:$0xff] %vm2705, %v2544
    %2722 = vst.msk [vmem:[#allocation3 + $0x80] sm:$0xff] %vm2705, %v2546
    %2723 = vst.msk [vmem:[#allocation3 + $0x88] sm:$0xff] %vm2705, %v2548
    %2724 = vst.msk [vmem:[#allocation3 + $0x90] sm:$0xff] %vm2705, %v2550
    %2725 = vst.msk [vmem:[#allocation3 + $0x98] sm:$0xff] %vm2705, %v2552
    %2726 = vst.msk [vmem:[#allocation3 + $0xa0] sm:$0xff] %vm2705, %v2554
    %2727 = vst.msk [vmem:[#allocation3 + $0xa8] sm:$0xff] %vm2705, %v2556
    %2728 = vst.msk [vmem:[#allocation3 + $0xb0] sm:$0xff] %vm2705, %v2558
    %2729 = vst.msk [vmem:[#allocation3 + $0xb8] sm:$0xff] %vm2705, %v2560
    %2730 = vst.msk [vmem:[#allocation3 + $0xc0] sm:$0xff] %vm2705, %v2562
    %2731 = vst.msk [vmem:[#allocation3 + $0xc8] sm:$0xff] %vm2705, %v2564
    %2732 = vst.msk [vmem:[#allocation3 + $0xd0] sm:$0xff] %vm2705, %v2566
    %2733 = vst.msk [vmem:[#allocation3 + $0xd8] sm:$0xff] %vm2705, %v2568
    %2734 = vst.msk [vmem:[#allocation3 + $0xe0] sm:$0xff] %vm2705, %v2570
    %2735 = vst.msk [vmem:[#allocation3 + $0xe8] sm:$0xff] %vm2705, %v2572
    %2736 = vst.msk [vmem:[#allocation3 + $0xf0] sm:$0xff] %vm2705, %v2574
    %2737 = vst.msk [vmem:[#allocation3 + $0xf8] sm:$0xff] %vm2705, %v2576
    %2738 = vst.msk [vmem:[#allocation3 + $0x100] sm:$0xff] %vm2705, %v2578
    %2739 = vst.msk [vmem:[#allocation3 + $0x108] sm:$0xff] %vm2705, %v2580
    %2740 = vst.msk [vmem:[#allocation3 + $0x110] sm:$0xff] %vm2705, %v2582
    %2741 = vst.msk [vmem:[#allocation3 + $0x118] sm:$0xff] %vm2705, %v2584
    %2742 = vst.msk [vmem:[#allocation3 + $0x120] sm:$0xff] %vm2705, %v2586
    %2743 = vst.msk [vmem:[#allocation3 + $0x128] sm:$0xff] %vm2705, %v2588
    %2744 = vst.msk [vmem:[#allocation3 + $0x130] sm:$0xff] %vm2705, %v2590
    %2745 = vst.msk [vmem:[#allocation3 + $0x138] sm:$0xff] %vm2705, %v2592
    %2746 = vst.msk [vmem:[#allocation3 + $0x140] sm:$0xff] %vm2705, %v2594
    %2747 = vst.msk [vmem:[#allocation3 + $0x148] sm:$0xff] %vm2705, %v2596
    %2748 = vst.msk [vmem:[#allocation3 + $0x150] sm:$0xff] %vm2705, %v2598
    %2749 = vst.msk [vmem:[#allocation3 + $0x158] sm:$0xff] %vm2705, %v2600
    %2750 = vst.msk [vmem:[#allocation3 + $0x160] sm:$0xff] %vm2705, %v2602
    %2751 = vst.msk [vmem:[#allocation3 + $0x168] sm:$0xff] %vm2705, %v2604
    %2752 = vst.msk [vmem:[#allocation3 + $0x170] sm:$0xff] %vm2705, %v2606
    %2753 = vst.msk [vmem:[#allocation3 + $0x178] sm:$0xff] %vm2705, %v2608
    %2754 = vst.msk [vmem:[#allocation3 + $0x180] sm:$0xff] %vm2705, %v2610
    %2755 = vst.msk [vmem:[#allocation3 + $0x188] sm:$0xff] %vm2705, %v2612
    %2756 = vst.msk [vmem:[#allocation3 + $0x190] sm:$0xff] %vm2705, %v2614
    %2757 = vst.msk [vmem:[#allocation3 + $0x198] sm:$0xff] %vm2705, %v2616
    %2758 = vst.msk [vmem:[#allocation3 + $0x1a0] sm:$0xff] %vm2705, %v2618
    %2759 = vst.msk [vmem:[#allocation3 + $0x1a8] sm:$0xff] %vm2705, %v2620
    %2760 = vst.msk [vmem:[#allocation3 + $0x1b0] sm:$0xff] %vm2705, %v2622
    %2761 = vst.msk [vmem:[#allocation3 + $0x1b8] sm:$0xff] %vm2705, %v2624
    %2762 = vst.msk [vmem:[#allocation3 + $0x1c0] sm:$0xff] %vm2705, %v2626
    %2763 = vst.msk [vmem:[#allocation3 + $0x1c8] sm:$0xff] %vm2705, %v2628
    %2764 = vst.msk [vmem:[#allocation3 + $0x1d0] sm:$0xff] %vm2705, %v2630
    %2765 = vst.msk [vmem:[#allocation3 + $0x1d8] sm:$0xff] %vm2705, %v2632
    %2766 = vst.msk [vmem:[#allocation3 + $0x1e0] sm:$0xff] %vm2705, %v2634
    %2767 = vst.msk [vmem:[#allocation3 + $0x1e8] sm:$0xff] %vm2705, %v2636
    %2768 = vst.msk [vmem:[#allocation3 + $0x1f0] sm:$0xff] %vm2705, %v2638
    %2769 = vst.msk [vmem:[#allocation3 + $0x1f8] sm:$0xff] %vm2705, %v2640
    %v2770 = vld [vmem:[%s2384 + $0x1] sm:$0xff]
    %v2771 = vld [vmem:[%s2384 + $0x9] sm:$0xff]
    %v2772 = vld [vmem:[%s2384 + $0x19] sm:$0xff]
    %v2773 = vld [vmem:[%s2384 + $0x21] sm:$0xff]
    %v2774 = vld [vmem:[%s2384 + $0x31] sm:$0xff]
    %v2775 = vld [vmem:[%s2384 + $0x39] sm:$0xff]
    %v2776 = vld [vmem:[%s2384 + $0x49] sm:$0xff]
    %v2777 = vld [vmem:[%s2384 + $0x51] sm:$0xff]
    %v2778 = vld [vmem:[%s2384 + $0x61] sm:$0xff]
    %v2779 = vld [vmem:[%s2384 + $0x69] sm:$0xff]
    %v2780 = vld [vmem:[%s2384 + $0x79] sm:$0xff]
    %v2781 = vld [vmem:[%s2384 + $0x81] sm:$0xff]
    %v2782 = vld [vmem:[%s2384 + $0x91] sm:$0xff]
    %v2783 = vld [vmem:[%s2384 + $0x99] sm:$0xff]
    %v2784 = vld [vmem:[%s2384 + $0xa9] sm:$0xff]
    %v2785 = vld [vmem:[%s2384 + $0xb1] sm:$0xff]
    %v2786 = vld [vmem:[%s2384 + $0xc1] sm:$0xff]
    %v2787 = vld [vmem:[%s2384 + $0xc9] sm:$0xff]
    %v2788 = vld [vmem:[%s2384 + $0xd9] sm:$0xff]
    %v2789 = vld [vmem:[%s2384 + $0xe1] sm:$0xff]
    %v2790 = vld [vmem:[%s2384 + $0xf1] sm:$0xff]
    %v2791 = vld [vmem:[%s2384 + $0xf9] sm:$0xff]
    %v2792 = vld [vmem:[%s2384 + $0x109] sm:$0xff]
    %v2793 = vld [vmem:[%s2384 + $0x111] sm:$0xff]
    %v2794 = vld [vmem:[%s2384 + $0x121] sm:$0xff]
    %v2795 = vld [vmem:[%s2384 + $0x129] sm:$0xff]
    %v2796 = vld [vmem:[%s2384 + $0x139] sm:$0xff]
    %v2797 = vld [vmem:[%s2384 + $0x141] sm:$0xff]
    %v2798 = vld [vmem:[%s2384 + $0x151] sm:$0xff]
    %v2799 = vld [vmem:[%s2384 + $0x159] sm:$0xff]
    %v2800 = vld [vmem:[%s2384 + $0x169] sm:$0xff]
    %v2801 = vld [vmem:[%s2384 + $0x171] sm:$0xff]
    %v2802 = vld [vmem:[%s2384 + $0x1b1] sm:$0xff]
    %v2803 = vld [vmem:[%s2384 + $0x1b9] sm:$0xff]
    %v2804 = vld [vmem:[%s2384 + $0x1c9] sm:$0xff]
    %v2805 = vld [vmem:[%s2384 + $0x1d1] sm:$0xff]
    %v2806 = vld [vmem:[%s2384 + $0x1e1] sm:$0xff]
    %v2807 = vld [vmem:[%s2384 + $0x1e9] sm:$0xff]
    %v2808 = vld [vmem:[%s2384 + $0x1f9] sm:$0xff]
    %v2809 = vld [vmem:[%s2384 + $0x201] sm:$0xff]
    %v2810 = vld [vmem:[%s2384 + $0x211] sm:$0xff]
    %v2811 = vld [vmem:[%s2384 + $0x219] sm:$0xff]
    %v2812 = vld [vmem:[%s2384 + $0x229] sm:$0xff]
    %v2813 = vld [vmem:[%s2384 + $0x231] sm:$0xff]
    %v2814 = vld [vmem:[%s2384 + $0x241] sm:$0xff]
    %v2815 = vld [vmem:[%s2384 + $0x249] sm:$0xff]
    %v2816 = vld [vmem:[%s2384 + $0x259] sm:$0xff]
    %v2817 = vld [vmem:[%s2384 + $0x261] sm:$0xff]
    %v2818 = vld [vmem:[%s2384 + $0x271] sm:$0xff]
    %v2819 = vld [vmem:[%s2384 + $0x279] sm:$0xff]
    %v2820 = vld [vmem:[%s2384 + $0x289] sm:$0xff]
    %v2821 = vld [vmem:[%s2384 + $0x291] sm:$0xff]
    %v2822 = vld [vmem:[%s2384 + $0x2a1] sm:$0xff]
    %v2823 = vld [vmem:[%s2384 + $0x2a9] sm:$0xff]
    %v2824 = vld [vmem:[%s2384 + $0x2b9] sm:$0xff]
    %v2825 = vld [vmem:[%s2384 + $0x2c1] sm:$0xff]
    %v2826 = vld [vmem:[%s2384 + $0x2d1] sm:$0xff]
    %v2827 = vld [vmem:[%s2384 + $0x2d9] sm:$0xff]
    %v2828 = vld [vmem:[%s2384 + $0x2e9] sm:$0xff]
    %v2829 = vld [vmem:[%s2384 + $0x2f1] sm:$0xff]
    %v2830 = vld [vmem:[%s2384 + $0x301] sm:$0xff]
    %v2831 = vld [vmem:[%s2384 + $0x309] sm:$0xff]
    %v2832 = vld [vmem:[%s2384 + $0x319] sm:$0xff]
    %v2833 = vld [vmem:[%s2384 + $0x321] sm:$0xff]
    %2898 = vrot.lane.b32.xlu0 %v2770, 28
    %v2899 = vpop.permute.xlu0 %2898
    %2900 = vrot.lane.b32.xlu0 %v2771, 28
    %v2901 = vpop.permute.xlu0 %2900
    %2902 = vrot.lane.b32.xlu0 %v2772, 28
    %v2903 = vpop.permute.xlu0 %2902
    %2904 = vrot.lane.b32.xlu0 %v2773, 28
    %v2905 = vpop.permute.xlu0 %2904
    %2906 = vrot.lane.b32.xlu0 %v2774, 28
    %v2907 = vpop.permute.xlu0 %2906
    %2908 = vrot.lane.b32.xlu0 %v2775, 28
    %v2909 = vpop.permute.xlu0 %2908
    %2910 = vrot.lane.b32.xlu0 %v2776, 28
    %v2911 = vpop.permute.xlu0 %2910
    %2912 = vrot.lane.b32.xlu0 %v2777, 28
    %v2913 = vpop.permute.xlu0 %2912
    %2914 = vrot.lane.b32.xlu0 %v2778, 28
    %v2915 = vpop.permute.xlu0 %2914
    %2916 = vrot.lane.b32.xlu0 %v2779, 28
    %v2917 = vpop.permute.xlu0 %2916
    %2918 = vrot.lane.b32.xlu0 %v2780, 28
    %v2919 = vpop.permute.xlu0 %2918
    %2920 = vrot.lane.b32.xlu0 %v2781, 28
    %v2921 = vpop.permute.xlu0 %2920
    %2922 = vrot.lane.b32.xlu0 %v2782, 28
    %v2923 = vpop.permute.xlu0 %2922
    %2924 = vrot.lane.b32.xlu0 %v2783, 28
    %v2925 = vpop.permute.xlu0 %2924
    %2926 = vrot.lane.b32.xlu0 %v2784, 28
    %v2927 = vpop.permute.xlu0 %2926
    %2928 = vrot.lane.b32.xlu0 %v2785, 28
    %v2929 = vpop.permute.xlu0 %2928
    %2930 = vrot.lane.b32.xlu0 %v2786, 28
    %v2931 = vpop.permute.xlu0 %2930
    %2932 = vrot.lane.b32.xlu0 %v2787, 28
    %v2933 = vpop.permute.xlu0 %2932
    %2934 = vrot.lane.b32.xlu0 %v2788, 28
    %v2935 = vpop.permute.xlu0 %2934
    %2936 = vrot.lane.b32.xlu0 %v2789, 28
    %v2937 = vpop.permute.xlu0 %2936
    %2938 = vrot.lane.b32.xlu0 %v2790, 28
    %v2939 = vpop.permute.xlu0 %2938
    %2940 = vrot.lane.b32.xlu0 %v2791, 28
    %v2941 = vpop.permute.xlu0 %2940
    %2942 = vrot.lane.b32.xlu0 %v2792, 28
    %v2943 = vpop.permute.xlu0 %2942
    %2944 = vrot.lane.b32.xlu0 %v2793, 28
    %v2945 = vpop.permute.xlu0 %2944
    %2946 = vrot.lane.b32.xlu0 %v2794, 28
    %v2947 = vpop.permute.xlu0 %2946
    %2948 = vrot.lane.b32.xlu0 %v2795, 28
    %v2949 = vpop.permute.xlu0 %2948
    %2950 = vrot.lane.b32.xlu0 %v2796, 28
    %v2951 = vpop.permute.xlu0 %2950
    %2952 = vrot.lane.b32.xlu0 %v2797, 28
    %v2953 = vpop.permute.xlu0 %2952
    %2954 = vrot.lane.b32.xlu0 %v2798, 28
    %v2955 = vpop.permute.xlu0 %2954
    %2956 = vrot.lane.b32.xlu0 %v2799, 28
    %v2957 = vpop.permute.xlu0 %2956
    %2958 = vrot.lane.b32.xlu0 %v2800, 28
    %v2959 = vpop.permute.xlu0 %2958
    %2960 = vrot.lane.b32.xlu0 %v2801, 28
    %v2961 = vpop.permute.xlu0 %2960
    %2962 = vrot.lane.b32.xlu0 %v2802, 28
    %v2963 = vpop.permute.xlu0 %2962
    %2964 = vrot.lane.b32.xlu0 %v2803, 28
    %v2965 = vpop.permute.xlu0 %2964
    %2966 = vrot.lane.b32.xlu0 %v2804, 28
    %v2967 = vpop.permute.xlu0 %2966
    %2968 = vrot.lane.b32.xlu0 %v2805, 28
    %v2969 = vpop.permute.xlu0 %2968
    %2970 = vrot.lane.b32.xlu0 %v2806, 28
    %v2971 = vpop.permute.xlu0 %2970
    %2972 = vrot.lane.b32.xlu0 %v2807, 28
    %v2973 = vpop.permute.xlu0 %2972
    %2974 = vrot.lane.b32.xlu0 %v2808, 28
    %v2975 = vpop.permute.xlu0 %2974
    %2976 = vrot.lane.b32.xlu0 %v2809, 28
    %v2977 = vpop.permute.xlu0 %2976
    %2978 = vrot.lane.b32.xlu0 %v2810, 28
    %v2979 = vpop.permute.xlu0 %2978
    %2980 = vrot.lane.b32.xlu0 %v2811, 28
    %v2981 = vpop.permute.xlu0 %2980
    %2982 = vrot.lane.b32.xlu0 %v2812, 28
    %v2983 = vpop.permute.xlu0 %2982
    %2984 = vrot.lane.b32.xlu0 %v2813, 28
    %v2985 = vpop.permute.xlu0 %2984
    %2986 = vrot.lane.b32.xlu0 %v2814, 28
    %v2987 = vpop.permute.xlu0 %2986
    %2988 = vrot.lane.b32.xlu0 %v2815, 28
    %v2989 = vpop.permute.xlu0 %2988
    %2990 = vrot.lane.b32.xlu0 %v2816, 28
    %v2991 = vpop.permute.xlu0 %2990
    %2992 = vrot.lane.b32.xlu0 %v2817, 28
    %v2993 = vpop.permute.xlu0 %2992
    %2994 = vrot.lane.b32.xlu0 %v2818, 28
    %v2995 = vpop.permute.xlu0 %2994
    %2996 = vrot.lane.b32.xlu0 %v2819, 28
    %v2997 = vpop.permute.xlu0 %2996
    %2998 = vrot.lane.b32.xlu0 %v2820, 28
    %v2999 = vpop.permute.xlu0 %2998
    %3000 = vrot.lane.b32.xlu0 %v2821, 28
    %v3001 = vpop.permute.xlu0 %3000
    %3002 = vrot.lane.b32.xlu0 %v2822, 28
    %v3003 = vpop.permute.xlu0 %3002
    %3004 = vrot.lane.b32.xlu0 %v2823, 28
    %v3005 = vpop.permute.xlu0 %3004
    %3006 = vrot.lane.b32.xlu0 %v2824, 28
    %v3007 = vpop.permute.xlu0 %3006
    %3008 = vrot.lane.b32.xlu0 %v2825, 28
    %v3009 = vpop.permute.xlu0 %3008
    %3010 = vrot.lane.b32.xlu0 %v2826, 28
    %v3011 = vpop.permute.xlu0 %3010
    %3012 = vrot.lane.b32.xlu0 %v2827, 28
    %v3013 = vpop.permute.xlu0 %3012
    %3014 = vrot.lane.b32.xlu0 %v2828, 28
    %v3015 = vpop.permute.xlu0 %3014
    %3016 = vrot.lane.b32.xlu0 %v2829, 28
    %v3017 = vpop.permute.xlu0 %3016
    %3018 = vrot.lane.b32.xlu0 %v2830, 28
    %v3019 = vpop.permute.xlu0 %3018
    %3020 = vrot.lane.b32.xlu0 %v2831, 28
    %v3021 = vpop.permute.xlu0 %3020
    %3022 = vrot.lane.b32.xlu0 %v2832, 28
    %v3023 = vpop.permute.xlu0 %3022
    %3024 = vrot.lane.b32.xlu0 %v2833, 28
    %v3025 = vpop.permute.xlu0 %3024
    %vm3090 = vcmask 261344
    %3091 = vst.msk [vmem:[#allocation3] sm:$0xff] %vm3090, %v2899
    %3092 = vst.msk [vmem:[#allocation3 + $0x8] sm:$0xff] %vm3090, %v2901
    %3093 = vst.msk [vmem:[#allocation3 + $0x10] sm:$0xff] %vm3090, %v2903
    %3094 = vst.msk [vmem:[#allocation3 + $0x18] sm:$0xff] %vm3090, %v2905
    %3095 = vst.msk [vmem:[#allocation3 + $0x20] sm:$0xff] %vm3090, %v2907
    %3096 = vst.msk [vmem:[#allocation3 + $0x28] sm:$0xff] %vm3090, %v2909
    %3097 = vst.msk [vmem:[#allocation3 + $0x30] sm:$0xff] %vm3090, %v2911
    %3098 = vst.msk [vmem:[#allocation3 + $0x38] sm:$0xff] %vm3090, %v2913
    %3099 = vst.msk [vmem:[#allocation3 + $0x40] sm:$0xff] %vm3090, %v2915
    %3100 = vst.msk [vmem:[#allocation3 + $0x48] sm:$0xff] %vm3090, %v2917
    %3101 = vst.msk [vmem:[#allocation3 + $0x50] sm:$0xff] %vm3090, %v2919
    %3102 = vst.msk [vmem:[#allocation3 + $0x58] sm:$0xff] %vm3090, %v2921
    %3103 = vst.msk [vmem:[#allocation3 + $0x60] sm:$0xff] %vm3090, %v2923
    %3104 = vst.msk [vmem:[#allocation3 + $0x68] sm:$0xff] %vm3090, %v2925
    %3105 = vst.msk [vmem:[#allocation3 + $0x70] sm:$0xff] %vm3090, %v2927
    %3106 = vst.msk [vmem:[#allocation3 + $0x78] sm:$0xff] %vm3090, %v2929
    %3107 = vst.msk [vmem:[#allocation3 + $0x80] sm:$0xff] %vm3090, %v2931
    %3108 = vst.msk [vmem:[#allocation3 + $0x88] sm:$0xff] %vm3090, %v2933
    %3109 = vst.msk [vmem:[#allocation3 + $0x90] sm:$0xff] %vm3090, %v2935
    %3110 = vst.msk [vmem:[#allocation3 + $0x98] sm:$0xff] %vm3090, %v2937
    %3111 = vst.msk [vmem:[#allocation3 + $0xa0] sm:$0xff] %vm3090, %v2939
    %3112 = vst.msk [vmem:[#allocation3 + $0xa8] sm:$0xff] %vm3090, %v2941
    %3113 = vst.msk [vmem:[#allocation3 + $0xb0] sm:$0xff] %vm3090, %v2943
    %3114 = vst.msk [vmem:[#allocation3 + $0xb8] sm:$0xff] %vm3090, %v2945
    %3115 = vst.msk [vmem:[#allocation3 + $0xc0] sm:$0xff] %vm3090, %v2947
    %3116 = vst.msk [vmem:[#allocation3 + $0xc8] sm:$0xff] %vm3090, %v2949
    %3117 = vst.msk [vmem:[#allocation3 + $0xd0] sm:$0xff] %vm3090, %v2951
    %3118 = vst.msk [vmem:[#allocation3 + $0xd8] sm:$0xff] %vm3090, %v2953
    %3119 = vst.msk [vmem:[#allocation3 + $0xe0] sm:$0xff] %vm3090, %v2955
    %3120 = vst.msk [vmem:[#allocation3 + $0xe8] sm:$0xff] %vm3090, %v2957
    %3121 = vst.msk [vmem:[#allocation3 + $0xf0] sm:$0xff] %vm3090, %v2959
    %3122 = vst.msk [vmem:[#allocation3 + $0xf8] sm:$0xff] %vm3090, %v2961
    %3123 = vst.msk [vmem:[#allocation3 + $0x100] sm:$0xff] %vm3090, %v2963
    %3124 = vst.msk [vmem:[#allocation3 + $0x108] sm:$0xff] %vm3090, %v2965
    %3125 = vst.msk [vmem:[#allocation3 + $0x110] sm:$0xff] %vm3090, %v2967
    %3126 = vst.msk [vmem:[#allocation3 + $0x118] sm:$0xff] %vm3090, %v2969
    %3127 = vst.msk [vmem:[#allocation3 + $0x120] sm:$0xff] %vm3090, %v2971
    %3128 = vst.msk [vmem:[#allocation3 + $0x128] sm:$0xff] %vm3090, %v2973
    %3129 = vst.msk [vmem:[#allocation3 + $0x130] sm:$0xff] %vm3090, %v2975
    %3130 = vst.msk [vmem:[#allocation3 + $0x138] sm:$0xff] %vm3090, %v2977
    %3131 = vst.msk [vmem:[#allocation3 + $0x140] sm:$0xff] %vm3090, %v2979
    %3132 = vst.msk [vmem:[#allocation3 + $0x148] sm:$0xff] %vm3090, %v2981
    %3133 = vst.msk [vmem:[#allocation3 + $0x150] sm:$0xff] %vm3090, %v2983
    %3134 = vst.msk [vmem:[#allocation3 + $0x158] sm:$0xff] %vm3090, %v2985
    %3135 = vst.msk [vmem:[#allocation3 + $0x160] sm:$0xff] %vm3090, %v2987
    %3136 = vst.msk [vmem:[#allocation3 + $0x168] sm:$0xff] %vm3090, %v2989
    %3137 = vst.msk [vmem:[#allocation3 + $0x170] sm:$0xff] %vm3090, %v2991
    %3138 = vst.msk [vmem:[#allocation3 + $0x178] sm:$0xff] %vm3090, %v2993
    %3139 = vst.msk [vmem:[#allocation3 + $0x180] sm:$0xff] %vm3090, %v2995
    %3140 = vst.msk [vmem:[#allocation3 + $0x188] sm:$0xff] %vm3090, %v2997
    %3141 = vst.msk [vmem:[#allocation3 + $0x190] sm:$0xff] %vm3090, %v2999
    %3142 = vst.msk [vmem:[#allocation3 + $0x198] sm:$0xff] %vm3090, %v3001
    %3143 = vst.msk [vmem:[#allocation3 + $0x1a0] sm:$0xff] %vm3090, %v3003
    %3144 = vst.msk [vmem:[#allocation3 + $0x1a8] sm:$0xff] %vm3090, %v3005
    %3145 = vst.msk [vmem:[#allocation3 + $0x1b0] sm:$0xff] %vm3090, %v3007
    %3146 = vst.msk [vmem:[#allocation3 + $0x1b8] sm:$0xff] %vm3090, %v3009
    %3147 = vst.msk [vmem:[#allocation3 + $0x1c0] sm:$0xff] %vm3090, %v3011
    %3148 = vst.msk [vmem:[#allocation3 + $0x1c8] sm:$0xff] %vm3090, %v3013
    %3149 = vst.msk [vmem:[#allocation3 + $0x1d0] sm:$0xff] %vm3090, %v3015
    %3150 = vst.msk [vmem:[#allocation3 + $0x1d8] sm:$0xff] %vm3090, %v3017
    %3151 = vst.msk [vmem:[#allocation3 + $0x1e0] sm:$0xff] %vm3090, %v3019
    %3152 = vst.msk [vmem:[#allocation3 + $0x1e8] sm:$0xff] %vm3090, %v3021
    %3153 = vst.msk [vmem:[#allocation3 + $0x1f0] sm:$0xff] %vm3090, %v3023
    %3154 = vst.msk [vmem:[#allocation3 + $0x1f8] sm:$0xff] %vm3090, %v3025
    %v3155 = vld [vmem:[%s2384 + $0x2] sm:$0xff]
    %v3156 = vld [vmem:[%s2384 + $0xa] sm:$0xff]
    %v3157 = vld [vmem:[%s2384 + $0x1a] sm:$0xff]
    %v3158 = vld [vmem:[%s2384 + $0x22] sm:$0xff]
    %v3159 = vld [vmem:[%s2384 + $0x32] sm:$0xff]
    %v3160 = vld [vmem:[%s2384 + $0x3a] sm:$0xff]
    %v3161 = vld [vmem:[%s2384 + $0x4a] sm:$0xff]
    %v3162 = vld [vmem:[%s2384 + $0x52] sm:$0xff]
    %v3163 = vld [vmem:[%s2384 + $0x62] sm:$0xff]
    %v3164 = vld [vmem:[%s2384 + $0x6a] sm:$0xff]
    %v3165 = vld [vmem:[%s2384 + $0x7a] sm:$0xff]
    %v3166 = vld [vmem:[%s2384 + $0x82] sm:$0xff]
    %v3167 = vld [vmem:[%s2384 + $0x92] sm:$0xff]
    %v3168 = vld [vmem:[%s2384 + $0x9a] sm:$0xff]
    %v3169 = vld [vmem:[%s2384 + $0xaa] sm:$0xff]
    %v3170 = vld [vmem:[%s2384 + $0xb2] sm:$0xff]
    %v3171 = vld [vmem:[%s2384 + $0xc2] sm:$0xff]
    %v3172 = vld [vmem:[%s2384 + $0xca] sm:$0xff]
    %v3173 = vld [vmem:[%s2384 + $0xda] sm:$0xff]
    %v3174 = vld [vmem:[%s2384 + $0xe2] sm:$0xff]
    %v3175 = vld [vmem:[%s2384 + $0xf2] sm:$0xff]
    %v3176 = vld [vmem:[%s2384 + $0xfa] sm:$0xff]
    %v3177 = vld [vmem:[%s2384 + $0x10a] sm:$0xff]
    %v3178 = vld [vmem:[%s2384 + $0x112] sm:$0xff]
    %v3179 = vld [vmem:[%s2384 + $0x122] sm:$0xff]
    %v3180 = vld [vmem:[%s2384 + $0x12a] sm:$0xff]
    %v3181 = vld [vmem:[%s2384 + $0x13a] sm:$0xff]
    %v3182 = vld [vmem:[%s2384 + $0x142] sm:$0xff]
    %v3183 = vld [vmem:[%s2384 + $0x152] sm:$0xff]
    %v3184 = vld [vmem:[%s2384 + $0x15a] sm:$0xff]
    %v3185 = vld [vmem:[%s2384 + $0x16a] sm:$0xff]
    %v3186 = vld [vmem:[%s2384 + $0x172] sm:$0xff]
    %v3187 = vld [vmem:[%s2384 + $0x1b2] sm:$0xff]
    %v3188 = vld [vmem:[%s2384 + $0x1ba] sm:$0xff]
    %v3189 = vld [vmem:[%s2384 + $0x1ca] sm:$0xff]
    %v3190 = vld [vmem:[%s2384 + $0x1d2] sm:$0xff]
    %v3191 = vld [vmem:[%s2384 + $0x1e2] sm:$0xff]
    %v3192 = vld [vmem:[%s2384 + $0x1ea] sm:$0xff]
    %v3193 = vld [vmem:[%s2384 + $0x1fa] sm:$0xff]
    %v3194 = vld [vmem:[%s2384 + $0x202] sm:$0xff]
    %v3195 = vld [vmem:[%s2384 + $0x212] sm:$0xff]
    %v3196 = vld [vmem:[%s2384 + $0x21a] sm:$0xff]
    %v3197 = vld [vmem:[%s2384 + $0x22a] sm:$0xff]
    %v3198 = vld [vmem:[%s2384 + $0x232] sm:$0xff]
    %v3199 = vld [vmem:[%s2384 + $0x242] sm:$0xff]
    %v3200 = vld [vmem:[%s2384 + $0x24a] sm:$0xff]
    %v3201 = vld [vmem:[%s2384 + $0x25a] sm:$0xff]
    %v3202 = vld [vmem:[%s2384 + $0x262] sm:$0xff]
    %v3203 = vld [vmem:[%s2384 + $0x272] sm:$0xff]
    %v3204 = vld [vmem:[%s2384 + $0x27a] sm:$0xff]
    %v3205 = vld [vmem:[%s2384 + $0x28a] sm:$0xff]
    %v3206 = vld [vmem:[%s2384 + $0x292] sm:$0xff]
    %v3207 = vld [vmem:[%s2384 + $0x2a2] sm:$0xff]
    %v3208 = vld [vmem:[%s2384 + $0x2aa] sm:$0xff]
    %v3209 = vld [vmem:[%s2384 + $0x2ba] sm:$0xff]
    %v3210 = vld [vmem:[%s2384 + $0x2c2] sm:$0xff]
    %v3211 = vld [vmem:[%s2384 + $0x2d2] sm:$0xff]
    %v3212 = vld [vmem:[%s2384 + $0x2da] sm:$0xff]
    %v3213 = vld [vmem:[%s2384 + $0x2ea] sm:$0xff]
    %v3214 = vld [vmem:[%s2384 + $0x2f2] sm:$0xff]
    %v3215 = vld [vmem:[%s2384 + $0x302] sm:$0xff]
    %v3216 = vld [vmem:[%s2384 + $0x30a] sm:$0xff]
    %v3217 = vld [vmem:[%s2384 + $0x31a] sm:$0xff]
    %v3218 = vld [vmem:[%s2384 + $0x322] sm:$0xff]
    %3283 = vrot.lane.b32.xlu0 %v3155, 32
    %v3284 = vpop.permute.xlu0 %3283
    %3285 = vrot.lane.b32.xlu0 %v3156, 32
    %v3286 = vpop.permute.xlu0 %3285
    %3287 = vrot.lane.b32.xlu0 %v3157, 32
    %v3288 = vpop.permute.xlu0 %3287
    %3289 = vrot.lane.b32.xlu0 %v3158, 32
    %v3290 = vpop.permute.xlu0 %3289
    %3291 = vrot.lane.b32.xlu0 %v3159, 32
    %v3292 = vpop.permute.xlu0 %3291
    %3293 = vrot.lane.b32.xlu0 %v3160, 32
    %v3294 = vpop.permute.xlu0 %3293
    %3295 = vrot.lane.b32.xlu0 %v3161, 32
    %v3296 = vpop.permute.xlu0 %3295
    %3297 = vrot.lane.b32.xlu0 %v3162, 32
    %v3298 = vpop.permute.xlu0 %3297
    %3299 = vrot.lane.b32.xlu0 %v3163, 32
    %v3300 = vpop.permute.xlu0 %3299
    %3301 = vrot.lane.b32.xlu0 %v3164, 32
    %v3302 = vpop.permute.xlu0 %3301
    %3303 = vrot.lane.b32.xlu0 %v3165, 32
    %v3304 = vpop.permute.xlu0 %3303
    %3305 = vrot.lane.b32.xlu0 %v3166, 32
    %v3306 = vpop.permute.xlu0 %3305
    %3307 = vrot.lane.b32.xlu0 %v3167, 32
    %v3308 = vpop.permute.xlu0 %3307
    %3309 = vrot.lane.b32.xlu0 %v3168, 32
    %v3310 = vpop.permute.xlu0 %3309
    %3311 = vrot.lane.b32.xlu0 %v3169, 32
    %v3312 = vpop.permute.xlu0 %3311
    %3313 = vrot.lane.b32.xlu0 %v3170, 32
    %v3314 = vpop.permute.xlu0 %3313
    %3315 = vrot.lane.b32.xlu0 %v3171, 32
    %v3316 = vpop.permute.xlu0 %3315
    %3317 = vrot.lane.b32.xlu0 %v3172, 32
    %v3318 = vpop.permute.xlu0 %3317
    %3319 = vrot.lane.b32.xlu0 %v3173, 32
    %v3320 = vpop.permute.xlu0 %3319
    %3321 = vrot.lane.b32.xlu0 %v3174, 32
    %v3322 = vpop.permute.xlu0 %3321
    %3323 = vrot.lane.b32.xlu0 %v3175, 32
    %v3324 = vpop.permute.xlu0 %3323
    %3325 = vrot.lane.b32.xlu0 %v3176, 32
    %v3326 = vpop.permute.xlu0 %3325
    %3327 = vrot.lane.b32.xlu0 %v3177, 32
    %v3328 = vpop.permute.xlu0 %3327
    %3329 = vrot.lane.b32.xlu0 %v3178, 32
    %v3330 = vpop.permute.xlu0 %3329
    %3331 = vrot.lane.b32.xlu0 %v3179, 32
    %v3332 = vpop.permute.xlu0 %3331
    %3333 = vrot.lane.b32.xlu0 %v3180, 32
    %v3334 = vpop.permute.xlu0 %3333
    %3335 = vrot.lane.b32.xlu0 %v3181, 32
    %v3336 = vpop.permute.xlu0 %3335
    %3337 = vrot.lane.b32.xlu0 %v3182, 32
    %v3338 = vpop.permute.xlu0 %3337
    %3339 = vrot.lane.b32.xlu0 %v3183, 32
    %v3340 = vpop.permute.xlu0 %3339
    %3341 = vrot.lane.b32.xlu0 %v3184, 32
    %v3342 = vpop.permute.xlu0 %3341
    %3343 = vrot.lane.b32.xlu0 %v3185, 32
    %v3344 = vpop.permute.xlu0 %3343
    %3345 = vrot.lane.b32.xlu0 %v3186, 32
    %v3346 = vpop.permute.xlu0 %3345
    %3347 = vrot.lane.b32.xlu0 %v3187, 32
    %v3348 = vpop.permute.xlu0 %3347
    %3349 = vrot.lane.b32.xlu0 %v3188, 32
    %v3350 = vpop.permute.xlu0 %3349
    %3351 = vrot.lane.b32.xlu0 %v3189, 32
    %v3352 = vpop.permute.xlu0 %3351
    %3353 = vrot.lane.b32.xlu0 %v3190, 32
    %v3354 = vpop.permute.xlu0 %3353
    %3355 = vrot.lane.b32.xlu0 %v3191, 32
    %v3356 = vpop.permute.xlu0 %3355
    %3357 = vrot.lane.b32.xlu0 %v3192, 32
    %v3358 = vpop.permute.xlu0 %3357
    %3359 = vrot.lane.b32.xlu0 %v3193, 32
    %v3360 = vpop.permute.xlu0 %3359
    %3361 = vrot.lane.b32.xlu0 %v3194, 32
    %v3362 = vpop.permute.xlu0 %3361
    %3363 = vrot.lane.b32.xlu0 %v3195, 32
    %v3364 = vpop.permute.xlu0 %3363
    %3365 = vrot.lane.b32.xlu0 %v3196, 32
    %v3366 = vpop.permute.xlu0 %3365
    %3367 = vrot.lane.b32.xlu0 %v3197, 32
    %v3368 = vpop.permute.xlu0 %3367
    %3369 = vrot.lane.b32.xlu0 %v3198, 32
    %v3370 = vpop.permute.xlu0 %3369
    %3371 = vrot.lane.b32.xlu0 %v3199, 32
    %v3372 = vpop.permute.xlu0 %3371
    %3373 = vrot.lane.b32.xlu0 %v3200, 32
    %v3374 = vpop.permute.xlu0 %3373
    %3375 = vrot.lane.b32.xlu0 %v3201, 32
    %v3376 = vpop.permute.xlu0 %3375
    %3377 = vrot.lane.b32.xlu0 %v3202, 32
    %v3378 = vpop.permute.xlu0 %3377
    %3379 = vrot.lane.b32.xlu0 %v3203, 32
    %v3380 = vpop.permute.xlu0 %3379
    %3381 = vrot.lane.b32.xlu0 %v3204, 32
    %v3382 = vpop.permute.xlu0 %3381
    %3383 = vrot.lane.b32.xlu0 %v3205, 32
    %v3384 = vpop.permute.xlu0 %3383
    %3385 = vrot.lane.b32.xlu0 %v3206, 32
    %v3386 = vpop.permute.xlu0 %3385
    %3387 = vrot.lane.b32.xlu0 %v3207, 32
    %v3388 = vpop.permute.xlu0 %3387
    %3389 = vrot.lane.b32.xlu0 %v3208, 32
    %v3390 = vpop.permute.xlu0 %3389
    %3391 = vrot.lane.b32.xlu0 %v3209, 32
    %v3392 = vpop.permute.xlu0 %3391
    %3393 = vrot.lane.b32.xlu0 %v3210, 32
    %v3394 = vpop.permute.xlu0 %3393
    %3395 = vrot.lane.b32.xlu0 %v3211, 32
    %v3396 = vpop.permute.xlu0 %3395
    %3397 = vrot.lane.b32.xlu0 %v3212, 32
    %v3398 = vpop.permute.xlu0 %3397
    %3399 = vrot.lane.b32.xlu0 %v3213, 32
    %v3400 = vpop.permute.xlu0 %3399
    %3401 = vrot.lane.b32.xlu0 %v3214, 32
    %v3402 = vpop.permute.xlu0 %3401
    %3403 = vrot.lane.b32.xlu0 %v3215, 32
    %v3404 = vpop.permute.xlu0 %3403
    %3405 = vrot.lane.b32.xlu0 %v3216, 32
    %v3406 = vpop.permute.xlu0 %3405
    %3407 = vrot.lane.b32.xlu0 %v3217, 32
    %v3408 = vpop.permute.xlu0 %3407
    %3409 = vrot.lane.b32.xlu0 %v3218, 32
    %v3410 = vpop.permute.xlu0 %3409
    %vm3475 = vcmask 294144
    %3476 = vst.msk [vmem:[#allocation3] sm:$0xff] %vm3475, %v3284
    %3477 = vst.msk [vmem:[#allocation3 + $0x8] sm:$0xff] %vm3475, %v3286
    %3478 = vst.msk [vmem:[#allocation3 + $0x10] sm:$0xff] %vm3475, %v3288
    %3479 = vst.msk [vmem:[#allocation3 + $0x18] sm:$0xff] %vm3475, %v3290
    %3480 = vst.msk [vmem:[#allocation3 + $0x20] sm:$0xff] %vm3475, %v3292
    %3481 = vst.msk [vmem:[#allocation3 + $0x28] sm:$0xff] %vm3475, %v3294
    %3482 = vst.msk [vmem:[#allocation3 + $0x30] sm:$0xff] %vm3475, %v3296
    %3483 = vst.msk [vmem:[#allocation3 + $0x38] sm:$0xff] %vm3475, %v3298
    %3484 = vst.msk [vmem:[#allocation3 + $0x40] sm:$0xff] %vm3475, %v3300
    %3485 = vst.msk [vmem:[#allocation3 + $0x48] sm:$0xff] %vm3475, %v3302
    %3486 = vst.msk [vmem:[#allocation3 + $0x50] sm:$0xff] %vm3475, %v3304
    %3487 = vst.msk [vmem:[#allocation3 + $0x58] sm:$0xff] %vm3475, %v3306
    %3488 = vst.msk [vmem:[#allocation3 + $0x60] sm:$0xff] %vm3475, %v3308
    %3489 = vst.msk [vmem:[#allocation3 + $0x68] sm:$0xff] %vm3475, %v3310
    %3490 = vst.msk [vmem:[#allocation3 + $0x70] sm:$0xff] %vm3475, %v3312
    %3491 = vst.msk [vmem:[#allocation3 + $0x78] sm:$0xff] %vm3475, %v3314
    %3492 = vst.msk [vmem:[#allocation3 + $0x80] sm:$0xff] %vm3475, %v3316
    %3493 = vst.msk [vmem:[#allocation3 + $0x88] sm:$0xff] %vm3475, %v3318
    %3494 = vst.msk [vmem:[#allocation3 + $0x90] sm:$0xff] %vm3475, %v3320
    %3495 = vst.msk [vmem:[#allocation3 + $0x98] sm:$0xff] %vm3475, %v3322
    %3496 = vst.msk [vmem:[#allocation3 + $0xa0] sm:$0xff] %vm3475, %v3324
    %3497 = vst.msk [vmem:[#allocation3 + $0xa8] sm:$0xff] %vm3475, %v3326
    %3498 = vst.msk [vmem:[#allocation3 + $0xb0] sm:$0xff] %vm3475, %v3328
    %3499 = vst.msk [vmem:[#allocation3 + $0xb8] sm:$0xff] %vm3475, %v3330
    %3500 = vst.msk [vmem:[#allocation3 + $0xc0] sm:$0xff] %vm3475, %v3332
    %3501 = vst.msk [vmem:[#allocation3 + $0xc8] sm:$0xff] %vm3475, %v3334
    %3502 = vst.msk [vmem:[#allocation3 + $0xd0] sm:$0xff] %vm3475, %v3336
    %3503 = vst.msk [vmem:[#allocation3 + $0xd8] sm:$0xff] %vm3475, %v3338
    %3504 = vst.msk [vmem:[#allocation3 + $0xe0] sm:$0xff] %vm3475, %v3340
    %3505 = vst.msk [vmem:[#allocation3 + $0xe8] sm:$0xff] %vm3475, %v3342
    %3506 = vst.msk [vmem:[#allocation3 + $0xf0] sm:$0xff] %vm3475, %v3344
    %3507 = vst.msk [vmem:[#allocation3 + $0xf8] sm:$0xff] %vm3475, %v3346
    %3508 = vst.msk [vmem:[#allocation3 + $0x100] sm:$0xff] %vm3475, %v3348
    %3509 = vst.msk [vmem:[#allocation3 + $0x108] sm:$0xff] %vm3475, %v3350
    %3510 = vst.msk [vmem:[#allocation3 + $0x110] sm:$0xff] %vm3475, %v3352
    %3511 = vst.msk [vmem:[#allocation3 + $0x118] sm:$0xff] %vm3475, %v3354
    %3512 = vst.msk [vmem:[#allocation3 + $0x120] sm:$0xff] %vm3475, %v3356
    %3513 = vst.msk [vmem:[#allocation3 + $0x128] sm:$0xff] %vm3475, %v3358
    %3514 = vst.msk [vmem:[#allocation3 + $0x130] sm:$0xff] %vm3475, %v3360
    %3515 = vst.msk [vmem:[#allocation3 + $0x138] sm:$0xff] %vm3475, %v3362
    %3516 = vst.msk [vmem:[#allocation3 + $0x140] sm:$0xff] %vm3475, %v3364
    %3517 = vst.msk [vmem:[#allocation3 + $0x148] sm:$0xff] %vm3475, %v3366
    %3518 = vst.msk [vmem:[#allocation3 + $0x150] sm:$0xff] %vm3475, %v3368
    %3519 = vst.msk [vmem:[#allocation3 + $0x158] sm:$0xff] %vm3475, %v3370
    %3520 = vst.msk [vmem:[#allocation3 + $0x160] sm:$0xff] %vm3475, %v3372
    %3521 = vst.msk [vmem:[#allocation3 + $0x168] sm:$0xff] %vm3475, %v3374
    %3522 = vst.msk [vmem:[#allocation3 + $0x170] sm:$0xff] %vm3475, %v3376
    %3523 = vst.msk [vmem:[#allocation3 + $0x178] sm:$0xff] %vm3475, %v3378
    %3524 = vst.msk [vmem:[#allocation3 + $0x180] sm:$0xff] %vm3475, %v3380
    %3525 = vst.msk [vmem:[#allocation3 + $0x188] sm:$0xff] %vm3475, %v3382
    %3526 = vst.msk [vmem:[#allocation3 + $0x190] sm:$0xff] %vm3475, %v3384
    %3527 = vst.msk [vmem:[#allocation3 + $0x198] sm:$0xff] %vm3475, %v3386
    %3528 = vst.msk [vmem:[#allocation3 + $0x1a0] sm:$0xff] %vm3475, %v3388
    %3529 = vst.msk [vmem:[#allocation3 + $0x1a8] sm:$0xff] %vm3475, %v3390
    %3530 = vst.msk [vmem:[#allocation3 + $0x1b0] sm:$0xff] %vm3475, %v3392
    %3531 = vst.msk [vmem:[#allocation3 + $0x1b8] sm:$0xff] %vm3475, %v3394
    %3532 = vst.msk [vmem:[#allocation3 + $0x1c0] sm:$0xff] %vm3475, %v3396
    %3533 = vst.msk [vmem:[#allocation3 + $0x1c8] sm:$0xff] %vm3475, %v3398
    %3534 = vst.msk [vmem:[#allocation3 + $0x1d0] sm:$0xff] %vm3475, %v3400
    %3535 = vst.msk [vmem:[#allocation3 + $0x1d8] sm:$0xff] %vm3475, %v3402
    %3536 = vst.msk [vmem:[#allocation3 + $0x1e0] sm:$0xff] %vm3475, %v3404
    %3537 = vst.msk [vmem:[#allocation3 + $0x1e8] sm:$0xff] %vm3475, %v3406
    %3538 = vst.msk [vmem:[#allocation3 + $0x1f0] sm:$0xff] %vm3475, %v3408
    %3539 = vst.msk [vmem:[#allocation3 + $0x1f8] sm:$0xff] %vm3475, %v3410
    %v3540 = vld [vmem:[#allocation3] sm:$0xff]
    %v3541 = vld [vmem:[#allocation3 + $0x8] sm:$0xff]
    %v3542 = vld [vmem:[#allocation3 + $0x10] sm:$0xff]
    %v3543 = vld [vmem:[#allocation3 + $0x18] sm:$0xff]
    %v3544 = vld [vmem:[#allocation3 + $0x20] sm:$0xff]
    %v3545 = vld [vmem:[#allocation3 + $0x28] sm:$0xff]
    %v3546 = vld [vmem:[#allocation3 + $0x30] sm:$0xff]
    %v3547 = vld [vmem:[#allocation3 + $0x38] sm:$0xff]
    %v3548 = vld [vmem:[#allocation3 + $0x40] sm:$0xff]
    %v3549 = vld [vmem:[#allocation3 + $0x48] sm:$0xff]
    %v3550 = vld [vmem:[#allocation3 + $0x50] sm:$0xff]
    %v3551 = vld [vmem:[#allocation3 + $0x58] sm:$0xff]
    %v3552 = vld [vmem:[#allocation3 + $0x60] sm:$0xff]
    %v3553 = vld [vmem:[#allocation3 + $0x68] sm:$0xff]
    %v3554 = vld [vmem:[#allocation3 + $0x70] sm:$0xff]
    %v3555 = vld [vmem:[#allocation3 + $0x78] sm:$0xff]
    %v3556 = vld [vmem:[#allocation3 + $0x80] sm:$0xff]
    %v3557 = vld [vmem:[#allocation3 + $0x88] sm:$0xff]
    %v3558 = vld [vmem:[#allocation3 + $0x90] sm:$0xff]
    %v3559 = vld [vmem:[#allocation3 + $0x98] sm:$0xff]
    %v3560 = vld [vmem:[#allocation3 + $0xa0] sm:$0xff]
    %v3561 = vld [vmem:[#allocation3 + $0xa8] sm:$0xff]
    %v3562 = vld [vmem:[#allocation3 + $0xb0] sm:$0xff]
    %v3563 = vld [vmem:[#allocation3 + $0xb8] sm:$0xff]
    %v3564 = vld [vmem:[#allocation3 + $0xc0] sm:$0xff]
    %v3565 = vld [vmem:[#allocation3 + $0xc8] sm:$0xff]
    %v3566 = vld [vmem:[#allocation3 + $0xd0] sm:$0xff]
    %v3567 = vld [vmem:[#allocation3 + $0xd8] sm:$0xff]
    %v3568 = vld [vmem:[#allocation3 + $0xe0] sm:$0xff]
    %v3569 = vld [vmem:[#allocation3 + $0xe8] sm:$0xff]
    %v3570 = vld [vmem:[#allocation3 + $0xf0] sm:$0xff]
    %v3571 = vld [vmem:[#allocation3 + $0xf8] sm:$0xff]
    %v3572 = vld [vmem:[#allocation3 + $0x100] sm:$0xff]
    %v3573 = vld [vmem:[#allocation3 + $0x108] sm:$0xff]
    %v3574 = vld [vmem:[#allocation3 + $0x110] sm:$0xff]
    %v3575 = vld [vmem:[#allocation3 + $0x118] sm:$0xff]
    %v3576 = vld [vmem:[#allocation3 + $0x120] sm:$0xff]
    %v3577 = vld [vmem:[#allocation3 + $0x128] sm:$0xff]
    %v3578 = vld [vmem:[#allocation3 + $0x130] sm:$0xff]
    %v3579 = vld [vmem:[#allocation3 + $0x138] sm:$0xff]
    %v3580 = vld [vmem:[#allocation3 + $0x140] sm:$0xff]
    %v3581 = vld [vmem:[#allocation3 + $0x148] sm:$0xff]
    %v3582 = vld [vmem:[#allocation3 + $0x150] sm:$0xff]
    %v3583 = vld [vmem:[#allocation3 + $0x158] sm:$0xff]
    %v3584 = vld [vmem:[#allocation3 + $0x160] sm:$0xff]
    %v3585 = vld [vmem:[#allocation3 + $0x168] sm:$0xff]
    %v3586 = vld [vmem:[#allocation3 + $0x170] sm:$0xff]
    %v3587 = vld [vmem:[#allocation3 + $0x178] sm:$0xff]
    %v3588 = vld [vmem:[#allocation3 + $0x180] sm:$0xff]
    %v3589 = vld [vmem:[#allocation3 + $0x188] sm:$0xff]
    %v3590 = vld [vmem:[#allocation3 + $0x190] sm:$0xff]
    %v3591 = vld [vmem:[#allocation3 + $0x198] sm:$0xff]
    %v3592 = vld [vmem:[#allocation3 + $0x1a0] sm:$0xff]
    %v3593 = vld [vmem:[#allocation3 + $0x1a8] sm:$0xff]
    %v3594 = vld [vmem:[#allocation3 + $0x1b0] sm:$0xff]
    %v3595 = vld [vmem:[#allocation3 + $0x1b8] sm:$0xff]
    %v3596 = vld [vmem:[#allocation3 + $0x1c0] sm:$0xff]
    %v3597 = vld [vmem:[#allocation3 + $0x1c8] sm:$0xff]
    %v3598 = vld [vmem:[#allocation3 + $0x1d0] sm:$0xff]
    %v3599 = vld [vmem:[#allocation3 + $0x1d8] sm:$0xff]
    %v3600 = vld [vmem:[#allocation3 + $0x1e0] sm:$0xff]
    %v3601 = vld [vmem:[#allocation3 + $0x1e8] sm:$0xff]
    %v3602 = vld [vmem:[#allocation3 + $0x1f0] sm:$0xff]
    %v3603 = vld [vmem:[#allocation3 + $0x1f8] sm:$0xff]
    %v3604 = vpack.c.bf16 %v3541, %v3540
    %v3605 = vpack.c.bf16 %v3543, %v3542
    %v3606 = vpack.c.bf16 %v3545, %v3544
    %v3607 = vpack.c.bf16 %v3547, %v3546
    %v3608 = vpack.c.bf16 %v3549, %v3548
    %v3609 = vpack.c.bf16 %v3551, %v3550
    %v3610 = vpack.c.bf16 %v3553, %v3552
    %v3611 = vpack.c.bf16 %v3555, %v3554
    %v3612 = vpack.c.bf16 %v3557, %v3556
    %v3613 = vpack.c.bf16 %v3559, %v3558
    %v3614 = vpack.c.bf16 %v3561, %v3560
    %v3615 = vpack.c.bf16 %v3563, %v3562
    %v3616 = vpack.c.bf16 %v3565, %v3564
    %v3617 = vpack.c.bf16 %v3567, %v3566
    %v3618 = vpack.c.bf16 %v3569, %v3568
    %v3619 = vpack.c.bf16 %v3571, %v3570
    %v3620 = vpack.c.bf16 %v3573, %v3572
    %v3621 = vpack.c.bf16 %v3575, %v3574
    %v3622 = vpack.c.bf16 %v3577, %v3576
    %v3623 = vpack.c.bf16 %v3579, %v3578
    %v3624 = vpack.c.bf16 %v3581, %v3580
    %v3625 = vpack.c.bf16 %v3583, %v3582
    %v3626 = vpack.c.bf16 %v3585, %v3584
    %v3627 = vpack.c.bf16 %v3587, %v3586
    %v3628 = vpack.c.bf16 %v3589, %v3588
    %v3629 = vpack.c.bf16 %v3591, %v3590
    %v3630 = vpack.c.bf16 %v3593, %v3592
    %v3631 = vpack.c.bf16 %v3595, %v3594
    %v3632 = vpack.c.bf16 %v3597, %v3596
    %v3633 = vpack.c.bf16 %v3599, %v3598
    %v3634 = vpack.c.bf16 %v3601, %v3600
    %v3635 = vpack.c.bf16 %v3603, %v3602
    %v3636 = vld [vmem:[%s1] sm:$0xf]
    %v3637 = vld [vmem:[%s1 + $0x4] sm:$0xf]
    %v3638 = vld [vmem:[%s1 + $0x8] sm:$0xf]
    %v3639 = vld [vmem:[%s1 + $0xc] sm:$0xf]
    %v3640 = vld [vmem:[%s1 + $0x10] sm:$0x3]
    %v3646 = vunpack.c.l.b16 %v3636
    %v3647 = vunpack.c.l.b16 %v3637
    %v3648 = vunpack.c.l.b16 %v3638
    %v3649 = vunpack.c.l.b16 %v3639
    %v3650 = vunpack.c.l.b16 %v3640
    %v3651 = vpack.c.b16 %v3647, %v3646
    %v3652 = vpack.c.b16 %v3649, %v3648
    %v3653 = vpack.c.b16 %v3650, %v3650
    %vm3656 = vcmask 293888
    %v3658 = vsel %vm3656, %v3604, 0
    %v3661 = vsel %vm3656, %v3605, 0
    %v3664 = vsel %vm3656, %v3606, 0
    %v3667 = vsel %vm3656, %v3607, 0
    %v3670 = vsel %vm3656, %v3608, 0
    %v3673 = vsel %vm3656, %v3609, 0
    %v3676 = vsel %vm3656, %v3610, 0
    %v3679 = vsel %vm3656, %v3611, 0
    %v3682 = vsel %vm3656, %v3612, 0
    %v3685 = vsel %vm3656, %v3613, 0
    %v3688 = vsel %vm3656, %v3614, 0
    %v3691 = vsel %vm3656, %v3615, 0
    %v3694 = vsel %vm3656, %v3616, 0
    %v3697 = vsel %vm3656, %v3617, 0
    %v3700 = vsel %vm3656, %v3618, 0
    %v3703 = vsel %vm3656, %v3619, 0
    %v3706 = vsel %vm3656, %v3620, 0
    %v3709 = vsel %vm3656, %v3621, 0
    %v3712 = vsel %vm3656, %v3622, 0
    %v3715 = vsel %vm3656, %v3623, 0
    %v3718 = vsel %vm3656, %v3624, 0
    %v3721 = vsel %vm3656, %v3625, 0
    %v3724 = vsel %vm3656, %v3626, 0
    %v3727 = vsel %vm3656, %v3627, 0
    %v3730 = vsel %vm3656, %v3628, 0
    %v3733 = vsel %vm3656, %v3629, 0
    %v3736 = vsel %vm3656, %v3630, 0
    %v3739 = vsel %vm3656, %v3631, 0
    %v3742 = vsel %vm3656, %v3632, 0
    %v3745 = vsel %vm3656, %v3633, 0
    %v3748 = vsel %vm3656, %v3634, 0
    %v3751 = vsel %vm3656, %v3635, 0
    %vm3753 = vcmask 1041408
    %v3755 = vsel %vm3753, %v3653, 0
    %3757 = vmatprep.subr.bf16.mxu0 0
    %3758 = vmatpush1.bf16.msra.mxu0 0
    %3759 = vmatprep.subr.bf16.mxu0 0
    %3760 = vmatpush1.bf16.msra.mxu0 0
    %3761 = vmatprep.subr.bf16.mxu0 0
    %3762 = vmatpush1.bf16.msra.mxu0 0
    %3763 = vmatprep.subr.bf16.mxu0 0
    %3764 = vmatpush1.bf16.msra.mxu0 0
    %3765 = vmatprep.subr.bf16.mxu0 0
    %3766 = vmatpush1.bf16.msra.mxu0 0
    %3767 = vmatprep.subr.bf16.mxu0 0
    %3768 = vmatpush1.bf16.msra.mxu0 %v3755
    %3769 = vmatprep.subr.bf16.mxu0 0
    %3770 = vmatpush1.bf16.msra.mxu0 %v3652
    %3771 = vmatprep.subr.bf16.mxu0 0
    %3772 = vmatpush1.bf16.msra.mxu0 %v3651
    %3773 = vmatprep.subr.bf16.mxu0 0
    %3774 = vmatpush2.bf16.msra.mxu0 0
    %3775 = vmatprep.subr.bf16.mxu0 0
    %3776 = vmatpush2.bf16.msra.mxu0 0
    %3777 = vmatprep.subr.bf16.mxu0 0
    %3778 = vmatpush2.bf16.msra.mxu0 0
    %3779 = vmatprep.subr.bf16.mxu0 0
    %3780 = vmatpush2.bf16.msra.mxu0 0
    %3781 = vmatprep.subr.bf16.mxu0 0
    %3782 = vmatpush2.bf16.msra.mxu0 0
    %3783 = vmatprep.subr.bf16.mxu0 0
    %3784 = vmatpush2.bf16.msra.mxu0 0
    %3785 = vmatprep.subr.bf16.mxu0 0
    %3786 = vmatpush2.bf16.msra.mxu0 0
    %3787 = vmatprep.subr.bf16.mxu0 0
    %3788 = vmatpush2.bf16.msra.mxu0 0
    %3789 = vmatprep.mubr.bf16.mxu0 0
    %3790 = vmatmul.mubr.bf16.gmra.mxu0 %v3658
    %v3791 = vpop.f32.mrf.mxu0
    %v3792 = vadd.f32 0.0, %v3791
    %v3793 = vpop.f32.mrf.mxu0
    %v3794 = vpop.f32.mrf.mxu0
    %v3795 = vadd.f32 0.0, %v3794
    %v3796 = vpop.f32.mrf.mxu0
    %3797 = vmatprep.mubr.bf16.mxu0 0
    %3798 = vmatmul.mubr.bf16.gmra.mxu0 %v3661
    %v3799 = vpop.f32.mrf.mxu0
    %v3800 = vadd.f32 0.0, %v3799
    %v3801 = vpop.f32.mrf.mxu0
    %v3802 = vpop.f32.mrf.mxu0
    %v3803 = vadd.f32 0.0, %v3802
    %v3804 = vpop.f32.mrf.mxu0
    %3805 = vmatprep.mubr.bf16.mxu0 0
    %3806 = vmatmul.mubr.bf16.gmra.mxu0 %v3664
    %v3807 = vpop.f32.mrf.mxu0
    %v3808 = vadd.f32 0.0, %v3807
    %v3809 = vpop.f32.mrf.mxu0
    %v3810 = vpop.f32.mrf.mxu0
    %v3811 = vadd.f32 0.0, %v3810
    %v3812 = vpop.f32.mrf.mxu0
    %3813 = vmatprep.mubr.bf16.mxu0 0
    %3814 = vmatmul.mubr.bf16.gmra.mxu0 %v3667
    %v3815 = vpop.f32.mrf.mxu0
    %v3816 = vadd.f32 0.0, %v3815
    %v3817 = vpop.f32.mrf.mxu0
    %v3818 = vpop.f32.mrf.mxu0
    %v3819 = vadd.f32 0.0, %v3818
    %v3820 = vpop.f32.mrf.mxu0
    %3821 = vmatprep.mubr.bf16.mxu0 0
    %3822 = vmatmul.mubr.bf16.gmra.mxu0 %v3670
    %v3823 = vpop.f32.mrf.mxu0
    %v3824 = vadd.f32 0.0, %v3823
    %v3825 = vpop.f32.mrf.mxu0
    %v3826 = vpop.f32.mrf.mxu0
    %v3827 = vadd.f32 0.0, %v3826
    %v3828 = vpop.f32.mrf.mxu0
    %3829 = vmatprep.mubr.bf16.mxu0 0
    %3830 = vmatmul.mubr.bf16.gmra.mxu0 %v3673
    %v3831 = vpop.f32.mrf.mxu0
    %v3832 = vadd.f32 0.0, %v3831
    %v3833 = vpop.f32.mrf.mxu0
    %v3834 = vpop.f32.mrf.mxu0
    %v3835 = vadd.f32 0.0, %v3834
    %v3836 = vpop.f32.mrf.mxu0
    %3837 = vmatprep.mubr.bf16.mxu0 0
    %3838 = vmatmul.mubr.bf16.gmra.mxu0 %v3676
    %v3839 = vpop.f32.mrf.mxu0
    %v3840 = vadd.f32 0.0, %v3839
    %v3841 = vpop.f32.mrf.mxu0
    %v3842 = vpop.f32.mrf.mxu0
    %v3843 = vadd.f32 0.0, %v3842
    %v3844 = vpop.f32.mrf.mxu0
    %3845 = vmatprep.mubr.bf16.mxu0 0
    %3846 = vmatmul.mubr.bf16.gmra.mxu0 %v3679
    %v3847 = vpop.f32.mrf.mxu0
    %v3848 = vadd.f32 0.0, %v3847
    %v3849 = vpop.f32.mrf.mxu0
    %v3850 = vpop.f32.mrf.mxu0
    %v3851 = vadd.f32 0.0, %v3850
    %v3852 = vpop.f32.mrf.mxu0
    %3853 = vmatprep.mubr.bf16.mxu0 0
    %3854 = vmatmul.mubr.bf16.gmra.mxu0 %v3682
    %v3855 = vpop.f32.mrf.mxu0
    %v3856 = vadd.f32 0.0, %v3855
    %v3857 = vpop.f32.mrf.mxu0
    %v3858 = vpop.f32.mrf.mxu0
    %v3859 = vadd.f32 0.0, %v3858
    %v3860 = vpop.f32.mrf.mxu0
    %3861 = vmatprep.mubr.bf16.mxu0 0
    %3862 = vmatmul.mubr.bf16.gmra.mxu0 %v3685
    %v3863 = vpop.f32.mrf.mxu0
    %v3864 = vadd.f32 0.0, %v3863
    %v3865 = vpop.f32.mrf.mxu0
    %v3866 = vpop.f32.mrf.mxu0
    %v3867 = vadd.f32 0.0, %v3866
    %v3868 = vpop.f32.mrf.mxu0
    %3869 = vmatprep.mubr.bf16.mxu0 0
    %3870 = vmatmul.mubr.bf16.gmra.mxu0 %v3688
    %v3871 = vpop.f32.mrf.mxu0
    %v3872 = vadd.f32 0.0, %v3871
    %v3873 = vpop.f32.mrf.mxu0
    %v3874 = vpop.f32.mrf.mxu0
    %v3875 = vadd.f32 0.0, %v3874
    %v3876 = vpop.f32.mrf.mxu0
    %3877 = vmatprep.mubr.bf16.mxu0 0
    %3878 = vmatmul.mubr.bf16.gmra.mxu0 %v3691
    %v3879 = vpop.f32.mrf.mxu0
    %v3880 = vadd.f32 0.0, %v3879
    %v3881 = vpop.f32.mrf.mxu0
    %v3882 = vpop.f32.mrf.mxu0
    %v3883 = vadd.f32 0.0, %v3882
    %v3884 = vpop.f32.mrf.mxu0
    %3885 = vmatprep.mubr.bf16.mxu0 0
    %3886 = vmatmul.mubr.bf16.gmra.mxu0 %v3694
    %v3887 = vpop.f32.mrf.mxu0
    %v3888 = vadd.f32 0.0, %v3887
    %v3889 = vpop.f32.mrf.mxu0
    %v3890 = vpop.f32.mrf.mxu0
    %v3891 = vadd.f32 0.0, %v3890
    %v3892 = vpop.f32.mrf.mxu0
    %3893 = vmatprep.mubr.bf16.mxu0 0
    %3894 = vmatmul.mubr.bf16.gmra.mxu0 %v3697
    %v3895 = vpop.f32.mrf.mxu0
    %v3896 = vadd.f32 0.0, %v3895
    %v3897 = vpop.f32.mrf.mxu0
    %v3898 = vpop.f32.mrf.mxu0
    %v3899 = vadd.f32 0.0, %v3898
    %v3900 = vpop.f32.mrf.mxu0
    %3901 = vmatprep.mubr.bf16.mxu0 0
    %3902 = vmatmul.mubr.bf16.gmra.mxu0 %v3700
    %v3903 = vpop.f32.mrf.mxu0
    %v3904 = vadd.f32 0.0, %v3903
    %v3905 = vpop.f32.mrf.mxu0
    %v3906 = vpop.f32.mrf.mxu0
    %v3907 = vadd.f32 0.0, %v3906
    %v3908 = vpop.f32.mrf.mxu0
    %3909 = vmatprep.mubr.bf16.mxu0 0
    %3910 = vmatmul.mubr.bf16.gmra.mxu0 %v3703
    %v3911 = vpop.f32.mrf.mxu0
    %v3912 = vadd.f32 0.0, %v3911
    %v3913 = vpop.f32.mrf.mxu0
    %v3914 = vpop.f32.mrf.mxu0
    %v3915 = vadd.f32 0.0, %v3914
    %v3916 = vpop.f32.mrf.mxu0
    %3917 = vmatprep.mubr.bf16.mxu0 0
    %3918 = vmatmul.mubr.bf16.gmra.mxu0 %v3706
    %v3919 = vpop.f32.mrf.mxu0
    %v3920 = vadd.f32 0.0, %v3919
    %v3921 = vpop.f32.mrf.mxu0
    %v3922 = vpop.f32.mrf.mxu0
    %v3923 = vadd.f32 0.0, %v3922
    %v3924 = vpop.f32.mrf.mxu0
    %3925 = vmatprep.mubr.bf16.mxu0 0
    %3926 = vmatmul.mubr.bf16.gmra.mxu0 %v3709
    %v3927 = vpop.f32.mrf.mxu0
    %v3928 = vadd.f32 0.0, %v3927
    %v3929 = vpop.f32.mrf.mxu0
    %v3930 = vpop.f32.mrf.mxu0
    %v3931 = vadd.f32 0.0, %v3930
    %v3932 = vpop.f32.mrf.mxu0
    %3933 = vmatprep.mubr.bf16.mxu0 0
    %3934 = vmatmul.mubr.bf16.gmra.mxu0 %v3712
    %v3935 = vpop.f32.mrf.mxu0
    %v3936 = vadd.f32 0.0, %v3935
    %v3937 = vpop.f32.mrf.mxu0
    %v3938 = vpop.f32.mrf.mxu0
    %v3939 = vadd.f32 0.0, %v3938
    %v3940 = vpop.f32.mrf.mxu0
    %3941 = vmatprep.mubr.bf16.mxu0 0
    %3942 = vmatmul.mubr.bf16.gmra.mxu0 %v3715
    %v3943 = vpop.f32.mrf.mxu0
    %v3944 = vadd.f32 0.0, %v3943
    %v3945 = vpop.f32.mrf.mxu0
    %v3946 = vpop.f32.mrf.mxu0
    %v3947 = vadd.f32 0.0, %v3946
    %v3948 = vpop.f32.mrf.mxu0
    %3949 = vmatprep.mubr.bf16.mxu0 0
    %3950 = vmatmul.mubr.bf16.gmra.mxu0 %v3718
    %v3951 = vpop.f32.mrf.mxu0
    %v3952 = vadd.f32 0.0, %v3951
    %v3953 = vpop.f32.mrf.mxu0
    %v3954 = vpop.f32.mrf.mxu0
    %v3955 = vadd.f32 0.0, %v3954
    %v3956 = vpop.f32.mrf.mxu0
    %3957 = vmatprep.mubr.bf16.mxu0 0
    %3958 = vmatmul.mubr.bf16.gmra.mxu0 %v3721
    %v3959 = vpop.f32.mrf.mxu0
    %v3960 = vadd.f32 0.0, %v3959
    %v3961 = vpop.f32.mrf.mxu0
    %v3962 = vpop.f32.mrf.mxu0
    %v3963 = vadd.f32 0.0, %v3962
    %v3964 = vpop.f32.mrf.mxu0
    %3965 = vmatprep.mubr.bf16.mxu0 0
    %3966 = vmatmul.mubr.bf16.gmra.mxu0 %v3724
    %v3967 = vpop.f32.mrf.mxu0
    %v3968 = vadd.f32 0.0, %v3967
    %v3969 = vpop.f32.mrf.mxu0
    %v3970 = vpop.f32.mrf.mxu0
    %v3971 = vadd.f32 0.0, %v3970
    %v3972 = vpop.f32.mrf.mxu0
    %3973 = vmatprep.mubr.bf16.mxu0 0
    %3974 = vmatmul.mubr.bf16.gmra.mxu0 %v3727
    %v3975 = vpop.f32.mrf.mxu0
    %v3976 = vadd.f32 0.0, %v3975
    %v3977 = vpop.f32.mrf.mxu0
    %v3978 = vpop.f32.mrf.mxu0
    %v3979 = vadd.f32 0.0, %v3978
    %v3980 = vpop.f32.mrf.mxu0
    %3981 = vmatprep.mubr.bf16.mxu0 0
    %3982 = vmatmul.mubr.bf16.gmra.mxu0 %v3730
    %v3983 = vpop.f32.mrf.mxu0
    %v3984 = vadd.f32 0.0, %v3983
    %v3985 = vpop.f32.mrf.mxu0
    %v3986 = vpop.f32.mrf.mxu0
    %v3987 = vadd.f32 0.0, %v3986
    %v3988 = vpop.f32.mrf.mxu0
    %3989 = vmatprep.mubr.bf16.mxu0 0
    %3990 = vmatmul.mubr.bf16.gmra.mxu0 %v3733
    %v3991 = vpop.f32.mrf.mxu0
    %v3992 = vadd.f32 0.0, %v3991
    %v3993 = vpop.f32.mrf.mxu0
    %v3994 = vpop.f32.mrf.mxu0
    %v3995 = vadd.f32 0.0, %v3994
    %v3996 = vpop.f32.mrf.mxu0
    %3997 = vmatprep.mubr.bf16.mxu0 0
    %3998 = vmatmul.mubr.bf16.gmra.mxu0 %v3736
    %v3999 = vpop.f32.mrf.mxu0
    %v4000 = vadd.f32 0.0, %v3999
    %v4001 = vpop.f32.mrf.mxu0
    %v4002 = vpop.f32.mrf.mxu0
    %v4003 = vadd.f32 0.0, %v4002
    %v4004 = vpop.f32.mrf.mxu0
    %4005 = vmatprep.mubr.bf16.mxu0 0
    %4006 = vmatmul.mubr.bf16.gmra.mxu0 %v3739
    %v4007 = vpop.f32.mrf.mxu0
    %v4008 = vadd.f32 0.0, %v4007
    %v4009 = vpop.f32.mrf.mxu0
    %v4010 = vpop.f32.mrf.mxu0
    %v4011 = vadd.f32 0.0, %v4010
    %v4012 = vpop.f32.mrf.mxu0
    %4013 = vmatprep.mubr.bf16.mxu0 0
    %4014 = vmatmul.mubr.bf16.gmra.mxu0 %v3742
    %v4015 = vpop.f32.mrf.mxu0
    %v4016 = vadd.f32 0.0, %v4015
    %v4017 = vpop.f32.mrf.mxu0
    %v4018 = vpop.f32.mrf.mxu0
    %v4019 = vadd.f32 0.0, %v4018
    %v4020 = vpop.f32.mrf.mxu0
    %4021 = vmatprep.mubr.bf16.mxu0 0
    %4022 = vmatmul.mubr.bf16.gmra.mxu0 %v3745
    %v4023 = vpop.f32.mrf.mxu0
    %v4024 = vadd.f32 0.0, %v4023
    %v4025 = vpop.f32.mrf.mxu0
    %v4026 = vpop.f32.mrf.mxu0
    %v4027 = vadd.f32 0.0, %v4026
    %v4028 = vpop.f32.mrf.mxu0
    %4029 = vmatprep.mubr.bf16.mxu0 0
    %4030 = vmatmul.mubr.bf16.gmra.mxu0 %v3748
    %v4031 = vpop.f32.mrf.mxu0
    %v4032 = vadd.f32 0.0, %v4031
    %v4033 = vpop.f32.mrf.mxu0
    %v4034 = vpop.f32.mrf.mxu0
    %v4035 = vadd.f32 0.0, %v4034
    %v4036 = vpop.f32.mrf.mxu0
    %4037 = vmatprep.mubr.bf16.mxu0 0
    %4038 = vmatmul.mubr.bf16.gmra.mxu0 %v3751
    %v4039 = vpop.f32.mrf.mxu0
    %v4040 = vadd.f32 0.0, %v4039
    %v4041 = vpop.f32.mrf.mxu0
    %v4042 = vpop.f32.mrf.mxu0
    %v4043 = vadd.f32 0.0, %v4042
    %v4044 = vpop.f32.mrf.mxu0
    %4045 = vdwg.mxu0
    %v4046 = vadd.f32 %v3792, %v3795
    %v4047 = vadd.f32 %v4046, %v3800
    %v4048 = vadd.f32 %v4047, %v3803
    %v4049 = vadd.f32 %v4048, %v3808
    %v4050 = vadd.f32 %v4049, %v3811
    %v4051 = vadd.f32 %v4050, %v3816
    %v4052 = vadd.f32 %v4051, %v3819
    %v4053 = vadd.f32 %v4052, %v3824
    %v4054 = vadd.f32 %v4053, %v3827
    %v4055 = vadd.f32 %v4054, %v3832
    %v4056 = vadd.f32 %v4055, %v3835
    %v4057 = vadd.f32 %v4056, %v3840
    %v4058 = vadd.f32 %v4057, %v3843
    %v4059 = vadd.f32 %v4058, %v3848
    %v4060 = vadd.f32 %v4059, %v3851
    %v4061 = vadd.f32 %v4060, %v3856
    %v4062 = vadd.f32 %v4061, %v3859
    %v4063 = vadd.f32 %v4062, %v3864
    %v4064 = vadd.f32 %v4063, %v3867
    %v4065 = vadd.f32 %v4064, %v3872
    %v4066 = vadd.f32 %v4065, %v3875
    %v4067 = vadd.f32 %v4066, %v3880
    %v4068 = vadd.f32 %v4067, %v3883
    %v4069 = vadd.f32 %v4068, %v3888
    %v4070 = vadd.f32 %v4069, %v3891
    %v4071 = vadd.f32 %v4070, %v3896
    %v4072 = vadd.f32 %v4071, %v3899
    %v4073 = vadd.f32 %v4072, %v3904
    %v4074 = vadd.f32 %v4073, %v3907
    %v4075 = vadd.f32 %v4074, %v3912
    %v4076 = vadd.f32 %v4075, %v3915
    %v4077 = vadd.f32 %v4076, %v3920
    %v4078 = vadd.f32 %v4077, %v3923
    %v4079 = vadd.f32 %v4078, %v3928
    %v4080 = vadd.f32 %v4079, %v3931
    %v4081 = vadd.f32 %v4080, %v3936
    %v4082 = vadd.f32 %v4081, %v3939
    %v4083 = vadd.f32 %v4082, %v3944
    %v4084 = vadd.f32 %v4083, %v3947
    %v4085 = vadd.f32 %v4084, %v3952
    %v4086 = vadd.f32 %v4085, %v3955
    %v4087 = vadd.f32 %v4086, %v3960
    %v4088 = vadd.f32 %v4087, %v3963
    %v4089 = vadd.f32 %v4088, %v3968
    %v4090 = vadd.f32 %v4089, %v3971
    %v4091 = vadd.f32 %v4090, %v3976
    %v4092 = vadd.f32 %v4091, %v3979
    %v4093 = vadd.f32 %v4092, %v3984
    %v4094 = vadd.f32 %v4093, %v3987
    %v4095 = vadd.f32 %v4094, %v3992
    %v4096 = vadd.f32 %v4095, %v3995
    %v4097 = vadd.f32 %v4096, %v4000
    %v4098 = vadd.f32 %v4097, %v4003
    %v4099 = vadd.f32 %v4098, %v4008
    %v4100 = vadd.f32 %v4099, %v4011
    %v4101 = vadd.f32 %v4100, %v4016
    %v4102 = vadd.f32 %v4101, %v4019
    %v4103 = vadd.f32 %v4102, %v4024
    %v4104 = vadd.f32 %v4103, %v4027
    %v4105 = vadd.f32 %v4104, %v4032
    %v4106 = vadd.f32 %v4105, %v4035
    %v4107 = vadd.f32 %v4106, %v4040
    %v4108 = vadd.f32 %v4107, %v4043
    %v4109 = vrot.slane %v4108, 4
    %v4110 = vadd.f32 %v4108, %v4109
    %v4111 = vrot.slane %v4110, 2
    %v4112 = vadd.f32 %v4110, %v4111
    %v4113 = vrot.slane %v4112, 1
    %v4114 = vadd.f32 %v4112, %v4113
    %v4115 = vmul.f32 %v3792, %v3792
    %v4116 = vmul.f32 %v3795, %v3795
    %v4117 = vmul.f32 %v3800, %v3800
    %v4118 = vmul.f32 %v3803, %v3803
    %v4119 = vmul.f32 %v3808, %v3808
    %v4120 = vmul.f32 %v3811, %v3811
    %v4121 = vmul.f32 %v3816, %v3816
    %v4122 = vmul.f32 %v3819, %v3819
    %v4123 = vmul.f32 %v3824, %v3824
    %v4124 = vmul.f32 %v3827, %v3827
    %v4125 = vmul.f32 %v3832, %v3832
    %v4126 = vmul.f32 %v3835, %v3835
    %v4127 = vmul.f32 %v3840, %v3840
    %v4128 = vmul.f32 %v3843, %v3843
    %v4129 = vmul.f32 %v3848, %v3848
    %v4130 = vmul.f32 %v3851, %v3851
    %v4131 = vmul.f32 %v3856, %v3856
    %v4132 = vmul.f32 %v3859, %v3859
    %v4133 = vmul.f32 %v3864, %v3864
    %v4134 = vmul.f32 %v3867, %v3867
    %v4135 = vmul.f32 %v3872, %v3872
    %v4136 = vmul.f32 %v3875, %v3875
    %v4137 = vmul.f32 %v3880, %v3880
    %v4138 = vmul.f32 %v3883, %v3883
    %v4139 = vmul.f32 %v3888, %v3888
    %v4140 = vmul.f32 %v3891, %v3891
    %v4141 = vmul.f32 %v3896, %v3896
    %v4142 = vmul.f32 %v3899, %v3899
    %v4143 = vmul.f32 %v3904, %v3904
    %v4144 = vmul.f32 %v3907, %v3907
    %v4145 = vmul.f32 %v3912, %v3912
    %v4146 = vmul.f32 %v3915, %v3915
    %v4147 = vmul.f32 %v3920, %v3920
    %v4148 = vmul.f32 %v3923, %v3923
    %v4149 = vmul.f32 %v3928, %v3928
    %v4150 = vmul.f32 %v3931, %v3931
    %v4151 = vmul.f32 %v3936, %v3936
    %v4152 = vmul.f32 %v3939, %v3939
    %v4153 = vmul.f32 %v3944, %v3944
    %v4154 = vmul.f32 %v3947, %v3947
    %v4155 = vmul.f32 %v3952, %v3952
    %v4156 = vmul.f32 %v3955, %v3955
    %v4157 = vmul.f32 %v3960, %v3960
    %v4158 = vmul.f32 %v3963, %v3963
    %v4159 = vmul.f32 %v3968, %v3968
    %v4160 = vmul.f32 %v3971, %v3971
    %v4161 = vmul.f32 %v3976, %v3976
    %v4162 = vmul.f32 %v3979, %v3979
    %v4163 = vmul.f32 %v3984, %v3984
    %v4164 = vmul.f32 %v3987, %v3987
    %v4165 = vmul.f32 %v3992, %v3992
    %v4166 = vmul.f32 %v3995, %v3995
    %v4167 = vmul.f32 %v4000, %v4000
    %v4168 = vmul.f32 %v4003, %v4003
    %v4169 = vmul.f32 %v4008, %v4008
    %v4170 = vmul.f32 %v4011, %v4011
    %v4171 = vmul.f32 %v4016, %v4016
    %v4172 = vmul.f32 %v4019, %v4019
    %v4173 = vmul.f32 %v4024, %v4024
    %v4174 = vmul.f32 %v4027, %v4027
    %v4175 = vmul.f32 %v4032, %v4032
    %v4176 = vmul.f32 %v4035, %v4035
    %v4177 = vmul.f32 %v4040, %v4040
    %v4178 = vmul.f32 %v4043, %v4043
    %v4179 = vadd.f32 %v4115, %v4116
    %v4180 = vadd.f32 %v4179, %v4117
    %v4181 = vadd.f32 %v4180, %v4118
    %v4182 = vadd.f32 %v4181, %v4119
    %v4183 = vadd.f32 %v4182, %v4120
    %v4184 = vadd.f32 %v4183, %v4121
    %v4185 = vadd.f32 %v4184, %v4122
    %v4186 = vadd.f32 %v4185, %v4123
    %v4187 = vadd.f32 %v4186, %v4124
    %v4188 = vadd.f32 %v4187, %v4125
    %v4189 = vadd.f32 %v4188, %v4126
    %v4190 = vadd.f32 %v4189, %v4127
    %v4191 = vadd.f32 %v4190, %v4128
    %v4192 = vadd.f32 %v4191, %v4129
    %v4193 = vadd.f32 %v4192, %v4130
    %v4194 = vadd.f32 %v4193, %v4131
    %v4195 = vadd.f32 %v4194, %v4132
    %v4196 = vadd.f32 %v4195, %v4133
    %v4197 = vadd.f32 %v4196, %v4134
    %v4198 = vadd.f32 %v4197, %v4135
    %v4199 = vadd.f32 %v4198, %v4136
    %v4200 = vadd.f32 %v4199, %v4137
    %v4201 = vadd.f32 %v4200, %v4138
    %v4202 = vadd.f32 %v4201, %v4139
    %v4203 = vadd.f32 %v4202, %v4140
    %v4204 = vadd.f32 %v4203, %v4141
    %v4205 = vadd.f32 %v4204, %v4142
    %v4206 = vadd.f32 %v4205, %v4143
    %v4207 = vadd.f32 %v4206, %v4144
    %v4208 = vadd.f32 %v4207, %v4145
    %v4209 = vadd.f32 %v4208, %v4146
    %v4210 = vadd.f32 %v4209, %v4147
    %v4211 = vadd.f32 %v4210, %v4148
    %v4212 = vadd.f32 %v4211, %v4149
    %v4213 = vadd.f32 %v4212, %v4150
    %v4214 = vadd.f32 %v4213, %v4151
    %v4215 = vadd.f32 %v4214, %v4152
    %v4216 = vadd.f32 %v4215, %v4153
    %v4217 = vadd.f32 %v4216, %v4154
    %v4218 = vadd.f32 %v4217, %v4155
    %v4219 = vadd.f32 %v4218, %v4156
    %v4220 = vadd.f32 %v4219, %v4157
    %v4221 = vadd.f32 %v4220, %v4158
    %v4222 = vadd.f32 %v4221, %v4159
    %v4223 = vadd.f32 %v4222, %v4160
    %v4224 = vadd.f32 %v4223, %v4161
    %v4225 = vadd.f32 %v4224, %v4162
    %v4226 = vadd.f32 %v4225, %v4163
    %v4227 = vadd.f32 %v4226, %v4164
    %v4228 = vadd.f32 %v4227, %v4165
    %v4229 = vadd.f32 %v4228, %v4166
    %v4230 = vadd.f32 %v4229, %v4167
    %v4231 = vadd.f32 %v4230, %v4168
    %v4232 = vadd.f32 %v4231, %v4169
    %v4233 = vadd.f32 %v4232, %v4170
    %v4234 = vadd.f32 %v4233, %v4171
    %v4235 = vadd.f32 %v4234, %v4172
    %v4236 = vadd.f32 %v4235, %v4173
    %v4237 = vadd.f32 %v4236, %v4174
    %v4238 = vadd.f32 %v4237, %v4175
    %v4239 = vadd.f32 %v4238, %v4176
    %v4240 = vadd.f32 %v4239, %v4177
    %v4241 = vadd.f32 %v4240, %v4178
    %v4242 = vrot.slane %v4241, 4
    %v4243 = vadd.f32 %v4241, %v4242
    %v4244 = vrot.slane %v4243, 2
    %v4245 = vadd.f32 %v4243, %v4244
    %v4246 = vrot.slane %v4245, 1
    %v4247 = vadd.f32 %v4245, %v4246
    %v4248 = vmul.f32 %v4114, 0.001953125
    %v4249 = vmul.f32 %v4247, 0.001953125
    %v4250 = vmul.f32 %v4248, %v4248
    %v4251 = vsub.f32 %v4249, %v4250
    %v4252 = vld [vmem:[%s3] sm:$0x1]
    %v4253 = vadd.f32 %v4251, 1e-05
    %v4254 = vrsqrt.pop %v4253
    %v4255 = vmul.f32 %v4252, %v4254
    %v4256 = vld [vmem:[%s4] sm:$0x1]
    %v4257 = vmul.f32 %v4248, %v4255
    %v4258 = vsub.f32 %v4256, %v4257
    %v4260 = vlaneseq
    %v4261 = vshrl.u32 %v4260, 7
    %v4262 = vsub.s32 0, %v4261
    %v4263 = vrot.slane %v4255, %v4262
    %v4265 = vmul.f32 %v3792, %v4263
    %v4266 = vmul.f32 %v3795, %v4263
    %v4267 = vmul.f32 %v3800, %v4263
    %v4268 = vmul.f32 %v3803, %v4263
    %v4269 = vmul.f32 %v3808, %v4263
    %v4270 = vmul.f32 %v3811, %v4263
    %v4271 = vmul.f32 %v3816, %v4263
    %v4272 = vmul.f32 %v3819, %v4263
    %v4273 = vmul.f32 %v3824, %v4263
    %v4274 = vmul.f32 %v3827, %v4263
    %v4275 = vmul.f32 %v3832, %v4263
    %v4276 = vmul.f32 %v3835, %v4263
    %v4277 = vmul.f32 %v3840, %v4263
    %v4278 = vmul.f32 %v3843, %v4263
    %v4279 = vmul.f32 %v3848, %v4263
    %v4280 = vmul.f32 %v3851, %v4263
    %v4281 = vmul.f32 %v3856, %v4263
    %v4282 = vmul.f32 %v3859, %v4263
    %v4283 = vmul.f32 %v3864, %v4263
    %v4284 = vmul.f32 %v3867, %v4263
    %v4285 = vmul.f32 %v3872, %v4263
    %v4286 = vmul.f32 %v3875, %v4263
    %v4287 = vmul.f32 %v3880, %v4263
    %v4288 = vmul.f32 %v3883, %v4263
    %v4289 = vmul.f32 %v3888, %v4263
    %v4290 = vmul.f32 %v3891, %v4263
    %v4291 = vmul.f32 %v3896, %v4263
    %v4292 = vmul.f32 %v3899, %v4263
    %v4293 = vmul.f32 %v3904, %v4263
    %v4294 = vmul.f32 %v3907, %v4263
    %v4295 = vmul.f32 %v3912, %v4263
    %v4296 = vmul.f32 %v3915, %v4263
    %v4297 = vmul.f32 %v3920, %v4263
    %v4298 = vmul.f32 %v3923, %v4263
    %v4299 = vmul.f32 %v3928, %v4263
    %v4300 = vmul.f32 %v3931, %v4263
    %v4301 = vmul.f32 %v3936, %v4263
    %v4302 = vmul.f32 %v3939, %v4263
    %v4303 = vmul.f32 %v3944, %v4263
    %v4304 = vmul.f32 %v3947, %v4263
    %v4305 = vmul.f32 %v3952, %v4263
    %v4306 = vmul.f32 %v3955, %v4263
    %v4307 = vmul.f32 %v3960, %v4263
    %v4308 = vmul.f32 %v3963, %v4263
    %v4309 = vmul.f32 %v3968, %v4263
    %v4310 = vmul.f32 %v3971, %v4263
    %v4311 = vmul.f32 %v3976, %v4263
    %v4312 = vmul.f32 %v3979, %v4263
    %v4313 = vmul.f32 %v3984, %v4263
    %v4314 = vmul.f32 %v3987, %v4263
    %v4315 = vmul.f32 %v3992, %v4263
    %v4316 = vmul.f32 %v3995, %v4263
    %v4317 = vmul.f32 %v4000, %v4263
    %v4318 = vmul.f32 %v4003, %v4263
    %v4319 = vmul.f32 %v4008, %v4263
    %v4320 = vmul.f32 %v4011, %v4263
    %v4321 = vmul.f32 %v4016, %v4263
    %v4322 = vmul.f32 %v4019, %v4263
    %v4323 = vmul.f32 %v4024, %v4263
    %v4324 = vmul.f32 %v4027, %v4263
    %v4325 = vmul.f32 %v4032, %v4263
    %v4326 = vmul.f32 %v4035, %v4263
    %v4327 = vmul.f32 %v4040, %v4263
    %v4328 = vmul.f32 %v4043, %v4263
    %v4330 = vlaneseq
    %v4331 = vshrl.u32 %v4330, 7
    %v4332 = vsub.s32 0, %v4331
    %v4333 = vrot.slane %v4258, %v4332
    %v4335 = vadd.f32 %v4265, %v4333
    %v4336 = vadd.f32 %v4266, %v4333
    %v4337 = vadd.f32 %v4267, %v4333
    %v4338 = vadd.f32 %v4268, %v4333
    %v4339 = vadd.f32 %v4269, %v4333
    %v4340 = vadd.f32 %v4270, %v4333
    %v4341 = vadd.f32 %v4271, %v4333
    %v4342 = vadd.f32 %v4272, %v4333
    %v4343 = vadd.f32 %v4273, %v4333
    %v4344 = vadd.f32 %v4274, %v4333
    %v4345 = vadd.f32 %v4275, %v4333
    %v4346 = vadd.f32 %v4276, %v4333
    %v4347 = vadd.f32 %v4277, %v4333
    %v4348 = vadd.f32 %v4278, %v4333
    %v4349 = vadd.f32 %v4279, %v4333
    %v4350 = vadd.f32 %v4280, %v4333
    %v4351 = vadd.f32 %v4281, %v4333
    %v4352 = vadd.f32 %v4282, %v4333
    %v4353 = vadd.f32 %v4283, %v4333
    %v4354 = vadd.f32 %v4284, %v4333
    %v4355 = vadd.f32 %v4285, %v4333
    %v4356 = vadd.f32 %v4286, %v4333
    %v4357 = vadd.f32 %v4287, %v4333
    %v4358 = vadd.f32 %v4288, %v4333
    %v4359 = vadd.f32 %v4289, %v4333
    %v4360 = vadd.f32 %v4290, %v4333
    %v4361 = vadd.f32 %v4291, %v4333
    %v4362 = vadd.f32 %v4292, %v4333
    %v4363 = vadd.f32 %v4293, %v4333
    %v4364 = vadd.f32 %v4294, %v4333
    %v4365 = vadd.f32 %v4295, %v4333
    %v4366 = vadd.f32 %v4296, %v4333
    %v4367 = vadd.f32 %v4297, %v4333
    %v4368 = vadd.f32 %v4298, %v4333
    %v4369 = vadd.f32 %v4299, %v4333
    %v4370 = vadd.f32 %v4300, %v4333
    %v4371 = vadd.f32 %v4301, %v4333
    %v4372 = vadd.f32 %v4302, %v4333
    %v4373 = vadd.f32 %v4303, %v4333
    %v4374 = vadd.f32 %v4304, %v4333
    %v4375 = vadd.f32 %v4305, %v4333
    %v4376 = vadd.f32 %v4306, %v4333
    %v4377 = vadd.f32 %v4307, %v4333
    %v4378 = vadd.f32 %v4308, %v4333
    %v4379 = vadd.f32 %v4309, %v4333
    %v4380 = vadd.f32 %v4310, %v4333
    %v4381 = vadd.f32 %v4311, %v4333
    %v4382 = vadd.f32 %v4312, %v4333
    %v4383 = vadd.f32 %v4313, %v4333
    %v4384 = vadd.f32 %v4314, %v4333
    %v4385 = vadd.f32 %v4315, %v4333
    %v4386 = vadd.f32 %v4316, %v4333
    %v4387 = vadd.f32 %v4317, %v4333
    %v4388 = vadd.f32 %v4318, %v4333
    %v4389 = vadd.f32 %v4319, %v4333
    %v4390 = vadd.f32 %v4320, %v4333
    %v4391 = vadd.f32 %v4321, %v4333
    %v4392 = vadd.f32 %v4322, %v4333
    %v4393 = vadd.f32 %v4323, %v4333
    %v4394 = vadd.f32 %v4324, %v4333
    %v4395 = vadd.f32 %v4325, %v4333
    %v4396 = vadd.f32 %v4326, %v4333
    %v4397 = vadd.f32 %v4327, %v4333
    %v4398 = vadd.f32 %v4328, %v4333
    %v4399 = vmax.f32 %v4335, 0.0
    %v4400 = vmax.f32 %v4336, 0.0
    %v4401 = vmax.f32 %v4337, 0.0
    %v4402 = vmax.f32 %v4338, 0.0
    %v4403 = vmax.f32 %v4339, 0.0
    %v4404 = vmax.f32 %v4340, 0.0
    %v4405 = vmax.f32 %v4341, 0.0
    %v4406 = vmax.f32 %v4342, 0.0
    %v4407 = vmax.f32 %v4343, 0.0
    %v4408 = vmax.f32 %v4344, 0.0
    %v4409 = vmax.f32 %v4345, 0.0
    %v4410 = vmax.f32 %v4346, 0.0
    %v4411 = vmax.f32 %v4347, 0.0
    %v4412 = vmax.f32 %v4348, 0.0
    %v4413 = vmax.f32 %v4349, 0.0
    %v4414 = vmax.f32 %v4350, 0.0
    %v4415 = vmax.f32 %v4351, 0.0
    %v4416 = vmax.f32 %v4352, 0.0
    %v4417 = vmax.f32 %v4353, 0.0
    %v4418 = vmax.f32 %v4354, 0.0
    %v4419 = vmax.f32 %v4355, 0.0
    %v4420 = vmax.f32 %v4356, 0.0
    %v4421 = vmax.f32 %v4357, 0.0
    %v4422 = vmax.f32 %v4358, 0.0
    %v4423 = vmax.f32 %v4359, 0.0
    %v4424 = vmax.f32 %v4360, 0.0
    %v4425 = vmax.f32 %v4361, 0.0
    %v4426 = vmax.f32 %v4362, 0.0
    %v4427 = vmax.f32 %v4363, 0.0
    %v4428 = vmax.f32 %v4364, 0.0
    %v4429 = vmax.f32 %v4365, 0.0
    %v4430 = vmax.f32 %v4366, 0.0
    %v4431 = vmax.f32 %v4367, 0.0
    %v4432 = vmax.f32 %v4368, 0.0
    %v4433 = vmax.f32 %v4369, 0.0
    %v4434 = vmax.f32 %v4370, 0.0
    %v4435 = vmax.f32 %v4371, 0.0
    %v4436 = vmax.f32 %v4372, 0.0
    %v4437 = vmax.f32 %v4373, 0.0
    %v4438 = vmax.f32 %v4374, 0.0
    %v4439 = vmax.f32 %v4375, 0.0
    %v4440 = vmax.f32 %v4376, 0.0
    %v4441 = vmax.f32 %v4377, 0.0
    %v4442 = vmax.f32 %v4378, 0.0
    %v4443 = vmax.f32 %v4379, 0.0
    %v4444 = vmax.f32 %v4380, 0.0
    %v4445 = vmax.f32 %v4381, 0.0
    %v4446 = vmax.f32 %v4382, 0.0
    %v4447 = vmax.f32 %v4383, 0.0
    %v4448 = vmax.f32 %v4384, 0.0
    %v4449 = vmax.f32 %v4385, 0.0
    %v4450 = vmax.f32 %v4386, 0.0
    %v4451 = vmax.f32 %v4387, 0.0
    %v4452 = vmax.f32 %v4388, 0.0
    %v4453 = vmax.f32 %v4389, 0.0
    %v4454 = vmax.f32 %v4390, 0.0
    %v4455 = vmax.f32 %v4391, 0.0
    %v4456 = vmax.f32 %v4392, 0.0
    %v4457 = vmax.f32 %v4393, 0.0
    %v4458 = vmax.f32 %v4394, 0.0
    %v4459 = vmax.f32 %v4395, 0.0
    %v4460 = vmax.f32 %v4396, 0.0
    %v4461 = vmax.f32 %v4397, 0.0
    %v4462 = vmax.f32 %v4398, 0.0
    %vm4463 = vcmask 64512
    %4464 = vst.msk [vmem:[#allocation4] sm:$0xff] %vm4463, 0.0
    %4465 = vst.msk [vmem:[#allocation4 + $0x8] sm:$0xff] %vm4463, 0.0
    %vm4466 = vcmask 58368
    %4467 = vst.msk [vmem:[#allocation4 + $0x10] sm:$0x3] %vm4466, 0.0
    %4468 = vst.msk [vmem:[#allocation4 + $0x18] sm:$0xff] %vm4463, 0.0
    %4469 = vst.msk [vmem:[#allocation4 + $0x20] sm:$0xff] %vm4463, 0.0
    %4470 = vst.msk [vmem:[#allocation4 + $0x28] sm:$0x3] %vm4466, 0.0
    %4471 = vst.msk [vmem:[#allocation4 + $0x30] sm:$0xff] %vm4463, 0.0
    %4472 = vst.msk [vmem:[#allocation4 + $0x38] sm:$0xff] %vm4463, 0.0
    %4473 = vst.msk [vmem:[#allocation4 + $0x40] sm:$0x3] %vm4466, 0.0
    %4474 = vst.msk [vmem:[#allocation4 + $0x48] sm:$0xff] %vm4463, 0.0
    %4475 = vst.msk [vmem:[#allocation4 + $0x50] sm:$0xff] %vm4463, 0.0
    %4476 = vst.msk [vmem:[#allocation4 + $0x58] sm:$0x3] %vm4466, 0.0
    %4477 = vst.msk [vmem:[#allocation4 + $0x60] sm:$0xff] %vm4463, 0.0
    %4478 = vst.msk [vmem:[#allocation4 + $0x68] sm:$0xff] %vm4463, 0.0
    %4479 = vst.msk [vmem:[#allocation4 + $0x70] sm:$0x3] %vm4466, 0.0
    %4480 = vst.msk [vmem:[#allocation4 + $0x78] sm:$0xff] %vm4463, 0.0
    %4481 = vst.msk [vmem:[#allocation4 + $0x80] sm:$0xff] %vm4463, 0.0
    %4482 = vst.msk [vmem:[#allocation4 + $0x88] sm:$0x3] %vm4466, 0.0
    %4483 = vst.msk [vmem:[#allocation4 + $0x90] sm:$0xff] %vm4463, 0.0
    %4484 = vst.msk [vmem:[#allocation4 + $0x98] sm:$0xff] %vm4463, 0.0
    %4485 = vst.msk [vmem:[#allocation4 + $0xa0] sm:$0x3] %vm4466, 0.0
    %4486 = vst.msk [vmem:[#allocation4 + $0xa8] sm:$0xff] %vm4463, 0.0
    %4487 = vst.msk [vmem:[#allocation4 + $0xb0] sm:$0xff] %vm4463, 0.0
    %4488 = vst.msk [vmem:[#allocation4 + $0xb8] sm:$0x3] %vm4466, 0.0
    %4489 = vst.msk [vmem:[#allocation4 + $0xc0] sm:$0xff] %vm4463, 0.0
    %4490 = vst.msk [vmem:[#allocation4 + $0xc8] sm:$0xff] %vm4463, 0.0
    %4491 = vst.msk [vmem:[#allocation4 + $0xd0] sm:$0x3] %vm4466, 0.0
    %4492 = vst.msk [vmem:[#allocation4 + $0xd8] sm:$0xff] %vm4463, 0.0
    %4493 = vst.msk [vmem:[#allocation4 + $0xe0] sm:$0xff] %vm4463, 0.0
    %4494 = vst.msk [vmem:[#allocation4 + $0xe8] sm:$0x3] %vm4466, 0.0
    %4495 = vst.msk [vmem:[#allocation4 + $0xf0] sm:$0xff] %vm4463, 0.0
    %4496 = vst.msk [vmem:[#allocation4 + $0xf8] sm:$0xff] %vm4463, 0.0
    %4497 = vst.msk [vmem:[#allocation4 + $0x100] sm:$0x3] %vm4466, 0.0
    %4498 = vst.msk [vmem:[#allocation4 + $0x108] sm:$0xff] %vm4463, 0.0
    %4499 = vst.msk [vmem:[#allocation4 + $0x110] sm:$0xff] %vm4463, 0.0
    %4500 = vst.msk [vmem:[#allocation4 + $0x118] sm:$0x3] %vm4466, 0.0
    %4501 = vst.msk [vmem:[#allocation4 + $0x120] sm:$0xff] %vm4463, 0.0
    %4502 = vst.msk [vmem:[#allocation4 + $0x128] sm:$0xff] %vm4463, 0.0
    %4503 = vst.msk [vmem:[#allocation4 + $0x130] sm:$0x3] %vm4466, 0.0
    %4504 = vst.msk [vmem:[#allocation4 + $0x138] sm:$0xff] %vm4463, 0.0
    %4505 = vst.msk [vmem:[#allocation4 + $0x140] sm:$0xff] %vm4463, 0.0
    %4506 = vst.msk [vmem:[#allocation4 + $0x148] sm:$0x3] %vm4466, 0.0
    %4507 = vst.msk [vmem:[#allocation4 + $0x150] sm:$0xff] %vm4463, 0.0
    %4508 = vst.msk [vmem:[#allocation4 + $0x158] sm:$0xff] %vm4463, 0.0
    %4509 = vst.msk [vmem:[#allocation4 + $0x160] sm:$0x3] %vm4466, 0.0
    %4510 = vst.msk [vmem:[#allocation4 + $0x168] sm:$0xff] %vm4463, 0.0
    %4511 = vst.msk [vmem:[#allocation4 + $0x170] sm:$0xff] %vm4463, 0.0
    %4512 = vst.msk [vmem:[#allocation4 + $0x178] sm:$0x3] %vm4466, 0.0
    %4513 = vst.msk [vmem:[#allocation4 + $0x180] sm:$0xff] %vm4463, 0.0
    %4514 = vst.msk [vmem:[#allocation4 + $0x188] sm:$0xff] %vm4463, 0.0
    %4515 = vst.msk [vmem:[#allocation4 + $0x190] sm:$0x3] %vm4466, 0.0
    %4516 = vst.msk [vmem:[#allocation4 + $0x198] sm:$0xff] %vm4463, 0.0
    %4517 = vst.msk [vmem:[#allocation4 + $0x1a0] sm:$0xff] %vm4463, 0.0
    %4518 = vst.msk [vmem:[#allocation4 + $0x1a8] sm:$0x3] %vm4466, 0.0
    %4519 = vst.msk [vmem:[#allocation4 + $0x1b0] sm:$0xff] %vm4463, 0.0
    %4520 = vst.msk [vmem:[#allocation4 + $0x1b8] sm:$0xff] %vm4463, 0.0
    %4521 = vst.msk [vmem:[#allocation4 + $0x1c0] sm:$0x3] %vm4466, 0.0
    %4522 = vst.msk [vmem:[#allocation4 + $0x1c8] sm:$0xff] %vm4463, 0.0
    %4523 = vst.msk [vmem:[#allocation4 + $0x1d0] sm:$0xff] %vm4463, 0.0
    %4524 = vst.msk [vmem:[#allocation4 + $0x1d8] sm:$0x3] %vm4466, 0.0
    %4525 = vst.msk [vmem:[#allocation4 + $0x1e0] sm:$0xff] %vm4463, 0.0
    %4526 = vst.msk [vmem:[#allocation4 + $0x1e8] sm:$0xff] %vm4463, 0.0
    %4527 = vst.msk [vmem:[#allocation4 + $0x1f0] sm:$0x3] %vm4466, 0.0
    %4528 = vst.msk [vmem:[#allocation4 + $0x1f8] sm:$0xff] %vm4463, 0.0
    %4529 = vst.msk [vmem:[#allocation4 + $0x200] sm:$0xff] %vm4463, 0.0
    %4530 = vst.msk [vmem:[#allocation4 + $0x208] sm:$0x3] %vm4466, 0.0
    %4531 = vst.msk [vmem:[#allocation4 + $0x210] sm:$0xff] %vm4463, 0.0
    %4532 = vst.msk [vmem:[#allocation4 + $0x218] sm:$0xff] %vm4463, 0.0
    %4533 = vst.msk [vmem:[#allocation4 + $0x220] sm:$0x3] %vm4466, 0.0
    %4534 = vst.msk [vmem:[#allocation4 + $0x228] sm:$0xff] %vm4463, 0.0
    %4535 = vst.msk [vmem:[#allocation4 + $0x230] sm:$0xff] %vm4463, 0.0
    %4536 = vst.msk [vmem:[#allocation4 + $0x238] sm:$0x3] %vm4466, 0.0
    %4537 = vst.msk [vmem:[#allocation4 + $0x240] sm:$0xff] %vm4463, 0.0
    %4538 = vst.msk [vmem:[#allocation4 + $0x248] sm:$0xff] %vm4463, 0.0
    %4539 = vst.msk [vmem:[#allocation4 + $0x250] sm:$0x3] %vm4466, 0.0
    %4540 = vst.msk [vmem:[#allocation4 + $0x258] sm:$0xff] %vm4463, 0.0
    %4541 = vst.msk [vmem:[#allocation4 + $0x260] sm:$0xff] %vm4463, 0.0
    %4542 = vst.msk [vmem:[#allocation4 + $0x268] sm:$0x3] %vm4466, 0.0
    %4543 = vst.msk [vmem:[#allocation4 + $0x270] sm:$0xff] %vm4463, 0.0
    %4544 = vst.msk [vmem:[#allocation4 + $0x278] sm:$0xff] %vm4463, 0.0
    %4545 = vst.msk [vmem:[#allocation4 + $0x280] sm:$0x3] %vm4466, 0.0
    %4546 = vst.msk [vmem:[#allocation4 + $0x288] sm:$0xff] %vm4463, 0.0
    %4547 = vst.msk [vmem:[#allocation4 + $0x290] sm:$0xff] %vm4463, 0.0
    %4548 = vst.msk [vmem:[#allocation4 + $0x298] sm:$0x3] %vm4466, 0.0
    %4549 = vst.msk [vmem:[#allocation4 + $0x2a0] sm:$0xff] %vm4463, 0.0
    %4550 = vst.msk [vmem:[#allocation4 + $0x2a8] sm:$0xff] %vm4463, 0.0
    %4551 = vst.msk [vmem:[#allocation4 + $0x2b0] sm:$0x3] %vm4466, 0.0
    %4552 = vst.msk [vmem:[#allocation4 + $0x2b8] sm:$0xff] %vm4463, 0.0
    %4553 = vst.msk [vmem:[#allocation4 + $0x2c0] sm:$0xff] %vm4463, 0.0
    %4554 = vst.msk [vmem:[#allocation4 + $0x2c8] sm:$0x3] %vm4466, 0.0
    %4555 = vst.msk [vmem:[#allocation4 + $0x2d0] sm:$0xff] %vm4463, 0.0
    %4556 = vst.msk [vmem:[#allocation4 + $0x2d8] sm:$0xff] %vm4463, 0.0
    %4557 = vst.msk [vmem:[#allocation4 + $0x2e0] sm:$0x3] %vm4466, 0.0
    %4558 = vst.msk [vmem:[#allocation4 + $0x2e8] sm:$0xff] %vm4463, 0.0
    %4559 = vst.msk [vmem:[#allocation4 + $0x2f0] sm:$0xff] %vm4463, 0.0
    %4560 = vst.msk [vmem:[#allocation4 + $0x2f8] sm:$0x3] %vm4466, 0.0
    %4561 = vst.msk [vmem:[#allocation4 + $0x300] sm:$0xff] %vm4463, 0.0
    %4562 = vst.msk [vmem:[#allocation4 + $0x308] sm:$0xff] %vm4463, 0.0
    %4563 = vst.msk [vmem:[#allocation4 + $0x310] sm:$0x3] %vm4466, 0.0
    %4564 = vst.msk [vmem:[#allocation4 + $0x318] sm:$0xff] %vm4463, 0.0
    %4565 = vst.msk [vmem:[#allocation4 + $0x320] sm:$0xff] %vm4463, 0.0
    %4566 = vst.msk [vmem:[#allocation4 + $0x328] sm:$0x3] %vm4466, 0.0
    %4567 = vst.msk [vmem:[#allocation4 + $0x330] sm:$0xff] %vm4463, 0.0
    %4568 = vst.msk [vmem:[#allocation4 + $0x338] sm:$0xff] %vm4463, 0.0
    %4569 = vst.msk [vmem:[#allocation4 + $0x340] sm:$0x3] %vm4466, 0.0
    %4570 = vst.msk [vmem:[#allocation4 + $0x348] sm:$0xff] %vm4463, 0.0
    %4571 = vst.msk [vmem:[#allocation4 + $0x350] sm:$0xff] %vm4463, 0.0
    %4572 = vst.msk [vmem:[#allocation4 + $0x358] sm:$0x3] %vm4466, 0.0
    %s4573 = scalar_lea.vmem [#allocation4], 24
    %4574 = vst.msk [vmem:[%s4573 + $0x1] sm:$0xff] %vm4463, %v4399
    %4575 = vst.msk [vmem:[%s4573 + $0x9] sm:$0xff] %vm4463, %v4400
    %4576 = vst.msk [vmem:[%s4573 + $0x19] sm:$0xff] %vm4463, %v4401
    %4577 = vst.msk [vmem:[%s4573 + $0x21] sm:$0xff] %vm4463, %v4402
    %4578 = vst.msk [vmem:[%s4573 + $0x31] sm:$0xff] %vm4463, %v4403
    %4579 = vst.msk [vmem:[%s4573 + $0x39] sm:$0xff] %vm4463, %v4404
    %4580 = vst.msk [vmem:[%s4573 + $0x49] sm:$0xff] %vm4463, %v4405
    %4581 = vst.msk [vmem:[%s4573 + $0x51] sm:$0xff] %vm4463, %v4406
    %4582 = vst.msk [vmem:[%s4573 + $0x61] sm:$0xff] %vm4463, %v4407
    %4583 = vst.msk [vmem:[%s4573 + $0x69] sm:$0xff] %vm4463, %v4408
    %4584 = vst.msk [vmem:[%s4573 + $0x79] sm:$0xff] %vm4463, %v4409
    %4585 = vst.msk [vmem:[%s4573 + $0x81] sm:$0xff] %vm4463, %v4410
    %4586 = vst.msk [vmem:[%s4573 + $0x91] sm:$0xff] %vm4463, %v4411
    %4587 = vst.msk [vmem:[%s4573 + $0x99] sm:$0xff] %vm4463, %v4412
    %4588 = vst.msk [vmem:[%s4573 + $0xa9] sm:$0xff] %vm4463, %v4413
    %4589 = vst.msk [vmem:[%s4573 + $0xb1] sm:$0xff] %vm4463, %v4414
    %4590 = vst.msk [vmem:[%s4573 + $0xc1] sm:$0xff] %vm4463, %v4415
    %4591 = vst.msk [vmem:[%s4573 + $0xc9] sm:$0xff] %vm4463, %v4416
    %4592 = vst.msk [vmem:[%s4573 + $0xd9] sm:$0xff] %vm4463, %v4417
    %4593 = vst.msk [vmem:[%s4573 + $0xe1] sm:$0xff] %vm4463, %v4418
    %4594 = vst.msk [vmem:[%s4573 + $0xf1] sm:$0xff] %vm4463, %v4419
    %4595 = vst.msk [vmem:[%s4573 + $0xf9] sm:$0xff] %vm4463, %v4420
    %4596 = vst.msk [vmem:[%s4573 + $0x109] sm:$0xff] %vm4463, %v4421
    %4597 = vst.msk [vmem:[%s4573 + $0x111] sm:$0xff] %vm4463, %v4422
    %4598 = vst.msk [vmem:[%s4573 + $0x121] sm:$0xff] %vm4463, %v4423
    %4599 = vst.msk [vmem:[%s4573 + $0x129] sm:$0xff] %vm4463, %v4424
    %4600 = vst.msk [vmem:[%s4573 + $0x139] sm:$0xff] %vm4463, %v4425
    %4601 = vst.msk [vmem:[%s4573 + $0x141] sm:$0xff] %vm4463, %v4426
    %4602 = vst.msk [vmem:[%s4573 + $0x151] sm:$0xff] %vm4463, %v4427
    %4603 = vst.msk [vmem:[%s4573 + $0x159] sm:$0xff] %vm4463, %v4428
    %4604 = vst.msk [vmem:[%s4573 + $0x169] sm:$0xff] %vm4463, %v4429
    %4605 = vst.msk [vmem:[%s4573 + $0x171] sm:$0xff] %vm4463, %v4430
    %4606 = vst.msk [vmem:[%s4573 + $0x1b1] sm:$0xff] %vm4463, %v4431
    %4607 = vst.msk [vmem:[%s4573 + $0x1b9] sm:$0xff] %vm4463, %v4432
    %4608 = vst.msk [vmem:[%s4573 + $0x1c9] sm:$0xff] %vm4463, %v4433
    %4609 = vst.msk [vmem:[%s4573 + $0x1d1] sm:$0xff] %vm4463, %v4434
    %4610 = vst.msk [vmem:[%s4573 + $0x1e1] sm:$0xff] %vm4463, %v4435
    %4611 = vst.msk [vmem:[%s4573 + $0x1e9] sm:$0xff] %vm4463, %v4436
    %4612 = vst.msk [vmem:[%s4573 + $0x1f9] sm:$0xff] %vm4463, %v4437
    %4613 = vst.msk [vmem:[%s4573 + $0x201] sm:$0xff] %vm4463, %v4438
    %4614 = vst.msk [vmem:[%s4573 + $0x211] sm:$0xff] %vm4463, %v4439
    %4615 = vst.msk [vmem:[%s4573 + $0x219] sm:$0xff] %vm4463, %v4440
    %4616 = vst.msk [vmem:[%s4573 + $0x229] sm:$0xff] %vm4463, %v4441
    %4617 = vst.msk [vmem:[%s4573 + $0x231] sm:$0xff] %vm4463, %v4442
    %4618 = vst.msk [vmem:[%s4573 + $0x241] sm:$0xff] %vm4463, %v4443
    %4619 = vst.msk [vmem:[%s4573 + $0x249] sm:$0xff] %vm4463, %v4444
    %4620 = vst.msk [vmem:[%s4573 + $0x259] sm:$0xff] %vm4463, %v4445
    %4621 = vst.msk [vmem:[%s4573 + $0x261] sm:$0xff] %vm4463, %v4446
    %4622 = vst.msk [vmem:[%s4573 + $0x271] sm:$0xff] %vm4463, %v4447
    %4623 = vst.msk [vmem:[%s4573 + $0x279] sm:$0xff] %vm4463, %v4448
    %4624 = vst.msk [vmem:[%s4573 + $0x289] sm:$0xff] %vm4463, %v4449
    %4625 = vst.msk [vmem:[%s4573 + $0x291] sm:$0xff] %vm4463, %v4450
    %4626 = vst.msk [vmem:[%s4573 + $0x2a1] sm:$0xff] %vm4463, %v4451
    %4627 = vst.msk [vmem:[%s4573 + $0x2a9] sm:$0xff] %vm4463, %v4452
    %4628 = vst.msk [vmem:[%s4573 + $0x2b9] sm:$0xff] %vm4463, %v4453
    %4629 = vst.msk [vmem:[%s4573 + $0x2c1] sm:$0xff] %vm4463, %v4454
    %4630 = vst.msk [vmem:[%s4573 + $0x2d1] sm:$0xff] %vm4463, %v4455
    %4631 = vst.msk [vmem:[%s4573 + $0x2d9] sm:$0xff] %vm4463, %v4456
    %4632 = vst.msk [vmem:[%s4573 + $0x2e9] sm:$0xff] %vm4463, %v4457
    %4633 = vst.msk [vmem:[%s4573 + $0x2f1] sm:$0xff] %vm4463, %v4458
    %4634 = vst.msk [vmem:[%s4573 + $0x301] sm:$0xff] %vm4463, %v4459
    %4635 = vst.msk [vmem:[%s4573 + $0x309] sm:$0xff] %vm4463, %v4460
    %4636 = vst.msk [vmem:[%s4573 + $0x319] sm:$0xff] %vm4463, %v4461
    %4637 = vst.msk [vmem:[%s4573 + $0x321] sm:$0xff] %vm4463, %v4462
    %v4638 = vld [vmem:[#allocation4] sm:$0xff]
    %v4639 = vld [vmem:[#allocation4 + $0x8] sm:$0xff]
    %v4640 = vld [vmem:[#allocation4 + $0x18] sm:$0xff]
    %v4641 = vld [vmem:[#allocation4 + $0x20] sm:$0xff]
    %v4642 = vld [vmem:[#allocation4 + $0x30] sm:$0xff]
    %v4643 = vld [vmem:[#allocation4 + $0x38] sm:$0xff]
    %v4644 = vld [vmem:[#allocation4 + $0x48] sm:$0xff]
    %v4645 = vld [vmem:[#allocation4 + $0x50] sm:$0xff]
    %v4646 = vld [vmem:[#allocation4 + $0x60] sm:$0xff]
    %v4647 = vld [vmem:[#allocation4 + $0x68] sm:$0xff]
    %v4648 = vld [vmem:[#allocation4 + $0x78] sm:$0xff]
    %v4649 = vld [vmem:[#allocation4 + $0x80] sm:$0xff]
    %v4650 = vld [vmem:[#allocation4 + $0x90] sm:$0xff]
    %v4651 = vld [vmem:[#allocation4 + $0x98] sm:$0xff]
    %v4652 = vld [vmem:[#allocation4 + $0xa8] sm:$0xff]
    %v4653 = vld [vmem:[#allocation4 + $0xb0] sm:$0xff]
    %v4654 = vld [vmem:[#allocation4 + $0xc0] sm:$0xff]
    %v4655 = vld [vmem:[#allocation4 + $0xc8] sm:$0xff]
    %v4656 = vld [vmem:[#allocation4 + $0xd8] sm:$0xff]
    %v4657 = vld [vmem:[#allocation4 + $0xe0] sm:$0xff]
    %v4658 = vld [vmem:[#allocation4 + $0xf0] sm:$0xff]
    %v4659 = vld [vmem:[#allocation4 + $0xf8] sm:$0xff]
    %v4660 = vld [vmem:[#allocation4 + $0x108] sm:$0xff]
    %v4661 = vld [vmem:[#allocation4 + $0x110] sm:$0xff]
    %v4662 = vld [vmem:[#allocation4 + $0x120] sm:$0xff]
    %v4663 = vld [vmem:[#allocation4 + $0x128] sm:$0xff]
    %v4664 = vld [vmem:[#allocation4 + $0x138] sm:$0xff]
    %v4665 = vld [vmem:[#allocation4 + $0x140] sm:$0xff]
    %v4666 = vld [vmem:[#allocation4 + $0x150] sm:$0xff]
    %v4667 = vld [vmem:[#allocation4 + $0x158] sm:$0xff]
    %v4668 = vld [vmem:[#allocation4 + $0x168] sm:$0xff]
    %v4669 = vld [vmem:[#allocation4 + $0x170] sm:$0xff]
    %v4670 = vld [vmem:[#allocation4 + $0x1b0] sm:$0xff]
    %v4671 = vld [vmem:[#allocation4 + $0x1b8] sm:$0xff]
    %v4672 = vld [vmem:[#allocation4 + $0x1c8] sm:$0xff]
    %v4673 = vld [vmem:[#allocation4 + $0x1d0] sm:$0xff]
    %v4674 = vld [vmem:[#allocation4 + $0x1e0] sm:$0xff]
    %v4675 = vld [vmem:[#allocation4 + $0x1e8] sm:$0xff]
    %v4676 = vld [vmem:[#allocation4 + $0x1f8] sm:$0xff]
    %v4677 = vld [vmem:[#allocation4 + $0x200] sm:$0xff]
    %v4678 = vld [vmem:[#allocation4 + $0x210] sm:$0xff]
    %v4679 = vld [vmem:[#allocation4 + $0x218] sm:$0xff]
    %v4680 = vld [vmem:[#allocation4 + $0x228] sm:$0xff]
    %v4681 = vld [vmem:[#allocation4 + $0x230] sm:$0xff]
    %v4682 = vld [vmem:[#allocation4 + $0x240] sm:$0xff]
    %v4683 = vld [vmem:[#allocation4 + $0x248] sm:$0xff]
    %v4684 = vld [vmem:[#allocation4 + $0x258] sm:$0xff]
    %v4685 = vld [vmem:[#allocation4 + $0x260] sm:$0xff]
    %v4686 = vld [vmem:[#allocation4 + $0x270] sm:$0xff]
    %v4687 = vld [vmem:[#allocation4 + $0x278] sm:$0xff]
    %v4688 = vld [vmem:[#allocation4 + $0x288] sm:$0xff]
    %v4689 = vld [vmem:[#allocation4 + $0x290] sm:$0xff]
    %v4690 = vld [vmem:[#allocation4 + $0x2a0] sm:$0xff]
    %v4691 = vld [vmem:[#allocation4 + $0x2a8] sm:$0xff]
    %v4692 = vld [vmem:[#allocation4 + $0x2b8] sm:$0xff]
    %v4693 = vld [vmem:[#allocation4 + $0x2c0] sm:$0xff]
    %v4694 = vld [vmem:[#allocation4 + $0x2d0] sm:$0xff]
    %v4695 = vld [vmem:[#allocation4 + $0x2d8] sm:$0xff]
    %v4696 = vld [vmem:[#allocation4 + $0x2e8] sm:$0xff]
    %v4697 = vld [vmem:[#allocation4 + $0x2f0] sm:$0xff]
    %v4698 = vld [vmem:[#allocation4 + $0x300] sm:$0xff]
    %v4699 = vld [vmem:[#allocation4 + $0x308] sm:$0xff]
    %v4700 = vld [vmem:[#allocation4 + $0x318] sm:$0xff]
    %v4701 = vld [vmem:[#allocation4 + $0x320] sm:$0xff]
    %4702 = vst.msk [vmem:[#allocation5] sm:$0xff] %vm4463, %v4638
    %4703 = vst.msk [vmem:[#allocation5 + $0x8] sm:$0xff] %vm4463, %v4639
    %4704 = vst.msk [vmem:[#allocation5 + $0x10] sm:$0xff] %vm4463, %v4640
    %4705 = vst.msk [vmem:[#allocation5 + $0x18] sm:$0xff] %vm4463, %v4641
    %4706 = vst.msk [vmem:[#allocation5 + $0x20] sm:$0xff] %vm4463, %v4642
    %4707 = vst.msk [vmem:[#allocation5 + $0x28] sm:$0xff] %vm4463, %v4643
    %4708 = vst.msk [vmem:[#allocation5 + $0x30] sm:$0xff] %vm4463, %v4644
    %4709 = vst.msk [vmem:[#allocation5 + $0x38] sm:$0xff] %vm4463, %v4645
    %4710 = vst.msk [vmem:[#allocation5 + $0x40] sm:$0xff] %vm4463, %v4646
    %4711 = vst.msk [vmem:[#allocation5 + $0x48] sm:$0xff] %vm4463, %v4647
    %4712 = vst.msk [vmem:[#allocation5 + $0x50] sm:$0xff] %vm4463, %v4648
    %4713 = vst.msk [vmem:[#allocation5 + $0x58] sm:$0xff] %vm4463, %v4649
    %4714 = vst.msk [vmem:[#allocation5 + $0x60] sm:$0xff] %vm4463, %v4650
    %4715 = vst.msk [vmem:[#allocation5 + $0x68] sm:$0xff] %vm4463, %v4651
    %4716 = vst.msk [vmem:[#allocation5 + $0x70] sm:$0xff] %vm4463, %v4652
    %4717 = vst.msk [vmem:[#allocation5 + $0x78] sm:$0xff] %vm4463, %v4653
    %4718 = vst.msk [vmem:[#allocation5 + $0x80] sm:$0xff] %vm4463, %v4654
    %4719 = vst.msk [vmem:[#allocation5 + $0x88] sm:$0xff] %vm4463, %v4655
    %4720 = vst.msk [vmem:[#allocation5 + $0x90] sm:$0xff] %vm4463, %v4656
    %4721 = vst.msk [vmem:[#allocation5 + $0x98] sm:$0xff] %vm4463, %v4657
    %4722 = vst.msk [vmem:[#allocation5 + $0xa0] sm:$0xff] %vm4463, %v4658
    %4723 = vst.msk [vmem:[#allocation5 + $0xa8] sm:$0xff] %vm4463, %v4659
    %4724 = vst.msk [vmem:[#allocation5 + $0xb0] sm:$0xff] %vm4463, %v4660
    %4725 = vst.msk [vmem:[#allocation5 + $0xb8] sm:$0xff] %vm4463, %v4661
    %4726 = vst.msk [vmem:[#allocation5 + $0xc0] sm:$0xff] %vm4463, %v4662
    %4727 = vst.msk [vmem:[#allocation5 + $0xc8] sm:$0xff] %vm4463, %v4663
    %4728 = vst.msk [vmem:[#allocation5 + $0xd0] sm:$0xff] %vm4463, %v4664
    %4729 = vst.msk [vmem:[#allocation5 + $0xd8] sm:$0xff] %vm4463, %v4665
    %4730 = vst.msk [vmem:[#allocation5 + $0xe0] sm:$0xff] %vm4463, %v4666
    %4731 = vst.msk [vmem:[#allocation5 + $0xe8] sm:$0xff] %vm4463, %v4667
    %4732 = vst.msk [vmem:[#allocation5 + $0xf0] sm:$0xff] %vm4463, %v4668
    %4733 = vst.msk [vmem:[#allocation5 + $0xf8] sm:$0xff] %vm4463, %v4669
    %4734 = vst.msk [vmem:[#allocation5 + $0x100] sm:$0xff] %vm4463, %v4670
    %4735 = vst.msk [vmem:[#allocation5 + $0x108] sm:$0xff] %vm4463, %v4671
    %4736 = vst.msk [vmem:[#allocation5 + $0x110] sm:$0xff] %vm4463, %v4672
    %4737 = vst.msk [vmem:[#allocation5 + $0x118] sm:$0xff] %vm4463, %v4673
    %4738 = vst.msk [vmem:[#allocation5 + $0x120] sm:$0xff] %vm4463, %v4674
    %4739 = vst.msk [vmem:[#allocation5 + $0x128] sm:$0xff] %vm4463, %v4675
    %4740 = vst.msk [vmem:[#allocation5 + $0x130] sm:$0xff] %vm4463, %v4676
    %4741 = vst.msk [vmem:[#allocation5 + $0x138] sm:$0xff] %vm4463, %v4677
    %4742 = vst.msk [vmem:[#allocation5 + $0x140] sm:$0xff] %vm4463, %v4678
    %4743 = vst.msk [vmem:[#allocation5 + $0x148] sm:$0xff] %vm4463, %v4679
    %4744 = vst.msk [vmem:[#allocation5 + $0x150] sm:$0xff] %vm4463, %v4680
    %4745 = vst.msk [vmem:[#allocation5 + $0x158] sm:$0xff] %vm4463, %v4681
    %4746 = vst.msk [vmem:[#allocation5 + $0x160] sm:$0xff] %vm4463, %v4682
    %4747 = vst.msk [vmem:[#allocation5 + $0x168] sm:$0xff] %vm4463, %v4683
    %4748 = vst.msk [vmem:[#allocation5 + $0x170] sm:$0xff] %vm4463, %v4684
    %4749 = vst.msk [vmem:[#allocation5 + $0x178] sm:$0xff] %vm4463, %v4685
    %4750 = vst.msk [vmem:[#allocation5 + $0x180] sm:$0xff] %vm4463, %v4686
    %4751 = vst.msk [vmem:[#allocation5 + $0x188] sm:$0xff] %vm4463, %v4687
    %4752 = vst.msk [vmem:[#allocation5 + $0x190] sm:$0xff] %vm4463, %v4688
    %4753 = vst.msk [vmem:[#allocation5 + $0x198] sm:$0xff] %vm4463, %v4689
    %4754 = vst.msk [vmem:[#allocation5 + $0x1a0] sm:$0xff] %vm4463, %v4690
    %4755 = vst.msk [vmem:[#allocation5 + $0x1a8] sm:$0xff] %vm4463, %v4691
    %4756 = vst.msk [vmem:[#allocation5 + $0x1b0] sm:$0xff] %vm4463, %v4692
    %4757 = vst.msk [vmem:[#allocation5 + $0x1b8] sm:$0xff] %vm4463, %v4693
    %4758 = vst.msk [vmem:[#allocation5 + $0x1c0] sm:$0xff] %vm4463, %v4694
    %4759 = vst.msk [vmem:[#allocation5 + $0x1c8] sm:$0xff] %vm4463, %v4695
    %4760 = vst.msk [vmem:[#allocation5 + $0x1d0] sm:$0xff] %vm4463, %v4696
    %4761 = vst.msk [vmem:[#allocation5 + $0x1d8] sm:$0xff] %vm4463, %v4697
    %4762 = vst.msk [vmem:[#allocation5 + $0x1e0] sm:$0xff] %vm4463, %v4698
    %4763 = vst.msk [vmem:[#allocation5 + $0x1e8] sm:$0xff] %vm4463, %v4699
    %4764 = vst.msk [vmem:[#allocation5 + $0x1f0] sm:$0xff] %vm4463, %v4700
    %4765 = vst.msk [vmem:[#allocation5 + $0x1f8] sm:$0xff] %vm4463, %v4701
    %v4766 = vld [vmem:[#allocation4 + $0x1] sm:$0xff]
    %v4767 = vld [vmem:[#allocation4 + $0x9] sm:$0xff]
    %v4768 = vld [vmem:[#allocation4 + $0x19] sm:$0xff]
    %v4769 = vld [vmem:[#allocation4 + $0x21] sm:$0xff]
    %v4770 = vld [vmem:[#allocation4 + $0x31] sm:$0xff]
    %v4771 = vld [vmem:[#allocation4 + $0x39] sm:$0xff]
    %v4772 = vld [vmem:[#allocation4 + $0x49] sm:$0xff]
    %v4773 = vld [vmem:[#allocation4 + $0x51] sm:$0xff]
    %v4774 = vld [vmem:[#allocation4 + $0x61] sm:$0xff]
    %v4775 = vld [vmem:[#allocation4 + $0x69] sm:$0xff]
    %v4776 = vld [vmem:[#allocation4 + $0x79] sm:$0xff]
    %v4777 = vld [vmem:[#allocation4 + $0x81] sm:$0xff]
    %v4778 = vld [vmem:[#allocation4 + $0x91] sm:$0xff]
    %v4779 = vld [vmem:[#allocation4 + $0x99] sm:$0xff]
    %v4780 = vld [vmem:[#allocation4 + $0xa9] sm:$0xff]
    %v4781 = vld [vmem:[#allocation4 + $0xb1] sm:$0xff]
    %v4782 = vld [vmem:[#allocation4 + $0xc1] sm:$0xff]
    %v4783 = vld [vmem:[#allocation4 + $0xc9] sm:$0xff]
    %v4784 = vld [vmem:[#allocation4 + $0xd9] sm:$0xff]
    %v4785 = vld [vmem:[#allocation4 + $0xe1] sm:$0xff]
    %v4786 = vld [vmem:[#allocation4 + $0xf1] sm:$0xff]
    %v4787 = vld [vmem:[#allocation4 + $0xf9] sm:$0xff]
    %v4788 = vld [vmem:[#allocation4 + $0x109] sm:$0xff]
    %v4789 = vld [vmem:[#allocation4 + $0x111] sm:$0xff]
    %v4790 = vld [vmem:[#allocation4 + $0x121] sm:$0xff]
    %v4791 = vld [vmem:[#allocation4 + $0x129] sm:$0xff]
    %v4792 = vld [vmem:[#allocation4 + $0x139] sm:$0xff]
    %v4793 = vld [vmem:[#allocation4 + $0x141] sm:$0xff]
    %v4794 = vld [vmem:[#allocation4 + $0x151] sm:$0xff]
    %v4795 = vld [vmem:[#allocation4 + $0x159] sm:$0xff]
    %v4796 = vld [vmem:[#allocation4 + $0x169] sm:$0xff]
    %v4797 = vld [vmem:[#allocation4 + $0x171] sm:$0xff]
    %v4798 = vld [vmem:[#allocation4 + $0x1b1] sm:$0xff]
    %v4799 = vld [vmem:[#allocation4 + $0x1b9] sm:$0xff]
    %v4800 = vld [vmem:[#allocation4 + $0x1c9] sm:$0xff]
    %v4801 = vld [vmem:[#allocation4 + $0x1d1] sm:$0xff]
    %v4802 = vld [vmem:[#allocation4 + $0x1e1] sm:$0xff]
    %v4803 = vld [vmem:[#allocation4 + $0x1e9] sm:$0xff]
    %v4804 = vld [vmem:[#allocation4 + $0x1f9] sm:$0xff]
    %v4805 = vld [vmem:[#allocation4 + $0x201] sm:$0xff]
    %v4806 = vld [vmem:[#allocation4 + $0x211] sm:$0xff]
    %v4807 = vld [vmem:[#allocation4 + $0x219] sm:$0xff]
    %v4808 = vld [vmem:[#allocation4 + $0x229] sm:$0xff]
    %v4809 = vld [vmem:[#allocation4 + $0x231] sm:$0xff]
    %v4810 = vld [vmem:[#allocation4 + $0x241] sm:$0xff]
    %v4811 = vld [vmem:[#allocation4 + $0x249] sm:$0xff]
    %v4812 = vld [vmem:[#allocation4 + $0x259] sm:$0xff]
    %v4813 = vld [vmem:[#allocation4 + $0x261] sm:$0xff]
    %v4814 = vld [vmem:[#allocation4 + $0x271] sm:$0xff]
    %v4815 = vld [vmem:[#allocation4 + $0x279] sm:$0xff]
    %v4816 = vld [vmem:[#allocation4 + $0x289] sm:$0xff]
    %v4817 = vld [vmem:[#allocation4 + $0x291] sm:$0xff]
    %v4818 = vld [vmem:[#allocation4 + $0x2a1] sm:$0xff]
    %v4819 = vld [vmem:[#allocation4 + $0x2a9] sm:$0xff]
    %v4820 = vld [vmem:[#allocation4 + $0x2b9] sm:$0xff]
    %v4821 = vld [vmem:[#allocation4 + $0x2c1] sm:$0xff]
    %v4822 = vld [vmem:[#allocation4 + $0x2d1] sm:$0xff]
    %v4823 = vld [vmem:[#allocation4 + $0x2d9] sm:$0xff]
    %v4824 = vld [vmem:[#allocation4 + $0x2e9] sm:$0xff]
    %v4825 = vld [vmem:[#allocation4 + $0x2f1] sm:$0xff]
    %v4826 = vld [vmem:[#allocation4 + $0x301] sm:$0xff]
    %v4827 = vld [vmem:[#allocation4 + $0x309] sm:$0xff]
    %v4828 = vld [vmem:[#allocation4 + $0x319] sm:$0xff]
    %v4829 = vld [vmem:[#allocation4 + $0x321] sm:$0xff]
    %4894 = vrot.lane.b32.xlu0 %v4766, 8
    %v4895 = vpop.permute.xlu0 %4894
    %4896 = vrot.lane.b32.xlu0 %v4767, 8
    %v4897 = vpop.permute.xlu0 %4896
    %4898 = vrot.lane.b32.xlu0 %v4768, 8
    %v4899 = vpop.permute.xlu0 %4898
    %4900 = vrot.lane.b32.xlu0 %v4769, 8
    %v4901 = vpop.permute.xlu0 %4900
    %4902 = vrot.lane.b32.xlu0 %v4770, 8
    %v4903 = vpop.permute.xlu0 %4902
    %4904 = vrot.lane.b32.xlu0 %v4771, 8
    %v4905 = vpop.permute.xlu0 %4904
    %4906 = vrot.lane.b32.xlu0 %v4772, 8
    %v4907 = vpop.permute.xlu0 %4906
    %4908 = vrot.lane.b32.xlu0 %v4773, 8
    %v4909 = vpop.permute.xlu0 %4908
    %4910 = vrot.lane.b32.xlu0 %v4774, 8
    %v4911 = vpop.permute.xlu0 %4910
    %4912 = vrot.lane.b32.xlu0 %v4775, 8
    %v4913 = vpop.permute.xlu0 %4912
    %4914 = vrot.lane.b32.xlu0 %v4776, 8
    %v4915 = vpop.permute.xlu0 %4914
    %4916 = vrot.lane.b32.xlu0 %v4777, 8
    %v4917 = vpop.permute.xlu0 %4916
    %4918 = vrot.lane.b32.xlu0 %v4778, 8
    %v4919 = vpop.permute.xlu0 %4918
    %4920 = vrot.lane.b32.xlu0 %v4779, 8
    %v4921 = vpop.permute.xlu0 %4920
    %4922 = vrot.lane.b32.xlu0 %v4780, 8
    %v4923 = vpop.permute.xlu0 %4922
    %4924 = vrot.lane.b32.xlu0 %v4781, 8
    %v4925 = vpop.permute.xlu0 %4924
    %4926 = vrot.lane.b32.xlu0 %v4782, 8
    %v4927 = vpop.permute.xlu0 %4926
    %4928 = vrot.lane.b32.xlu0 %v4783, 8
    %v4929 = vpop.permute.xlu0 %4928
    %4930 = vrot.lane.b32.xlu0 %v4784, 8
    %v4931 = vpop.permute.xlu0 %4930
    %4932 = vrot.lane.b32.xlu0 %v4785, 8
    %v4933 = vpop.permute.xlu0 %4932
    %4934 = vrot.lane.b32.xlu0 %v4786, 8
    %v4935 = vpop.permute.xlu0 %4934
    %4936 = vrot.lane.b32.xlu0 %v4787, 8
    %v4937 = vpop.permute.xlu0 %4936
    %4938 = vrot.lane.b32.xlu0 %v4788, 8
    %v4939 = vpop.permute.xlu0 %4938
    %4940 = vrot.lane.b32.xlu0 %v4789, 8
    %v4941 = vpop.permute.xlu0 %4940
    %4942 = vrot.lane.b32.xlu0 %v4790, 8
    %v4943 = vpop.permute.xlu0 %4942
    %4944 = vrot.lane.b32.xlu0 %v4791, 8
    %v4945 = vpop.permute.xlu0 %4944
    %4946 = vrot.lane.b32.xlu0 %v4792, 8
    %v4947 = vpop.permute.xlu0 %4946
    %4948 = vrot.lane.b32.xlu0 %v4793, 8
    %v4949 = vpop.permute.xlu0 %4948
    %4950 = vrot.lane.b32.xlu0 %v4794, 8
    %v4951 = vpop.permute.xlu0 %4950
    %4952 = vrot.lane.b32.xlu0 %v4795, 8
    %v4953 = vpop.permute.xlu0 %4952
    %4954 = vrot.lane.b32.xlu0 %v4796, 8
    %v4955 = vpop.permute.xlu0 %4954
    %4956 = vrot.lane.b32.xlu0 %v4797, 8
    %v4957 = vpop.permute.xlu0 %4956
    %4958 = vrot.lane.b32.xlu0 %v4798, 8
    %v4959 = vpop.permute.xlu0 %4958
    %4960 = vrot.lane.b32.xlu0 %v4799, 8
    %v4961 = vpop.permute.xlu0 %4960
    %4962 = vrot.lane.b32.xlu0 %v4800, 8
    %v4963 = vpop.permute.xlu0 %4962
    %4964 = vrot.lane.b32.xlu0 %v4801, 8
    %v4965 = vpop.permute.xlu0 %4964
    %4966 = vrot.lane.b32.xlu0 %v4802, 8
    %v4967 = vpop.permute.xlu0 %4966
    %4968 = vrot.lane.b32.xlu0 %v4803, 8
    %v4969 = vpop.permute.xlu0 %4968
    %4970 = vrot.lane.b32.xlu0 %v4804, 8
    %v4971 = vpop.permute.xlu0 %4970
    %4972 = vrot.lane.b32.xlu0 %v4805, 8
    %v4973 = vpop.permute.xlu0 %4972
    %4974 = vrot.lane.b32.xlu0 %v4806, 8
    %v4975 = vpop.permute.xlu0 %4974
    %4976 = vrot.lane.b32.xlu0 %v4807, 8
    %v4977 = vpop.permute.xlu0 %4976
    %4978 = vrot.lane.b32.xlu0 %v4808, 8
    %v4979 = vpop.permute.xlu0 %4978
    %4980 = vrot.lane.b32.xlu0 %v4809, 8
    %v4981 = vpop.permute.xlu0 %4980
    %4982 = vrot.lane.b32.xlu0 %v4810, 8
    %v4983 = vpop.permute.xlu0 %4982
    %4984 = vrot.lane.b32.xlu0 %v4811, 8
    %v4985 = vpop.permute.xlu0 %4984
    %4986 = vrot.lane.b32.xlu0 %v4812, 8
    %v4987 = vpop.permute.xlu0 %4986
    %4988 = vrot.lane.b32.xlu0 %v4813, 8
    %v4989 = vpop.permute.xlu0 %4988
    %4990 = vrot.lane.b32.xlu0 %v4814, 8
    %v4991 = vpop.permute.xlu0 %4990
    %4992 = vrot.lane.b32.xlu0 %v4815, 8
    %v4993 = vpop.permute.xlu0 %4992
    %4994 = vrot.lane.b32.xlu0 %v4816, 8
    %v4995 = vpop.permute.xlu0 %4994
    %4996 = vrot.lane.b32.xlu0 %v4817, 8
    %v4997 = vpop.permute.xlu0 %4996
    %4998 = vrot.lane.b32.xlu0 %v4818, 8
    %v4999 = vpop.permute.xlu0 %4998
    %5000 = vrot.lane.b32.xlu0 %v4819, 8
    %v5001 = vpop.permute.xlu0 %5000
    %5002 = vrot.lane.b32.xlu0 %v4820, 8
    %v5003 = vpop.permute.xlu0 %5002
    %5004 = vrot.lane.b32.xlu0 %v4821, 8
    %v5005 = vpop.permute.xlu0 %5004
    %5006 = vrot.lane.b32.xlu0 %v4822, 8
    %v5007 = vpop.permute.xlu0 %5006
    %5008 = vrot.lane.b32.xlu0 %v4823, 8
    %v5009 = vpop.permute.xlu0 %5008
    %5010 = vrot.lane.b32.xlu0 %v4824, 8
    %v5011 = vpop.permute.xlu0 %5010
    %5012 = vrot.lane.b32.xlu0 %v4825, 8
    %v5013 = vpop.permute.xlu0 %5012
    %5014 = vrot.lane.b32.xlu0 %v4826, 8
    %v5015 = vpop.permute.xlu0 %5014
    %5016 = vrot.lane.b32.xlu0 %v4827, 8
    %v5017 = vpop.permute.xlu0 %5016
    %5018 = vrot.lane.b32.xlu0 %v4828, 8
    %v5019 = vpop.permute.xlu0 %5018
    %5020 = vrot.lane.b32.xlu0 %v4829, 8
    %v5021 = vpop.permute.xlu0 %5020
    %vm5086 = vcmask 130112
    %5087 = vst.msk [vmem:[#allocation5] sm:$0xff] %vm5086, %v4895
    %5088 = vst.msk [vmem:[#allocation5 + $0x8] sm:$0xff] %vm5086, %v4897
    %5089 = vst.msk [vmem:[#allocation5 + $0x10] sm:$0xff] %vm5086, %v4899
    %5090 = vst.msk [vmem:[#allocation5 + $0x18] sm:$0xff] %vm5086, %v4901
    %5091 = vst.msk [vmem:[#allocation5 + $0x20] sm:$0xff] %vm5086, %v4903
    %5092 = vst.msk [vmem:[#allocation5 + $0x28] sm:$0xff] %vm5086, %v4905
    %5093 = vst.msk [vmem:[#allocation5 + $0x30] sm:$0xff] %vm5086, %v4907
    %5094 = vst.msk [vmem:[#allocation5 + $0x38] sm:$0xff] %vm5086, %v4909
    %5095 = vst.msk [vmem:[#allocation5 + $0x40] sm:$0xff] %vm5086, %v4911
    %5096 = vst.msk [vmem:[#allocation5 + $0x48] sm:$0xff] %vm5086, %v4913
    %5097 = vst.msk [vmem:[#allocation5 + $0x50] sm:$0xff] %vm5086, %v4915
    %5098 = vst.msk [vmem:[#allocation5 + $0x58] sm:$0xff] %vm5086, %v4917
    %5099 = vst.msk [vmem:[#allocation5 + $0x60] sm:$0xff] %vm5086, %v4919
    %5100 = vst.msk [vmem:[#allocation5 + $0x68] sm:$0xff] %vm5086, %v4921
    %5101 = vst.msk [vmem:[#allocation5 + $0x70] sm:$0xff] %vm5086, %v4923
    %5102 = vst.msk [vmem:[#allocation5 + $0x78] sm:$0xff] %vm5086, %v4925
    %5103 = vst.msk [vmem:[#allocation5 + $0x80] sm:$0xff] %vm5086, %v4927
    %5104 = vst.msk [vmem:[#allocation5 + $0x88] sm:$0xff] %vm5086, %v4929
    %5105 = vst.msk [vmem:[#allocation5 + $0x90] sm:$0xff] %vm5086, %v4931
    %5106 = vst.msk [vmem:[#allocation5 + $0x98] sm:$0xff] %vm5086, %v4933
    %5107 = vst.msk [vmem:[#allocation5 + $0xa0] sm:$0xff] %vm5086, %v4935
    %5108 = vst.msk [vmem:[#allocation5 + $0xa8] sm:$0xff] %vm5086, %v4937
    %5109 = vst.msk [vmem:[#allocation5 + $0xb0] sm:$0xff] %vm5086, %v4939
    %5110 = vst.msk [vmem:[#allocation5 + $0xb8] sm:$0xff] %vm5086, %v4941
    %5111 = vst.msk [vmem:[#allocation5 + $0xc0] sm:$0xff] %vm5086, %v4943
    %5112 = vst.msk [vmem:[#allocation5 + $0xc8] sm:$0xff] %vm5086, %v4945
    %5113 = vst.msk [vmem:[#allocation5 + $0xd0] sm:$0xff] %vm5086, %v4947
    %5114 = vst.msk [vmem:[#allocation5 + $0xd8] sm:$0xff] %vm5086, %v4949
    %5115 = vst.msk [vmem:[#allocation5 + $0xe0] sm:$0xff] %vm5086, %v4951
    %5116 = vst.msk [vmem:[#allocation5 + $0xe8] sm:$0xff] %vm5086, %v4953
    %5117 = vst.msk [vmem:[#allocation5 + $0xf0] sm:$0xff] %vm5086, %v4955
    %5118 = vst.msk [vmem:[#allocation5 + $0xf8] sm:$0xff] %vm5086, %v4957
    %5119 = vst.msk [vmem:[#allocation5 + $0x100] sm:$0xff] %vm5086, %v4959
    %5120 = vst.msk [vmem:[#allocation5 + $0x108] sm:$0xff] %vm5086, %v4961
    %5121 = vst.msk [vmem:[#allocation5 + $0x110] sm:$0xff] %vm5086, %v4963
    %5122 = vst.msk [vmem:[#allocation5 + $0x118] sm:$0xff] %vm5086, %v4965
    %5123 = vst.msk [vmem:[#allocation5 + $0x120] sm:$0xff] %vm5086, %v4967
    %5124 = vst.msk [vmem:[#allocation5 + $0x128] sm:$0xff] %vm5086, %v4969
    %5125 = vst.msk [vmem:[#allocation5 + $0x130] sm:$0xff] %vm5086, %v4971
    %5126 = vst.msk [vmem:[#allocation5 + $0x138] sm:$0xff] %vm5086, %v4973
    %5127 = vst.msk [vmem:[#allocation5 + $0x140] sm:$0xff] %vm5086, %v4975
    %5128 = vst.msk [vmem:[#allocation5 + $0x148] sm:$0xff] %vm5086, %v4977
    %5129 = vst.msk [vmem:[#allocation5 + $0x150] sm:$0xff] %vm5086, %v4979
    %5130 = vst.msk [vmem:[#allocation5 + $0x158] sm:$0xff] %vm5086, %v4981
    %5131 = vst.msk [vmem:[#allocation5 + $0x160] sm:$0xff] %vm5086, %v4983
    %5132 = vst.msk [vmem:[#allocation5 + $0x168] sm:$0xff] %vm5086, %v4985
    %5133 = vst.msk [vmem:[#allocation5 + $0x170] sm:$0xff] %vm5086, %v4987
    %5134 = vst.msk [vmem:[#allocation5 + $0x178] sm:$0xff] %vm5086, %v4989
    %5135 = vst.msk [vmem:[#allocation5 + $0x180] sm:$0xff] %vm5086, %v4991
    %5136 = vst.msk [vmem:[#allocation5 + $0x188] sm:$0xff] %vm5086, %v4993
    %5137 = vst.msk [vmem:[#allocation5 + $0x190] sm:$0xff] %vm5086, %v4995
    %5138 = vst.msk [vmem:[#allocation5 + $0x198] sm:$0xff] %vm5086, %v4997
    %5139 = vst.msk [vmem:[#allocation5 + $0x1a0] sm:$0xff] %vm5086, %v4999
    %5140 = vst.msk [vmem:[#allocation5 + $0x1a8] sm:$0xff] %vm5086, %v5001
    %5141 = vst.msk [vmem:[#allocation5 + $0x1b0] sm:$0xff] %vm5086, %v5003
    %5142 = vst.msk [vmem:[#allocation5 + $0x1b8] sm:$0xff] %vm5086, %v5005
    %5143 = vst.msk [vmem:[#allocation5 + $0x1c0] sm:$0xff] %vm5086, %v5007
    %5144 = vst.msk [vmem:[#allocation5 + $0x1c8] sm:$0xff] %vm5086, %v5009
    %5145 = vst.msk [vmem:[#allocation5 + $0x1d0] sm:$0xff] %vm5086, %v5011
    %5146 = vst.msk [vmem:[#allocation5 + $0x1d8] sm:$0xff] %vm5086, %v5013
    %5147 = vst.msk [vmem:[#allocation5 + $0x1e0] sm:$0xff] %vm5086, %v5015
    %5148 = vst.msk [vmem:[#allocation5 + $0x1e8] sm:$0xff] %vm5086, %v5017
    %5149 = vst.msk [vmem:[#allocation5 + $0x1f0] sm:$0xff] %vm5086, %v5019
    %5150 = vst.msk [vmem:[#allocation5 + $0x1f8] sm:$0xff] %vm5086, %v5021
    %v5151 = vld [vmem:[#allocation4 + $0x2] sm:$0xff]
    %v5152 = vld [vmem:[#allocation4 + $0xa] sm:$0xff]
    %v5153 = vld [vmem:[#allocation4 + $0x1a] sm:$0xff]
    %v5154 = vld [vmem:[#allocation4 + $0x22] sm:$0xff]
    %v5155 = vld [vmem:[#allocation4 + $0x32] sm:$0xff]
    %v5156 = vld [vmem:[#allocation4 + $0x3a] sm:$0xff]
    %v5157 = vld [vmem:[#allocation4 + $0x4a] sm:$0xff]
    %v5158 = vld [vmem:[#allocation4 + $0x52] sm:$0xff]
    %v5159 = vld [vmem:[#allocation4 + $0x62] sm:$0xff]
    %v5160 = vld [vmem:[#allocation4 + $0x6a] sm:$0xff]
    %v5161 = vld [vmem:[#allocation4 + $0x7a] sm:$0xff]
    %v5162 = vld [vmem:[#allocation4 + $0x82] sm:$0xff]
    %v5163 = vld [vmem:[#allocation4 + $0x92] sm:$0xff]
    %v5164 = vld [vmem:[#allocation4 + $0x9a] sm:$0xff]
    %v5165 = vld [vmem:[#allocation4 + $0xaa] sm:$0xff]
    %v5166 = vld [vmem:[#allocation4 + $0xb2] sm:$0xff]
    %v5167 = vld [vmem:[#allocation4 + $0xc2] sm:$0xff]
    %v5168 = vld [vmem:[#allocation4 + $0xca] sm:$0xff]
    %v5169 = vld [vmem:[#allocation4 + $0xda] sm:$0xff]
    %v5170 = vld [vmem:[#allocation4 + $0xe2] sm:$0xff]
    %v5171 = vld [vmem:[#allocation4 + $0xf2] sm:$0xff]
    %v5172 = vld [vmem:[#allocation4 + $0xfa] sm:$0xff]
    %v5173 = vld [vmem:[#allocation4 + $0x10a] sm:$0xff]
    %v5174 = vld [vmem:[#allocation4 + $0x112] sm:$0xff]
    %v5175 = vld [vmem:[#allocation4 + $0x122] sm:$0xff]
    %v5176 = vld [vmem:[#allocation4 + $0x12a] sm:$0xff]
    %v5177 = vld [vmem:[#allocation4 + $0x13a] sm:$0xff]
    %v5178 = vld [vmem:[#allocation4 + $0x142] sm:$0xff]
    %v5179 = vld [vmem:[#allocation4 + $0x152] sm:$0xff]
    %v5180 = vld [vmem:[#allocation4 + $0x15a] sm:$0xff]
    %v5181 = vld [vmem:[#allocation4 + $0x16a] sm:$0xff]
    %v5182 = vld [vmem:[#allocation4 + $0x172] sm:$0xff]
    %v5183 = vld [vmem:[#allocation4 + $0x1b2] sm:$0xff]
    %v5184 = vld [vmem:[#allocation4 + $0x1ba] sm:$0xff]
    %v5185 = vld [vmem:[#allocation4 + $0x1ca] sm:$0xff]
    %v5186 = vld [vmem:[#allocation4 + $0x1d2] sm:$0xff]
    %v5187 = vld [vmem:[#allocation4 + $0x1e2] sm:$0xff]
    %v5188 = vld [vmem:[#allocation4 + $0x1ea] sm:$0xff]
    %v5189 = vld [vmem:[#allocation4 + $0x1fa] sm:$0xff]
    %v5190 = vld [vmem:[#allocation4 + $0x202] sm:$0xff]
    %v5191 = vld [vmem:[#allocation4 + $0x212] sm:$0xff]
    %v5192 = vld [vmem:[#allocation4 + $0x21a] sm:$0xff]
    %v5193 = vld [vmem:[#allocation4 + $0x22a] sm:$0xff]
    %v5194 = vld [vmem:[#allocation4 + $0x232] sm:$0xff]
    %v5195 = vld [vmem:[#allocation4 + $0x242] sm:$0xff]
    %v5196 = vld [vmem:[#allocation4 + $0x24a] sm:$0xff]
    %v5197 = vld [vmem:[#allocation4 + $0x25a] sm:$0xff]
    %v5198 = vld [vmem:[#allocation4 + $0x262] sm:$0xff]
    %v5199 = vld [vmem:[#allocation4 + $0x272] sm:$0xff]
    %v5200 = vld [vmem:[#allocation4 + $0x27a] sm:$0xff]
    %v5201 = vld [vmem:[#allocation4 + $0x28a] sm:$0xff]
    %v5202 = vld [vmem:[#allocation4 + $0x292] sm:$0xff]
    %v5203 = vld [vmem:[#allocation4 + $0x2a2] sm:$0xff]
    %v5204 = vld [vmem:[#allocation4 + $0x2aa] sm:$0xff]
    %v5205 = vld [vmem:[#allocation4 + $0x2ba] sm:$0xff]
    %v5206 = vld [vmem:[#allocation4 + $0x2c2] sm:$0xff]
    %v5207 = vld [vmem:[#allocation4 + $0x2d2] sm:$0xff]
    %v5208 = vld [vmem:[#allocation4 + $0x2da] sm:$0xff]
    %v5209 = vld [vmem:[#allocation4 + $0x2ea] sm:$0xff]
    %v5210 = vld [vmem:[#allocation4 + $0x2f2] sm:$0xff]
    %v5211 = vld [vmem:[#allocation4 + $0x302] sm:$0xff]
    %v5212 = vld [vmem:[#allocation4 + $0x30a] sm:$0xff]
    %v5213 = vld [vmem:[#allocation4 + $0x31a] sm:$0xff]
    %v5214 = vld [vmem:[#allocation4 + $0x322] sm:$0xff]
    %5279 = vrot.lane.b32.xlu0 %v5151, 16
    %v5280 = vpop.permute.xlu0 %5279
    %5281 = vrot.lane.b32.xlu0 %v5152, 16
    %v5282 = vpop.permute.xlu0 %5281
    %5283 = vrot.lane.b32.xlu0 %v5153, 16
    %v5284 = vpop.permute.xlu0 %5283
    %5285 = vrot.lane.b32.xlu0 %v5154, 16
    %v5286 = vpop.permute.xlu0 %5285
    %5287 = vrot.lane.b32.xlu0 %v5155, 16
    %v5288 = vpop.permute.xlu0 %5287
    %5289 = vrot.lane.b32.xlu0 %v5156, 16
    %v5290 = vpop.permute.xlu0 %5289
    %5291 = vrot.lane.b32.xlu0 %v5157, 16
    %v5292 = vpop.permute.xlu0 %5291
    %5293 = vrot.lane.b32.xlu0 %v5158, 16
    %v5294 = vpop.permute.xlu0 %5293
    %5295 = vrot.lane.b32.xlu0 %v5159, 16
    %v5296 = vpop.permute.xlu0 %5295
    %5297 = vrot.lane.b32.xlu0 %v5160, 16
    %v5298 = vpop.permute.xlu0 %5297
    %5299 = vrot.lane.b32.xlu0 %v5161, 16
    %v5300 = vpop.permute.xlu0 %5299
    %5301 = vrot.lane.b32.xlu0 %v5162, 16
    %v5302 = vpop.permute.xlu0 %5301
    %5303 = vrot.lane.b32.xlu0 %v5163, 16
    %v5304 = vpop.permute.xlu0 %5303
    %5305 = vrot.lane.b32.xlu0 %v5164, 16
    %v5306 = vpop.permute.xlu0 %5305
    %5307 = vrot.lane.b32.xlu0 %v5165, 16
    %v5308 = vpop.permute.xlu0 %5307
    %5309 = vrot.lane.b32.xlu0 %v5166, 16
    %v5310 = vpop.permute.xlu0 %5309
    %5311 = vrot.lane.b32.xlu0 %v5167, 16
    %v5312 = vpop.permute.xlu0 %5311
    %5313 = vrot.lane.b32.xlu0 %v5168, 16
    %v5314 = vpop.permute.xlu0 %5313
    %5315 = vrot.lane.b32.xlu0 %v5169, 16
    %v5316 = vpop.permute.xlu0 %5315
    %5317 = vrot.lane.b32.xlu0 %v5170, 16
    %v5318 = vpop.permute.xlu0 %5317
    %5319 = vrot.lane.b32.xlu0 %v5171, 16
    %v5320 = vpop.permute.xlu0 %5319
    %5321 = vrot.lane.b32.xlu0 %v5172, 16
    %v5322 = vpop.permute.xlu0 %5321
    %5323 = vrot.lane.b32.xlu0 %v5173, 16
    %v5324 = vpop.permute.xlu0 %5323
    %5325 = vrot.lane.b32.xlu0 %v5174, 16
    %v5326 = vpop.permute.xlu0 %5325
    %5327 = vrot.lane.b32.xlu0 %v5175, 16
    %v5328 = vpop.permute.xlu0 %5327
    %5329 = vrot.lane.b32.xlu0 %v5176, 16
    %v5330 = vpop.permute.xlu0 %5329
    %5331 = vrot.lane.b32.xlu0 %v5177, 16
    %v5332 = vpop.permute.xlu0 %5331
    %5333 = vrot.lane.b32.xlu0 %v5178, 16
    %v5334 = vpop.permute.xlu0 %5333
    %5335 = vrot.lane.b32.xlu0 %v5179, 16
    %v5336 = vpop.permute.xlu0 %5335
    %5337 = vrot.lane.b32.xlu0 %v5180, 16
    %v5338 = vpop.permute.xlu0 %5337
    %5339 = vrot.lane.b32.xlu0 %v5181, 16
    %v5340 = vpop.permute.xlu0 %5339
    %5341 = vrot.lane.b32.xlu0 %v5182, 16
    %v5342 = vpop.permute.xlu0 %5341
    %5343 = vrot.lane.b32.xlu0 %v5183, 16
    %v5344 = vpop.permute.xlu0 %5343
    %5345 = vrot.lane.b32.xlu0 %v5184, 16
    %v5346 = vpop.permute.xlu0 %5345
    %5347 = vrot.lane.b32.xlu0 %v5185, 16
    %v5348 = vpop.permute.xlu0 %5347
    %5349 = vrot.lane.b32.xlu0 %v5186, 16
    %v5350 = vpop.permute.xlu0 %5349
    %5351 = vrot.lane.b32.xlu0 %v5187, 16
    %v5352 = vpop.permute.xlu0 %5351
    %5353 = vrot.lane.b32.xlu0 %v5188, 16
    %v5354 = vpop.permute.xlu0 %5353
    %5355 = vrot.lane.b32.xlu0 %v5189, 16
    %v5356 = vpop.permute.xlu0 %5355
    %5357 = vrot.lane.b32.xlu0 %v5190, 16
    %v5358 = vpop.permute.xlu0 %5357
    %5359 = vrot.lane.b32.xlu0 %v5191, 16
    %v5360 = vpop.permute.xlu0 %5359
    %5361 = vrot.lane.b32.xlu0 %v5192, 16
    %v5362 = vpop.permute.xlu0 %5361
    %5363 = vrot.lane.b32.xlu0 %v5193, 16
    %v5364 = vpop.permute.xlu0 %5363
    %5365 = vrot.lane.b32.xlu0 %v5194, 16
    %v5366 = vpop.permute.xlu0 %5365
    %5367 = vrot.lane.b32.xlu0 %v5195, 16
    %v5368 = vpop.permute.xlu0 %5367
    %5369 = vrot.lane.b32.xlu0 %v5196, 16
    %v5370 = vpop.permute.xlu0 %5369
    %5371 = vrot.lane.b32.xlu0 %v5197, 16
    %v5372 = vpop.permute.xlu0 %5371
    %5373 = vrot.lane.b32.xlu0 %v5198, 16
    %v5374 = vpop.permute.xlu0 %5373
    %5375 = vrot.lane.b32.xlu0 %v5199, 16
    %v5376 = vpop.permute.xlu0 %5375
    %5377 = vrot.lane.b32.xlu0 %v5200, 16
    %v5378 = vpop.permute.xlu0 %5377
    %5379 = vrot.lane.b32.xlu0 %v5201, 16
    %v5380 = vpop.permute.xlu0 %5379
    %5381 = vrot.lane.b32.xlu0 %v5202, 16
    %v5382 = vpop.permute.xlu0 %5381
    %5383 = vrot.lane.b32.xlu0 %v5203, 16
    %v5384 = vpop.permute.xlu0 %5383
    %5385 = vrot.lane.b32.xlu0 %v5204, 16
    %v5386 = vpop.permute.xlu0 %5385
    %5387 = vrot.lane.b32.xlu0 %v5205, 16
    %v5388 = vpop.permute.xlu0 %5387
    %5389 = vrot.lane.b32.xlu0 %v5206, 16
    %v5390 = vpop.permute.xlu0 %5389
    %5391 = vrot.lane.b32.xlu0 %v5207, 16
    %v5392 = vpop.permute.xlu0 %5391
    %5393 = vrot.lane.b32.xlu0 %v5208, 16
    %v5394 = vpop.permute.xlu0 %5393
    %5395 = vrot.lane.b32.xlu0 %v5209, 16
    %v5396 = vpop.permute.xlu0 %5395
    %5397 = vrot.lane.b32.xlu0 %v5210, 16
    %v5398 = vpop.permute.xlu0 %5397
    %5399 = vrot.lane.b32.xlu0 %v5211, 16
    %v5400 = vpop.permute.xlu0 %5399
    %5401 = vrot.lane.b32.xlu0 %v5212, 16
    %v5402 = vpop.permute.xlu0 %5401
    %5403 = vrot.lane.b32.xlu0 %v5213, 16
    %v5404 = vpop.permute.xlu0 %5403
    %5405 = vrot.lane.b32.xlu0 %v5214, 16
    %v5406 = vpop.permute.xlu0 %5405
    %vm5471 = vcmask 195712
    %5472 = vst.msk [vmem:[#allocation5] sm:$0xff] %vm5471, %v5280
    %5473 = vst.msk [vmem:[#allocation5 + $0x8] sm:$0xff] %vm5471, %v5282
    %5474 = vst.msk [vmem:[#allocation5 + $0x10] sm:$0xff] %vm5471, %v5284
    %5475 = vst.msk [vmem:[#allocation5 + $0x18] sm:$0xff] %vm5471, %v5286
    %5476 = vst.msk [vmem:[#allocation5 + $0x20] sm:$0xff] %vm5471, %v5288
    %5477 = vst.msk [vmem:[#allocation5 + $0x28] sm:$0xff] %vm5471, %v5290
    %5478 = vst.msk [vmem:[#allocation5 + $0x30] sm:$0xff] %vm5471, %v5292
    %5479 = vst.msk [vmem:[#allocation5 + $0x38] sm:$0xff] %vm5471, %v5294
    %5480 = vst.msk [vmem:[#allocation5 + $0x40] sm:$0xff] %vm5471, %v5296
    %5481 = vst.msk [vmem:[#allocation5 + $0x48] sm:$0xff] %vm5471, %v5298
    %5482 = vst.msk [vmem:[#allocation5 + $0x50] sm:$0xff] %vm5471, %v5300
    %5483 = vst.msk [vmem:[#allocation5 + $0x58] sm:$0xff] %vm5471, %v5302
    %5484 = vst.msk [vmem:[#allocation5 + $0x60] sm:$0xff] %vm5471, %v5304
    %5485 = vst.msk [vmem:[#allocation5 + $0x68] sm:$0xff] %vm5471, %v5306
    %5486 = vst.msk [vmem:[#allocation5 + $0x70] sm:$0xff] %vm5471, %v5308
    %5487 = vst.msk [vmem:[#allocation5 + $0x78] sm:$0xff] %vm5471, %v5310
    %5488 = vst.msk [vmem:[#allocation5 + $0x80] sm:$0xff] %vm5471, %v5312
    %5489 = vst.msk [vmem:[#allocation5 + $0x88] sm:$0xff] %vm5471, %v5314
    %5490 = vst.msk [vmem:[#allocation5 + $0x90] sm:$0xff] %vm5471, %v5316
    %5491 = vst.msk [vmem:[#allocation5 + $0x98] sm:$0xff] %vm5471, %v5318
    %5492 = vst.msk [vmem:[#allocation5 + $0xa0] sm:$0xff] %vm5471, %v5320
    %5493 = vst.msk [vmem:[#allocation5 + $0xa8] sm:$0xff] %vm5471, %v5322
    %5494 = vst.msk [vmem:[#allocation5 + $0xb0] sm:$0xff] %vm5471, %v5324
    %5495 = vst.msk [vmem:[#allocation5 + $0xb8] sm:$0xff] %vm5471, %v5326
    %5496 = vst.msk [vmem:[#allocation5 + $0xc0] sm:$0xff] %vm5471, %v5328
    %5497 = vst.msk [vmem:[#allocation5 + $0xc8] sm:$0xff] %vm5471, %v5330
    %5498 = vst.msk [vmem:[#allocation5 + $0xd0] sm:$0xff] %vm5471, %v5332
    %5499 = vst.msk [vmem:[#allocation5 + $0xd8] sm:$0xff] %vm5471, %v5334
    %5500 = vst.msk [vmem:[#allocation5 + $0xe0] sm:$0xff] %vm5471, %v5336
    %5501 = vst.msk [vmem:[#allocation5 + $0xe8] sm:$0xff] %vm5471, %v5338
    %5502 = vst.msk [vmem:[#allocation5 + $0xf0] sm:$0xff] %vm5471, %v5340
    %5503 = vst.msk [vmem:[#allocation5 + $0xf8] sm:$0xff] %vm5471, %v5342
    %5504 = vst.msk [vmem:[#allocation5 + $0x100] sm:$0xff] %vm5471, %v5344
    %5505 = vst.msk [vmem:[#allocation5 + $0x108] sm:$0xff] %vm5471, %v5346
    %5506 = vst.msk [vmem:[#allocation5 + $0x110] sm:$0xff] %vm5471, %v5348
    %5507 = vst.msk [vmem:[#allocation5 + $0x118] sm:$0xff] %vm5471, %v5350
    %5508 = vst.msk [vmem:[#allocation5 + $0x120] sm:$0xff] %vm5471, %v5352
    %5509 = vst.msk [vmem:[#allocation5 + $0x128] sm:$0xff] %vm5471, %v5354
    %5510 = vst.msk [vmem:[#allocation5 + $0x130] sm:$0xff] %vm5471, %v5356
    %5511 = vst.msk [vmem:[#allocation5 + $0x138] sm:$0xff] %vm5471, %v5358
    %5512 = vst.msk [vmem:[#allocation5 + $0x140] sm:$0xff] %vm5471, %v5360
    %5513 = vst.msk [vmem:[#allocation5 + $0x148] sm:$0xff] %vm5471, %v5362
    %5514 = vst.msk [vmem:[#allocation5 + $0x150] sm:$0xff] %vm5471, %v5364
    %5515 = vst.msk [vmem:[#allocation5 + $0x158] sm:$0xff] %vm5471, %v5366
    %5516 = vst.msk [vmem:[#allocation5 + $0x160] sm:$0xff] %vm5471, %v5368
    %5517 = vst.msk [vmem:[#allocation5 + $0x168] sm:$0xff] %vm5471, %v5370
    %5518 = vst.msk [vmem:[#allocation5 + $0x170] sm:$0xff] %vm5471, %v5372
    %5519 = vst.msk [vmem:[#allocation5 + $0x178] sm:$0xff] %vm5471, %v5374
    %5520 = vst.msk [vmem:[#allocation5 + $0x180] sm:$0xff] %vm5471, %v5376
    %5521 = vst.msk [vmem:[#allocation5 + $0x188] sm:$0xff] %vm5471, %v5378
    %5522 = vst.msk [vmem:[#allocation5 + $0x190] sm:$0xff] %vm5471, %v5380
    %5523 = vst.msk [vmem:[#allocation5 + $0x198] sm:$0xff] %vm5471, %v5382
    %5524 = vst.msk [vmem:[#allocation5 + $0x1a0] sm:$0xff] %vm5471, %v5384
    %5525 = vst.msk [vmem:[#allocation5 + $0x1a8] sm:$0xff] %vm5471, %v5386
    %5526 = vst.msk [vmem:[#allocation5 + $0x1b0] sm:$0xff] %vm5471, %v5388
    %5527 = vst.msk [vmem:[#allocation5 + $0x1b8] sm:$0xff] %vm5471, %v5390
    %5528 = vst.msk [vmem:[#allocation5 + $0x1c0] sm:$0xff] %vm5471, %v5392
    %5529 = vst.msk [vmem:[#allocation5 + $0x1c8] sm:$0xff] %vm5471, %v5394
    %5530 = vst.msk [vmem:[#allocation5 + $0x1d0] sm:$0xff] %vm5471, %v5396
    %5531 = vst.msk [vmem:[#allocation5 + $0x1d8] sm:$0xff] %vm5471, %v5398
    %5532 = vst.msk [vmem:[#allocation5 + $0x1e0] sm:$0xff] %vm5471, %v5400
    %5533 = vst.msk [vmem:[#allocation5 + $0x1e8] sm:$0xff] %vm5471, %v5402
    %5534 = vst.msk [vmem:[#allocation5 + $0x1f0] sm:$0xff] %vm5471, %v5404
    %5535 = vst.msk [vmem:[#allocation5 + $0x1f8] sm:$0xff] %vm5471, %v5406
    %v5536 = vld [vmem:[%s4573] sm:$0xff]
    %v5537 = vld [vmem:[%s4573 + $0x8] sm:$0xff]
    %v5538 = vld [vmem:[%s4573 + $0x18] sm:$0xff]
    %v5539 = vld [vmem:[%s4573 + $0x20] sm:$0xff]
    %v5540 = vld [vmem:[%s4573 + $0x30] sm:$0xff]
    %v5541 = vld [vmem:[%s4573 + $0x38] sm:$0xff]
    %v5542 = vld [vmem:[%s4573 + $0x48] sm:$0xff]
    %v5543 = vld [vmem:[%s4573 + $0x50] sm:$0xff]
    %v5544 = vld [vmem:[%s4573 + $0x60] sm:$0xff]
    %v5545 = vld [vmem:[%s4573 + $0x68] sm:$0xff]
    %v5546 = vld [vmem:[%s4573 + $0x78] sm:$0xff]
    %v5547 = vld [vmem:[%s4573 + $0x80] sm:$0xff]
    %v5548 = vld [vmem:[%s4573 + $0x90] sm:$0xff]
    %v5549 = vld [vmem:[%s4573 + $0x98] sm:$0xff]
    %v5550 = vld [vmem:[%s4573 + $0xa8] sm:$0xff]
    %v5551 = vld [vmem:[%s4573 + $0xb0] sm:$0xff]
    %v5552 = vld [vmem:[%s4573 + $0xc0] sm:$0xff]
    %v5553 = vld [vmem:[%s4573 + $0xc8] sm:$0xff]
    %v5554 = vld [vmem:[%s4573 + $0xd8] sm:$0xff]
    %v5555 = vld [vmem:[%s4573 + $0xe0] sm:$0xff]
    %v5556 = vld [vmem:[%s4573 + $0xf0] sm:$0xff]
    %v5557 = vld [vmem:[%s4573 + $0xf8] sm:$0xff]
    %v5558 = vld [vmem:[%s4573 + $0x108] sm:$0xff]
    %v5559 = vld [vmem:[%s4573 + $0x110] sm:$0xff]
    %v5560 = vld [vmem:[%s4573 + $0x120] sm:$0xff]
    %v5561 = vld [vmem:[%s4573 + $0x128] sm:$0xff]
    %v5562 = vld [vmem:[%s4573 + $0x138] sm:$0xff]
    %v5563 = vld [vmem:[%s4573 + $0x140] sm:$0xff]
    %v5564 = vld [vmem:[%s4573 + $0x150] sm:$0xff]
    %v5565 = vld [vmem:[%s4573 + $0x158] sm:$0xff]
    %v5566 = vld [vmem:[%s4573 + $0x168] sm:$0xff]
    %v5567 = vld [vmem:[%s4573 + $0x170] sm:$0xff]
    %v5568 = vld [vmem:[%s4573 + $0x1b0] sm:$0xff]
    %v5569 = vld [vmem:[%s4573 + $0x1b8] sm:$0xff]
    %v5570 = vld [vmem:[%s4573 + $0x1c8] sm:$0xff]
    %v5571 = vld [vmem:[%s4573 + $0x1d0] sm:$0xff]
    %v5572 = vld [vmem:[%s4573 + $0x1e0] sm:$0xff]
    %v5573 = vld [vmem:[%s4573 + $0x1e8] sm:$0xff]
    %v5574 = vld [vmem:[%s4573 + $0x1f8] sm:$0xff]
    %v5575 = vld [vmem:[%s4573 + $0x200] sm:$0xff]
    %v5576 = vld [vmem:[%s4573 + $0x210] sm:$0xff]
    %v5577 = vld [vmem:[%s4573 + $0x218] sm:$0xff]
    %v5578 = vld [vmem:[%s4573 + $0x228] sm:$0xff]
    %v5579 = vld [vmem:[%s4573 + $0x230] sm:$0xff]
    %v5580 = vld [vmem:[%s4573 + $0x240] sm:$0xff]
    %v5581 = vld [vmem:[%s4573 + $0x248] sm:$0xff]
    %v5582 = vld [vmem:[%s4573 + $0x258] sm:$0xff]
    %v5583 = vld [vmem:[%s4573 + $0x260] sm:$0xff]
    %v5584 = vld [vmem:[%s4573 + $0x270] sm:$0xff]
    %v5585 = vld [vmem:[%s4573 + $0x278] sm:$0xff]
    %v5586 = vld [vmem:[%s4573 + $0x288] sm:$0xff]
    %v5587 = vld [vmem:[%s4573 + $0x290] sm:$0xff]
    %v5588 = vld [vmem:[%s4573 + $0x2a0] sm:$0xff]
    %v5589 = vld [vmem:[%s4573 + $0x2a8] sm:$0xff]
    %v5590 = vld [vmem:[%s4573 + $0x2b8] sm:$0xff]
    %v5591 = vld [vmem:[%s4573 + $0x2c0] sm:$0xff]
    %v5592 = vld [vmem:[%s4573 + $0x2d0] sm:$0xff]
    %v5593 = vld [vmem:[%s4573 + $0x2d8] sm:$0xff]
    %v5594 = vld [vmem:[%s4573 + $0x2e8] sm:$0xff]
    %v5595 = vld [vmem:[%s4573 + $0x2f0] sm:$0xff]
    %v5596 = vld [vmem:[%s4573 + $0x300] sm:$0xff]
    %v5597 = vld [vmem:[%s4573 + $0x308] sm:$0xff]
    %v5598 = vld [vmem:[%s4573 + $0x318] sm:$0xff]
    %v5599 = vld [vmem:[%s4573 + $0x320] sm:$0xff]
    %5664 = vrot.lane.b32.xlu0 %v5536, 24
    %v5665 = vpop.permute.xlu0 %5664
    %5666 = vrot.lane.b32.xlu0 %v5537, 24
    %v5667 = vpop.permute.xlu0 %5666
    %5668 = vrot.lane.b32.xlu0 %v5538, 24
    %v5669 = vpop.permute.xlu0 %5668
    %5670 = vrot.lane.b32.xlu0 %v5539, 24
    %v5671 = vpop.permute.xlu0 %5670
    %5672 = vrot.lane.b32.xlu0 %v5540, 24
    %v5673 = vpop.permute.xlu0 %5672
    %5674 = vrot.lane.b32.xlu0 %v5541, 24
    %v5675 = vpop.permute.xlu0 %5674
    %5676 = vrot.lane.b32.xlu0 %v5542, 24
    %v5677 = vpop.permute.xlu0 %5676
    %5678 = vrot.lane.b32.xlu0 %v5543, 24
    %v5679 = vpop.permute.xlu0 %5678
    %5680 = vrot.lane.b32.xlu0 %v5544, 24
    %v5681 = vpop.permute.xlu0 %5680
    %5682 = vrot.lane.b32.xlu0 %v5545, 24
    %v5683 = vpop.permute.xlu0 %5682
    %5684 = vrot.lane.b32.xlu0 %v5546, 24
    %v5685 = vpop.permute.xlu0 %5684
    %5686 = vrot.lane.b32.xlu0 %v5547, 24
    %v5687 = vpop.permute.xlu0 %5686
    %5688 = vrot.lane.b32.xlu0 %v5548, 24
    %v5689 = vpop.permute.xlu0 %5688
    %5690 = vrot.lane.b32.xlu0 %v5549, 24
    %v5691 = vpop.permute.xlu0 %5690
    %5692 = vrot.lane.b32.xlu0 %v5550, 24
    %v5693 = vpop.permute.xlu0 %5692
    %5694 = vrot.lane.b32.xlu0 %v5551, 24
    %v5695 = vpop.permute.xlu0 %5694
    %5696 = vrot.lane.b32.xlu0 %v5552, 24
    %v5697 = vpop.permute.xlu0 %5696
    %5698 = vrot.lane.b32.xlu0 %v5553, 24
    %v5699 = vpop.permute.xlu0 %5698
    %5700 = vrot.lane.b32.xlu0 %v5554, 24
    %v5701 = vpop.permute.xlu0 %5700
    %5702 = vrot.lane.b32.xlu0 %v5555, 24
    %v5703 = vpop.permute.xlu0 %5702
    %5704 = vrot.lane.b32.xlu0 %v5556, 24
    %v5705 = vpop.permute.xlu0 %5704
    %5706 = vrot.lane.b32.xlu0 %v5557, 24
    %v5707 = vpop.permute.xlu0 %5706
    %5708 = vrot.lane.b32.xlu0 %v5558, 24
    %v5709 = vpop.permute.xlu0 %5708
    %5710 = vrot.lane.b32.xlu0 %v5559, 24
    %v5711 = vpop.permute.xlu0 %5710
    %5712 = vrot.lane.b32.xlu0 %v5560, 24
    %v5713 = vpop.permute.xlu0 %5712
    %5714 = vrot.lane.b32.xlu0 %v5561, 24
    %v5715 = vpop.permute.xlu0 %5714
    %5716 = vrot.lane.b32.xlu0 %v5562, 24
    %v5717 = vpop.permute.xlu0 %5716
    %5718 = vrot.lane.b32.xlu0 %v5563, 24
    %v5719 = vpop.permute.xlu0 %5718
    %5720 = vrot.lane.b32.xlu0 %v5564, 24
    %v5721 = vpop.permute.xlu0 %5720
    %5722 = vrot.lane.b32.xlu0 %v5565, 24
    %v5723 = vpop.permute.xlu0 %5722
    %5724 = vrot.lane.b32.xlu0 %v5566, 24
    %v5725 = vpop.permute.xlu0 %5724
    %5726 = vrot.lane.b32.xlu0 %v5567, 24
    %v5727 = vpop.permute.xlu0 %5726
    %5728 = vrot.lane.b32.xlu0 %v5568, 24
    %v5729 = vpop.permute.xlu0 %5728
    %5730 = vrot.lane.b32.xlu0 %v5569, 24
    %v5731 = vpop.permute.xlu0 %5730
    %5732 = vrot.lane.b32.xlu0 %v5570, 24
    %v5733 = vpop.permute.xlu0 %5732
    %5734 = vrot.lane.b32.xlu0 %v5571, 24
    %v5735 = vpop.permute.xlu0 %5734
    %5736 = vrot.lane.b32.xlu0 %v5572, 24
    %v5737 = vpop.permute.xlu0 %5736
    %5738 = vrot.lane.b32.xlu0 %v5573, 24
    %v5739 = vpop.permute.xlu0 %5738
    %5740 = vrot.lane.b32.xlu0 %v5574, 24
    %v5741 = vpop.permute.xlu0 %5740
    %5742 = vrot.lane.b32.xlu0 %v5575, 24
    %v5743 = vpop.permute.xlu0 %5742
    %5744 = vrot.lane.b32.xlu0 %v5576, 24
    %v5745 = vpop.permute.xlu0 %5744
    %5746 = vrot.lane.b32.xlu0 %v5577, 24
    %v5747 = vpop.permute.xlu0 %5746
    %5748 = vrot.lane.b32.xlu0 %v5578, 24
    %v5749 = vpop.permute.xlu0 %5748
    %5750 = vrot.lane.b32.xlu0 %v5579, 24
    %v5751 = vpop.permute.xlu0 %5750
    %5752 = vrot.lane.b32.xlu0 %v5580, 24
    %v5753 = vpop.permute.xlu0 %5752
    %5754 = vrot.lane.b32.xlu0 %v5581, 24
    %v5755 = vpop.permute.xlu0 %5754
    %5756 = vrot.lane.b32.xlu0 %v5582, 24
    %v5757 = vpop.permute.xlu0 %5756
    %5758 = vrot.lane.b32.xlu0 %v5583, 24
    %v5759 = vpop.permute.xlu0 %5758
    %5760 = vrot.lane.b32.xlu0 %v5584, 24
    %v5761 = vpop.permute.xlu0 %5760
    %5762 = vrot.lane.b32.xlu0 %v5585, 24
    %v5763 = vpop.permute.xlu0 %5762
    %5764 = vrot.lane.b32.xlu0 %v5586, 24
    %v5765 = vpop.permute.xlu0 %5764
    %5766 = vrot.lane.b32.xlu0 %v5587, 24
    %v5767 = vpop.permute.xlu0 %5766
    %5768 = vrot.lane.b32.xlu0 %v5588, 24
    %v5769 = vpop.permute.xlu0 %5768
    %5770 = vrot.lane.b32.xlu0 %v5589, 24
    %v5771 = vpop.permute.xlu0 %5770
    %5772 = vrot.lane.b32.xlu0 %v5590, 24
    %v5773 = vpop.permute.xlu0 %5772
    %5774 = vrot.lane.b32.xlu0 %v5591, 24
    %v5775 = vpop.permute.xlu0 %5774
    %5776 = vrot.lane.b32.xlu0 %v5592, 24
    %v5777 = vpop.permute.xlu0 %5776
    %5778 = vrot.lane.b32.xlu0 %v5593, 24
    %v5779 = vpop.permute.xlu0 %5778
    %5780 = vrot.lane.b32.xlu0 %v5594, 24
    %v5781 = vpop.permute.xlu0 %5780
    %5782 = vrot.lane.b32.xlu0 %v5595, 24
    %v5783 = vpop.permute.xlu0 %5782
    %5784 = vrot.lane.b32.xlu0 %v5596, 24
    %v5785 = vpop.permute.xlu0 %5784
    %5786 = vrot.lane.b32.xlu0 %v5597, 24
    %v5787 = vpop.permute.xlu0 %5786
    %5788 = vrot.lane.b32.xlu0 %v5598, 24
    %v5789 = vpop.permute.xlu0 %5788
    %5790 = vrot.lane.b32.xlu0 %v5599, 24
    %v5791 = vpop.permute.xlu0 %5790
    %vm5856 = vcmask 261312
    %5857 = vst.msk [vmem:[#allocation5] sm:$0xff] %vm5856, %v5665
    %5858 = vst.msk [vmem:[#allocation5 + $0x8] sm:$0xff] %vm5856, %v5667
    %5859 = vst.msk [vmem:[#allocation5 + $0x10] sm:$0xff] %vm5856, %v5669
    %5860 = vst.msk [vmem:[#allocation5 + $0x18] sm:$0xff] %vm5856, %v5671
    %5861 = vst.msk [vmem:[#allocation5 + $0x20] sm:$0xff] %vm5856, %v5673
    %5862 = vst.msk [vmem:[#allocation5 + $0x28] sm:$0xff] %vm5856, %v5675
    %5863 = vst.msk [vmem:[#allocation5 + $0x30] sm:$0xff] %vm5856, %v5677
    %5864 = vst.msk [vmem:[#allocation5 + $0x38] sm:$0xff] %vm5856, %v5679
    %5865 = vst.msk [vmem:[#allocation5 + $0x40] sm:$0xff] %vm5856, %v5681
    %5866 = vst.msk [vmem:[#allocation5 + $0x48] sm:$0xff] %vm5856, %v5683
    %5867 = vst.msk [vmem:[#allocation5 + $0x50] sm:$0xff] %vm5856, %v5685
    %5868 = vst.msk [vmem:[#allocation5 + $0x58] sm:$0xff] %vm5856, %v5687
    %5869 = vst.msk [vmem:[#allocation5 + $0x60] sm:$0xff] %vm5856, %v5689
    %5870 = vst.msk [vmem:[#allocation5 + $0x68] sm:$0xff] %vm5856, %v5691
    %5871 = vst.msk [vmem:[#allocation5 + $0x70] sm:$0xff] %vm5856, %v5693
    %5872 = vst.msk [vmem:[#allocation5 + $0x78] sm:$0xff] %vm5856, %v5695
    %5873 = vst.msk [vmem:[#allocation5 + $0x80] sm:$0xff] %vm5856, %v5697
    %5874 = vst.msk [vmem:[#allocation5 + $0x88] sm:$0xff] %vm5856, %v5699
    %5875 = vst.msk [vmem:[#allocation5 + $0x90] sm:$0xff] %vm5856, %v5701
    %5876 = vst.msk [vmem:[#allocation5 + $0x98] sm:$0xff] %vm5856, %v5703
    %5877 = vst.msk [vmem:[#allocation5 + $0xa0] sm:$0xff] %vm5856, %v5705
    %5878 = vst.msk [vmem:[#allocation5 + $0xa8] sm:$0xff] %vm5856, %v5707
    %5879 = vst.msk [vmem:[#allocation5 + $0xb0] sm:$0xff] %vm5856, %v5709
    %5880 = vst.msk [vmem:[#allocation5 + $0xb8] sm:$0xff] %vm5856, %v5711
    %5881 = vst.msk [vmem:[#allocation5 + $0xc0] sm:$0xff] %vm5856, %v5713
    %5882 = vst.msk [vmem:[#allocation5 + $0xc8] sm:$0xff] %vm5856, %v5715
    %5883 = vst.msk [vmem:[#allocation5 + $0xd0] sm:$0xff] %vm5856, %v5717
    %5884 = vst.msk [vmem:[#allocation5 + $0xd8] sm:$0xff] %vm5856, %v5719
    %5885 = vst.msk [vmem:[#allocation5 + $0xe0] sm:$0xff] %vm5856, %v5721
    %5886 = vst.msk [vmem:[#allocation5 + $0xe8] sm:$0xff] %vm5856, %v5723
    %5887 = vst.msk [vmem:[#allocation5 + $0xf0] sm:$0xff] %vm5856, %v5725
    %5888 = vst.msk [vmem:[#allocation5 + $0xf8] sm:$0xff] %vm5856, %v5727
    %5889 = vst.msk [vmem:[#allocation5 + $0x100] sm:$0xff] %vm5856, %v5729
    %5890 = vst.msk [vmem:[#allocation5 + $0x108] sm:$0xff] %vm5856, %v5731
    %5891 = vst.msk [vmem:[#allocation5 + $0x110] sm:$0xff] %vm5856, %v5733
    %5892 = vst.msk [vmem:[#allocation5 + $0x118] sm:$0xff] %vm5856, %v5735
    %5893 = vst.msk [vmem:[#allocation5 + $0x120] sm:$0xff] %vm5856, %v5737
    %5894 = vst.msk [vmem:[#allocation5 + $0x128] sm:$0xff] %vm5856, %v5739
    %5895 = vst.msk [vmem:[#allocation5 + $0x130] sm:$0xff] %vm5856, %v5741
    %5896 = vst.msk [vmem:[#allocation5 + $0x138] sm:$0xff] %vm5856, %v5743
    %5897 = vst.msk [vmem:[#allocation5 + $0x140] sm:$0xff] %vm5856, %v5745
    %5898 = vst.msk [vmem:[#allocation5 + $0x148] sm:$0xff] %vm5856, %v5747
    %5899 = vst.msk [vmem:[#allocation5 + $0x150] sm:$0xff] %vm5856, %v5749
    %5900 = vst.msk [vmem:[#allocation5 + $0x158] sm:$0xff] %vm5856, %v5751
    %5901 = vst.msk [vmem:[#allocation5 + $0x160] sm:$0xff] %vm5856, %v5753
    %5902 = vst.msk [vmem:[#allocation5 + $0x168] sm:$0xff] %vm5856, %v5755
    %5903 = vst.msk [vmem:[#allocation5 + $0x170] sm:$0xff] %vm5856, %v5757
    %5904 = vst.msk [vmem:[#allocation5 + $0x178] sm:$0xff] %vm5856, %v5759
    %5905 = vst.msk [vmem:[#allocation5 + $0x180] sm:$0xff] %vm5856, %v5761
    %5906 = vst.msk [vmem:[#allocation5 + $0x188] sm:$0xff] %vm5856, %v5763
    %5907 = vst.msk [vmem:[#allocation5 + $0x190] sm:$0xff] %vm5856, %v5765
    %5908 = vst.msk [vmem:[#allocation5 + $0x198] sm:$0xff] %vm5856, %v5767
    %5909 = vst.msk [vmem:[#allocation5 + $0x1a0] sm:$0xff] %vm5856, %v5769
    %5910 = vst.msk [vmem:[#allocation5 + $0x1a8] sm:$0xff] %vm5856, %v5771
    %5911 = vst.msk [vmem:[#allocation5 + $0x1b0] sm:$0xff] %vm5856, %v5773
    %5912 = vst.msk [vmem:[#allocation5 + $0x1b8] sm:$0xff] %vm5856, %v5775
    %5913 = vst.msk [vmem:[#allocation5 + $0x1c0] sm:$0xff] %vm5856, %v5777
    %5914 = vst.msk [vmem:[#allocation5 + $0x1c8] sm:$0xff] %vm5856, %v5779
    %5915 = vst.msk [vmem:[#allocation5 + $0x1d0] sm:$0xff] %vm5856, %v5781
    %5916 = vst.msk [vmem:[#allocation5 + $0x1d8] sm:$0xff] %vm5856, %v5783
    %5917 = vst.msk [vmem:[#allocation5 + $0x1e0] sm:$0xff] %vm5856, %v5785
    %5918 = vst.msk [vmem:[#allocation5 + $0x1e8] sm:$0xff] %vm5856, %v5787
    %5919 = vst.msk [vmem:[#allocation5 + $0x1f0] sm:$0xff] %vm5856, %v5789
    %5920 = vst.msk [vmem:[#allocation5 + $0x1f8] sm:$0xff] %vm5856, %v5791
    %v5921 = vld [vmem:[%s4573 + $0x1] sm:$0xff]
    %v5922 = vld [vmem:[%s4573 + $0x9] sm:$0xff]
    %v5923 = vld [vmem:[%s4573 + $0x19] sm:$0xff]
    %v5924 = vld [vmem:[%s4573 + $0x21] sm:$0xff]
    %v5925 = vld [vmem:[%s4573 + $0x31] sm:$0xff]
    %v5926 = vld [vmem:[%s4573 + $0x39] sm:$0xff]
    %v5927 = vld [vmem:[%s4573 + $0x49] sm:$0xff]
    %v5928 = vld [vmem:[%s4573 + $0x51] sm:$0xff]
    %v5929 = vld [vmem:[%s4573 + $0x61] sm:$0xff]
    %v5930 = vld [vmem:[%s4573 + $0x69] sm:$0xff]
    %v5931 = vld [vmem:[%s4573 + $0x79] sm:$0xff]
    %v5932 = vld [vmem:[%s4573 + $0x81] sm:$0xff]
    %v5933 = vld [vmem:[%s4573 + $0x91] sm:$0xff]
    %v5934 = vld [vmem:[%s4573 + $0x99] sm:$0xff]
    %v5935 = vld [vmem:[%s4573 + $0xa9] sm:$0xff]
    %v5936 = vld [vmem:[%s4573 + $0xb1] sm:$0xff]
    %v5937 = vld [vmem:[%s4573 + $0xc1] sm:$0xff]
    %v5938 = vld [vmem:[%s4573 + $0xc9] sm:$0xff]
    %v5939 = vld [vmem:[%s4573 + $0xd9] sm:$0xff]
    %v5940 = vld [vmem:[%s4573 + $0xe1] sm:$0xff]
    %v5941 = vld [vmem:[%s4573 + $0xf1] sm:$0xff]
    %v5942 = vld [vmem:[%s4573 + $0xf9] sm:$0xff]
    %v5943 = vld [vmem:[%s4573 + $0x109] sm:$0xff]
    %v5944 = vld [vmem:[%s4573 + $0x111] sm:$0xff]
    %v5945 = vld [vmem:[%s4573 + $0x121] sm:$0xff]
    %v5946 = vld [vmem:[%s4573 + $0x129] sm:$0xff]
    %v5947 = vld [vmem:[%s4573 + $0x139] sm:$0xff]
    %v5948 = vld [vmem:[%s4573 + $0x141] sm:$0xff]
    %v5949 = vld [vmem:[%s4573 + $0x151] sm:$0xff]
    %v5950 = vld [vmem:[%s4573 + $0x159] sm:$0xff]
    %v5951 = vld [vmem:[%s4573 + $0x169] sm:$0xff]
    %v5952 = vld [vmem:[%s4573 + $0x171] sm:$0xff]
    %v5953 = vld [vmem:[%s4573 + $0x1b1] sm:$0xff]
    %v5954 = vld [vmem:[%s4573 + $0x1b9] sm:$0xff]
    %v5955 = vld [vmem:[%s4573 + $0x1c9] sm:$0xff]
    %v5956 = vld [vmem:[%s4573 + $0x1d1] sm:$0xff]
    %v5957 = vld [vmem:[%s4573 + $0x1e1] sm:$0xff]
    %v5958 = vld [vmem:[%s4573 + $0x1e9] sm:$0xff]
    %v5959 = vld [vmem:[%s4573 + $0x1f9] sm:$0xff]
    %v5960 = vld [vmem:[%s4573 + $0x201] sm:$0xff]
    %v5961 = vld [vmem:[%s4573 + $0x211] sm:$0xff]
    %v5962 = vld [vmem:[%s4573 + $0x219] sm:$0xff]
    %v5963 = vld [vmem:[%s4573 + $0x229] sm:$0xff]
    %v5964 = vld [vmem:[%s4573 + $0x231] sm:$0xff]
    %v5965 = vld [vmem:[%s4573 + $0x241] sm:$0xff]
    %v5966 = vld [vmem:[%s4573 + $0x249] sm:$0xff]
    %v5967 = vld [vmem:[%s4573 + $0x259] sm:$0xff]
    %v5968 = vld [vmem:[%s4573 + $0x261] sm:$0xff]
    %v5969 = vld [vmem:[%s4573 + $0x271] sm:$0xff]
    %v5970 = vld [vmem:[%s4573 + $0x279] sm:$0xff]
    %v5971 = vld [vmem:[%s4573 + $0x289] sm:$0xff]
    %v5972 = vld [vmem:[%s4573 + $0x291] sm:$0xff]
    %v5973 = vld [vmem:[%s4573 + $0x2a1] sm:$0xff]
    %v5974 = vld [vmem:[%s4573 + $0x2a9] sm:$0xff]
    %v5975 = vld [vmem:[%s4573 + $0x2b9] sm:$0xff]
    %v5976 = vld [vmem:[%s4573 + $0x2c1] sm:$0xff]
    %v5977 = vld [vmem:[%s4573 + $0x2d1] sm:$0xff]
    %v5978 = vld [vmem:[%s4573 + $0x2d9] sm:$0xff]
    %v5979 = vld [vmem:[%s4573 + $0x2e9] sm:$0xff]
    %v5980 = vld [vmem:[%s4573 + $0x2f1] sm:$0xff]
    %v5981 = vld [vmem:[%s4573 + $0x301] sm:$0xff]
    %v5982 = vld [vmem:[%s4573 + $0x309] sm:$0xff]
    %v5983 = vld [vmem:[%s4573 + $0x319] sm:$0xff]
    %v5984 = vld [vmem:[%s4573 + $0x321] sm:$0xff]
    %6049 = vrot.lane.b32.xlu0 %v5921, 32
    %v6050 = vpop.permute.xlu0 %6049
    %6051 = vrot.lane.b32.xlu0 %v5922, 32
    %v6052 = vpop.permute.xlu0 %6051
    %6053 = vrot.lane.b32.xlu0 %v5923, 32
    %v6054 = vpop.permute.xlu0 %6053
    %6055 = vrot.lane.b32.xlu0 %v5924, 32
    %v6056 = vpop.permute.xlu0 %6055
    %6057 = vrot.lane.b32.xlu0 %v5925, 32
    %v6058 = vpop.permute.xlu0 %6057
    %6059 = vrot.lane.b32.xlu0 %v5926, 32
    %v6060 = vpop.permute.xlu0 %6059
    %6061 = vrot.lane.b32.xlu0 %v5927, 32
    %v6062 = vpop.permute.xlu0 %6061
    %6063 = vrot.lane.b32.xlu0 %v5928, 32
    %v6064 = vpop.permute.xlu0 %6063
    %6065 = vrot.lane.b32.xlu0 %v5929, 32
    %v6066 = vpop.permute.xlu0 %6065
    %6067 = vrot.lane.b32.xlu0 %v5930, 32
    %v6068 = vpop.permute.xlu0 %6067
    %6069 = vrot.lane.b32.xlu0 %v5931, 32
    %v6070 = vpop.permute.xlu0 %6069
    %6071 = vrot.lane.b32.xlu0 %v5932, 32
    %v6072 = vpop.permute.xlu0 %6071
    %6073 = vrot.lane.b32.xlu0 %v5933, 32
    %v6074 = vpop.permute.xlu0 %6073
    %6075 = vrot.lane.b32.xlu0 %v5934, 32
    %v6076 = vpop.permute.xlu0 %6075
    %6077 = vrot.lane.b32.xlu0 %v5935, 32
    %v6078 = vpop.permute.xlu0 %6077
    %6079 = vrot.lane.b32.xlu0 %v5936, 32
    %v6080 = vpop.permute.xlu0 %6079
    %6081 = vrot.lane.b32.xlu0 %v5937, 32
    %v6082 = vpop.permute.xlu0 %6081
    %6083 = vrot.lane.b32.xlu0 %v5938, 32
    %v6084 = vpop.permute.xlu0 %6083
    %6085 = vrot.lane.b32.xlu0 %v5939, 32
    %v6086 = vpop.permute.xlu0 %6085
    %6087 = vrot.lane.b32.xlu0 %v5940, 32
    %v6088 = vpop.permute.xlu0 %6087
    %6089 = vrot.lane.b32.xlu0 %v5941, 32
    %v6090 = vpop.permute.xlu0 %6089
    %6091 = vrot.lane.b32.xlu0 %v5942, 32
    %v6092 = vpop.permute.xlu0 %6091
    %6093 = vrot.lane.b32.xlu0 %v5943, 32
    %v6094 = vpop.permute.xlu0 %6093
    %6095 = vrot.lane.b32.xlu0 %v5944, 32
    %v6096 = vpop.permute.xlu0 %6095
    %6097 = vrot.lane.b32.xlu0 %v5945, 32
    %v6098 = vpop.permute.xlu0 %6097
    %6099 = vrot.lane.b32.xlu0 %v5946, 32
    %v6100 = vpop.permute.xlu0 %6099
    %6101 = vrot.lane.b32.xlu0 %v5947, 32
    %v6102 = vpop.permute.xlu0 %6101
    %6103 = vrot.lane.b32.xlu0 %v5948, 32
    %v6104 = vpop.permute.xlu0 %6103
    %6105 = vrot.lane.b32.xlu0 %v5949, 32
    %v6106 = vpop.permute.xlu0 %6105
    %6107 = vrot.lane.b32.xlu0 %v5950, 32
    %v6108 = vpop.permute.xlu0 %6107
    %6109 = vrot.lane.b32.xlu0 %v5951, 32
    %v6110 = vpop.permute.xlu0 %6109
    %6111 = vrot.lane.b32.xlu0 %v5952, 32
    %v6112 = vpop.permute.xlu0 %6111
    %6113 = vrot.lane.b32.xlu0 %v5953, 32
    %v6114 = vpop.permute.xlu0 %6113
    %6115 = vrot.lane.b32.xlu0 %v5954, 32
    %v6116 = vpop.permute.xlu0 %6115
    %6117 = vrot.lane.b32.xlu0 %v5955, 32
    %v6118 = vpop.permute.xlu0 %6117
    %6119 = vrot.lane.b32.xlu0 %v5956, 32
    %v6120 = vpop.permute.xlu0 %6119
    %6121 = vrot.lane.b32.xlu0 %v5957, 32
    %v6122 = vpop.permute.xlu0 %6121
    %6123 = vrot.lane.b32.xlu0 %v5958, 32
    %v6124 = vpop.permute.xlu0 %6123
    %6125 = vrot.lane.b32.xlu0 %v5959, 32
    %v6126 = vpop.permute.xlu0 %6125
    %6127 = vrot.lane.b32.xlu0 %v5960, 32
    %v6128 = vpop.permute.xlu0 %6127
    %6129 = vrot.lane.b32.xlu0 %v5961, 32
    %v6130 = vpop.permute.xlu0 %6129
    %6131 = vrot.lane.b32.xlu0 %v5962, 32
    %v6132 = vpop.permute.xlu0 %6131
    %6133 = vrot.lane.b32.xlu0 %v5963, 32
    %v6134 = vpop.permute.xlu0 %6133
    %6135 = vrot.lane.b32.xlu0 %v5964, 32
    %v6136 = vpop.permute.xlu0 %6135
    %6137 = vrot.lane.b32.xlu0 %v5965, 32
    %v6138 = vpop.permute.xlu0 %6137
    %6139 = vrot.lane.b32.xlu0 %v5966, 32
    %v6140 = vpop.permute.xlu0 %6139
    %6141 = vrot.lane.b32.xlu0 %v5967, 32
    %v6142 = vpop.permute.xlu0 %6141
    %6143 = vrot.lane.b32.xlu0 %v5968, 32
    %v6144 = vpop.permute.xlu0 %6143
    %6145 = vrot.lane.b32.xlu0 %v5969, 32
    %v6146 = vpop.permute.xlu0 %6145
    %6147 = vrot.lane.b32.xlu0 %v5970, 32
    %v6148 = vpop.permute.xlu0 %6147
    %6149 = vrot.lane.b32.xlu0 %v5971, 32
    %v6150 = vpop.permute.xlu0 %6149
    %6151 = vrot.lane.b32.xlu0 %v5972, 32
    %v6152 = vpop.permute.xlu0 %6151
    %6153 = vrot.lane.b32.xlu0 %v5973, 32
    %v6154 = vpop.permute.xlu0 %6153
    %6155 = vrot.lane.b32.xlu0 %v5974, 32
    %v6156 = vpop.permute.xlu0 %6155
    %6157 = vrot.lane.b32.xlu0 %v5975, 32
    %v6158 = vpop.permute.xlu0 %6157
    %6159 = vrot.lane.b32.xlu0 %v5976, 32
    %v6160 = vpop.permute.xlu0 %6159
    %6161 = vrot.lane.b32.xlu0 %v5977, 32
    %v6162 = vpop.permute.xlu0 %6161
    %6163 = vrot.lane.b32.xlu0 %v5978, 32
    %v6164 = vpop.permute.xlu0 %6163
    %6165 = vrot.lane.b32.xlu0 %v5979, 32
    %v6166 = vpop.permute.xlu0 %6165
    %6167 = vrot.lane.b32.xlu0 %v5980, 32
    %v6168 = vpop.permute.xlu0 %6167
    %6169 = vrot.lane.b32.xlu0 %v5981, 32
    %v6170 = vpop.permute.xlu0 %6169
    %6171 = vrot.lane.b32.xlu0 %v5982, 32
    %v6172 = vpop.permute.xlu0 %6171
    %6173 = vrot.lane.b32.xlu0 %v5983, 32
    %v6174 = vpop.permute.xlu0 %6173
    %6175 = vrot.lane.b32.xlu0 %v5984, 32
    %v6176 = vpop.permute.xlu0 %6175
    %vm6241 = vcmask 326912
    %6242 = vst.msk [vmem:[#allocation5] sm:$0xff] %vm6241, %v6050
    %6243 = vst.msk [vmem:[#allocation5 + $0x8] sm:$0xff] %vm6241, %v6052
    %6244 = vst.msk [vmem:[#allocation5 + $0x10] sm:$0xff] %vm6241, %v6054
    %6245 = vst.msk [vmem:[#allocation5 + $0x18] sm:$0xff] %vm6241, %v6056
    %6246 = vst.msk [vmem:[#allocation5 + $0x20] sm:$0xff] %vm6241, %v6058
    %6247 = vst.msk [vmem:[#allocation5 + $0x28] sm:$0xff] %vm6241, %v6060
    %6248 = vst.msk [vmem:[#allocation5 + $0x30] sm:$0xff] %vm6241, %v6062
    %6249 = vst.msk [vmem:[#allocation5 + $0x38] sm:$0xff] %vm6241, %v6064
    %6250 = vst.msk [vmem:[#allocation5 + $0x40] sm:$0xff] %vm6241, %v6066
    %6251 = vst.msk [vmem:[#allocation5 + $0x48] sm:$0xff] %vm6241, %v6068
    %6252 = vst.msk [vmem:[#allocation5 + $0x50] sm:$0xff] %vm6241, %v6070
    %6253 = vst.msk [vmem:[#allocation5 + $0x58] sm:$0xff] %vm6241, %v6072
    %6254 = vst.msk [vmem:[#allocation5 + $0x60] sm:$0xff] %vm6241, %v6074
    %6255 = vst.msk [vmem:[#allocation5 + $0x68] sm:$0xff] %vm6241, %v6076
    %6256 = vst.msk [vmem:[#allocation5 + $0x70] sm:$0xff] %vm6241, %v6078
    %6257 = vst.msk [vmem:[#allocation5 + $0x78] sm:$0xff] %vm6241, %v6080
    %6258 = vst.msk [vmem:[#allocation5 + $0x80] sm:$0xff] %vm6241, %v6082
    %6259 = vst.msk [vmem:[#allocation5 + $0x88] sm:$0xff] %vm6241, %v6084
    %6260 = vst.msk [vmem:[#allocation5 + $0x90] sm:$0xff] %vm6241, %v6086
    %6261 = vst.msk [vmem:[#allocation5 + $0x98] sm:$0xff] %vm6241, %v6088
    %6262 = vst.msk [vmem:[#allocation5 + $0xa0] sm:$0xff] %vm6241, %v6090
    %6263 = vst.msk [vmem:[#allocation5 + $0xa8] sm:$0xff] %vm6241, %v6092
    %6264 = vst.msk [vmem:[#allocation5 + $0xb0] sm:$0xff] %vm6241, %v6094
    %6265 = vst.msk [vmem:[#allocation5 + $0xb8] sm:$0xff] %vm6241, %v6096
    %6266 = vst.msk [vmem:[#allocation5 + $0xc0] sm:$0xff] %vm6241, %v6098
    %6267 = vst.msk [vmem:[#allocation5 + $0xc8] sm:$0xff] %vm6241, %v6100
    %6268 = vst.msk [vmem:[#allocation5 + $0xd0] sm:$0xff] %vm6241, %v6102
    %6269 = vst.msk [vmem:[#allocation5 + $0xd8] sm:$0xff] %vm6241, %v6104
    %6270 = vst.msk [vmem:[#allocation5 + $0xe0] sm:$0xff] %vm6241, %v6106
    %6271 = vst.msk [vmem:[#allocation5 + $0xe8] sm:$0xff] %vm6241, %v6108
    %6272 = vst.msk [vmem:[#allocation5 + $0xf0] sm:$0xff] %vm6241, %v6110
    %6273 = vst.msk [vmem:[#allocation5 + $0xf8] sm:$0xff] %vm6241, %v6112
    %6274 = vst.msk [vmem:[#allocation5 + $0x100] sm:$0xff] %vm6241, %v6114
    %6275 = vst.msk [vmem:[#allocation5 + $0x108] sm:$0xff] %vm6241, %v6116
    %6276 = vst.msk [vmem:[#allocation5 + $0x110] sm:$0xff] %vm6241, %v6118
    %6277 = vst.msk [vmem:[#allocation5 + $0x118] sm:$0xff] %vm6241, %v6120
    %6278 = vst.msk [vmem:[#allocation5 + $0x120] sm:$0xff] %vm6241, %v6122
    %6279 = vst.msk [vmem:[#allocation5 + $0x128] sm:$0xff] %vm6241, %v6124
    %6280 = vst.msk [vmem:[#allocation5 + $0x130] sm:$0xff] %vm6241, %v6126
    %6281 = vst.msk [vmem:[#allocation5 + $0x138] sm:$0xff] %vm6241, %v6128
    %6282 = vst.msk [vmem:[#allocation5 + $0x140] sm:$0xff] %vm6241, %v6130
    %6283 = vst.msk [vmem:[#allocation5 + $0x148] sm:$0xff] %vm6241, %v6132
    %6284 = vst.msk [vmem:[#allocation5 + $0x150] sm:$0xff] %vm6241, %v6134
    %6285 = vst.msk [vmem:[#allocation5 + $0x158] sm:$0xff] %vm6241, %v6136
    %6286 = vst.msk [vmem:[#allocation5 + $0x160] sm:$0xff] %vm6241, %v6138
    %6287 = vst.msk [vmem:[#allocation5 + $0x168] sm:$0xff] %vm6241, %v6140
    %6288 = vst.msk [vmem:[#allocation5 + $0x170] sm:$0xff] %vm6241, %v6142
    %6289 = vst.msk [vmem:[#allocation5 + $0x178] sm:$0xff] %vm6241, %v6144
    %6290 = vst.msk [vmem:[#allocation5 + $0x180] sm:$0xff] %vm6241, %v6146
    %6291 = vst.msk [vmem:[#allocation5 + $0x188] sm:$0xff] %vm6241, %v6148
    %6292 = vst.msk [vmem:[#allocation5 + $0x190] sm:$0xff] %vm6241, %v6150
    %6293 = vst.msk [vmem:[#allocation5 + $0x198] sm:$0xff] %vm6241, %v6152
    %6294 = vst.msk [vmem:[#allocation5 + $0x1a0] sm:$0xff] %vm6241, %v6154
    %6295 = vst.msk [vmem:[#allocation5 + $0x1a8] sm:$0xff] %vm6241, %v6156
    %6296 = vst.msk [vmem:[#allocation5 + $0x1b0] sm:$0xff] %vm6241, %v6158
    %6297 = vst.msk [vmem:[#allocation5 + $0x1b8] sm:$0xff] %vm6241, %v6160
    %6298 = vst.msk [vmem:[#allocation5 + $0x1c0] sm:$0xff] %vm6241, %v6162
    %6299 = vst.msk [vmem:[#allocation5 + $0x1c8] sm:$0xff] %vm6241, %v6164
    %6300 = vst.msk [vmem:[#allocation5 + $0x1d0] sm:$0xff] %vm6241, %v6166
    %6301 = vst.msk [vmem:[#allocation5 + $0x1d8] sm:$0xff] %vm6241, %v6168
    %6302 = vst.msk [vmem:[#allocation5 + $0x1e0] sm:$0xff] %vm6241, %v6170
    %6303 = vst.msk [vmem:[#allocation5 + $0x1e8] sm:$0xff] %vm6241, %v6172
    %6304 = vst.msk [vmem:[#allocation5 + $0x1f0] sm:$0xff] %vm6241, %v6174
    %6305 = vst.msk [vmem:[#allocation5 + $0x1f8] sm:$0xff] %vm6241, %v6176
    %v6306 = vld [vmem:[%s4573 + $0x2] sm:$0xff]
    %v6307 = vld [vmem:[%s4573 + $0xa] sm:$0xff]
    %v6308 = vld [vmem:[%s4573 + $0x1a] sm:$0xff]
    %v6309 = vld [vmem:[%s4573 + $0x22] sm:$0xff]
    %v6310 = vld [vmem:[%s4573 + $0x32] sm:$0xff]
    %v6311 = vld [vmem:[%s4573 + $0x3a] sm:$0xff]
    %v6312 = vld [vmem:[%s4573 + $0x4a] sm:$0xff]
    %v6313 = vld [vmem:[%s4573 + $0x52] sm:$0xff]
    %v6314 = vld [vmem:[%s4573 + $0x62] sm:$0xff]
    %v6315 = vld [vmem:[%s4573 + $0x6a] sm:$0xff]
    %v6316 = vld [vmem:[%s4573 + $0x7a] sm:$0xff]
    %v6317 = vld [vmem:[%s4573 + $0x82] sm:$0xff]
    %v6318 = vld [vmem:[%s4573 + $0x92] sm:$0xff]
    %v6319 = vld [vmem:[%s4573 + $0x9a] sm:$0xff]
    %v6320 = vld [vmem:[%s4573 + $0xaa] sm:$0xff]
    %v6321 = vld [vmem:[%s4573 + $0xb2] sm:$0xff]
    %v6322 = vld [vmem:[%s4573 + $0xc2] sm:$0xff]
    %v6323 = vld [vmem:[%s4573 + $0xca] sm:$0xff]
    %v6324 = vld [vmem:[%s4573 + $0xda] sm:$0xff]
    %v6325 = vld [vmem:[%s4573 + $0xe2] sm:$0xff]
    %v6326 = vld [vmem:[%s4573 + $0xf2] sm:$0xff]
    %v6327 = vld [vmem:[%s4573 + $0xfa] sm:$0xff]
    %v6328 = vld [vmem:[%s4573 + $0x10a] sm:$0xff]
    %v6329 = vld [vmem:[%s4573 + $0x112] sm:$0xff]
    %v6330 = vld [vmem:[%s4573 + $0x122] sm:$0xff]
    %v6331 = vld [vmem:[%s4573 + $0x12a] sm:$0xff]
    %v6332 = vld [vmem:[%s4573 + $0x13a] sm:$0xff]
    %v6333 = vld [vmem:[%s4573 + $0x142] sm:$0xff]
    %v6334 = vld [vmem:[%s4573 + $0x152] sm:$0xff]
    %v6335 = vld [vmem:[%s4573 + $0x15a] sm:$0xff]
    %v6336 = vld [vmem:[%s4573 + $0x16a] sm:$0xff]
    %v6337 = vld [vmem:[%s4573 + $0x172] sm:$0xff]
    %v6338 = vld [vmem:[%s4573 + $0x1b2] sm:$0xff]
    %v6339 = vld [vmem:[%s4573 + $0x1ba] sm:$0xff]
    %v6340 = vld [vmem:[%s4573 + $0x1ca] sm:$0xff]
    %v6341 = vld [vmem:[%s4573 + $0x1d2] sm:$0xff]
    %v6342 = vld [vmem:[%s4573 + $0x1e2] sm:$0xff]
    %v6343 = vld [vmem:[%s4573 + $0x1ea] sm:$0xff]
    %v6344 = vld [vmem:[%s4573 + $0x1fa] sm:$0xff]
    %v6345 = vld [vmem:[%s4573 + $0x202] sm:$0xff]
    %v6346 = vld [vmem:[%s4573 + $0x212] sm:$0xff]
    %v6347 = vld [vmem:[%s4573 + $0x21a] sm:$0xff]
    %v6348 = vld [vmem:[%s4573 + $0x22a] sm:$0xff]
    %v6349 = vld [vmem:[%s4573 + $0x232] sm:$0xff]
    %v6350 = vld [vmem:[%s4573 + $0x242] sm:$0xff]
    %v6351 = vld [vmem:[%s4573 + $0x24a] sm:$0xff]
    %v6352 = vld [vmem:[%s4573 + $0x25a] sm:$0xff]
    %v6353 = vld [vmem:[%s4573 + $0x262] sm:$0xff]
    %v6354 = vld [vmem:[%s4573 + $0x272] sm:$0xff]
    %v6355 = vld [vmem:[%s4573 + $0x27a] sm:$0xff]
    %v6356 = vld [vmem:[%s4573 + $0x28a] sm:$0xff]
    %v6357 = vld [vmem:[%s4573 + $0x292] sm:$0xff]
    %v6358 = vld [vmem:[%s4573 + $0x2a2] sm:$0xff]
    %v6359 = vld [vmem:[%s4573 + $0x2aa] sm:$0xff]
    %v6360 = vld [vmem:[%s4573 + $0x2ba] sm:$0xff]
    %v6361 = vld [vmem:[%s4573 + $0x2c2] sm:$0xff]
    %v6362 = vld [vmem:[%s4573 + $0x2d2] sm:$0xff]
    %v6363 = vld [vmem:[%s4573 + $0x2da] sm:$0xff]
    %v6364 = vld [vmem:[%s4573 + $0x2ea] sm:$0xff]
    %v6365 = vld [vmem:[%s4573 + $0x2f2] sm:$0xff]
    %v6366 = vld [vmem:[%s4573 + $0x302] sm:$0xff]
    %v6367 = vld [vmem:[%s4573 + $0x30a] sm:$0xff]
    %v6368 = vld [vmem:[%s4573 + $0x31a] sm:$0xff]
    %v6369 = vld [vmem:[%s4573 + $0x322] sm:$0xff]
    %6434 = vrot.lane.b32.xlu0 %v6306, 40
    %v6435 = vpop.permute.xlu0 %6434
    %6436 = vrot.lane.b32.xlu0 %v6307, 40
    %v6437 = vpop.permute.xlu0 %6436
    %6438 = vrot.lane.b32.xlu0 %v6308, 40
    %v6439 = vpop.permute.xlu0 %6438
    %6440 = vrot.lane.b32.xlu0 %v6309, 40
    %v6441 = vpop.permute.xlu0 %6440
    %6442 = vrot.lane.b32.xlu0 %v6310, 40
    %v6443 = vpop.permute.xlu0 %6442
    %6444 = vrot.lane.b32.xlu0 %v6311, 40
    %v6445 = vpop.permute.xlu0 %6444
    %6446 = vrot.lane.b32.xlu0 %v6312, 40
    %v6447 = vpop.permute.xlu0 %6446
    %6448 = vrot.lane.b32.xlu0 %v6313, 40
    %v6449 = vpop.permute.xlu0 %6448
    %6450 = vrot.lane.b32.xlu0 %v6314, 40
    %v6451 = vpop.permute.xlu0 %6450
    %6452 = vrot.lane.b32.xlu0 %v6315, 40
    %v6453 = vpop.permute.xlu0 %6452
    %6454 = vrot.lane.b32.xlu0 %v6316, 40
    %v6455 = vpop.permute.xlu0 %6454
    %6456 = vrot.lane.b32.xlu0 %v6317, 40
    %v6457 = vpop.permute.xlu0 %6456
    %6458 = vrot.lane.b32.xlu0 %v6318, 40
    %v6459 = vpop.permute.xlu0 %6458
    %6460 = vrot.lane.b32.xlu0 %v6319, 40
    %v6461 = vpop.permute.xlu0 %6460
    %6462 = vrot.lane.b32.xlu0 %v6320, 40
    %v6463 = vpop.permute.xlu0 %6462
    %6464 = vrot.lane.b32.xlu0 %v6321, 40
    %v6465 = vpop.permute.xlu0 %6464
    %6466 = vrot.lane.b32.xlu0 %v6322, 40
    %v6467 = vpop.permute.xlu0 %6466
    %6468 = vrot.lane.b32.xlu0 %v6323, 40
    %v6469 = vpop.permute.xlu0 %6468
    %6470 = vrot.lane.b32.xlu0 %v6324, 40
    %v6471 = vpop.permute.xlu0 %6470
    %6472 = vrot.lane.b32.xlu0 %v6325, 40
    %v6473 = vpop.permute.xlu0 %6472
    %6474 = vrot.lane.b32.xlu0 %v6326, 40
    %v6475 = vpop.permute.xlu0 %6474
    %6476 = vrot.lane.b32.xlu0 %v6327, 40
    %v6477 = vpop.permute.xlu0 %6476
    %6478 = vrot.lane.b32.xlu0 %v6328, 40
    %v6479 = vpop.permute.xlu0 %6478
    %6480 = vrot.lane.b32.xlu0 %v6329, 40
    %v6481 = vpop.permute.xlu0 %6480
    %6482 = vrot.lane.b32.xlu0 %v6330, 40
    %v6483 = vpop.permute.xlu0 %6482
    %6484 = vrot.lane.b32.xlu0 %v6331, 40
    %v6485 = vpop.permute.xlu0 %6484
    %6486 = vrot.lane.b32.xlu0 %v6332, 40
    %v6487 = vpop.permute.xlu0 %6486
    %6488 = vrot.lane.b32.xlu0 %v6333, 40
    %v6489 = vpop.permute.xlu0 %6488
    %6490 = vrot.lane.b32.xlu0 %v6334, 40
    %v6491 = vpop.permute.xlu0 %6490
    %6492 = vrot.lane.b32.xlu0 %v6335, 40
    %v6493 = vpop.permute.xlu0 %6492
    %6494 = vrot.lane.b32.xlu0 %v6336, 40
    %v6495 = vpop.permute.xlu0 %6494
    %6496 = vrot.lane.b32.xlu0 %v6337, 40
    %v6497 = vpop.permute.xlu0 %6496
    %6498 = vrot.lane.b32.xlu0 %v6338, 40
    %v6499 = vpop.permute.xlu0 %6498
    %6500 = vrot.lane.b32.xlu0 %v6339, 40
    %v6501 = vpop.permute.xlu0 %6500
    %6502 = vrot.lane.b32.xlu0 %v6340, 40
    %v6503 = vpop.permute.xlu0 %6502
    %6504 = vrot.lane.b32.xlu0 %v6341, 40
    %v6505 = vpop.permute.xlu0 %6504
    %6506 = vrot.lane.b32.xlu0 %v6342, 40
    %v6507 = vpop.permute.xlu0 %6506
    %6508 = vrot.lane.b32.xlu0 %v6343, 40
    %v6509 = vpop.permute.xlu0 %6508
    %6510 = vrot.lane.b32.xlu0 %v6344, 40
    %v6511 = vpop.permute.xlu0 %6510
    %6512 = vrot.lane.b32.xlu0 %v6345, 40
    %v6513 = vpop.permute.xlu0 %6512
    %6514 = vrot.lane.b32.xlu0 %v6346, 40
    %v6515 = vpop.permute.xlu0 %6514
    %6516 = vrot.lane.b32.xlu0 %v6347, 40
    %v6517 = vpop.permute.xlu0 %6516
    %6518 = vrot.lane.b32.xlu0 %v6348, 40
    %v6519 = vpop.permute.xlu0 %6518
    %6520 = vrot.lane.b32.xlu0 %v6349, 40
    %v6521 = vpop.permute.xlu0 %6520
    %6522 = vrot.lane.b32.xlu0 %v6350, 40
    %v6523 = vpop.permute.xlu0 %6522
    %6524 = vrot.lane.b32.xlu0 %v6351, 40
    %v6525 = vpop.permute.xlu0 %6524
    %6526 = vrot.lane.b32.xlu0 %v6352, 40
    %v6527 = vpop.permute.xlu0 %6526
    %6528 = vrot.lane.b32.xlu0 %v6353, 40
    %v6529 = vpop.permute.xlu0 %6528
    %6530 = vrot.lane.b32.xlu0 %v6354, 40
    %v6531 = vpop.permute.xlu0 %6530
    %6532 = vrot.lane.b32.xlu0 %v6355, 40
    %v6533 = vpop.permute.xlu0 %6532
    %6534 = vrot.lane.b32.xlu0 %v6356, 40
    %v6535 = vpop.permute.xlu0 %6534
    %6536 = vrot.lane.b32.xlu0 %v6357, 40
    %v6537 = vpop.permute.xlu0 %6536
    %6538 = vrot.lane.b32.xlu0 %v6358, 40
    %v6539 = vpop.permute.xlu0 %6538
    %6540 = vrot.lane.b32.xlu0 %v6359, 40
    %v6541 = vpop.permute.xlu0 %6540
    %6542 = vrot.lane.b32.xlu0 %v6360, 40
    %v6543 = vpop.permute.xlu0 %6542
    %6544 = vrot.lane.b32.xlu0 %v6361, 40
    %v6545 = vpop.permute.xlu0 %6544
    %6546 = vrot.lane.b32.xlu0 %v6362, 40
    %v6547 = vpop.permute.xlu0 %6546
    %6548 = vrot.lane.b32.xlu0 %v6363, 40
    %v6549 = vpop.permute.xlu0 %6548
    %6550 = vrot.lane.b32.xlu0 %v6364, 40
    %v6551 = vpop.permute.xlu0 %6550
    %6552 = vrot.lane.b32.xlu0 %v6365, 40
    %v6553 = vpop.permute.xlu0 %6552
    %6554 = vrot.lane.b32.xlu0 %v6366, 40
    %v6555 = vpop.permute.xlu0 %6554
    %6556 = vrot.lane.b32.xlu0 %v6367, 40
    %v6557 = vpop.permute.xlu0 %6556
    %6558 = vrot.lane.b32.xlu0 %v6368, 40
    %v6559 = vpop.permute.xlu0 %6558
    %6560 = vrot.lane.b32.xlu0 %v6369, 40
    %v6561 = vpop.permute.xlu0 %6560
    %vm6626 = vcmask 392512
    %6627 = vst.msk [vmem:[#allocation5] sm:$0xff] %vm6626, %v6435
    %6628 = vst.msk [vmem:[#allocation5 + $0x8] sm:$0xff] %vm6626, %v6437
    %6629 = vst.msk [vmem:[#allocation5 + $0x10] sm:$0xff] %vm6626, %v6439
    %6630 = vst.msk [vmem:[#allocation5 + $0x18] sm:$0xff] %vm6626, %v6441
    %6631 = vst.msk [vmem:[#allocation5 + $0x20] sm:$0xff] %vm6626, %v6443
    %6632 = vst.msk [vmem:[#allocation5 + $0x28] sm:$0xff] %vm6626, %v6445
    %6633 = vst.msk [vmem:[#allocation5 + $0x30] sm:$0xff] %vm6626, %v6447
    %6634 = vst.msk [vmem:[#allocation5 + $0x38] sm:$0xff] %vm6626, %v6449
    %6635 = vst.msk [vmem:[#allocation5 + $0x40] sm:$0xff] %vm6626, %v6451
    %6636 = vst.msk [vmem:[#allocation5 + $0x48] sm:$0xff] %vm6626, %v6453
    %6637 = vst.msk [vmem:[#allocation5 + $0x50] sm:$0xff] %vm6626, %v6455
    %6638 = vst.msk [vmem:[#allocation5 + $0x58] sm:$0xff] %vm6626, %v6457
    %6639 = vst.msk [vmem:[#allocation5 + $0x60] sm:$0xff] %vm6626, %v6459
    %6640 = vst.msk [vmem:[#allocation5 + $0x68] sm:$0xff] %vm6626, %v6461
    %6641 = vst.msk [vmem:[#allocation5 + $0x70] sm:$0xff] %vm6626, %v6463
    %6642 = vst.msk [vmem:[#allocation5 + $0x78] sm:$0xff] %vm6626, %v6465
    %6643 = vst.msk [vmem:[#allocation5 + $0x80] sm:$0xff] %vm6626, %v6467
    %6644 = vst.msk [vmem:[#allocation5 + $0x88] sm:$0xff] %vm6626, %v6469
    %6645 = vst.msk [vmem:[#allocation5 + $0x90] sm:$0xff] %vm6626, %v6471
    %6646 = vst.msk [vmem:[#allocation5 + $0x98] sm:$0xff] %vm6626, %v6473
    %6647 = vst.msk [vmem:[#allocation5 + $0xa0] sm:$0xff] %vm6626, %v6475
    %6648 = vst.msk [vmem:[#allocation5 + $0xa8] sm:$0xff] %vm6626, %v6477
    %6649 = vst.msk [vmem:[#allocation5 + $0xb0] sm:$0xff] %vm6626, %v6479
    %6650 = vst.msk [vmem:[#allocation5 + $0xb8] sm:$0xff] %vm6626, %v6481
    %6651 = vst.msk [vmem:[#allocation5 + $0xc0] sm:$0xff] %vm6626, %v6483
    %6652 = vst.msk [vmem:[#allocation5 + $0xc8] sm:$0xff] %vm6626, %v6485
    %6653 = vst.msk [vmem:[#allocation5 + $0xd0] sm:$0xff] %vm6626, %v6487
    %6654 = vst.msk [vmem:[#allocation5 + $0xd8] sm:$0xff] %vm6626, %v6489
    %6655 = vst.msk [vmem:[#allocation5 + $0xe0] sm:$0xff] %vm6626, %v6491
    %6656 = vst.msk [vmem:[#allocation5 + $0xe8] sm:$0xff] %vm6626, %v6493
    %6657 = vst.msk [vmem:[#allocation5 + $0xf0] sm:$0xff] %vm6626, %v6495
    %6658 = vst.msk [vmem:[#allocation5 + $0xf8] sm:$0xff] %vm6626, %v6497
    %6659 = vst.msk [vmem:[#allocation5 + $0x100] sm:$0xff] %vm6626, %v6499
    %6660 = vst.msk [vmem:[#allocation5 + $0x108] sm:$0xff] %vm6626, %v6501
    %6661 = vst.msk [vmem:[#allocation5 + $0x110] sm:$0xff] %vm6626, %v6503
    %6662 = vst.msk [vmem:[#allocation5 + $0x118] sm:$0xff] %vm6626, %v6505
    %6663 = vst.msk [vmem:[#allocation5 + $0x120] sm:$0xff] %vm6626, %v6507
    %6664 = vst.msk [vmem:[#allocation5 + $0x128] sm:$0xff] %vm6626, %v6509
    %6665 = vst.msk [vmem:[#allocation5 + $0x130] sm:$0xff] %vm6626, %v6511
    %6666 = vst.msk [vmem:[#allocation5 + $0x138] sm:$0xff] %vm6626, %v6513
    %6667 = vst.msk [vmem:[#allocation5 + $0x140] sm:$0xff] %vm6626, %v6515
    %6668 = vst.msk [vmem:[#allocation5 + $0x148] sm:$0xff] %vm6626, %v6517
    %6669 = vst.msk [vmem:[#allocation5 + $0x150] sm:$0xff] %vm6626, %v6519
    %6670 = vst.msk [vmem:[#allocation5 + $0x158] sm:$0xff] %vm6626, %v6521
    %6671 = vst.msk [vmem:[#allocation5 + $0x160] sm:$0xff] %vm6626, %v6523
    %6672 = vst.msk [vmem:[#allocation5 + $0x168] sm:$0xff] %vm6626, %v6525
    %6673 = vst.msk [vmem:[#allocation5 + $0x170] sm:$0xff] %vm6626, %v6527
    %6674 = vst.msk [vmem:[#allocation5 + $0x178] sm:$0xff] %vm6626, %v6529
    %6675 = vst.msk [vmem:[#allocation5 + $0x180] sm:$0xff] %vm6626, %v6531
    %6676 = vst.msk [vmem:[#allocation5 + $0x188] sm:$0xff] %vm6626, %v6533
    %6677 = vst.msk [vmem:[#allocation5 + $0x190] sm:$0xff] %vm6626, %v6535
    %6678 = vst.msk [vmem:[#allocation5 + $0x198] sm:$0xff] %vm6626, %v6537
    %6679 = vst.msk [vmem:[#allocation5 + $0x1a0] sm:$0xff] %vm6626, %v6539
    %6680 = vst.msk [vmem:[#allocation5 + $0x1a8] sm:$0xff] %vm6626, %v6541
    %6681 = vst.msk [vmem:[#allocation5 + $0x1b0] sm:$0xff] %vm6626, %v6543
    %6682 = vst.msk [vmem:[#allocation5 + $0x1b8] sm:$0xff] %vm6626, %v6545
    %6683 = vst.msk [vmem:[#allocation5 + $0x1c0] sm:$0xff] %vm6626, %v6547
    %6684 = vst.msk [vmem:[#allocation5 + $0x1c8] sm:$0xff] %vm6626, %v6549
    %6685 = vst.msk [vmem:[#allocation5 + $0x1d0] sm:$0xff] %vm6626, %v6551
    %6686 = vst.msk [vmem:[#allocation5 + $0x1d8] sm:$0xff] %vm6626, %v6553
    %6687 = vst.msk [vmem:[#allocation5 + $0x1e0] sm:$0xff] %vm6626, %v6555
    %6688 = vst.msk [vmem:[#allocation5 + $0x1e8] sm:$0xff] %vm6626, %v6557
    %6689 = vst.msk [vmem:[#allocation5 + $0x1f0] sm:$0xff] %vm6626, %v6559
    %6690 = vst.msk [vmem:[#allocation5 + $0x1f8] sm:$0xff] %vm6626, %v6561
    %s6691 = scalar_lea.vmem [#allocation4], 48
    %v6692 = vld [vmem:[%s6691] sm:$0xff]
    %v6693 = vld [vmem:[%s6691 + $0x8] sm:$0xff]
    %v6694 = vld [vmem:[%s6691 + $0x18] sm:$0xff]
    %v6695 = vld [vmem:[%s6691 + $0x20] sm:$0xff]
    %v6696 = vld [vmem:[%s6691 + $0x30] sm:$0xff]
    %v6697 = vld [vmem:[%s6691 + $0x38] sm:$0xff]
    %v6698 = vld [vmem:[%s6691 + $0x48] sm:$0xff]
    %v6699 = vld [vmem:[%s6691 + $0x50] sm:$0xff]
    %v6700 = vld [vmem:[%s6691 + $0x60] sm:$0xff]
    %v6701 = vld [vmem:[%s6691 + $0x68] sm:$0xff]
    %v6702 = vld [vmem:[%s6691 + $0x78] sm:$0xff]
    %v6703 = vld [vmem:[%s6691 + $0x80] sm:$0xff]
    %v6704 = vld [vmem:[%s6691 + $0x90] sm:$0xff]
    %v6705 = vld [vmem:[%s6691 + $0x98] sm:$0xff]
    %v6706 = vld [vmem:[%s6691 + $0xa8] sm:$0xff]
    %v6707 = vld [vmem:[%s6691 + $0xb0] sm:$0xff]
    %v6708 = vld [vmem:[%s6691 + $0xc0] sm:$0xff]
    %v6709 = vld [vmem:[%s6691 + $0xc8] sm:$0xff]
    %v6710 = vld [vmem:[%s6691 + $0xd8] sm:$0xff]
    %v6711 = vld [vmem:[%s6691 + $0xe0] sm:$0xff]
    %v6712 = vld [vmem:[%s6691 + $0xf0] sm:$0xff]
    %v6713 = vld [vmem:[%s6691 + $0xf8] sm:$0xff]
    %v6714 = vld [vmem:[%s6691 + $0x108] sm:$0xff]
    %v6715 = vld [vmem:[%s6691 + $0x110] sm:$0xff]
    %v6716 = vld [vmem:[%s6691 + $0x120] sm:$0xff]
    %v6717 = vld [vmem:[%s6691 + $0x128] sm:$0xff]
    %v6718 = vld [vmem:[%s6691 + $0x138] sm:$0xff]
    %v6719 = vld [vmem:[%s6691 + $0x140] sm:$0xff]
    %v6720 = vld [vmem:[%s6691 + $0x150] sm:$0xff]
    %v6721 = vld [vmem:[%s6691 + $0x158] sm:$0xff]
    %v6722 = vld [vmem:[%s6691 + $0x168] sm:$0xff]
    %v6723 = vld [vmem:[%s6691 + $0x170] sm:$0xff]
    %v6724 = vld [vmem:[%s6691 + $0x1b0] sm:$0xff]
    %v6725 = vld [vmem:[%s6691 + $0x1b8] sm:$0xff]
    %v6726 = vld [vmem:[%s6691 + $0x1c8] sm:$0xff]
    %v6727 = vld [vmem:[%s6691 + $0x1d0] sm:$0xff]
    %v6728 = vld [vmem:[%s6691 + $0x1e0] sm:$0xff]
    %v6729 = vld [vmem:[%s6691 + $0x1e8] sm:$0xff]
    %v6730 = vld [vmem:[%s6691 + $0x1f8] sm:$0xff]
    %v6731 = vld [vmem:[%s6691 + $0x200] sm:$0xff]
    %v6732 = vld [vmem:[%s6691 + $0x210] sm:$0xff]
    %v6733 = vld [vmem:[%s6691 + $0x218] sm:$0xff]
    %v6734 = vld [vmem:[%s6691 + $0x228] sm:$0xff]
    %v6735 = vld [vmem:[%s6691 + $0x230] sm:$0xff]
    %v6736 = vld [vmem:[%s6691 + $0x240] sm:$0xff]
    %v6737 = vld [vmem:[%s6691 + $0x248] sm:$0xff]
    %v6738 = vld [vmem:[%s6691 + $0x258] sm:$0xff]
    %v6739 = vld [vmem:[%s6691 + $0x260] sm:$0xff]
    %v6740 = vld [vmem:[%s6691 + $0x270] sm:$0xff]
    %v6741 = vld [vmem:[%s6691 + $0x278] sm:$0xff]
    %v6742 = vld [vmem:[%s6691 + $0x288] sm:$0xff]
    %v6743 = vld [vmem:[%s6691 + $0x290] sm:$0xff]
    %v6744 = vld [vmem:[%s6691 + $0x2a0] sm:$0xff]
    %v6745 = vld [vmem:[%s6691 + $0x2a8] sm:$0xff]
    %v6746 = vld [vmem:[%s6691 + $0x2b8] sm:$0xff]
    %v6747 = vld [vmem:[%s6691 + $0x2c0] sm:$0xff]
    %v6748 = vld [vmem:[%s6691 + $0x2d0] sm:$0xff]
    %v6749 = vld [vmem:[%s6691 + $0x2d8] sm:$0xff]
    %v6750 = vld [vmem:[%s6691 + $0x2e8] sm:$0xff]
    %v6751 = vld [vmem:[%s6691 + $0x2f0] sm:$0xff]
    %v6752 = vld [vmem:[%s6691 + $0x300] sm:$0xff]
    %v6753 = vld [vmem:[%s6691 + $0x308] sm:$0xff]
    %v6754 = vld [vmem:[%s6691 + $0x318] sm:$0xff]
    %v6755 = vld [vmem:[%s6691 + $0x320] sm:$0xff]
    %6820 = vrot.lane.b32.xlu0 %v6692, 48
    %v6821 = vpop.permute.xlu0 %6820
    %6822 = vrot.lane.b32.xlu0 %v6693, 48
    %v6823 = vpop.permute.xlu0 %6822
    %6824 = vrot.lane.b32.xlu0 %v6694, 48
    %v6825 = vpop.permute.xlu0 %6824
    %6826 = vrot.lane.b32.xlu0 %v6695, 48
    %v6827 = vpop.permute.xlu0 %6826
    %6828 = vrot.lane.b32.xlu0 %v6696, 48
    %v6829 = vpop.permute.xlu0 %6828
    %6830 = vrot.lane.b32.xlu0 %v6697, 48
    %v6831 = vpop.permute.xlu0 %6830
    %6832 = vrot.lane.b32.xlu0 %v6698, 48
    %v6833 = vpop.permute.xlu0 %6832
    %6834 = vrot.lane.b32.xlu0 %v6699, 48
    %v6835 = vpop.permute.xlu0 %6834
    %6836 = vrot.lane.b32.xlu0 %v6700, 48
    %v6837 = vpop.permute.xlu0 %6836
    %6838 = vrot.lane.b32.xlu0 %v6701, 48
    %v6839 = vpop.permute.xlu0 %6838
    %6840 = vrot.lane.b32.xlu0 %v6702, 48
    %v6841 = vpop.permute.xlu0 %6840
    %6842 = vrot.lane.b32.xlu0 %v6703, 48
    %v6843 = vpop.permute.xlu0 %6842
    %6844 = vrot.lane.b32.xlu0 %v6704, 48
    %v6845 = vpop.permute.xlu0 %6844
    %6846 = vrot.lane.b32.xlu0 %v6705, 48
    %v6847 = vpop.permute.xlu0 %6846
    %6848 = vrot.lane.b32.xlu0 %v6706, 48
    %v6849 = vpop.permute.xlu0 %6848
    %6850 = vrot.lane.b32.xlu0 %v6707, 48
    %v6851 = vpop.permute.xlu0 %6850
    %6852 = vrot.lane.b32.xlu0 %v6708, 48
    %v6853 = vpop.permute.xlu0 %6852
    %6854 = vrot.lane.b32.xlu0 %v6709, 48
    %v6855 = vpop.permute.xlu0 %6854
    %6856 = vrot.lane.b32.xlu0 %v6710, 48
    %v6857 = vpop.permute.xlu0 %6856
    %6858 = vrot.lane.b32.xlu0 %v6711, 48
    %v6859 = vpop.permute.xlu0 %6858
    %6860 = vrot.lane.b32.xlu0 %v6712, 48
    %v6861 = vpop.permute.xlu0 %6860
    %6862 = vrot.lane.b32.xlu0 %v6713, 48
    %v6863 = vpop.permute.xlu0 %6862
    %6864 = vrot.lane.b32.xlu0 %v6714, 48
    %v6865 = vpop.permute.xlu0 %6864
    %6866 = vrot.lane.b32.xlu0 %v6715, 48
    %v6867 = vpop.permute.xlu0 %6866
    %6868 = vrot.lane.b32.xlu0 %v6716, 48
    %v6869 = vpop.permute.xlu0 %6868
    %6870 = vrot.lane.b32.xlu0 %v6717, 48
    %v6871 = vpop.permute.xlu0 %6870
    %6872 = vrot.lane.b32.xlu0 %v6718, 48
    %v6873 = vpop.permute.xlu0 %6872
    %6874 = vrot.lane.b32.xlu0 %v6719, 48
    %v6875 = vpop.permute.xlu0 %6874
    %6876 = vrot.lane.b32.xlu0 %v6720, 48
    %v6877 = vpop.permute.xlu0 %6876
    %6878 = vrot.lane.b32.xlu0 %v6721, 48
    %v6879 = vpop.permute.xlu0 %6878
    %6880 = vrot.lane.b32.xlu0 %v6722, 48
    %v6881 = vpop.permute.xlu0 %6880
    %6882 = vrot.lane.b32.xlu0 %v6723, 48
    %v6883 = vpop.permute.xlu0 %6882
    %6884 = vrot.lane.b32.xlu0 %v6724, 48
    %v6885 = vpop.permute.xlu0 %6884
    %6886 = vrot.lane.b32.xlu0 %v6725, 48
    %v6887 = vpop.permute.xlu0 %6886
    %6888 = vrot.lane.b32.xlu0 %v6726, 48
    %v6889 = vpop.permute.xlu0 %6888
    %6890 = vrot.lane.b32.xlu0 %v6727, 48
    %v6891 = vpop.permute.xlu0 %6890
    %6892 = vrot.lane.b32.xlu0 %v6728, 48
    %v6893 = vpop.permute.xlu0 %6892
    %6894 = vrot.lane.b32.xlu0 %v6729, 48
    %v6895 = vpop.permute.xlu0 %6894
    %6896 = vrot.lane.b32.xlu0 %v6730, 48
    %v6897 = vpop.permute.xlu0 %6896
    %6898 = vrot.lane.b32.xlu0 %v6731, 48
    %v6899 = vpop.permute.xlu0 %6898
    %6900 = vrot.lane.b32.xlu0 %v6732, 48
    %v6901 = vpop.permute.xlu0 %6900
    %6902 = vrot.lane.b32.xlu0 %v6733, 48
    %v6903 = vpop.permute.xlu0 %6902
    %6904 = vrot.lane.b32.xlu0 %v6734, 48
    %v6905 = vpop.permute.xlu0 %6904
    %6906 = vrot.lane.b32.xlu0 %v6735, 48
    %v6907 = vpop.permute.xlu0 %6906
    %6908 = vrot.lane.b32.xlu0 %v6736, 48
    %v6909 = vpop.permute.xlu0 %6908
    %6910 = vrot.lane.b32.xlu0 %v6737, 48
    %v6911 = vpop.permute.xlu0 %6910
    %6912 = vrot.lane.b32.xlu0 %v6738, 48
    %v6913 = vpop.permute.xlu0 %6912
    %6914 = vrot.lane.b32.xlu0 %v6739, 48
    %v6915 = vpop.permute.xlu0 %6914
    %6916 = vrot.lane.b32.xlu0 %v6740, 48
    %v6917 = vpop.permute.xlu0 %6916
    %6918 = vrot.lane.b32.xlu0 %v6741, 48
    %v6919 = vpop.permute.xlu0 %6918
    %6920 = vrot.lane.b32.xlu0 %v6742, 48
    %v6921 = vpop.permute.xlu0 %6920
    %6922 = vrot.lane.b32.xlu0 %v6743, 48
    %v6923 = vpop.permute.xlu0 %6922
    %6924 = vrot.lane.b32.xlu0 %v6744, 48
    %v6925 = vpop.permute.xlu0 %6924
    %6926 = vrot.lane.b32.xlu0 %v6745, 48
    %v6927 = vpop.permute.xlu0 %6926
    %6928 = vrot.lane.b32.xlu0 %v6746, 48
    %v6929 = vpop.permute.xlu0 %6928
    %6930 = vrot.lane.b32.xlu0 %v6747, 48
    %v6931 = vpop.permute.xlu0 %6930
    %6932 = vrot.lane.b32.xlu0 %v6748, 48
    %v6933 = vpop.permute.xlu0 %6932
    %6934 = vrot.lane.b32.xlu0 %v6749, 48
    %v6935 = vpop.permute.xlu0 %6934
    %6936 = vrot.lane.b32.xlu0 %v6750, 48
    %v6937 = vpop.permute.xlu0 %6936
    %6938 = vrot.lane.b32.xlu0 %v6751, 48
    %v6939 = vpop.permute.xlu0 %6938
    %6940 = vrot.lane.b32.xlu0 %v6752, 48
    %v6941 = vpop.permute.xlu0 %6940
    %6942 = vrot.lane.b32.xlu0 %v6753, 48
    %v6943 = vpop.permute.xlu0 %6942
    %6944 = vrot.lane.b32.xlu0 %v6754, 48
    %v6945 = vpop.permute.xlu0 %6944
    %6946 = vrot.lane.b32.xlu0 %v6755, 48
    %v6947 = vpop.permute.xlu0 %6946
    %vm7012 = vcmask 458112
    %7013 = vst.msk [vmem:[#allocation5] sm:$0xff] %vm7012, %v6821
    %7014 = vst.msk [vmem:[#allocation5 + $0x8] sm:$0xff] %vm7012, %v6823
    %7015 = vst.msk [vmem:[#allocation5 + $0x10] sm:$0xff] %vm7012, %v6825
    %7016 = vst.msk [vmem:[#allocation5 + $0x18] sm:$0xff] %vm7012, %v6827
    %7017 = vst.msk [vmem:[#allocation5 + $0x20] sm:$0xff] %vm7012, %v6829
    %7018 = vst.msk [vmem:[#allocation5 + $0x28] sm:$0xff] %vm7012, %v6831
    %7019 = vst.msk [vmem:[#allocation5 + $0x30] sm:$0xff] %vm7012, %v6833
    %7020 = vst.msk [vmem:[#allocation5 + $0x38] sm:$0xff] %vm7012, %v6835
    %7021 = vst.msk [vmem:[#allocation5 + $0x40] sm:$0xff] %vm7012, %v6837
    %7022 = vst.msk [vmem:[#allocation5 + $0x48] sm:$0xff] %vm7012, %v6839
    %7023 = vst.msk [vmem:[#allocation5 + $0x50] sm:$0xff] %vm7012, %v6841
    %7024 = vst.msk [vmem:[#allocation5 + $0x58] sm:$0xff] %vm7012, %v6843
    %7025 = vst.msk [vmem:[#allocation5 + $0x60] sm:$0xff] %vm7012, %v6845
    %7026 = vst.msk [vmem:[#allocation5 + $0x68] sm:$0xff] %vm7012, %v6847
    %7027 = vst.msk [vmem:[#allocation5 + $0x70] sm:$0xff] %vm7012, %v6849
    %7028 = vst.msk [vmem:[#allocation5 + $0x78] sm:$0xff] %vm7012, %v6851
    %7029 = vst.msk [vmem:[#allocation5 + $0x80] sm:$0xff] %vm7012, %v6853
    %7030 = vst.msk [vmem:[#allocation5 + $0x88] sm:$0xff] %vm7012, %v6855
    %7031 = vst.msk [vmem:[#allocation5 + $0x90] sm:$0xff] %vm7012, %v6857
    %7032 = vst.msk [vmem:[#allocation5 + $0x98] sm:$0xff] %vm7012, %v6859
    %7033 = vst.msk [vmem:[#allocation5 + $0xa0] sm:$0xff] %vm7012, %v6861
    %7034 = vst.msk [vmem:[#allocation5 + $0xa8] sm:$0xff] %vm7012, %v6863
    %7035 = vst.msk [vmem:[#allocation5 + $0xb0] sm:$0xff] %vm7012, %v6865
    %7036 = vst.msk [vmem:[#allocation5 + $0xb8] sm:$0xff] %vm7012, %v6867
    %7037 = vst.msk [vmem:[#allocation5 + $0xc0] sm:$0xff] %vm7012, %v6869
    %7038 = vst.msk [vmem:[#allocation5 + $0xc8] sm:$0xff] %vm7012, %v6871
    %7039 = vst.msk [vmem:[#allocation5 + $0xd0] sm:$0xff] %vm7012, %v6873
    %7040 = vst.msk [vmem:[#allocation5 + $0xd8] sm:$0xff] %vm7012, %v6875
    %7041 = vst.msk [vmem:[#allocation5 + $0xe0] sm:$0xff] %vm7012, %v6877
    %7042 = vst.msk [vmem:[#allocation5 + $0xe8] sm:$0xff] %vm7012, %v6879
    %7043 = vst.msk [vmem:[#allocation5 + $0xf0] sm:$0xff] %vm7012, %v6881
    %7044 = vst.msk [vmem:[#allocation5 + $0xf8] sm:$0xff] %vm7012, %v6883
    %7045 = vst.msk [vmem:[#allocation5 + $0x100] sm:$0xff] %vm7012, %v6885
    %7046 = vst.msk [vmem:[#allocation5 + $0x108] sm:$0xff] %vm7012, %v6887
    %7047 = vst.msk [vmem:[#allocation5 + $0x110] sm:$0xff] %vm7012, %v6889
    %7048 = vst.msk [vmem:[#allocation5 + $0x118] sm:$0xff] %vm7012, %v6891
    %7049 = vst.msk [vmem:[#allocation5 + $0x120] sm:$0xff] %vm7012, %v6893
    %7050 = vst.msk [vmem:[#allocation5 + $0x128] sm:$0xff] %vm7012, %v6895
    %7051 = vst.msk [vmem:[#allocation5 + $0x130] sm:$0xff] %vm7012, %v6897
    %7052 = vst.msk [vmem:[#allocation5 + $0x138] sm:$0xff] %vm7012, %v6899
    %7053 = vst.msk [vmem:[#allocation5 + $0x140] sm:$0xff] %vm7012, %v6901
    %7054 = vst.msk [vmem:[#allocation5 + $0x148] sm:$0xff] %vm7012, %v6903
    %7055 = vst.msk [vmem:[#allocation5 + $0x150] sm:$0xff] %vm7012, %v6905
    %7056 = vst.msk [vmem:[#allocation5 + $0x158] sm:$0xff] %vm7012, %v6907
    %7057 = vst.msk [vmem:[#allocation5 + $0x160] sm:$0xff] %vm7012, %v6909
    %7058 = vst.msk [vmem:[#allocation5 + $0x168] sm:$0xff] %vm7012, %v6911
    %7059 = vst.msk [vmem:[#allocation5 + $0x170] sm:$0xff] %vm7012, %v6913
    %7060 = vst.msk [vmem:[#allocation5 + $0x178] sm:$0xff] %vm7012, %v6915
    %7061 = vst.msk [vmem:[#allocation5 + $0x180] sm:$0xff] %vm7012, %v6917
    %7062 = vst.msk [vmem:[#allocation5 + $0x188] sm:$0xff] %vm7012, %v6919
    %7063 = vst.msk [vmem:[#allocation5 + $0x190] sm:$0xff] %vm7012, %v6921
    %7064 = vst.msk [vmem:[#allocation5 + $0x198] sm:$0xff] %vm7012, %v6923
    %7065 = vst.msk [vmem:[#allocation5 + $0x1a0] sm:$0xff] %vm7012, %v6925
    %7066 = vst.msk [vmem:[#allocation5 + $0x1a8] sm:$0xff] %vm7012, %v6927
    %7067 = vst.msk [vmem:[#allocation5 + $0x1b0] sm:$0xff] %vm7012, %v6929
    %7068 = vst.msk [vmem:[#allocation5 + $0x1b8] sm:$0xff] %vm7012, %v6931
    %7069 = vst.msk [vmem:[#allocation5 + $0x1c0] sm:$0xff] %vm7012, %v6933
    %7070 = vst.msk [vmem:[#allocation5 + $0x1c8] sm:$0xff] %vm7012, %v6935
    %7071 = vst.msk [vmem:[#allocation5 + $0x1d0] sm:$0xff] %vm7012, %v6937
    %7072 = vst.msk [vmem:[#allocation5 + $0x1d8] sm:$0xff] %vm7012, %v6939
    %7073 = vst.msk [vmem:[#allocation5 + $0x1e0] sm:$0xff] %vm7012, %v6941
    %7074 = vst.msk [vmem:[#allocation5 + $0x1e8] sm:$0xff] %vm7012, %v6943
    %7075 = vst.msk [vmem:[#allocation5 + $0x1f0] sm:$0xff] %vm7012, %v6945
    %7076 = vst.msk [vmem:[#allocation5 + $0x1f8] sm:$0xff] %vm7012, %v6947
    %v7077 = vld [vmem:[%s6691 + $0x1] sm:$0xff]
    %v7078 = vld [vmem:[%s6691 + $0x9] sm:$0xff]
    %v7079 = vld [vmem:[%s6691 + $0x19] sm:$0xff]
    %v7080 = vld [vmem:[%s6691 + $0x21] sm:$0xff]
    %v7081 = vld [vmem:[%s6691 + $0x31] sm:$0xff]
    %v7082 = vld [vmem:[%s6691 + $0x39] sm:$0xff]
    %v7083 = vld [vmem:[%s6691 + $0x49] sm:$0xff]
    %v7084 = vld [vmem:[%s6691 + $0x51] sm:$0xff]
    %v7085 = vld [vmem:[%s6691 + $0x61] sm:$0xff]
    %v7086 = vld [vmem:[%s6691 + $0x69] sm:$0xff]
    %v7087 = vld [vmem:[%s6691 + $0x79] sm:$0xff]
    %v7088 = vld [vmem:[%s6691 + $0x81] sm:$0xff]
    %v7089 = vld [vmem:[%s6691 + $0x91] sm:$0xff]
    %v7090 = vld [vmem:[%s6691 + $0x99] sm:$0xff]
    %v7091 = vld [vmem:[%s6691 + $0xa9] sm:$0xff]
    %v7092 = vld [vmem:[%s6691 + $0xb1] sm:$0xff]
    %v7093 = vld [vmem:[%s6691 + $0xc1] sm:$0xff]
    %v7094 = vld [vmem:[%s6691 + $0xc9] sm:$0xff]
    %v7095 = vld [vmem:[%s6691 + $0xd9] sm:$0xff]
    %v7096 = vld [vmem:[%s6691 + $0xe1] sm:$0xff]
    %v7097 = vld [vmem:[%s6691 + $0xf1] sm:$0xff]
    %v7098 = vld [vmem:[%s6691 + $0xf9] sm:$0xff]
    %v7099 = vld [vmem:[%s6691 + $0x109] sm:$0xff]
    %v7100 = vld [vmem:[%s6691 + $0x111] sm:$0xff]
    %v7101 = vld [vmem:[%s6691 + $0x121] sm:$0xff]
    %v7102 = vld [vmem:[%s6691 + $0x129] sm:$0xff]
    %v7103 = vld [vmem:[%s6691 + $0x139] sm:$0xff]
    %v7104 = vld [vmem:[%s6691 + $0x141] sm:$0xff]
    %v7105 = vld [vmem:[%s6691 + $0x151] sm:$0xff]
    %v7106 = vld [vmem:[%s6691 + $0x159] sm:$0xff]
    %v7107 = vld [vmem:[%s6691 + $0x169] sm:$0xff]
    %v7108 = vld [vmem:[%s6691 + $0x171] sm:$0xff]
    %v7109 = vld [vmem:[%s6691 + $0x1b1] sm:$0xff]
    %v7110 = vld [vmem:[%s6691 + $0x1b9] sm:$0xff]
    %v7111 = vld [vmem:[%s6691 + $0x1c9] sm:$0xff]
    %v7112 = vld [vmem:[%s6691 + $0x1d1] sm:$0xff]
    %v7113 = vld [vmem:[%s6691 + $0x1e1] sm:$0xff]
    %v7114 = vld [vmem:[%s6691 + $0x1e9] sm:$0xff]
    %v7115 = vld [vmem:[%s6691 + $0x1f9] sm:$0xff]
    %v7116 = vld [vmem:[%s6691 + $0x201] sm:$0xff]
    %v7117 = vld [vmem:[%s6691 + $0x211] sm:$0xff]
    %v7118 = vld [vmem:[%s6691 + $0x219] sm:$0xff]
    %v7119 = vld [vmem:[%s6691 + $0x229] sm:$0xff]
    %v7120 = vld [vmem:[%s6691 + $0x231] sm:$0xff]
    %v7121 = vld [vmem:[%s6691 + $0x241] sm:$0xff]
    %v7122 = vld [vmem:[%s6691 + $0x249] sm:$0xff]
    %v7123 = vld [vmem:[%s6691 + $0x259] sm:$0xff]
    %v7124 = vld [vmem:[%s6691 + $0x261] sm:$0xff]
    %v7125 = vld [vmem:[%s6691 + $0x271] sm:$0xff]
    %v7126 = vld [vmem:[%s6691 + $0x279] sm:$0xff]
    %v7127 = vld [vmem:[%s6691 + $0x289] sm:$0xff]
    %v7128 = vld [vmem:[%s6691 + $0x291] sm:$0xff]
    %v7129 = vld [vmem:[%s6691 + $0x2a1] sm:$0xff]
    %v7130 = vld [vmem:[%s6691 + $0x2a9] sm:$0xff]
    %v7131 = vld [vmem:[%s6691 + $0x2b9] sm:$0xff]
    %v7132 = vld [vmem:[%s6691 + $0x2c1] sm:$0xff]
    %v7133 = vld [vmem:[%s6691 + $0x2d1] sm:$0xff]
    %v7134 = vld [vmem:[%s6691 + $0x2d9] sm:$0xff]
    %v7135 = vld [vmem:[%s6691 + $0x2e9] sm:$0xff]
    %v7136 = vld [vmem:[%s6691 + $0x2f1] sm:$0xff]
    %v7137 = vld [vmem:[%s6691 + $0x301] sm:$0xff]
    %v7138 = vld [vmem:[%s6691 + $0x309] sm:$0xff]
    %v7139 = vld [vmem:[%s6691 + $0x319] sm:$0xff]
    %v7140 = vld [vmem:[%s6691 + $0x321] sm:$0xff]
    %7205 = vrot.lane.b32.xlu0 %v7077, 56
    %v7206 = vpop.permute.xlu0 %7205
    %7207 = vrot.lane.b32.xlu0 %v7078, 56
    %v7208 = vpop.permute.xlu0 %7207
    %7209 = vrot.lane.b32.xlu0 %v7079, 56
    %v7210 = vpop.permute.xlu0 %7209
    %7211 = vrot.lane.b32.xlu0 %v7080, 56
    %v7212 = vpop.permute.xlu0 %7211
    %7213 = vrot.lane.b32.xlu0 %v7081, 56
    %v7214 = vpop.permute.xlu0 %7213
    %7215 = vrot.lane.b32.xlu0 %v7082, 56
    %v7216 = vpop.permute.xlu0 %7215
    %7217 = vrot.lane.b32.xlu0 %v7083, 56
    %v7218 = vpop.permute.xlu0 %7217
    %7219 = vrot.lane.b32.xlu0 %v7084, 56
    %v7220 = vpop.permute.xlu0 %7219
    %7221 = vrot.lane.b32.xlu0 %v7085, 56
    %v7222 = vpop.permute.xlu0 %7221
    %7223 = vrot.lane.b32.xlu0 %v7086, 56
    %v7224 = vpop.permute.xlu0 %7223
    %7225 = vrot.lane.b32.xlu0 %v7087, 56
    %v7226 = vpop.permute.xlu0 %7225
    %7227 = vrot.lane.b32.xlu0 %v7088, 56
    %v7228 = vpop.permute.xlu0 %7227
    %7229 = vrot.lane.b32.xlu0 %v7089, 56
    %v7230 = vpop.permute.xlu0 %7229
    %7231 = vrot.lane.b32.xlu0 %v7090, 56
    %v7232 = vpop.permute.xlu0 %7231
    %7233 = vrot.lane.b32.xlu0 %v7091, 56
    %v7234 = vpop.permute.xlu0 %7233
    %7235 = vrot.lane.b32.xlu0 %v7092, 56
    %v7236 = vpop.permute.xlu0 %7235
    %7237 = vrot.lane.b32.xlu0 %v7093, 56
    %v7238 = vpop.permute.xlu0 %7237
    %7239 = vrot.lane.b32.xlu0 %v7094, 56
    %v7240 = vpop.permute.xlu0 %7239
    %7241 = vrot.lane.b32.xlu0 %v7095, 56
    %v7242 = vpop.permute.xlu0 %7241
    %7243 = vrot.lane.b32.xlu0 %v7096, 56
    %v7244 = vpop.permute.xlu0 %7243
    %7245 = vrot.lane.b32.xlu0 %v7097, 56
    %v7246 = vpop.permute.xlu0 %7245
    %7247 = vrot.lane.b32.xlu0 %v7098, 56
    %v7248 = vpop.permute.xlu0 %7247
    %7249 = vrot.lane.b32.xlu0 %v7099, 56
    %v7250 = vpop.permute.xlu0 %7249
    %7251 = vrot.lane.b32.xlu0 %v7100, 56
    %v7252 = vpop.permute.xlu0 %7251
    %7253 = vrot.lane.b32.xlu0 %v7101, 56
    %v7254 = vpop.permute.xlu0 %7253
    %7255 = vrot.lane.b32.xlu0 %v7102, 56
    %v7256 = vpop.permute.xlu0 %7255
    %7257 = vrot.lane.b32.xlu0 %v7103, 56
    %v7258 = vpop.permute.xlu0 %7257
    %7259 = vrot.lane.b32.xlu0 %v7104, 56
    %v7260 = vpop.permute.xlu0 %7259
    %7261 = vrot.lane.b32.xlu0 %v7105, 56
    %v7262 = vpop.permute.xlu0 %7261
    %7263 = vrot.lane.b32.xlu0 %v7106, 56
    %v7264 = vpop.permute.xlu0 %7263
    %7265 = vrot.lane.b32.xlu0 %v7107, 56
    %v7266 = vpop.permute.xlu0 %7265
    %7267 = vrot.lane.b32.xlu0 %v7108, 56
    %v7268 = vpop.permute.xlu0 %7267
    %7269 = vrot.lane.b32.xlu0 %v7109, 56
    %v7270 = vpop.permute.xlu0 %7269
    %7271 = vrot.lane.b32.xlu0 %v7110, 56
    %v7272 = vpop.permute.xlu0 %7271
    %7273 = vrot.lane.b32.xlu0 %v7111, 56
    %v7274 = vpop.permute.xlu0 %7273
    %7275 = vrot.lane.b32.xlu0 %v7112, 56
    %v7276 = vpop.permute.xlu0 %7275
    %7277 = vrot.lane.b32.xlu0 %v7113, 56
    %v7278 = vpop.permute.xlu0 %7277
    %7279 = vrot.lane.b32.xlu0 %v7114, 56
    %v7280 = vpop.permute.xlu0 %7279
    %7281 = vrot.lane.b32.xlu0 %v7115, 56
    %v7282 = vpop.permute.xlu0 %7281
    %7283 = vrot.lane.b32.xlu0 %v7116, 56
    %v7284 = vpop.permute.xlu0 %7283
    %7285 = vrot.lane.b32.xlu0 %v7117, 56
    %v7286 = vpop.permute.xlu0 %7285
    %7287 = vrot.lane.b32.xlu0 %v7118, 56
    %v7288 = vpop.permute.xlu0 %7287
    %7289 = vrot.lane.b32.xlu0 %v7119, 56
    %v7290 = vpop.permute.xlu0 %7289
    %7291 = vrot.lane.b32.xlu0 %v7120, 56
    %v7292 = vpop.permute.xlu0 %7291
    %7293 = vrot.lane.b32.xlu0 %v7121, 56
    %v7294 = vpop.permute.xlu0 %7293
    %7295 = vrot.lane.b32.xlu0 %v7122, 56
    %v7296 = vpop.permute.xlu0 %7295
    %7297 = vrot.lane.b32.xlu0 %v7123, 56
    %v7298 = vpop.permute.xlu0 %7297
    %7299 = vrot.lane.b32.xlu0 %v7124, 56
    %v7300 = vpop.permute.xlu0 %7299
    %7301 = vrot.lane.b32.xlu0 %v7125, 56
    %v7302 = vpop.permute.xlu0 %7301
    %7303 = vrot.lane.b32.xlu0 %v7126, 56
    %v7304 = vpop.permute.xlu0 %7303
    %7305 = vrot.lane.b32.xlu0 %v7127, 56
    %v7306 = vpop.permute.xlu0 %7305
    %7307 = vrot.lane.b32.xlu0 %v7128, 56
    %v7308 = vpop.permute.xlu0 %7307
    %7309 = vrot.lane.b32.xlu0 %v7129, 56
    %v7310 = vpop.permute.xlu0 %7309
    %7311 = vrot.lane.b32.xlu0 %v7130, 56
    %v7312 = vpop.permute.xlu0 %7311
    %7313 = vrot.lane.b32.xlu0 %v7131, 56
    %v7314 = vpop.permute.xlu0 %7313
    %7315 = vrot.lane.b32.xlu0 %v7132, 56
    %v7316 = vpop.permute.xlu0 %7315
    %7317 = vrot.lane.b32.xlu0 %v7133, 56
    %v7318 = vpop.permute.xlu0 %7317
    %7319 = vrot.lane.b32.xlu0 %v7134, 56
    %v7320 = vpop.permute.xlu0 %7319
    %7321 = vrot.lane.b32.xlu0 %v7135, 56
    %v7322 = vpop.permute.xlu0 %7321
    %7323 = vrot.lane.b32.xlu0 %v7136, 56
    %v7324 = vpop.permute.xlu0 %7323
    %7325 = vrot.lane.b32.xlu0 %v7137, 56
    %v7326 = vpop.permute.xlu0 %7325
    %7327 = vrot.lane.b32.xlu0 %v7138, 56
    %v7328 = vpop.permute.xlu0 %7327
    %7329 = vrot.lane.b32.xlu0 %v7139, 56
    %v7330 = vpop.permute.xlu0 %7329
    %7331 = vrot.lane.b32.xlu0 %v7140, 56
    %v7332 = vpop.permute.xlu0 %7331
    %vm7397 = vcmask 523712
    %7398 = vst.msk [vmem:[#allocation5] sm:$0xff] %vm7397, %v7206
    %7399 = vst.msk [vmem:[#allocation5 + $0x8] sm:$0xff] %vm7397, %v7208
    %7400 = vst.msk [vmem:[#allocation5 + $0x10] sm:$0xff] %vm7397, %v7210
    %7401 = vst.msk [vmem:[#allocation5 + $0x18] sm:$0xff] %vm7397, %v7212
    %7402 = vst.msk [vmem:[#allocation5 + $0x20] sm:$0xff] %vm7397, %v7214
    %7403 = vst.msk [vmem:[#allocation5 + $0x28] sm:$0xff] %vm7397, %v7216
    %7404 = vst.msk [vmem:[#allocation5 + $0x30] sm:$0xff] %vm7397, %v7218
    %7405 = vst.msk [vmem:[#allocation5 + $0x38] sm:$0xff] %vm7397, %v7220
    %7406 = vst.msk [vmem:[#allocation5 + $0x40] sm:$0xff] %vm7397, %v7222
    %7407 = vst.msk [vmem:[#allocation5 + $0x48] sm:$0xff] %vm7397, %v7224
    %7408 = vst.msk [vmem:[#allocation5 + $0x50] sm:$0xff] %vm7397, %v7226
    %7409 = vst.msk [vmem:[#allocation5 + $0x58] sm:$0xff] %vm7397, %v7228
    %7410 = vst.msk [vmem:[#allocation5 + $0x60] sm:$0xff] %vm7397, %v7230
    %7411 = vst.msk [vmem:[#allocation5 + $0x68] sm:$0xff] %vm7397, %v7232
    %7412 = vst.msk [vmem:[#allocation5 + $0x70] sm:$0xff] %vm7397, %v7234
    %7413 = vst.msk [vmem:[#allocation5 + $0x78] sm:$0xff] %vm7397, %v7236
    %7414 = vst.msk [vmem:[#allocation5 + $0x80] sm:$0xff] %vm7397, %v7238
    %7415 = vst.msk [vmem:[#allocation5 + $0x88] sm:$0xff] %vm7397, %v7240
    %7416 = vst.msk [vmem:[#allocation5 + $0x90] sm:$0xff] %vm7397, %v7242
    %7417 = vst.msk [vmem:[#allocation5 + $0x98] sm:$0xff] %vm7397, %v7244
    %7418 = vst.msk [vmem:[#allocation5 + $0xa0] sm:$0xff] %vm7397, %v7246
    %7419 = vst.msk [vmem:[#allocation5 + $0xa8] sm:$0xff] %vm7397, %v7248
    %7420 = vst.msk [vmem:[#allocation5 + $0xb0] sm:$0xff] %vm7397, %v7250
    %7421 = vst.msk [vmem:[#allocation5 + $0xb8] sm:$0xff] %vm7397, %v7252
    %7422 = vst.msk [vmem:[#allocation5 + $0xc0] sm:$0xff] %vm7397, %v7254
    %7423 = vst.msk [vmem:[#allocation5 + $0xc8] sm:$0xff] %vm7397, %v7256
    %7424 = vst.msk [vmem:[#allocation5 + $0xd0] sm:$0xff] %vm7397, %v7258
    %7425 = vst.msk [vmem:[#allocation5 + $0xd8] sm:$0xff] %vm7397, %v7260
    %7426 = vst.msk [vmem:[#allocation5 + $0xe0] sm:$0xff] %vm7397, %v7262
    %7427 = vst.msk [vmem:[#allocation5 + $0xe8] sm:$0xff] %vm7397, %v7264
    %7428 = vst.msk [vmem:[#allocation5 + $0xf0] sm:$0xff] %vm7397, %v7266
    %7429 = vst.msk [vmem:[#allocation5 + $0xf8] sm:$0xff] %vm7397, %v7268
    %7430 = vst.msk [vmem:[#allocation5 + $0x100] sm:$0xff] %vm7397, %v7270
    %7431 = vst.msk [vmem:[#allocation5 + $0x108] sm:$0xff] %vm7397, %v7272
    %7432 = vst.msk [vmem:[#allocation5 + $0x110] sm:$0xff] %vm7397, %v7274
    %7433 = vst.msk [vmem:[#allocation5 + $0x118] sm:$0xff] %vm7397, %v7276
    %7434 = vst.msk [vmem:[#allocation5 + $0x120] sm:$0xff] %vm7397, %v7278
    %7435 = vst.msk [vmem:[#allocation5 + $0x128] sm:$0xff] %vm7397, %v7280
    %7436 = vst.msk [vmem:[#allocation5 + $0x130] sm:$0xff] %vm7397, %v7282
    %7437 = vst.msk [vmem:[#allocation5 + $0x138] sm:$0xff] %vm7397, %v7284
    %7438 = vst.msk [vmem:[#allocation5 + $0x140] sm:$0xff] %vm7397, %v7286
    %7439 = vst.msk [vmem:[#allocation5 + $0x148] sm:$0xff] %vm7397, %v7288
    %7440 = vst.msk [vmem:[#allocation5 + $0x150] sm:$0xff] %vm7397, %v7290
    %7441 = vst.msk [vmem:[#allocation5 + $0x158] sm:$0xff] %vm7397, %v7292
    %7442 = vst.msk [vmem:[#allocation5 + $0x160] sm:$0xff] %vm7397, %v7294
    %7443 = vst.msk [vmem:[#allocation5 + $0x168] sm:$0xff] %vm7397, %v7296
    %7444 = vst.msk [vmem:[#allocation5 + $0x170] sm:$0xff] %vm7397, %v7298
    %7445 = vst.msk [vmem:[#allocation5 + $0x178] sm:$0xff] %vm7397, %v7300
    %7446 = vst.msk [vmem:[#allocation5 + $0x180] sm:$0xff] %vm7397, %v7302
    %7447 = vst.msk [vmem:[#allocation5 + $0x188] sm:$0xff] %vm7397, %v7304
    %7448 = vst.msk [vmem:[#allocation5 + $0x190] sm:$0xff] %vm7397, %v7306
    %7449 = vst.msk [vmem:[#allocation5 + $0x198] sm:$0xff] %vm7397, %v7308
    %7450 = vst.msk [vmem:[#allocation5 + $0x1a0] sm:$0xff] %vm7397, %v7310
    %7451 = vst.msk [vmem:[#allocation5 + $0x1a8] sm:$0xff] %vm7397, %v7312
    %7452 = vst.msk [vmem:[#allocation5 + $0x1b0] sm:$0xff] %vm7397, %v7314
    %7453 = vst.msk [vmem:[#allocation5 + $0x1b8] sm:$0xff] %vm7397, %v7316
    %7454 = vst.msk [vmem:[#allocation5 + $0x1c0] sm:$0xff] %vm7397, %v7318
    %7455 = vst.msk [vmem:[#allocation5 + $0x1c8] sm:$0xff] %vm7397, %v7320
    %7456 = vst.msk [vmem:[#allocation5 + $0x1d0] sm:$0xff] %vm7397, %v7322
    %7457 = vst.msk [vmem:[#allocation5 + $0x1d8] sm:$0xff] %vm7397, %v7324
    %7458 = vst.msk [vmem:[#allocation5 + $0x1e0] sm:$0xff] %vm7397, %v7326
    %7459 = vst.msk [vmem:[#allocation5 + $0x1e8] sm:$0xff] %vm7397, %v7328
    %7460 = vst.msk [vmem:[#allocation5 + $0x1f0] sm:$0xff] %vm7397, %v7330
    %7461 = vst.msk [vmem:[#allocation5 + $0x1f8] sm:$0xff] %vm7397, %v7332
    %v7462 = vld [vmem:[%s6691 + $0x2] sm:$0xff]
    %v7463 = vld [vmem:[%s6691 + $0xa] sm:$0xff]
    %v7464 = vld [vmem:[%s6691 + $0x1a] sm:$0xff]
    %v7465 = vld [vmem:[%s6691 + $0x22] sm:$0xff]
    %v7466 = vld [vmem:[%s6691 + $0x32] sm:$0xff]
    %v7467 = vld [vmem:[%s6691 + $0x3a] sm:$0xff]
    %v7468 = vld [vmem:[%s6691 + $0x4a] sm:$0xff]
    %v7469 = vld [vmem:[%s6691 + $0x52] sm:$0xff]
    %v7470 = vld [vmem:[%s6691 + $0x62] sm:$0xff]
    %v7471 = vld [vmem:[%s6691 + $0x6a] sm:$0xff]
    %v7472 = vld [vmem:[%s6691 + $0x7a] sm:$0xff]
    %v7473 = vld [vmem:[%s6691 + $0x82] sm:$0xff]
    %v7474 = vld [vmem:[%s6691 + $0x92] sm:$0xff]
    %v7475 = vld [vmem:[%s6691 + $0x9a] sm:$0xff]
    %v7476 = vld [vmem:[%s6691 + $0xaa] sm:$0xff]
    %v7477 = vld [vmem:[%s6691 + $0xb2] sm:$0xff]
    %v7478 = vld [vmem:[%s6691 + $0xc2] sm:$0xff]
    %v7479 = vld [vmem:[%s6691 + $0xca] sm:$0xff]
    %v7480 = vld [vmem:[%s6691 + $0xda] sm:$0xff]
    %v7481 = vld [vmem:[%s6691 + $0xe2] sm:$0xff]
    %v7482 = vld [vmem:[%s6691 + $0xf2] sm:$0xff]
    %v7483 = vld [vmem:[%s6691 + $0xfa] sm:$0xff]
    %v7484 = vld [vmem:[%s6691 + $0x10a] sm:$0xff]
    %v7485 = vld [vmem:[%s6691 + $0x112] sm:$0xff]
    %v7486 = vld [vmem:[%s6691 + $0x122] sm:$0xff]
    %v7487 = vld [vmem:[%s6691 + $0x12a] sm:$0xff]
    %v7488 = vld [vmem:[%s6691 + $0x13a] sm:$0xff]
    %v7489 = vld [vmem:[%s6691 + $0x142] sm:$0xff]
    %v7490 = vld [vmem:[%s6691 + $0x152] sm:$0xff]
    %v7491 = vld [vmem:[%s6691 + $0x15a] sm:$0xff]
    %v7492 = vld [vmem:[%s6691 + $0x16a] sm:$0xff]
    %v7493 = vld [vmem:[%s6691 + $0x172] sm:$0xff]
    %v7494 = vld [vmem:[%s6691 + $0x1b2] sm:$0xff]
    %v7495 = vld [vmem:[%s6691 + $0x1ba] sm:$0xff]
    %v7496 = vld [vmem:[%s6691 + $0x1ca] sm:$0xff]
    %v7497 = vld [vmem:[%s6691 + $0x1d2] sm:$0xff]
    %v7498 = vld [vmem:[%s6691 + $0x1e2] sm:$0xff]
    %v7499 = vld [vmem:[%s6691 + $0x1ea] sm:$0xff]
    %v7500 = vld [vmem:[%s6691 + $0x1fa] sm:$0xff]
    %v7501 = vld [vmem:[%s6691 + $0x202] sm:$0xff]
    %v7502 = vld [vmem:[%s6691 + $0x212] sm:$0xff]
    %v7503 = vld [vmem:[%s6691 + $0x21a] sm:$0xff]
    %v7504 = vld [vmem:[%s6691 + $0x22a] sm:$0xff]
    %v7505 = vld [vmem:[%s6691 + $0x232] sm:$0xff]
    %v7506 = vld [vmem:[%s6691 + $0x242] sm:$0xff]
    %v7507 = vld [vmem:[%s6691 + $0x24a] sm:$0xff]
    %v7508 = vld [vmem:[%s6691 + $0x25a] sm:$0xff]
    %v7509 = vld [vmem:[%s6691 + $0x262] sm:$0xff]
    %v7510 = vld [vmem:[%s6691 + $0x272] sm:$0xff]
    %v7511 = vld [vmem:[%s6691 + $0x27a] sm:$0xff]
    %v7512 = vld [vmem:[%s6691 + $0x28a] sm:$0xff]
    %v7513 = vld [vmem:[%s6691 + $0x292] sm:$0xff]
    %v7514 = vld [vmem:[%s6691 + $0x2a2] sm:$0xff]
    %v7515 = vld [vmem:[%s6691 + $0x2aa] sm:$0xff]
    %v7516 = vld [vmem:[%s6691 + $0x2ba] sm:$0xff]
    %v7517 = vld [vmem:[%s6691 + $0x2c2] sm:$0xff]
    %v7518 = vld [vmem:[%s6691 + $0x2d2] sm:$0xff]
    %v7519 = vld [vmem:[%s6691 + $0x2da] sm:$0xff]
    %v7520 = vld [vmem:[%s6691 + $0x2ea] sm:$0xff]
    %v7521 = vld [vmem:[%s6691 + $0x2f2] sm:$0xff]
    %v7522 = vld [vmem:[%s6691 + $0x302] sm:$0xff]
    %v7523 = vld [vmem:[%s6691 + $0x30a] sm:$0xff]
    %v7524 = vld [vmem:[%s6691 + $0x31a] sm:$0xff]
    %v7525 = vld [vmem:[%s6691 + $0x322] sm:$0xff]
    %7590 = vrot.lane.b32.xlu0 %v7462, 64
    %v7591 = vpop.permute.xlu0 %7590
    %7592 = vrot.lane.b32.xlu0 %v7463, 64
    %v7593 = vpop.permute.xlu0 %7592
    %7594 = vrot.lane.b32.xlu0 %v7464, 64
    %v7595 = vpop.permute.xlu0 %7594
    %7596 = vrot.lane.b32.xlu0 %v7465, 64
    %v7597 = vpop.permute.xlu0 %7596
    %7598 = vrot.lane.b32.xlu0 %v7466, 64
    %v7599 = vpop.permute.xlu0 %7598
    %7600 = vrot.lane.b32.xlu0 %v7467, 64
    %v7601 = vpop.permute.xlu0 %7600
    %7602 = vrot.lane.b32.xlu0 %v7468, 64
    %v7603 = vpop.permute.xlu0 %7602
    %7604 = vrot.lane.b32.xlu0 %v7469, 64
    %v7605 = vpop.permute.xlu0 %7604
    %7606 = vrot.lane.b32.xlu0 %v7470, 64
    %v7607 = vpop.permute.xlu0 %7606
    %7608 = vrot.lane.b32.xlu0 %v7471, 64
    %v7609 = vpop.permute.xlu0 %7608
    %7610 = vrot.lane.b32.xlu0 %v7472, 64
    %v7611 = vpop.permute.xlu0 %7610
    %7612 = vrot.lane.b32.xlu0 %v7473, 64
    %v7613 = vpop.permute.xlu0 %7612
    %7614 = vrot.lane.b32.xlu0 %v7474, 64
    %v7615 = vpop.permute.xlu0 %7614
    %7616 = vrot.lane.b32.xlu0 %v7475, 64
    %v7617 = vpop.permute.xlu0 %7616
    %7618 = vrot.lane.b32.xlu0 %v7476, 64
    %v7619 = vpop.permute.xlu0 %7618
    %7620 = vrot.lane.b32.xlu0 %v7477, 64
    %v7621 = vpop.permute.xlu0 %7620
    %7622 = vrot.lane.b32.xlu0 %v7478, 64
    %v7623 = vpop.permute.xlu0 %7622
    %7624 = vrot.lane.b32.xlu0 %v7479, 64
    %v7625 = vpop.permute.xlu0 %7624
    %7626 = vrot.lane.b32.xlu0 %v7480, 64
    %v7627 = vpop.permute.xlu0 %7626
    %7628 = vrot.lane.b32.xlu0 %v7481, 64
    %v7629 = vpop.permute.xlu0 %7628
    %7630 = vrot.lane.b32.xlu0 %v7482, 64
    %v7631 = vpop.permute.xlu0 %7630
    %7632 = vrot.lane.b32.xlu0 %v7483, 64
    %v7633 = vpop.permute.xlu0 %7632
    %7634 = vrot.lane.b32.xlu0 %v7484, 64
    %v7635 = vpop.permute.xlu0 %7634
    %7636 = vrot.lane.b32.xlu0 %v7485, 64
    %v7637 = vpop.permute.xlu0 %7636
    %7638 = vrot.lane.b32.xlu0 %v7486, 64
    %v7639 = vpop.permute.xlu0 %7638
    %7640 = vrot.lane.b32.xlu0 %v7487, 64
    %v7641 = vpop.permute.xlu0 %7640
    %7642 = vrot.lane.b32.xlu0 %v7488, 64
    %v7643 = vpop.permute.xlu0 %7642
    %7644 = vrot.lane.b32.xlu0 %v7489, 64
    %v7645 = vpop.permute.xlu0 %7644
    %7646 = vrot.lane.b32.xlu0 %v7490, 64
    %v7647 = vpop.permute.xlu0 %7646
    %7648 = vrot.lane.b32.xlu0 %v7491, 64
    %v7649 = vpop.permute.xlu0 %7648
    %7650 = vrot.lane.b32.xlu0 %v7492, 64
    %v7651 = vpop.permute.xlu0 %7650
    %7652 = vrot.lane.b32.xlu0 %v7493, 64
    %v7653 = vpop.permute.xlu0 %7652
    %7654 = vrot.lane.b32.xlu0 %v7494, 64
    %v7655 = vpop.permute.xlu0 %7654
    %7656 = vrot.lane.b32.xlu0 %v7495, 64
    %v7657 = vpop.permute.xlu0 %7656
    %7658 = vrot.lane.b32.xlu0 %v7496, 64
    %v7659 = vpop.permute.xlu0 %7658
    %7660 = vrot.lane.b32.xlu0 %v7497, 64
    %v7661 = vpop.permute.xlu0 %7660
    %7662 = vrot.lane.b32.xlu0 %v7498, 64
    %v7663 = vpop.permute.xlu0 %7662
    %7664 = vrot.lane.b32.xlu0 %v7499, 64
    %v7665 = vpop.permute.xlu0 %7664
    %7666 = vrot.lane.b32.xlu0 %v7500, 64
    %v7667 = vpop.permute.xlu0 %7666
    %7668 = vrot.lane.b32.xlu0 %v7501, 64
    %v7669 = vpop.permute.xlu0 %7668
    %7670 = vrot.lane.b32.xlu0 %v7502, 64
    %v7671 = vpop.permute.xlu0 %7670
    %7672 = vrot.lane.b32.xlu0 %v7503, 64
    %v7673 = vpop.permute.xlu0 %7672
    %7674 = vrot.lane.b32.xlu0 %v7504, 64
    %v7675 = vpop.permute.xlu0 %7674
    %7676 = vrot.lane.b32.xlu0 %v7505, 64
    %v7677 = vpop.permute.xlu0 %7676
    %7678 = vrot.lane.b32.xlu0 %v7506, 64
    %v7679 = vpop.permute.xlu0 %7678
    %7680 = vrot.lane.b32.xlu0 %v7507, 64
    %v7681 = vpop.permute.xlu0 %7680
    %7682 = vrot.lane.b32.xlu0 %v7508, 64
    %v7683 = vpop.permute.xlu0 %7682
    %7684 = vrot.lane.b32.xlu0 %v7509, 64
    %v7685 = vpop.permute.xlu0 %7684
    %7686 = vrot.lane.b32.xlu0 %v7510, 64
    %v7687 = vpop.permute.xlu0 %7686
    %7688 = vrot.lane.b32.xlu0 %v7511, 64
    %v7689 = vpop.permute.xlu0 %7688
    %7690 = vrot.lane.b32.xlu0 %v7512, 64
    %v7691 = vpop.permute.xlu0 %7690
    %7692 = vrot.lane.b32.xlu0 %v7513, 64
    %v7693 = vpop.permute.xlu0 %7692
    %7694 = vrot.lane.b32.xlu0 %v7514, 64
    %v7695 = vpop.permute.xlu0 %7694
    %7696 = vrot.lane.b32.xlu0 %v7515, 64
    %v7697 = vpop.permute.xlu0 %7696
    %7698 = vrot.lane.b32.xlu0 %v7516, 64
    %v7699 = vpop.permute.xlu0 %7698
    %7700 = vrot.lane.b32.xlu0 %v7517, 64
    %v7701 = vpop.permute.xlu0 %7700
    %7702 = vrot.lane.b32.xlu0 %v7518, 64
    %v7703 = vpop.permute.xlu0 %7702
    %7704 = vrot.lane.b32.xlu0 %v7519, 64
    %v7705 = vpop.permute.xlu0 %7704
    %7706 = vrot.lane.b32.xlu0 %v7520, 64
    %v7707 = vpop.permute.xlu0 %7706
    %7708 = vrot.lane.b32.xlu0 %v7521, 64
    %v7709 = vpop.permute.xlu0 %7708
    %7710 = vrot.lane.b32.xlu0 %v7522, 64
    %v7711 = vpop.permute.xlu0 %7710
    %7712 = vrot.lane.b32.xlu0 %v7523, 64
    %v7713 = vpop.permute.xlu0 %7712
    %7714 = vrot.lane.b32.xlu0 %v7524, 64
    %v7715 = vpop.permute.xlu0 %7714
    %7716 = vrot.lane.b32.xlu0 %v7525, 64
    %v7717 = vpop.permute.xlu0 %7716
    %vm7782 = vcmask 589312
    %7783 = vst.msk [vmem:[#allocation5] sm:$0xff] %vm7782, %v7591
    %7784 = vst.msk [vmem:[#allocation5 + $0x8] sm:$0xff] %vm7782, %v7593
    %7785 = vst.msk [vmem:[#allocation5 + $0x10] sm:$0xff] %vm7782, %v7595
    %7786 = vst.msk [vmem:[#allocation5 + $0x18] sm:$0xff] %vm7782, %v7597
    %7787 = vst.msk [vmem:[#allocation5 + $0x20] sm:$0xff] %vm7782, %v7599
    %7788 = vst.msk [vmem:[#allocation5 + $0x28] sm:$0xff] %vm7782, %v7601
    %7789 = vst.msk [vmem:[#allocation5 + $0x30] sm:$0xff] %vm7782, %v7603
    %7790 = vst.msk [vmem:[#allocation5 + $0x38] sm:$0xff] %vm7782, %v7605
    %7791 = vst.msk [vmem:[#allocation5 + $0x40] sm:$0xff] %vm7782, %v7607
    %7792 = vst.msk [vmem:[#allocation5 + $0x48] sm:$0xff] %vm7782, %v7609
    %7793 = vst.msk [vmem:[#allocation5 + $0x50] sm:$0xff] %vm7782, %v7611
    %7794 = vst.msk [vmem:[#allocation5 + $0x58] sm:$0xff] %vm7782, %v7613
    %7795 = vst.msk [vmem:[#allocation5 + $0x60] sm:$0xff] %vm7782, %v7615
    %7796 = vst.msk [vmem:[#allocation5 + $0x68] sm:$0xff] %vm7782, %v7617
    %7797 = vst.msk [vmem:[#allocation5 + $0x70] sm:$0xff] %vm7782, %v7619
    %7798 = vst.msk [vmem:[#allocation5 + $0x78] sm:$0xff] %vm7782, %v7621
    %7799 = vst.msk [vmem:[#allocation5 + $0x80] sm:$0xff] %vm7782, %v7623
    %7800 = vst.msk [vmem:[#allocation5 + $0x88] sm:$0xff] %vm7782, %v7625
    %7801 = vst.msk [vmem:[#allocation5 + $0x90] sm:$0xff] %vm7782, %v7627
    %7802 = vst.msk [vmem:[#allocation5 + $0x98] sm:$0xff] %vm7782, %v7629
    %7803 = vst.msk [vmem:[#allocation5 + $0xa0] sm:$0xff] %vm7782, %v7631
    %7804 = vst.msk [vmem:[#allocation5 + $0xa8] sm:$0xff] %vm7782, %v7633
    %7805 = vst.msk [vmem:[#allocation5 + $0xb0] sm:$0xff] %vm7782, %v7635
    %7806 = vst.msk [vmem:[#allocation5 + $0xb8] sm:$0xff] %vm7782, %v7637
    %7807 = vst.msk [vmem:[#allocation5 + $0xc0] sm:$0xff] %vm7782, %v7639
    %7808 = vst.msk [vmem:[#allocation5 + $0xc8] sm:$0xff] %vm7782, %v7641
    %7809 = vst.msk [vmem:[#allocation5 + $0xd0] sm:$0xff] %vm7782, %v7643
    %7810 = vst.msk [vmem:[#allocation5 + $0xd8] sm:$0xff] %vm7782, %v7645
    %7811 = vst.msk [vmem:[#allocation5 + $0xe0] sm:$0xff] %vm7782, %v7647
    %7812 = vst.msk [vmem:[#allocation5 + $0xe8] sm:$0xff] %vm7782, %v7649
    %7813 = vst.msk [vmem:[#allocation5 + $0xf0] sm:$0xff] %vm7782, %v7651
    %7814 = vst.msk [vmem:[#allocation5 + $0xf8] sm:$0xff] %vm7782, %v7653
    %7815 = vst.msk [vmem:[#allocation5 + $0x100] sm:$0xff] %vm7782, %v7655
    %7816 = vst.msk [vmem:[#allocation5 + $0x108] sm:$0xff] %vm7782, %v7657
    %7817 = vst.msk [vmem:[#allocation5 + $0x110] sm:$0xff] %vm7782, %v7659
    %7818 = vst.msk [vmem:[#allocation5 + $0x118] sm:$0xff] %vm7782, %v7661
    %7819 = vst.msk [vmem:[#allocation5 + $0x120] sm:$0xff] %vm7782, %v7663
    %7820 = vst.msk [vmem:[#allocation5 + $0x128] sm:$0xff] %vm7782, %v7665
    %7821 = vst.msk [vmem:[#allocation5 + $0x130] sm:$0xff] %vm7782, %v7667
    %7822 = vst.msk [vmem:[#allocation5 + $0x138] sm:$0xff] %vm7782, %v7669
    %7823 = vst.msk [vmem:[#allocation5 + $0x140] sm:$0xff] %vm7782, %v7671
    %7824 = vst.msk [vmem:[#allocation5 + $0x148] sm:$0xff] %vm7782, %v7673
    %7825 = vst.msk [vmem:[#allocation5 + $0x150] sm:$0xff] %vm7782, %v7675
    %7826 = vst.msk [vmem:[#allocation5 + $0x158] sm:$0xff] %vm7782, %v7677
    %7827 = vst.msk [vmem:[#allocation5 + $0x160] sm:$0xff] %vm7782, %v7679
    %7828 = vst.msk [vmem:[#allocation5 + $0x168] sm:$0xff] %vm7782, %v7681
    %7829 = vst.msk [vmem:[#allocation5 + $0x170] sm:$0xff] %vm7782, %v7683
    %7830 = vst.msk [vmem:[#allocation5 + $0x178] sm:$0xff] %vm7782, %v7685
    %7831 = vst.msk [vmem:[#allocation5 + $0x180] sm:$0xff] %vm7782, %v7687
    %7832 = vst.msk [vmem:[#allocation5 + $0x188] sm:$0xff] %vm7782, %v7689
    %7833 = vst.msk [vmem:[#allocation5 + $0x190] sm:$0xff] %vm7782, %v7691
    %7834 = vst.msk [vmem:[#allocation5 + $0x198] sm:$0xff] %vm7782, %v7693
    %7835 = vst.msk [vmem:[#allocation5 + $0x1a0] sm:$0xff] %vm7782, %v7695
    %7836 = vst.msk [vmem:[#allocation5 + $0x1a8] sm:$0xff] %vm7782, %v7697
    %7837 = vst.msk [vmem:[#allocation5 + $0x1b0] sm:$0xff] %vm7782, %v7699
    %7838 = vst.msk [vmem:[#allocation5 + $0x1b8] sm:$0xff] %vm7782, %v7701
    %7839 = vst.msk [vmem:[#allocation5 + $0x1c0] sm:$0xff] %vm7782, %v7703
    %7840 = vst.msk [vmem:[#allocation5 + $0x1c8] sm:$0xff] %vm7782, %v7705
    %7841 = vst.msk [vmem:[#allocation5 + $0x1d0] sm:$0xff] %vm7782, %v7707
    %7842 = vst.msk [vmem:[#allocation5 + $0x1d8] sm:$0xff] %vm7782, %v7709
    %7843 = vst.msk [vmem:[#allocation5 + $0x1e0] sm:$0xff] %vm7782, %v7711
    %7844 = vst.msk [vmem:[#allocation5 + $0x1e8] sm:$0xff] %vm7782, %v7713
    %7845 = vst.msk [vmem:[#allocation5 + $0x1f0] sm:$0xff] %vm7782, %v7715
    %7846 = vst.msk [vmem:[#allocation5 + $0x1f8] sm:$0xff] %vm7782, %v7717
    %v7847 = vld [vmem:[#allocation5] sm:$0xff]
    %v7848 = vld [vmem:[#allocation5 + $0x8] sm:$0xff]
    %v7849 = vld [vmem:[#allocation5 + $0x10] sm:$0xff]
    %v7850 = vld [vmem:[#allocation5 + $0x18] sm:$0xff]
    %v7851 = vld [vmem:[#allocation5 + $0x20] sm:$0xff]
    %v7852 = vld [vmem:[#allocation5 + $0x28] sm:$0xff]
    %v7853 = vld [vmem:[#allocation5 + $0x30] sm:$0xff]
    %v7854 = vld [vmem:[#allocation5 + $0x38] sm:$0xff]
    %v7855 = vld [vmem:[#allocation5 + $0x40] sm:$0xff]
    %v7856 = vld [vmem:[#allocation5 + $0x48] sm:$0xff]
    %v7857 = vld [vmem:[#allocation5 + $0x50] sm:$0xff]
    %v7858 = vld [vmem:[#allocation5 + $0x58] sm:$0xff]
    %v7859 = vld [vmem:[#allocation5 + $0x60] sm:$0xff]
    %v7860 = vld [vmem:[#allocation5 + $0x68] sm:$0xff]
    %v7861 = vld [vmem:[#allocation5 + $0x70] sm:$0xff]
    %v7862 = vld [vmem:[#allocation5 + $0x78] sm:$0xff]
    %v7863 = vld [vmem:[#allocation5 + $0x80] sm:$0xff]
    %v7864 = vld [vmem:[#allocation5 + $0x88] sm:$0xff]
    %v7865 = vld [vmem:[#allocation5 + $0x90] sm:$0xff]
    %v7866 = vld [vmem:[#allocation5 + $0x98] sm:$0xff]
    %v7867 = vld [vmem:[#allocation5 + $0xa0] sm:$0xff]
    %v7868 = vld [vmem:[#allocation5 + $0xa8] sm:$0xff]
    %v7869 = vld [vmem:[#allocation5 + $0xb0] sm:$0xff]
    %v7870 = vld [vmem:[#allocation5 + $0xb8] sm:$0xff]
    %v7871 = vld [vmem:[#allocation5 + $0xc0] sm:$0xff]
    %v7872 = vld [vmem:[#allocation5 + $0xc8] sm:$0xff]
    %v7873 = vld [vmem:[#allocation5 + $0xd0] sm:$0xff]
    %v7874 = vld [vmem:[#allocation5 + $0xd8] sm:$0xff]
    %v7875 = vld [vmem:[#allocation5 + $0xe0] sm:$0xff]
    %v7876 = vld [vmem:[#allocation5 + $0xe8] sm:$0xff]
    %v7877 = vld [vmem:[#allocation5 + $0xf0] sm:$0xff]
    %v7878 = vld [vmem:[#allocation5 + $0xf8] sm:$0xff]
    %v7879 = vld [vmem:[#allocation5 + $0x100] sm:$0xff]
    %v7880 = vld [vmem:[#allocation5 + $0x108] sm:$0xff]
    %v7881 = vld [vmem:[#allocation5 + $0x110] sm:$0xff]
    %v7882 = vld [vmem:[#allocation5 + $0x118] sm:$0xff]
    %v7883 = vld [vmem:[#allocation5 + $0x120] sm:$0xff]
    %v7884 = vld [vmem:[#allocation5 + $0x128] sm:$0xff]
    %v7885 = vld [vmem:[#allocation5 + $0x130] sm:$0xff]
    %v7886 = vld [vmem:[#allocation5 + $0x138] sm:$0xff]
    %v7887 = vld [vmem:[#allocation5 + $0x140] sm:$0xff]
    %v7888 = vld [vmem:[#allocation5 + $0x148] sm:$0xff]
    %v7889 = vld [vmem:[#allocation5 + $0x150] sm:$0xff]
    %v7890 = vld [vmem:[#allocation5 + $0x158] sm:$0xff]
    %v7891 = vld [vmem:[#allocation5 + $0x160] sm:$0xff]
    %v7892 = vld [vmem:[#allocation5 + $0x168] sm:$0xff]
    %v7893 = vld [vmem:[#allocation5 + $0x170] sm:$0xff]
    %v7894 = vld [vmem:[#allocation5 + $0x178] sm:$0xff]
    %v7895 = vld [vmem:[#allocation5 + $0x180] sm:$0xff]
    %v7896 = vld [vmem:[#allocation5 + $0x188] sm:$0xff]
    %v7897 = vld [vmem:[#allocation5 + $0x190] sm:$0xff]
    %v7898 = vld [vmem:[#allocation5 + $0x198] sm:$0xff]
    %v7899 = vld [vmem:[#allocation5 + $0x1a0] sm:$0xff]
    %v7900 = vld [vmem:[#allocation5 + $0x1a8] sm:$0xff]
    %v7901 = vld [vmem:[#allocation5 + $0x1b0] sm:$0xff]
    %v7902 = vld [vmem:[#allocation5 + $0x1b8] sm:$0xff]
    %v7903 = vld [vmem:[#allocation5 + $0x1c0] sm:$0xff]
    %v7904 = vld [vmem:[#allocation5 + $0x1c8] sm:$0xff]
    %v7905 = vld [vmem:[#allocation5 + $0x1d0] sm:$0xff]
    %v7906 = vld [vmem:[#allocation5 + $0x1d8] sm:$0xff]
    %v7907 = vld [vmem:[#allocation5 + $0x1e0] sm:$0xff]
    %v7908 = vld [vmem:[#allocation5 + $0x1e8] sm:$0xff]
    %v7909 = vld [vmem:[#allocation5 + $0x1f0] sm:$0xff]
    %v7910 = vld [vmem:[#allocation5 + $0x1f8] sm:$0xff]
    %v7911 = vpack.c.bf16 %v7848, %v7847
    %v7912 = vpack.c.bf16 %v7850, %v7849
    %v7913 = vpack.c.bf16 %v7852, %v7851
    %v7914 = vpack.c.bf16 %v7854, %v7853
    %v7915 = vpack.c.bf16 %v7856, %v7855
    %v7916 = vpack.c.bf16 %v7858, %v7857
    %v7917 = vpack.c.bf16 %v7860, %v7859
    %v7918 = vpack.c.bf16 %v7862, %v7861
    %v7919 = vpack.c.bf16 %v7864, %v7863
    %v7920 = vpack.c.bf16 %v7866, %v7865
    %v7921 = vpack.c.bf16 %v7868, %v7867
    %v7922 = vpack.c.bf16 %v7870, %v7869
    %v7923 = vpack.c.bf16 %v7872, %v7871
    %v7924 = vpack.c.bf16 %v7874, %v7873
    %v7925 = vpack.c.bf16 %v7876, %v7875
    %v7926 = vpack.c.bf16 %v7878, %v7877
    %v7927 = vpack.c.bf16 %v7880, %v7879
    %v7928 = vpack.c.bf16 %v7882, %v7881
    %v7929 = vpack.c.bf16 %v7884, %v7883
    %v7930 = vpack.c.bf16 %v7886, %v7885
    %v7931 = vpack.c.bf16 %v7888, %v7887
    %v7932 = vpack.c.bf16 %v7890, %v7889
    %v7933 = vpack.c.bf16 %v7892, %v7891
    %v7934 = vpack.c.bf16 %v7894, %v7893
    %v7935 = vpack.c.bf16 %v7896, %v7895
    %v7936 = vpack.c.bf16 %v7898, %v7897
    %v7937 = vpack.c.bf16 %v7900, %v7899
    %v7938 = vpack.c.bf16 %v7902, %v7901
    %v7939 = vpack.c.bf16 %v7904, %v7903
    %v7940 = vpack.c.bf16 %v7906, %v7905
    %v7941 = vpack.c.bf16 %v7908, %v7907
    %v7942 = vpack.c.bf16 %v7910, %v7909
    %v7943 = vld [vmem:[%s2] sm:$0xf]
    %v7944 = vld [vmem:[%s2 + $0x4] sm:$0xf]
    %v7945 = vld [vmem:[%s2 + $0x8] sm:$0xf]
    %v7946 = vld [vmem:[%s2 + $0xc] sm:$0xf]
    %v7947 = vld [vmem:[%s2 + $0x10] sm:$0xf]
    %v7948 = vld [vmem:[%s2 + $0x14] sm:$0xf]
    %v7949 = vld [vmem:[%s2 + $0x18] sm:$0xf]
    %v7950 = vld [vmem:[%s2 + $0x1c] sm:$0xf]
    %v7951 = vld [vmem:[%s2 + $0x20] sm:$0xf]
    %v7961 = vunpack.c.l.b16 %v7943
    %v7962 = vunpack.c.l.b16 %v7944
    %v7963 = vunpack.c.l.b16 %v7945
    %v7964 = vunpack.c.l.b16 %v7946
    %v7965 = vunpack.c.l.b16 %v7947
    %v7966 = vunpack.c.l.b16 %v7948
    %v7967 = vunpack.c.l.b16 %v7949
    %v7968 = vunpack.c.l.b16 %v7950
    %v7969 = vunpack.c.l.b16 %v7951
    %v7970 = vpack.c.b16 %v7962, %v7961
    %v7971 = vpack.c.b16 %v7964, %v7963
    %v7972 = vpack.c.b16 %v7966, %v7965
    %v7973 = vpack.c.b16 %v7968, %v7967
    %v7974 = vpack.c.b16 %v7969, %v7969
    %vm7979 = vcmask 588800
    %v7981 = vsel %vm7979, %v7911, 0
    %v7984 = vsel %vm7979, %v7912, 0
    %v7987 = vsel %vm7979, %v7913, 0
    %v7990 = vsel %vm7979, %v7914, 0
    %v7993 = vsel %vm7979, %v7915, 0
    %v7996 = vsel %vm7979, %v7916, 0
    %v7999 = vsel %vm7979, %v7917, 0
    %v8002 = vsel %vm7979, %v7918, 0
    %v8005 = vsel %vm7979, %v7919, 0
    %v8008 = vsel %vm7979, %v7920, 0
    %v8011 = vsel %vm7979, %v7921, 0
    %v8014 = vsel %vm7979, %v7922, 0
    %v8017 = vsel %vm7979, %v7923, 0
    %v8020 = vsel %vm7979, %v7924, 0
    %v8023 = vsel %vm7979, %v7925, 0
    %v8026 = vsel %vm7979, %v7926, 0
    %v8029 = vsel %vm7979, %v7927, 0
    %v8032 = vsel %vm7979, %v7928, 0
    %v8035 = vsel %vm7979, %v7929, 0
    %v8038 = vsel %vm7979, %v7930, 0
    %v8041 = vsel %vm7979, %v7931, 0
    %v8044 = vsel %vm7979, %v7932, 0
    %v8047 = vsel %vm7979, %v7933, 0
    %v8050 = vsel %vm7979, %v7934, 0
    %v8053 = vsel %vm7979, %v7935, 0
    %v8056 = vsel %vm7979, %v7936, 0
    %v8059 = vsel %vm7979, %v7937, 0
    %v8062 = vsel %vm7979, %v7938, 0
    %v8065 = vsel %vm7979, %v7939, 0
    %v8068 = vsel %vm7979, %v7940, 0
    %v8071 = vsel %vm7979, %v7941, 0
    %v8074 = vsel %vm7979, %v7942, 0
    %vm8076 = vcmask 1043456
    %v8078 = vsel %vm8076, %v7974, 0
    %8080 = vmatprep.subr.bf16.mxu0 0
    %8081 = vmatpush1.bf16.msra.mxu0 0
    %8082 = vmatprep.subr.bf16.mxu0 0
    %8083 = vmatpush1.bf16.msra.mxu0 0
    %8084 = vmatprep.subr.bf16.mxu0 0
    %8085 = vmatpush1.bf16.msra.mxu0 0
    %8086 = vmatprep.subr.bf16.mxu0 0
    %8087 = vmatpush1.bf16.msra.mxu0 %v8078
    %8088 = vmatprep.subr.bf16.mxu0 0
    %8089 = vmatpush1.bf16.msra.mxu0 %v7973
    %8090 = vmatprep.subr.bf16.mxu0 0
    %8091 = vmatpush1.bf16.msra.mxu0 %v7972
    %8092 = vmatprep.subr.bf16.mxu0 0
    %8093 = vmatpush1.bf16.msra.mxu0 %v7971
    %8094 = vmatprep.subr.bf16.mxu0 0
    %8095 = vmatpush1.bf16.msra.mxu0 %v7970
    %8096 = vmatprep.subr.bf16.mxu0 0
    %8097 = vmatpush2.bf16.msra.mxu0 0
    %8098 = vmatprep.subr.bf16.mxu0 0
    %8099 = vmatpush2.bf16.msra.mxu0 0
    %8100 = vmatprep.subr.bf16.mxu0 0
    %8101 = vmatpush2.bf16.msra.mxu0 0
    %8102 = vmatprep.subr.bf16.mxu0 0
    %8103 = vmatpush2.bf16.msra.mxu0 0
    %8104 = vmatprep.subr.bf16.mxu0 0
    %8105 = vmatpush2.bf16.msra.mxu0 0
    %8106 = vmatprep.subr.bf16.mxu0 0
    %8107 = vmatpush2.bf16.msra.mxu0 0
    %8108 = vmatprep.subr.bf16.mxu0 0
    %8109 = vmatpush2.bf16.msra.mxu0 0
    %8110 = vmatprep.subr.bf16.mxu0 0
    %8111 = vmatpush2.bf16.msra.mxu0 0
    %8112 = vmatprep.mubr.bf16.mxu0 0
    %8113 = vmatmul.mubr.bf16.gmra.mxu0 %v7981
    %v8114 = vpop.f32.mrf.mxu0
    %v8115 = vadd.f32 0.0, %v8114
    %v8116 = vpop.f32.mrf.mxu0
    %v8117 = vpop.f32.mrf.mxu0
    %v8118 = vadd.f32 0.0, %v8117
    %v8119 = vpop.f32.mrf.mxu0
    %8120 = vmatprep.mubr.bf16.mxu0 0
    %8121 = vmatmul.mubr.bf16.gmra.mxu0 %v7984
    %v8122 = vpop.f32.mrf.mxu0
    %v8123 = vadd.f32 0.0, %v8122
    %v8124 = vpop.f32.mrf.mxu0
    %v8125 = vpop.f32.mrf.mxu0
    %v8126 = vadd.f32 0.0, %v8125
    %v8127 = vpop.f32.mrf.mxu0
    %8128 = vmatprep.mubr.bf16.mxu0 0
    %8129 = vmatmul.mubr.bf16.gmra.mxu0 %v7987
    %v8130 = vpop.f32.mrf.mxu0
    %v8131 = vadd.f32 0.0, %v8130
    %v8132 = vpop.f32.mrf.mxu0
    %v8133 = vpop.f32.mrf.mxu0
    %v8134 = vadd.f32 0.0, %v8133
    %v8135 = vpop.f32.mrf.mxu0
    %8136 = vmatprep.mubr.bf16.mxu0 0
    %8137 = vmatmul.mubr.bf16.gmra.mxu0 %v7990
    %v8138 = vpop.f32.mrf.mxu0
    %v8139 = vadd.f32 0.0, %v8138
    %v8140 = vpop.f32.mrf.mxu0
    %v8141 = vpop.f32.mrf.mxu0
    %v8142 = vadd.f32 0.0, %v8141
    %v8143 = vpop.f32.mrf.mxu0
    %8144 = vmatprep.mubr.bf16.mxu0 0
    %8145 = vmatmul.mubr.bf16.gmra.mxu0 %v7993
    %v8146 = vpop.f32.mrf.mxu0
    %v8147 = vadd.f32 0.0, %v8146
    %v8148 = vpop.f32.mrf.mxu0
    %v8149 = vpop.f32.mrf.mxu0
    %v8150 = vadd.f32 0.0, %v8149
    %v8151 = vpop.f32.mrf.mxu0
    %8152 = vmatprep.mubr.bf16.mxu0 0
    %8153 = vmatmul.mubr.bf16.gmra.mxu0 %v7996
    %v8154 = vpop.f32.mrf.mxu0
    %v8155 = vadd.f32 0.0, %v8154
    %v8156 = vpop.f32.mrf.mxu0
    %v8157 = vpop.f32.mrf.mxu0
    %v8158 = vadd.f32 0.0, %v8157
    %v8159 = vpop.f32.mrf.mxu0
    %8160 = vmatprep.mubr.bf16.mxu0 0
    %8161 = vmatmul.mubr.bf16.gmra.mxu0 %v7999
    %v8162 = vpop.f32.mrf.mxu0
    %v8163 = vadd.f32 0.0, %v8162
    %v8164 = vpop.f32.mrf.mxu0
    %v8165 = vpop.f32.mrf.mxu0
    %v8166 = vadd.f32 0.0, %v8165
    %v8167 = vpop.f32.mrf.mxu0
    %8168 = vmatprep.mubr.bf16.mxu0 0
    %8169 = vmatmul.mubr.bf16.gmra.mxu0 %v8002
    %v8170 = vpop.f32.mrf.mxu0
    %v8171 = vadd.f32 0.0, %v8170
    %v8172 = vpop.f32.mrf.mxu0
    %v8173 = vpop.f32.mrf.mxu0
    %v8174 = vadd.f32 0.0, %v8173
    %v8175 = vpop.f32.mrf.mxu0
    %8176 = vmatprep.mubr.bf16.mxu0 0
    %8177 = vmatmul.mubr.bf16.gmra.mxu0 %v8005
    %v8178 = vpop.f32.mrf.mxu0
    %v8179 = vadd.f32 0.0, %v8178
    %v8180 = vpop.f32.mrf.mxu0
    %v8181 = vpop.f32.mrf.mxu0
    %v8182 = vadd.f32 0.0, %v8181
    %v8183 = vpop.f32.mrf.mxu0
    %8184 = vmatprep.mubr.bf16.mxu0 0
    %8185 = vmatmul.mubr.bf16.gmra.mxu0 %v8008
    %v8186 = vpop.f32.mrf.mxu0
    %v8187 = vadd.f32 0.0, %v8186
    %v8188 = vpop.f32.mrf.mxu0
    %v8189 = vpop.f32.mrf.mxu0
    %v8190 = vadd.f32 0.0, %v8189
    %v8191 = vpop.f32.mrf.mxu0
    %8192 = vmatprep.mubr.bf16.mxu0 0
    %8193 = vmatmul.mubr.bf16.gmra.mxu0 %v8011
    %v8194 = vpop.f32.mrf.mxu0
    %v8195 = vadd.f32 0.0, %v8194
    %v8196 = vpop.f32.mrf.mxu0
    %v8197 = vpop.f32.mrf.mxu0
    %v8198 = vadd.f32 0.0, %v8197
    %v8199 = vpop.f32.mrf.mxu0
    %8200 = vmatprep.mubr.bf16.mxu0 0
    %8201 = vmatmul.mubr.bf16.gmra.mxu0 %v8014
    %v8202 = vpop.f32.mrf.mxu0
    %v8203 = vadd.f32 0.0, %v8202
    %v8204 = vpop.f32.mrf.mxu0
    %v8205 = vpop.f32.mrf.mxu0
    %v8206 = vadd.f32 0.0, %v8205
    %v8207 = vpop.f32.mrf.mxu0
    %8208 = vmatprep.mubr.bf16.mxu0 0
    %8209 = vmatmul.mubr.bf16.gmra.mxu0 %v8017
    %v8210 = vpop.f32.mrf.mxu0
    %v8211 = vadd.f32 0.0, %v8210
    %v8212 = vpop.f32.mrf.mxu0
    %v8213 = vpop.f32.mrf.mxu0
    %v8214 = vadd.f32 0.0, %v8213
    %v8215 = vpop.f32.mrf.mxu0
    %8216 = vmatprep.mubr.bf16.mxu0 0
    %8217 = vmatmul.mubr.bf16.gmra.mxu0 %v8020
    %v8218 = vpop.f32.mrf.mxu0
    %v8219 = vadd.f32 0.0, %v8218
    %v8220 = vpop.f32.mrf.mxu0
    %v8221 = vpop.f32.mrf.mxu0
    %v8222 = vadd.f32 0.0, %v8221
    %v8223 = vpop.f32.mrf.mxu0
    %8224 = vmatprep.mubr.bf16.mxu0 0
    %8225 = vmatmul.mubr.bf16.gmra.mxu0 %v8023
    %v8226 = vpop.f32.mrf.mxu0
    %v8227 = vadd.f32 0.0, %v8226
    %v8228 = vpop.f32.mrf.mxu0
    %v8229 = vpop.f32.mrf.mxu0
    %v8230 = vadd.f32 0.0, %v8229
    %v8231 = vpop.f32.mrf.mxu0
    %8232 = vmatprep.mubr.bf16.mxu0 0
    %8233 = vmatmul.mubr.bf16.gmra.mxu0 %v8026
    %v8234 = vpop.f32.mrf.mxu0
    %v8235 = vadd.f32 0.0, %v8234
    %v8236 = vpop.f32.mrf.mxu0
    %v8237 = vpop.f32.mrf.mxu0
    %v8238 = vadd.f32 0.0, %v8237
    %v8239 = vpop.f32.mrf.mxu0
    %8240 = vmatprep.mubr.bf16.mxu0 0
    %8241 = vmatmul.mubr.bf16.gmra.mxu0 %v8029
    %v8242 = vpop.f32.mrf.mxu0
    %v8243 = vadd.f32 0.0, %v8242
    %v8244 = vpop.f32.mrf.mxu0
    %v8245 = vpop.f32.mrf.mxu0
    %v8246 = vadd.f32 0.0, %v8245
    %v8247 = vpop.f32.mrf.mxu0
    %8248 = vmatprep.mubr.bf16.mxu0 0
    %8249 = vmatmul.mubr.bf16.gmra.mxu0 %v8032
    %v8250 = vpop.f32.mrf.mxu0
    %v8251 = vadd.f32 0.0, %v8250
    %v8252 = vpop.f32.mrf.mxu0
    %v8253 = vpop.f32.mrf.mxu0
    %v8254 = vadd.f32 0.0, %v8253
    %v8255 = vpop.f32.mrf.mxu0
    %8256 = vmatprep.mubr.bf16.mxu0 0
    %8257 = vmatmul.mubr.bf16.gmra.mxu0 %v8035
    %v8258 = vpop.f32.mrf.mxu0
    %v8259 = vadd.f32 0.0, %v8258
    %v8260 = vpop.f32.mrf.mxu0
    %v8261 = vpop.f32.mrf.mxu0
    %v8262 = vadd.f32 0.0, %v8261
    %v8263 = vpop.f32.mrf.mxu0
    %8264 = vmatprep.mubr.bf16.mxu0 0
    %8265 = vmatmul.mubr.bf16.gmra.mxu0 %v8038
    %v8266 = vpop.f32.mrf.mxu0
    %v8267 = vadd.f32 0.0, %v8266
    %v8268 = vpop.f32.mrf.mxu0
    %v8269 = vpop.f32.mrf.mxu0
    %v8270 = vadd.f32 0.0, %v8269
    %v8271 = vpop.f32.mrf.mxu0
    %8272 = vmatprep.mubr.bf16.mxu0 0
    %8273 = vmatmul.mubr.bf16.gmra.mxu0 %v8041
    %v8274 = vpop.f32.mrf.mxu0
    %v8275 = vadd.f32 0.0, %v8274
    %v8276 = vpop.f32.mrf.mxu0
    %v8277 = vpop.f32.mrf.mxu0
    %v8278 = vadd.f32 0.0, %v8277
    %v8279 = vpop.f32.mrf.mxu0
    %8280 = vmatprep.mubr.bf16.mxu0 0
    %8281 = vmatmul.mubr.bf16.gmra.mxu0 %v8044
    %v8282 = vpop.f32.mrf.mxu0
    %v8283 = vadd.f32 0.0, %v8282
    %v8284 = vpop.f32.mrf.mxu0
    %v8285 = vpop.f32.mrf.mxu0
    %v8286 = vadd.f32 0.0, %v8285
    %v8287 = vpop.f32.mrf.mxu0
    %8288 = vmatprep.mubr.bf16.mxu0 0
    %8289 = vmatmul.mubr.bf16.gmra.mxu0 %v8047
    %v8290 = vpop.f32.mrf.mxu0
    %v8291 = vadd.f32 0.0, %v8290
    %v8292 = vpop.f32.mrf.mxu0
    %v8293 = vpop.f32.mrf.mxu0
    %v8294 = vadd.f32 0.0, %v8293
    %v8295 = vpop.f32.mrf.mxu0
    %8296 = vmatprep.mubr.bf16.mxu0 0
    %8297 = vmatmul.mubr.bf16.gmra.mxu0 %v8050
    %v8298 = vpop.f32.mrf.mxu0
    %v8299 = vadd.f32 0.0, %v8298
    %v8300 = vpop.f32.mrf.mxu0
    %v8301 = vpop.f32.mrf.mxu0
    %v8302 = vadd.f32 0.0, %v8301
    %v8303 = vpop.f32.mrf.mxu0
    %8304 = vmatprep.mubr.bf16.mxu0 0
    %8305 = vmatmul.mubr.bf16.gmra.mxu0 %v8053
    %v8306 = vpop.f32.mrf.mxu0
    %v8307 = vadd.f32 0.0, %v8306
    %v8308 = vpop.f32.mrf.mxu0
    %v8309 = vpop.f32.mrf.mxu0
    %v8310 = vadd.f32 0.0, %v8309
    %v8311 = vpop.f32.mrf.mxu0
    %8312 = vmatprep.mubr.bf16.mxu0 0
    %8313 = vmatmul.mubr.bf16.gmra.mxu0 %v8056
    %v8314 = vpop.f32.mrf.mxu0
    %v8315 = vadd.f32 0.0, %v8314
    %v8316 = vpop.f32.mrf.mxu0
    %v8317 = vpop.f32.mrf.mxu0
    %v8318 = vadd.f32 0.0, %v8317
    %v8319 = vpop.f32.mrf.mxu0
    %8320 = vmatprep.mubr.bf16.mxu0 0
    %8321 = vmatmul.mubr.bf16.gmra.mxu0 %v8059
    %v8322 = vpop.f32.mrf.mxu0
    %v8323 = vadd.f32 0.0, %v8322
    %v8324 = vpop.f32.mrf.mxu0
    %v8325 = vpop.f32.mrf.mxu0
    %v8326 = vadd.f32 0.0, %v8325
    %v8327 = vpop.f32.mrf.mxu0
    %8328 = vmatprep.mubr.bf16.mxu0 0
    %8329 = vmatmul.mubr.bf16.gmra.mxu0 %v8062
    %v8330 = vpop.f32.mrf.mxu0
    %v8331 = vadd.f32 0.0, %v8330
    %v8332 = vpop.f32.mrf.mxu0
    %v8333 = vpop.f32.mrf.mxu0
    %v8334 = vadd.f32 0.0, %v8333
    %v8335 = vpop.f32.mrf.mxu0
    %8336 = vmatprep.mubr.bf16.mxu0 0
    %8337 = vmatmul.mubr.bf16.gmra.mxu0 %v8065
    %v8338 = vpop.f32.mrf.mxu0
    %v8339 = vadd.f32 0.0, %v8338
    %v8340 = vpop.f32.mrf.mxu0
    %v8341 = vpop.f32.mrf.mxu0
    %v8342 = vadd.f32 0.0, %v8341
    %v8343 = vpop.f32.mrf.mxu0
    %8344 = vmatprep.mubr.bf16.mxu0 0
    %8345 = vmatmul.mubr.bf16.gmra.mxu0 %v8068
    %v8346 = vpop.f32.mrf.mxu0
    %v8347 = vadd.f32 0.0, %v8346
    %v8348 = vpop.f32.mrf.mxu0
    %v8349 = vpop.f32.mrf.mxu0
    %v8350 = vadd.f32 0.0, %v8349
    %v8351 = vpop.f32.mrf.mxu0
    %8352 = vmatprep.mubr.bf16.mxu0 0
    %8353 = vmatmul.mubr.bf16.gmra.mxu0 %v8071
    %v8354 = vpop.f32.mrf.mxu0
    %v8355 = vadd.f32 0.0, %v8354
    %v8356 = vpop.f32.mrf.mxu0
    %v8357 = vpop.f32.mrf.mxu0
    %v8358 = vadd.f32 0.0, %v8357
    %v8359 = vpop.f32.mrf.mxu0
    %8360 = vmatprep.mubr.bf16.mxu0 0
    %8361 = vmatmul.mubr.bf16.gmra.mxu0 %v8074
    %v8362 = vpop.f32.mrf.mxu0
    %v8363 = vadd.f32 0.0, %v8362
    %v8364 = vpop.f32.mrf.mxu0
    %v8365 = vpop.f32.mrf.mxu0
    %v8366 = vadd.f32 0.0, %v8365
    %v8367 = vpop.f32.mrf.mxu0
    %8368 = vdwg.mxu0
    %v8369 = vadd.f32 %v8115, %v8118
    %v8370 = vadd.f32 %v8369, %v8123
    %v8371 = vadd.f32 %v8370, %v8126
    %v8372 = vadd.f32 %v8371, %v8131
    %v8373 = vadd.f32 %v8372, %v8134
    %v8374 = vadd.f32 %v8373, %v8139
    %v8375 = vadd.f32 %v8374, %v8142
    %v8376 = vadd.f32 %v8375, %v8147
    %v8377 = vadd.f32 %v8376, %v8150
    %v8378 = vadd.f32 %v8377, %v8155
    %v8379 = vadd.f32 %v8378, %v8158
    %v8380 = vadd.f32 %v8379, %v8163
    %v8381 = vadd.f32 %v8380, %v8166
    %v8382 = vadd.f32 %v8381, %v8171
    %v8383 = vadd.f32 %v8382, %v8174
    %v8384 = vadd.f32 %v8383, %v8179
    %v8385 = vadd.f32 %v8384, %v8182
    %v8386 = vadd.f32 %v8385, %v8187
    %v8387 = vadd.f32 %v8386, %v8190
    %v8388 = vadd.f32 %v8387, %v8195
    %v8389 = vadd.f32 %v8388, %v8198
    %v8390 = vadd.f32 %v8389, %v8203
    %v8391 = vadd.f32 %v8390, %v8206
    %v8392 = vadd.f32 %v8391, %v8211
    %v8393 = vadd.f32 %v8392, %v8214
    %v8394 = vadd.f32 %v8393, %v8219
    %v8395 = vadd.f32 %v8394, %v8222
    %v8396 = vadd.f32 %v8395, %v8227
    %v8397 = vadd.f32 %v8396, %v8230
    %v8398 = vadd.f32 %v8397, %v8235
    %v8399 = vadd.f32 %v8398, %v8238
    %v8400 = vadd.f32 %v8399, %v8243
    %v8401 = vadd.f32 %v8400, %v8246
    %v8402 = vadd.f32 %v8401, %v8251
    %v8403 = vadd.f32 %v8402, %v8254
    %v8404 = vadd.f32 %v8403, %v8259
    %v8405 = vadd.f32 %v8404, %v8262
    %v8406 = vadd.f32 %v8405, %v8267
    %v8407 = vadd.f32 %v8406, %v8270
    %v8408 = vadd.f32 %v8407, %v8275
    %v8409 = vadd.f32 %v8408, %v8278
    %v8410 = vadd.f32 %v8409, %v8283
    %v8411 = vadd.f32 %v8410, %v8286
    %v8412 = vadd.f32 %v8411, %v8291
    %v8413 = vadd.f32 %v8412, %v8294
    %v8414 = vadd.f32 %v8413, %v8299
    %v8415 = vadd.f32 %v8414, %v8302
    %v8416 = vadd.f32 %v8415, %v8307
    %v8417 = vadd.f32 %v8416, %v8310
    %v8418 = vadd.f32 %v8417, %v8315
    %v8419 = vadd.f32 %v8418, %v8318
    %v8420 = vadd.f32 %v8419, %v8323
    %v8421 = vadd.f32 %v8420, %v8326
    %v8422 = vadd.f32 %v8421, %v8331
    %v8423 = vadd.f32 %v8422, %v8334
    %v8424 = vadd.f32 %v8423, %v8339
    %v8425 = vadd.f32 %v8424, %v8342
    %v8426 = vadd.f32 %v8425, %v8347
    %v8427 = vadd.f32 %v8426, %v8350
    %v8428 = vadd.f32 %v8427, %v8355
    %v8429 = vadd.f32 %v8428, %v8358
    %v8430 = vadd.f32 %v8429, %v8363
    %v8431 = vadd.f32 %v8430, %v8366
    %v8432 = vrot.slane %v8431, 4
    %v8433 = vadd.f32 %v8431, %v8432
    %v8434 = vrot.slane %v8433, 2
    %v8435 = vadd.f32 %v8433, %v8434
    %v8436 = vrot.slane %v8435, 1
    %v8437 = vadd.f32 %v8435, %v8436
    %v8438 = vmul.f32 %v8115, %v8115
    %v8439 = vmul.f32 %v8118, %v8118
    %v8440 = vmul.f32 %v8123, %v8123
    %v8441 = vmul.f32 %v8126, %v8126
    %v8442 = vmul.f32 %v8131, %v8131
    %v8443 = vmul.f32 %v8134, %v8134
    %v8444 = vmul.f32 %v8139, %v8139
    %v8445 = vmul.f32 %v8142, %v8142
    %v8446 = vmul.f32 %v8147, %v8147
    %v8447 = vmul.f32 %v8150, %v8150
    %v8448 = vmul.f32 %v8155, %v8155
    %v8449 = vmul.f32 %v8158, %v8158
    %v8450 = vmul.f32 %v8163, %v8163
    %v8451 = vmul.f32 %v8166, %v8166
    %v8452 = vmul.f32 %v8171, %v8171
    %v8453 = vmul.f32 %v8174, %v8174
    %v8454 = vmul.f32 %v8179, %v8179
    %v8455 = vmul.f32 %v8182, %v8182
    %v8456 = vmul.f32 %v8187, %v8187
    %v8457 = vmul.f32 %v8190, %v8190
    %v8458 = vmul.f32 %v8195, %v8195
    %v8459 = vmul.f32 %v8198, %v8198
    %v8460 = vmul.f32 %v8203, %v8203
    %v8461 = vmul.f32 %v8206, %v8206
    %v8462 = vmul.f32 %v8211, %v8211
    %v8463 = vmul.f32 %v8214, %v8214
    %v8464 = vmul.f32 %v8219, %v8219
    %v8465 = vmul.f32 %v8222, %v8222
    %v8466 = vmul.f32 %v8227, %v8227
    %v8467 = vmul.f32 %v8230, %v8230
    %v8468 = vmul.f32 %v8235, %v8235
    %v8469 = vmul.f32 %v8238, %v8238
    %v8470 = vmul.f32 %v8243, %v8243
    %v8471 = vmul.f32 %v8246, %v8246
    %v8472 = vmul.f32 %v8251, %v8251
    %v8473 = vmul.f32 %v8254, %v8254
    %v8474 = vmul.f32 %v8259, %v8259
    %v8475 = vmul.f32 %v8262, %v8262
    %v8476 = vmul.f32 %v8267, %v8267
    %v8477 = vmul.f32 %v8270, %v8270
    %v8478 = vmul.f32 %v8275, %v8275
    %v8479 = vmul.f32 %v8278, %v8278
    %v8480 = vmul.f32 %v8283, %v8283
    %v8481 = vmul.f32 %v8286, %v8286
    %v8482 = vmul.f32 %v8291, %v8291
    %v8483 = vmul.f32 %v8294, %v8294
    %v8484 = vmul.f32 %v8299, %v8299
    %v8485 = vmul.f32 %v8302, %v8302
    %v8486 = vmul.f32 %v8307, %v8307
    %v8487 = vmul.f32 %v8310, %v8310
    %v8488 = vmul.f32 %v8315, %v8315
    %v8489 = vmul.f32 %v8318, %v8318
    %v8490 = vmul.f32 %v8323, %v8323
    %v8491 = vmul.f32 %v8326, %v8326
    %v8492 = vmul.f32 %v8331, %v8331
    %v8493 = vmul.f32 %v8334, %v8334
    %v8494 = vmul.f32 %v8339, %v8339
    %v8495 = vmul.f32 %v8342, %v8342
    %v8496 = vmul.f32 %v8347, %v8347
    %v8497 = vmul.f32 %v8350, %v8350
    %v8498 = vmul.f32 %v8355, %v8355
    %v8499 = vmul.f32 %v8358, %v8358
    %v8500 = vmul.f32 %v8363, %v8363
    %v8501 = vmul.f32 %v8366, %v8366
    %v8502 = vadd.f32 %v8438, %v8439
    %v8503 = vadd.f32 %v8502, %v8440
    %v8504 = vadd.f32 %v8503, %v8441
    %v8505 = vadd.f32 %v8504, %v8442
    %v8506 = vadd.f32 %v8505, %v8443
    %v8507 = vadd.f32 %v8506, %v8444
    %v8508 = vadd.f32 %v8507, %v8445
    %v8509 = vadd.f32 %v8508, %v8446
    %v8510 = vadd.f32 %v8509, %v8447
    %v8511 = vadd.f32 %v8510, %v8448
    %v8512 = vadd.f32 %v8511, %v8449
    %v8513 = vadd.f32 %v8512, %v8450
    %v8514 = vadd.f32 %v8513, %v8451
    %v8515 = vadd.f32 %v8514, %v8452
    %v8516 = vadd.f32 %v8515, %v8453
    %v8517 = vadd.f32 %v8516, %v8454
    %v8518 = vadd.f32 %v8517, %v8455
    %v8519 = vadd.f32 %v8518, %v8456
    %v8520 = vadd.f32 %v8519, %v8457
    %v8521 = vadd.f32 %v8520, %v8458
    %v8522 = vadd.f32 %v8521, %v8459
    %v8523 = vadd.f32 %v8522, %v8460
    %v8524 = vadd.f32 %v8523, %v8461
    %v8525 = vadd.f32 %v8524, %v8462
    %v8526 = vadd.f32 %v8525, %v8463
    %v8527 = vadd.f32 %v8526, %v8464
    %v8528 = vadd.f32 %v8527, %v8465
    %v8529 = vadd.f32 %v8528, %v8466
    %v8530 = vadd.f32 %v8529, %v8467
    %v8531 = vadd.f32 %v8530, %v8468
    %v8532 = vadd.f32 %v8531, %v8469
    %v8533 = vadd.f32 %v8532, %v8470
    %v8534 = vadd.f32 %v8533, %v8471
    %v8535 = vadd.f32 %v8534, %v8472
    %v8536 = vadd.f32 %v8535, %v8473
    %v8537 = vadd.f32 %v8536, %v8474
    %v8538 = vadd.f32 %v8537, %v8475
    %v8539 = vadd.f32 %v8538, %v8476
    %v8540 = vadd.f32 %v8539, %v8477
    %v8541 = vadd.f32 %v8540, %v8478
    %v8542 = vadd.f32 %v8541, %v8479
    %v8543 = vadd.f32 %v8542, %v8480
    %v8544 = vadd.f32 %v8543, %v8481
    %v8545 = vadd.f32 %v8544, %v8482
    %v8546 = vadd.f32 %v8545, %v8483
    %v8547 = vadd.f32 %v8546, %v8484
    %v8548 = vadd.f32 %v8547, %v8485
    %v8549 = vadd.f32 %v8548, %v8486
    %v8550 = vadd.f32 %v8549, %v8487
    %v8551 = vadd.f32 %v8550, %v8488
    %v8552 = vadd.f32 %v8551, %v8489
    %v8553 = vadd.f32 %v8552, %v8490
    %v8554 = vadd.f32 %v8553, %v8491
    %v8555 = vadd.f32 %v8554, %v8492
    %v8556 = vadd.f32 %v8555, %v8493
    %v8557 = vadd.f32 %v8556, %v8494
    %v8558 = vadd.f32 %v8557, %v8495
    %v8559 = vadd.f32 %v8558, %v8496
    %v8560 = vadd.f32 %v8559, %v8497
    %v8561 = vadd.f32 %v8560, %v8498
    %v8562 = vadd.f32 %v8561, %v8499
    %v8563 = vadd.f32 %v8562, %v8500
    %v8564 = vadd.f32 %v8563, %v8501
    %v8565 = vrot.slane %v8564, 4
    %v8566 = vadd.f32 %v8564, %v8565
    %v8567 = vrot.slane %v8566, 2
    %v8568 = vadd.f32 %v8566, %v8567
    %v8569 = vrot.slane %v8568, 1
    %v8570 = vadd.f32 %v8568, %v8569
    %v8571 = vmul.f32 %v8437, 0.001953125
    %v8572 = vmul.f32 %v8570, 0.001953125
    %v8573 = vmul.f32 %v8571, %v8571
    %v8574 = vsub.f32 %v8572, %v8573
    %v8575 = vld [vmem:[%s5] sm:$0x1]
    %v8576 = vadd.f32 %v8574, 1e-05
    %v8577 = vrsqrt.pop %v8576
    %v8578 = vmul.f32 %v8575, %v8577
    %v8579 = vld [vmem:[%s6] sm:$0x1]
    %v8580 = vmul.f32 %v8571, %v8578
    %v8581 = vsub.f32 %v8579, %v8580
    %v8583 = vlaneseq
    %v8584 = vshrl.u32 %v8583, 7
    %v8585 = vsub.s32 0, %v8584
    %v8586 = vrot.slane %v8578, %v8585
    %v8588 = vmul.f32 %v8115, %v8586
    %v8589 = vmul.f32 %v8118, %v8586
    %v8590 = vmul.f32 %v8123, %v8586
    %v8591 = vmul.f32 %v8126, %v8586
    %v8592 = vmul.f32 %v8131, %v8586
    %v8593 = vmul.f32 %v8134, %v8586
    %v8594 = vmul.f32 %v8139, %v8586
    %v8595 = vmul.f32 %v8142, %v8586
    %v8596 = vmul.f32 %v8147, %v8586
    %v8597 = vmul.f32 %v8150, %v8586
    %v8598 = vmul.f32 %v8155, %v8586
    %v8599 = vmul.f32 %v8158, %v8586
    %v8600 = vmul.f32 %v8163, %v8586
    %v8601 = vmul.f32 %v8166, %v8586
    %v8602 = vmul.f32 %v8171, %v8586
    %v8603 = vmul.f32 %v8174, %v8586
    %v8604 = vmul.f32 %v8179, %v8586
    %v8605 = vmul.f32 %v8182, %v8586
    %v8606 = vmul.f32 %v8187, %v8586
    %v8607 = vmul.f32 %v8190, %v8586
    %v8608 = vmul.f32 %v8195, %v8586
    %v8609 = vmul.f32 %v8198, %v8586
    %v8610 = vmul.f32 %v8203, %v8586
    %v8611 = vmul.f32 %v8206, %v8586
    %v8612 = vmul.f32 %v8211, %v8586
    %v8613 = vmul.f32 %v8214, %v8586
    %v8614 = vmul.f32 %v8219, %v8586
    %v8615 = vmul.f32 %v8222, %v8586
    %v8616 = vmul.f32 %v8227, %v8586
    %v8617 = vmul.f32 %v8230, %v8586
    %v8618 = vmul.f32 %v8235, %v8586
    %v8619 = vmul.f32 %v8238, %v8586
    %v8620 = vmul.f32 %v8243, %v8586
    %v8621 = vmul.f32 %v8246, %v8586
    %v8622 = vmul.f32 %v8251, %v8586
    %v8623 = vmul.f32 %v8254, %v8586
    %v8624 = vmul.f32 %v8259, %v8586
    %v8625 = vmul.f32 %v8262, %v8586
    %v8626 = vmul.f32 %v8267, %v8586
    %v8627 = vmul.f32 %v8270, %v8586
    %v8628 = vmul.f32 %v8275, %v8586
    %v8629 = vmul.f32 %v8278, %v8586
    %v8630 = vmul.f32 %v8283, %v8586
    %v8631 = vmul.f32 %v8286, %v8586
    %v8632 = vmul.f32 %v8291, %v8586
    %v8633 = vmul.f32 %v8294, %v8586
    %v8634 = vmul.f32 %v8299, %v8586
    %v8635 = vmul.f32 %v8302, %v8586
    %v8636 = vmul.f32 %v8307, %v8586
    %v8637 = vmul.f32 %v8310, %v8586
    %v8638 = vmul.f32 %v8315, %v8586
    %v8639 = vmul.f32 %v8318, %v8586
    %v8640 = vmul.f32 %v8323, %v8586
    %v8641 = vmul.f32 %v8326, %v8586
    %v8642 = vmul.f32 %v8331, %v8586
    %v8643 = vmul.f32 %v8334, %v8586
    %v8644 = vmul.f32 %v8339, %v8586
    %v8645 = vmul.f32 %v8342, %v8586
    %v8646 = vmul.f32 %v8347, %v8586
    %v8647 = vmul.f32 %v8350, %v8586
    %v8648 = vmul.f32 %v8355, %v8586
    %v8649 = vmul.f32 %v8358, %v8586
    %v8650 = vmul.f32 %v8363, %v8586
    %v8651 = vmul.f32 %v8366, %v8586
    %v8653 = vlaneseq
    %v8654 = vshrl.u32 %v8653, 7
    %v8655 = vsub.s32 0, %v8654
    %v8656 = vrot.slane %v8581, %v8655
    %v8658 = vadd.f32 %v8588, %v8656
    %v8659 = vadd.f32 %v8589, %v8656
    %v8660 = vadd.f32 %v8590, %v8656
    %v8661 = vadd.f32 %v8591, %v8656
    %v8662 = vadd.f32 %v8592, %v8656
    %v8663 = vadd.f32 %v8593, %v8656
    %v8664 = vadd.f32 %v8594, %v8656
    %v8665 = vadd.f32 %v8595, %v8656
    %v8666 = vadd.f32 %v8596, %v8656
    %v8667 = vadd.f32 %v8597, %v8656
    %v8668 = vadd.f32 %v8598, %v8656
    %v8669 = vadd.f32 %v8599, %v8656
    %v8670 = vadd.f32 %v8600, %v8656
    %v8671 = vadd.f32 %v8601, %v8656
    %v8672 = vadd.f32 %v8602, %v8656
    %v8673 = vadd.f32 %v8603, %v8656
    %v8674 = vadd.f32 %v8604, %v8656
    %v8675 = vadd.f32 %v8605, %v8656
    %v8676 = vadd.f32 %v8606, %v8656
    %v8677 = vadd.f32 %v8607, %v8656
    %v8678 = vadd.f32 %v8608, %v8656
    %v8679 = vadd.f32 %v8609, %v8656
    %v8680 = vadd.f32 %v8610, %v8656
    %v8681 = vadd.f32 %v8611, %v8656
    %v8682 = vadd.f32 %v8612, %v8656
    %v8683 = vadd.f32 %v8613, %v8656
    %v8684 = vadd.f32 %v8614, %v8656
    %v8685 = vadd.f32 %v8615, %v8656
    %v8686 = vadd.f32 %v8616, %v8656
    %v8687 = vadd.f32 %v8617, %v8656
    %v8688 = vadd.f32 %v8618, %v8656
    %v8689 = vadd.f32 %v8619, %v8656
    %v8690 = vadd.f32 %v8620, %v8656
    %v8691 = vadd.f32 %v8621, %v8656
    %v8692 = vadd.f32 %v8622, %v8656
    %v8693 = vadd.f32 %v8623, %v8656
    %v8694 = vadd.f32 %v8624, %v8656
    %v8695 = vadd.f32 %v8625, %v8656
    %v8696 = vadd.f32 %v8626, %v8656
    %v8697 = vadd.f32 %v8627, %v8656
    %v8698 = vadd.f32 %v8628, %v8656
    %v8699 = vadd.f32 %v8629, %v8656
    %v8700 = vadd.f32 %v8630, %v8656
    %v8701 = vadd.f32 %v8631, %v8656
    %v8702 = vadd.f32 %v8632, %v8656
    %v8703 = vadd.f32 %v8633, %v8656
    %v8704 = vadd.f32 %v8634, %v8656
    %v8705 = vadd.f32 %v8635, %v8656
    %v8706 = vadd.f32 %v8636, %v8656
    %v8707 = vadd.f32 %v8637, %v8656
    %v8708 = vadd.f32 %v8638, %v8656
    %v8709 = vadd.f32 %v8639, %v8656
    %v8710 = vadd.f32 %v8640, %v8656
    %v8711 = vadd.f32 %v8641, %v8656
    %v8712 = vadd.f32 %v8642, %v8656
    %v8713 = vadd.f32 %v8643, %v8656
    %v8714 = vadd.f32 %v8644, %v8656
    %v8715 = vadd.f32 %v8645, %v8656
    %v8716 = vadd.f32 %v8646, %v8656
    %v8717 = vadd.f32 %v8647, %v8656
    %v8718 = vadd.f32 %v8648, %v8656
    %v8719 = vadd.f32 %v8649, %v8656
    %v8720 = vadd.f32 %v8650, %v8656
    %v8721 = vadd.f32 %v8651, %v8656
    %v8722 = vmax.f32 %v8658, 0.0
    %v8723 = vmax.f32 %v8659, 0.0
    %v8724 = vmax.f32 %v8660, 0.0
    %v8725 = vmax.f32 %v8661, 0.0
    %v8726 = vmax.f32 %v8662, 0.0
    %v8727 = vmax.f32 %v8663, 0.0
    %v8728 = vmax.f32 %v8664, 0.0
    %v8729 = vmax.f32 %v8665, 0.0
    %v8730 = vmax.f32 %v8666, 0.0
    %v8731 = vmax.f32 %v8667, 0.0
    %v8732 = vmax.f32 %v8668, 0.0
    %v8733 = vmax.f32 %v8669, 0.0
    %v8734 = vmax.f32 %v8670, 0.0
    %v8735 = vmax.f32 %v8671, 0.0
    %v8736 = vmax.f32 %v8672, 0.0
    %v8737 = vmax.f32 %v8673, 0.0
    %v8738 = vmax.f32 %v8674, 0.0
    %v8739 = vmax.f32 %v8675, 0.0
    %v8740 = vmax.f32 %v8676, 0.0
    %v8741 = vmax.f32 %v8677, 0.0
    %v8742 = vmax.f32 %v8678, 0.0
    %v8743 = vmax.f32 %v8679, 0.0
    %v8744 = vmax.f32 %v8680, 0.0
    %v8745 = vmax.f32 %v8681, 0.0
    %v8746 = vmax.f32 %v8682, 0.0
    %v8747 = vmax.f32 %v8683, 0.0
    %v8748 = vmax.f32 %v8684, 0.0
    %v8749 = vmax.f32 %v8685, 0.0
    %v8750 = vmax.f32 %v8686, 0.0
    %v8751 = vmax.f32 %v8687, 0.0
    %v8752 = vmax.f32 %v8688, 0.0
    %v8753 = vmax.f32 %v8689, 0.0
    %v8754 = vmax.f32 %v8690, 0.0
    %v8755 = vmax.f32 %v8691, 0.0
    %v8756 = vmax.f32 %v8692, 0.0
    %v8757 = vmax.f32 %v8693, 0.0
    %v8758 = vmax.f32 %v8694, 0.0
    %v8759 = vmax.f32 %v8695, 0.0
    %v8760 = vmax.f32 %v8696, 0.0
    %v8761 = vmax.f32 %v8697, 0.0
    %v8762 = vmax.f32 %v8698, 0.0
    %v8763 = vmax.f32 %v8699, 0.0
    %v8764 = vmax.f32 %v8700, 0.0
    %v8765 = vmax.f32 %v8701, 0.0
    %v8766 = vmax.f32 %v8702, 0.0
    %v8767 = vmax.f32 %v8703, 0.0
    %v8768 = vmax.f32 %v8704, 0.0
    %v8769 = vmax.f32 %v8705, 0.0
    %v8770 = vmax.f32 %v8706, 0.0
    %v8771 = vmax.f32 %v8707, 0.0
    %v8772 = vmax.f32 %v8708, 0.0
    %v8773 = vmax.f32 %v8709, 0.0
    %v8774 = vmax.f32 %v8710, 0.0
    %v8775 = vmax.f32 %v8711, 0.0
    %v8776 = vmax.f32 %v8712, 0.0
    %v8777 = vmax.f32 %v8713, 0.0
    %v8778 = vmax.f32 %v8714, 0.0
    %v8779 = vmax.f32 %v8715, 0.0
    %v8780 = vmax.f32 %v8716, 0.0
    %v8781 = vmax.f32 %v8717, 0.0
    %v8782 = vmax.f32 %v8718, 0.0
    %v8783 = vmax.f32 %v8719, 0.0
    %v8784 = vmax.f32 %v8720, 0.0
    %v8785 = vmax.f32 %v8721, 0.0
    %8786 = vst [vmem:[#allocation6] sm:$0xff] %v8722
    %8787 = vst [vmem:[#allocation6 + $0x8] sm:$0xff] %v8723
    %8788 = vst [vmem:[#allocation6 + $0x10] sm:$0xff] %v8724
    %8789 = vst [vmem:[#allocation6 + $0x18] sm:$0xff] %v8725
    %8790 = vst [vmem:[#allocation6 + $0x20] sm:$0xff] %v8726
    %8791 = vst [vmem:[#allocation6 + $0x28] sm:$0xff] %v8727
    %8792 = vst [vmem:[#allocation6 + $0x30] sm:$0xff] %v8728
    %8793 = vst [vmem:[#allocation6 + $0x38] sm:$0xff] %v8729
    %8794 = vst [vmem:[#allocation6 + $0x40] sm:$0xff] %v8730
    %8795 = vst [vmem:[#allocation6 + $0x48] sm:$0xff] %v8731
    %8796 = vst [vmem:[#allocation6 + $0x50] sm:$0xff] %v8732
    %8797 = vst [vmem:[#allocation6 + $0x58] sm:$0xff] %v8733
    %8798 = vst [vmem:[#allocation6 + $0x60] sm:$0xff] %v8734
    %8799 = vst [vmem:[#allocation6 + $0x68] sm:$0xff] %v8735
    %8800 = vst [vmem:[#allocation6 + $0x70] sm:$0xff] %v8736
    %8801 = vst [vmem:[#allocation6 + $0x78] sm:$0xff] %v8737
    %8802 = vst [vmem:[#allocation6 + $0x80] sm:$0xff] %v8738
    %8803 = vst [vmem:[#allocation6 + $0x88] sm:$0xff] %v8739
    %8804 = vst [vmem:[#allocation6 + $0x90] sm:$0xff] %v8740
    %8805 = vst [vmem:[#allocation6 + $0x98] sm:$0xff] %v8741
    %8806 = vst [vmem:[#allocation6 + $0xa0] sm:$0xff] %v8742
    %8807 = vst [vmem:[#allocation6 + $0xa8] sm:$0xff] %v8743
    %8808 = vst [vmem:[#allocation6 + $0xb0] sm:$0xff] %v8744
    %8809 = vst [vmem:[#allocation6 + $0xb8] sm:$0xff] %v8745
    %8810 = vst [vmem:[#allocation6 + $0xc0] sm:$0xff] %v8746
    %8811 = vst [vmem:[#allocation6 + $0xc8] sm:$0xff] %v8747
    %8812 = vst [vmem:[#allocation6 + $0xd0] sm:$0xff] %v8748
    %8813 = vst [vmem:[#allocation6 + $0xd8] sm:$0xff] %v8749
    %8814 = vst [vmem:[#allocation6 + $0xe0] sm:$0xff] %v8750
    %8815 = vst [vmem:[#allocation6 + $0xe8] sm:$0xff] %v8751
    %8816 = vst [vmem:[#allocation6 + $0xf0] sm:$0xff] %v8752
    %8817 = vst [vmem:[#allocation6 + $0xf8] sm:$0xff] %v8753
    %8818 = vst [vmem:[#allocation6 + $0x100] sm:$0xff] %v8754
    %8819 = vst [vmem:[#allocation6 + $0x108] sm:$0xff] %v8755
    %8820 = vst [vmem:[#allocation6 + $0x110] sm:$0xff] %v8756
    %8821 = vst [vmem:[#allocation6 + $0x118] sm:$0xff] %v8757
    %8822 = vst [vmem:[#allocation6 + $0x120] sm:$0xff] %v8758
    %8823 = vst [vmem:[#allocation6 + $0x128] sm:$0xff] %v8759
    %8824 = vst [vmem:[#allocation6 + $0x130] sm:$0xff] %v8760
    %8825 = vst [vmem:[#allocation6 + $0x138] sm:$0xff] %v8761
    %8826 = vst [vmem:[#allocation6 + $0x140] sm:$0xff] %v8762
    %8827 = vst [vmem:[#allocation6 + $0x148] sm:$0xff] %v8763
    %8828 = vst [vmem:[#allocation6 + $0x150] sm:$0xff] %v8764
    %8829 = vst [vmem:[#allocation6 + $0x158] sm:$0xff] %v8765
    %8830 = vst [vmem:[#allocation6 + $0x160] sm:$0xff] %v8766
    %8831 = vst [vmem:[#allocation6 + $0x168] sm:$0xff] %v8767
    %8832 = vst [vmem:[#allocation6 + $0x170] sm:$0xff] %v8768
    %8833 = vst [vmem:[#allocation6 + $0x178] sm:$0xff] %v8769
    %8834 = vst [vmem:[#allocation6 + $0x180] sm:$0xff] %v8770
    %8835 = vst [vmem:[#allocation6 + $0x188] sm:$0xff] %v8771
    %8836 = vst [vmem:[#allocation6 + $0x190] sm:$0xff] %v8772
    %8837 = vst [vmem:[#allocation6 + $0x198] sm:$0xff] %v8773
    %8838 = vst [vmem:[#allocation6 + $0x1a0] sm:$0xff] %v8774
    %8839 = vst [vmem:[#allocation6 + $0x1a8] sm:$0xff] %v8775
    %8840 = vst [vmem:[#allocation6 + $0x1b0] sm:$0xff] %v8776
    %8841 = vst [vmem:[#allocation6 + $0x1b8] sm:$0xff] %v8777
    %8842 = vst [vmem:[#allocation6 + $0x1c0] sm:$0xff] %v8778
    %8843 = vst [vmem:[#allocation6 + $0x1c8] sm:$0xff] %v8779
    %8844 = vst [vmem:[#allocation6 + $0x1d0] sm:$0xff] %v8780
    %8845 = vst [vmem:[#allocation6 + $0x1d8] sm:$0xff] %v8781
    %8846 = vst [vmem:[#allocation6 + $0x1e0] sm:$0xff] %v8782
    %8847 = vst [vmem:[#allocation6 + $0x1e8] sm:$0xff] %v8783
    %8848 = vst [vmem:[#allocation6 + $0x1f0] sm:$0xff] %v8784
    %8849 = vst [vmem:[#allocation6 + $0x1f8] sm:$0xff] %v8785
    // Predicated region
    $region30: #{tpu_custom_call.1} parent=1 // pred_check
      _
    $region31: #{tpu_custom_call.1} parent=1 // pred_check_branch
      %8851 = sbr.rel (0) target = $region33
    $region32: #{tpu_custom_call.1} parent=1 // pred_region
      %s8853 = ssub.s32 8192, 8192
      %8854 = vsyncadd [#allocation7], %s8853
      %s8855 = sshll.u32 [#allocation6], 4
      %s8856 = int_to_ptr.vmem [resolvable:$true] %s8855
      %8861 = dma.vmem_to_hbm [thread:$0]  %s8856, 8192, %s7, [#allocation7], 128, 128, 8
    $region33: #{tpu_custom_call.1} parent=1 // pred_fallthru
      _
    // Predicated region
    $region34: #{tpu_custom_call.1} parent=1 // pred_check
      _
    $region35: #{tpu_custom_call.1} parent=1 // pred_check_branch
      %8863 = sbr.rel (0) target = $region37
    $region36: #{tpu_custom_call.1} parent=1 // pred_region
      %8864 = dma.done [#allocation7], 8192
    $region37: #{tpu_custom_call.1} parent=1 // pred_fallthru
      _
    %8865 = vsyncpa [#allocation7], 1

</llo_original>
